<compile_context>
chip_gen: v5e
topology: v5e:2x2
jax: 0.10.0
libtpu: 0.0.40
codegen_flags: <defaults>
</compile_context>

<pallas_src>
from functools import partial

import numpy as np

import jax
import jax.numpy as jnp
from jax.experimental import pallas as pl
from jax.experimental.pallas import tpu as pltpu

KH = KW = 3      # conv kernel size of the backbone stand-in
LANE = 128       # TPU lane width; head dims are padded to this for dense vregs


# ---------------------------------------------------------------------------
# Fused kernel: backbone conv-pool for TB (x1, x2) pairs + diff head
# ---------------------------------------------------------------------------
def fused_kernel(p_ref, cwt_ref, dm_ref, w1_ref, b1_ref, w2_ref, b2_ref, o_ref):
    # p_ref  : (1, K1, NS)  bf16  lane-dense im2col patches for TB pairs
    #                             (K1 = KH*KW*Cin + 1 bias tap, NS = 2*TB*P,
    #                              column order = (image, pair, position))
    # cwt_ref: (F, K1)      bf16  conv weight (+ bias row), transposed
    # dm_ref : (TB, NS)     f32   +/-1 pool-and-difference matrix
    # w1_ref : (F, LANE)    f32   fc weight * (1/P), zero-padded to 128 lanes
    # b1_ref : (1, LANE)    f32   fc bias, zero-padded
    # w2_ref : (LANE, LANE) f32   fc2 weight, zero-padded
    # b2_ref : (1, LANE)    f32   fc2 bias, zero-padded
    # o_ref  : (1, TB, LANE) f32  lane-dense padded logits for these TB pairs

    # Backbone stand-in: ONE 2D MXU matmul over all TB pairs (bias folded in
    # via the constant-1 tap row), then ReLU.
    aT = jax.lax.dot_general(
        cwt_ref[...], p_ref[0],
        dimension_numbers=(((1,), (0,)), ((), ())),
        preferred_element_type=jnp.float32)                 # (F, NS)
    aT = jnp.maximum(aT, 0.0)

    # Global pool + pairwise difference fused into one MXU matmul with a
    # constant +/-1 matrix (sum pool; 1/P is folded into w1).  M = TB is tiny,
    # so the HIGHEST-precision f32 passes are essentially free.
    d = jax.lax.dot_general(
        dm_ref[...], aT,
        dimension_numbers=(((1,), (1,)), ((), ())),
        precision=jax.lax.Precision.HIGHEST,
        preferred_element_type=jnp.float32)                 # (TB, F)

    # Diff head: s computed once, both relu branches derived from it.
    s = jnp.dot(d, w1_ref[...],
                precision=jax.lax.Precision.HIGHEST,
                preferred_element_type=jnp.float32)         # (TB, LANE)
    b1 = b1_ref[...]
    h = 0.5 * (jnp.maximum(s + b1, 0.0) + jnp.maximum(-s + b1, 0.0))
    o_ref[0] = (jnp.dot(h, w2_ref[...],
                        precision=jax.lax.Precision.HIGHEST,
                        preferred_element_type=jnp.float32)
                + b2_ref[...])


# ---------------------------------------------------------------------------
# Wrapper helpers
# ---------------------------------------------------------------------------
def _pad_lanes(w, rows, cols):
    out = jnp.zeros((rows, cols), jnp.float32)
    return out.at[:w.shape[0], :w.shape[1]].set(w.astype(jnp.float32))


def prepare_params(params, image_hw):
    """One-time parameter prep (hoisted out of the per-call forward)."""
    H, W = image_hw
    P = (H - KH + 1) * (W - KW + 1)
    Kc = KH * KW * params["conv_w"].shape[2]
    F = params["conv_w"].shape[-1]

    cw = params["conv_w"].reshape(Kc, F)
    cwb = jnp.concatenate([cw, params["conv_b"].reshape(1, F)], axis=0)  # (K+1, F)
    return {
        "cwt": jnp.transpose(cwb).astype(jnp.bfloat16),                  # (F, K+1)
        "w1": _pad_lanes(params["fc_w"] * (1.0 / P), F, LANE),           # 1/P folded
        "b1": _pad_lanes(params["fc_b"].reshape(1, -1), 1, LANE),
        "w2": _pad_lanes(params["fc2_w"], LANE, LANE),
        "b2": _pad_lanes(params["fc2_b"].reshape(1, -1), 1, LANE),
    }


def _pick_tb(batch, cap=16):
    """Largest divisor of batch <= cap that keeps >= 2 grid steps (v7x 2 TCs)."""
    limit = max(1, min(cap, batch // 2 if batch >= 2 else 1))
    tb = 1
    for t in range(1, limit + 1):
        if batch % t == 0:
            tb = t
    return tb


def _im2col(x):
    """(B, C, H, W) -> (B, KH*KW*C, Ho*Wo), tap rows ordered (di, dj, c)."""
    Bn, C, Hn, Wn = x.shape
    Ho, Wo = Hn - KH + 1, Wn - KW + 1
    taps = [x[:, :, di:di + Ho, dj:dj + Wo].reshape(Bn, C, Ho * Wo)
            for di in range(KH) for dj in range(KW)]        # each (B, C, P)
    p = jnp.stack(taps, axis=1)                             # (B, 9, C, P)
    return p.reshape(Bn, KH * KW * C, Ho * Wo)


def _group_pairs(p, tb):
    """(B, K, P) -> (G, K, tb*P): tb consecutive pairs share one grid step."""
    Bn, Kn, Pn = p.shape
    g = Bn // tb
    return (p.reshape(g, tb, Kn, Pn)
             .transpose(0, 2, 1, 3)
             .reshape(g, Kn, tb * Pn))


@partial(jax.jit, static_argnames=("out_dim",))
def turtle_diff_conv_pool(x1_nchw, x2_nchw, prep, *, out_dim=2):
    B, C, H, W = x1_nchw.shape
    P = (H - KH + 1) * (W - KW + 1)
    F, K1 = prep["cwt"].shape
    TB = _pick_tb(B)
    G = B // TB
    NS = 2 * TB * P                                         # columns per grid step

    # im2col, bf16, lane-dense (taps on sublanes, positions on lanes),
    # TB pairs grouped per grid step; constant-1 bias tap appended.
    x1b = x1_nchw.astype(jnp.bfloat16)
    x2b = x2_nchw.astype(jnp.bfloat16)
    pg = jnp.concatenate([_group_pairs(_im2col(x1b), TB),
                          _group_pairs(_im2col(x2b), TB)], axis=2)   # (G, K, NS)
    ones = jnp.ones((G, 1, NS), jnp.bfloat16)
    patches = jnp.concatenate([pg, ones], axis=1)                    # (G, K1, NS)

    # Constant +/-1 pool-and-difference matrix (compile-time constant).
    dm_np = np.zeros((TB, NS), np.float32)
    for j in range(TB):
        dm_np[j, j * P:(j + 1) * P] = 1.0                  # image-1 positions of pair j
        dm_np[j, TB * P + j * P: TB * P + (j + 1) * P] = -1.0  # image-2 positions
    dm = jnp.asarray(dm_np)

    def whole(shape):
        return pl.BlockSpec(shape, lambda g: (0,) * len(shape))

    out_pad = pl.pallas_call(
        fused_kernel,
        out_shape=jax.ShapeDtypeStruct((G, TB, LANE), jnp.float32),
        grid_spec=pltpu.PrefetchScalarGridSpec(
            num_scalar_prefetch=0,
            grid=(G,),                                      # one step per TB pairs
            in_specs=[
                pl.BlockSpec((1, K1, NS), lambda g: (g, 0, 0)),
                whole((F, K1)), whole((TB, NS)),
                whole((F, LANE)), whole((1, LANE)),
                whole((LANE, LANE)), whole((1, LANE)),
            ],
            out_specs=pl.BlockSpec((1, TB, LANE), lambda g: (g, 0, 0)),
        ),
        compiler_params=pltpu.CompilerParams(
            dimension_semantics=("parallel",)),             # v7x: steps split across 2 TCs
    )(patches, prep["cwt"], dm, prep["w1"], prep["b1"], prep["w2"], prep["b2"])

    return out_pad.reshape(B, LANE)[:, :out_dim]            # (B, 2) logits


# ---------------------------------------------------------------------------
# Main
# ---------------------------------------------------------------------------
if __name__ == "__main__":
    # 8 image pairs (so TB=4 blocking + a 2-step grid is exercised),
    # in-channels=3, spatial=16, backbone F=128, hidden=32, output classes=2.
    B, Cin, H, W = 8, 3, 16, 16
    F, HID, OUT = 128, 32, 2

    key = jax.random.PRNGKey(0)
    k_x1, k_x2, k_cw, k_cb, k_w1, k_b1, k_w2, k_b2 = jax.random.split(key, 8)

    x1 = jax.random.normal(k_x1, (B, Cin, H, W), dtype=jnp.float32)
    x2 = jax.random.normal(k_x2, (B, Cin, H, W), dtype=jnp.float32)

    params = {
        "conv_w": 0.1 * jax.random.normal(k_cw, (KH, KW, Cin, F), jnp.float32),
        "conv_b": 0.1 * jax.random.normal(k_cb, (1, F), jnp.float32),
        "fc_w":   0.1 * jax.random.normal(k_w1, (F, HID), jnp.float32),
        "fc_b":   0.1 * jax.random.normal(k_b1, (1, HID), jnp.float32),
        "fc2_w":  0.1 * jax.random.normal(k_w2, (HID, OUT), jnp.float32),
        "fc2_b":  0.1 * jax.random.normal(k_b2, (1, OUT), jnp.float32),
    }

    prep = prepare_params(params, (H, W))                   # hoisted, done once
    out = turtle_diff_conv_pool(x1, x2, prep, out_dim=OUT)
    jax.block_until_ready(out)
    assert out.shape == (B, OUT), out.shape

    # Pure-JAX reference of the same math (conv inputs cast to bf16 to match
    # the kernel's chosen precision; accumulation stays f32).
    def ref(x1n, x2n, p):
        cwb = p["conv_w"].astype(jnp.bfloat16)
        cbb = p["conv_b"].astype(jnp.bfloat16).astype(jnp.float32)

        def bb(x):
            xn = jnp.transpose(x, (0, 2, 3, 1)).astype(jnp.bfloat16)
            Ho, Wo = H - KH + 1, W - KW + 1
            acc = jnp.zeros((B, Ho, Wo, F), jnp.float32)
            for di in range(KH):
                for dj in range(KW):
                    acc = acc + jnp.einsum(
                        "bhwc,cf->bhwf",
                        xn[:, di:di + Ho, dj:dj + Wo, :], cwb[di, dj],
                        preferred_element_type=jnp.float32)
            acc = jnp.maximum(acc + cbb[0], 0.0)
            return jnp.mean(acc, axis=(1, 2))

        f1, f2 = bb(x1n), bb(x2n)
        d = f1 - f2
        h1 = jnp.maximum(d @ p["fc_w"] + p["fc_b"], 0.0)
        h2 = jnp.maximum(-d @ p["fc_w"] + p["fc_b"], 0.0)
        return ((h1 + h2) / 2) @ p["fc2_w"] + p["fc2_b"]

    ref_out = ref(x1, x2, params)
    # Tolerance covers bf16-input conv + XLA-default-precision head in the ref.
    assert jnp.allclose(out, ref_out, atol=2e-3, rtol=2e-3), (out, ref_out)

    print("KERNEL_OK")
</pallas_src>

<mosaic_0001>
module attributes {stable_mosaic.version = 11 : i64} {
  func.func @fused_kernel(%arg0: i32, %arg1: memref<1x28x1568xbf16, #tpu.memory_space<vmem>>, %arg2: memref<128x28xbf16, #tpu.memory_space<vmem>>, %arg3: memref<4x1568xf32, #tpu.memory_space<vmem>>, %arg4: memref<128x128xf32, #tpu.memory_space<vmem>>, %arg5: memref<1x128xf32, #tpu.memory_space<vmem>>, %arg6: memref<128x128xf32, #tpu.memory_space<vmem>>, %arg7: memref<1x128xf32, #tpu.memory_space<vmem>>, %arg8: memref<1x4x128xf32, #tpu.memory_space<vmem>>) attributes {dimension_semantics = [#tpu.dimension_semantics<parallel>], iteration_bounds = array<i64: 2>, scalar_prefetch = 0 : i64, scratch_operands = 0 : i64, tpu.core_type = #tpu.core_type<tc>, window_params = [{transform_indices = @transform_0, window_bounds = array<i64: 1, 28, 1568>}, {pipeline_mode = #tpu.pipeline_mode<synchronous>, transform_indices = @transform_1, window_bounds = array<i64: 128, 28>}, {pipeline_mode = #tpu.pipeline_mode<synchronous>, transform_indices = @transform_2, window_bounds = array<i64: 4, 1568>}, {pipeline_mode = #tpu.pipeline_mode<synchronous>, transform_indices = @transform_3, window_bounds = array<i64: 128, 128>}, {pipeline_mode = #tpu.pipeline_mode<synchronous>, transform_indices = @transform_4, window_bounds = array<i64: 1, 128>}, {pipeline_mode = #tpu.pipeline_mode<synchronous>, transform_indices = @transform_5, window_bounds = array<i64: 128, 128>}, {pipeline_mode = #tpu.pipeline_mode<synchronous>, transform_indices = @transform_6, window_bounds = array<i64: 1, 128>}, {transform_indices = @transform_7, window_bounds = array<i64: 1, 4, 128>}]} {
    %c0 = arith.constant 0 : index
    %c0_0 = arith.constant 0 : index
    %0 = vector.load %arg2[%c0, %c0_0] : memref<128x28xbf16, #tpu.memory_space<vmem>>, vector<128x28xbf16>
    %c0_1 = arith.constant 0 : index
    %c0_2 = arith.constant 0 : index
    %c0_3 = arith.constant 0 : index
    %1 = vector.load %arg1[%c0_1, %c0_2, %c0_3] : memref<1x28x1568xbf16, #tpu.memory_space<vmem>>, vector<1x28x1568xbf16>
    %2 = vector.shape_cast %1 : vector<1x28x1568xbf16> to vector<28x1568xbf16>
    %cst = arith.constant dense<0.000000e+00> : vector<128x1568xf32>
    %3 = tpu.matmul %0, %2, %cst {dimension_numbers = #tpu.dot_dimension_numbers<[1], [0], [0], [1], [0, 0, 1, 1], [], []>} : vector<128x28xbf16>, vector<28x1568xbf16>, vector<128x1568xf32> -> vector<128x1568xf32>
    %cst_4 = arith.constant 0.000000e+00 : f32
    %4 = vector.broadcast %cst_4 : f32 to vector<128x1568xf32>
    %5 = arith.maximumf %3, %4 : vector<128x1568xf32>
    %c0_5 = arith.constant 0 : index
    %c0_6 = arith.constant 0 : index
    %6 = vector.load %arg3[%c0_5, %c0_6] : memref<4x1568xf32, #tpu.memory_space<vmem>>, vector<4x1568xf32>
    %cst_7 = arith.constant dense<0.000000e+00> : vector<4x128xf32>
    %7 = tpu.matmul %6, %5, %cst_7 {dimension_numbers = #tpu.dot_dimension_numbers<[1], [1], [0], [0], [0, 0, 1, 0], [], []>, precision = #tpu.contract_precision<fp32>} : vector<4x1568xf32>, vector<128x1568xf32>, vector<4x128xf32> -> vector<4x128xf32>
    %c0_8 = arith.constant 0 : index
    %c0_9 = arith.constant 0 : index
    %8 = vector.load %arg4[%c0_8, %c0_9] : memref<128x128xf32, #tpu.memory_space<vmem>>, vector<128x128xf32>
    %cst_10 = arith.constant dense<0.000000e+00> : vector<4x128xf32>
    %9 = tpu.matmul %7, %8, %cst_10 {dimension_numbers = #tpu.dot_dimension_numbers<[1], [0], [0], [1], [0, 0, 1, 1], [], []>, precision = #tpu.contract_precision<fp32>} : vector<4x128xf32>, vector<128x128xf32>, vector<4x128xf32> -> vector<4x128xf32>
    %c0_11 = arith.constant 0 : index
    %c0_12 = arith.constant 0 : index
    %10 = vector.load %arg5[%c0_11, %c0_12] : memref<1x128xf32, #tpu.memory_space<vmem>>, vector<1x128xf32>
    %11 = vector.broadcast %10 : vector<1x128xf32> to vector<4x128xf32>
    %12 = arith.addf %9, %11 : vector<4x128xf32>
    %cst_13 = arith.constant 0.000000e+00 : f32
    %13 = vector.broadcast %cst_13 : f32 to vector<4x128xf32>
    %14 = arith.maximumf %12, %13 : vector<4x128xf32>
    %cst_14 = arith.constant 0.000000e+00 : f32
    %15 = vector.broadcast %cst_14 : f32 to vector<4x128xf32>
    %16 = arith.subf %15, %9 : vector<4x128xf32>
    %17 = vector.broadcast %10 : vector<1x128xf32> to vector<4x128xf32>
    %18 = arith.addf %16, %17 : vector<4x128xf32>
    %cst_15 = arith.constant 0.000000e+00 : f32
    %19 = vector.broadcast %cst_15 : f32 to vector<4x128xf32>
    %20 = arith.maximumf %18, %19 : vector<4x128xf32>
    %21 = arith.addf %14, %20 : vector<4x128xf32>
    %cst_16 = arith.constant 5.000000e-01 : f32
    %22 = vector.broadcast %cst_16 : f32 to vector<4x128xf32>
    %23 = arith.mulf %22, %21 : vector<4x128xf32>
    %c0_17 = arith.constant 0 : index
    %c0_18 = arith.constant 0 : index
    %24 = vector.load %arg6[%c0_17, %c0_18] : memref<128x128xf32, #tpu.memory_space<vmem>>, vector<128x128xf32>
    %cst_19 = arith.constant dense<0.000000e+00> : vector<4x128xf32>
    %25 = tpu.matmul %23, %24, %cst_19 {dimension_numbers = #tpu.dot_dimension_numbers<[1], [0], [0], [1], [0, 0, 1, 1], [], []>, precision = #tpu.contract_precision<fp32>} : vector<4x128xf32>, vector<128x128xf32>, vector<4x128xf32> -> vector<4x128xf32>
    %c0_20 = arith.constant 0 : index
    %c0_21 = arith.constant 0 : index
    %26 = vector.load %arg7[%c0_20, %c0_21] : memref<1x128xf32, #tpu.memory_space<vmem>>, vector<1x128xf32>
    %27 = vector.broadcast %26 : vector<1x128xf32> to vector<4x128xf32>
    %28 = arith.addf %25, %27 : vector<4x128xf32>
    %c0_22 = arith.constant 0 : index
    %c0_23 = arith.constant 0 : index
    %c0_24 = arith.constant 0 : index
    %29 = vector.load %arg8[%c0_22, %c0_23, %c0_24] : memref<1x4x128xf32, #tpu.memory_space<vmem>>, vector<1x4x128xf32>
    %30 = vector.shape_cast %29 : vector<1x4x128xf32> to vector<4x128xf32>
    %31 = vector.shape_cast %28 : vector<4x128xf32> to vector<1x4x128xf32>
    tpu.vector_store %arg8[%c0_22, %c0_23, %c0_24], %31 {strides = array<i32>} : memref<1x4x128xf32, #tpu.memory_space<vmem>>, vector<1x4x128xf32>,
    return
  }
  func.func @transform_0(%arg0: i32) -> (i32, i32, i32) {
    %c0_i32 = arith.constant 0 : i32
    %c0_i32_0 = arith.constant 0 : i32
    %c0_i32_1 = arith.constant 0 : i32
    return %arg0, %c0_i32, %c0_i32_0 : i32, i32, i32
  }
  func.func @transform_1(%arg0: i32) -> (i32, i32) {
    %c0_i32 = arith.constant 0 : i32
    %c0_i32_0 = arith.constant 0 : i32
    %c0_i32_1 = arith.constant 0 : i32
    return %c0_i32, %c0_i32_0 : i32, i32
  }
  func.func @transform_2(%arg0: i32) -> (i32, i32) {
    %c0_i32 = arith.constant 0 : i32
    %c0_i32_0 = arith.constant 0 : i32
    %c0_i32_1 = arith.constant 0 : i32
    return %c0_i32, %c0_i32_0 : i32, i32
  }
  func.func @transform_3(%arg0: i32) -> (i32, i32) {
    %c0_i32 = arith.constant 0 : i32
    %c0_i32_0 = arith.constant 0 : i32
    %c0_i32_1 = arith.constant 0 : i32
    return %c0_i32, %c0_i32_0 : i32, i32
  }
  func.func @transform_4(%arg0: i32) -> (i32, i32) {
    %c0_i32 = arith.constant 0 : i32
    %c0_i32_0 = arith.constant 0 : i32
    %c0_i32_1 = arith.constant 0 : i32
    return %c0_i32, %c0_i32_0 : i32, i32
  }
  func.func @transform_5(%arg0: i32) -> (i32, i32) {
    %c0_i32 = arith.constant 0 : i32
    %c0_i32_0 = arith.constant 0 : i32
    %c0_i32_1 = arith.constant 0 : i32
    return %c0_i32, %c0_i32_0 : i32, i32
  }
  func.func @transform_6(%arg0: i32) -> (i32, i32) {
    %c0_i32 = arith.constant 0 : i32
    %c0_i32_0 = arith.constant 0 : i32
    %c0_i32_1 = arith.constant 0 : i32
    return %c0_i32, %c0_i32_0 : i32, i32
  }
  func.func @transform_7(%arg0: i32) -> (i32, i32, i32) {
    %c0_i32 = arith.constant 0 : i32
    %c0_i32_0 = arith.constant 0 : i32
    %c0_i32_1 = arith.constant 0 : i32
    return %arg0, %c0_i32, %c0_i32_0 : i32, i32, i32
  }
}

</mosaic_0001>

<llo_original>
// kernel: turtle_diff_conv_pool.1
$region0: #{turtle_diff_conv_pool.1}
  #allocation0 [shape = 'u32[]', space=smem, size = 0x4, offset = 0x4, fixed_abs, tag = 'smem constant byte address 0x4 - core index']
  #allocation1 [shape = 'u32[72,128]{1,0:T(1,128)}', space=vmem, size = 0x9000, scoped, tag = 'internal scratch']
  %s0 = inlined_call_operand.vmem [shape: bf16[2,28,1568], index: 0, kind: input, shape index: {}]
  %s1 = inlined_call_operand.vmem [shape: bf16[128,28], index: 1, kind: input, shape index: {}]
  %s2 = inlined_call_operand.vmem [shape: f32[4,1568], index: 2, kind: input, shape index: {}]
  %s3 = inlined_call_operand.vmem [shape: f32[128,128], index: 3, kind: input, shape index: {}]
  %s4 = inlined_call_operand.vmem [shape: f32[1,128], index: 4, kind: input, shape index: {}]
  %s5 = inlined_call_operand.vmem [shape: f32[128,128], index: 5, kind: input, shape index: {}]
  %s6 = inlined_call_operand.vmem [shape: f32[1,128], index: 6, kind: input, shape index: {}]
  %s7 = inlined_call_operand.vmem [shape: f32[2,4,128], index: 7, kind: output, shape index: {}]
  %s8 = sld [smem:[#allocation0]]
  $region61: #{turtle_diff_conv_pool.1} parent=0
    _
  %s10 = ssub.s32 1, %s8
  %s11 = scalar_select 0, %s10, %s8
  loop: start=0, step=1, limit=4
  $region2: #{turtle_diff_conv_pool.1} parent=0 // loop_pre_header
    _
  $region3: #{turtle_diff_conv_pool.1} parent=0 // loop_header
    %s13 = sphi 0, %s17
    %p14 = scmp.ge.s32.totalorder %s13, 4
    %s23 = sphi 0, %s25
    %s26 = sphi 0, %s23
    %s27 = sphi 0, %s26
    %s43 = sphi 0, %s27
    %s47 = sphi 0, %s47
    %s49 = sphi 0, %s47
    %s50 = sphi 0, %s49
    %s64 = sphi 0, %s50
    %s68 = sphi 0, %s68
    %s70 = sphi 0, %s68
    %s71 = sphi 0, %s70
    %s85 = sphi 0, %s71
    %s89 = sphi 0, %s89
    %s91 = sphi 0, %s89
    %s92 = sphi 0, %s91
    %s106 = sphi 0, %s92
    %s110 = sphi 0, %s110
    %s112 = sphi 0, %s110
    %s113 = sphi 0, %s112
    %s127 = sphi 0, %s113
    %s131 = sphi 0, %s131
    %s133 = sphi 0, %s131
    %s134 = sphi 0, %s133
    %s148 = sphi 0, %s134
    %s152 = sphi 0, %s152
    %s154 = sphi 0, %s152
    %s155 = sphi 0, %s154
    %s169 = sphi 0, %s155
    %s175 = sphi 0, %s177
    %s178 = sphi 0, %s175
    %s179 = sphi 0, %s178
    %s195 = sphi 0, %s179
  $region4: #{turtle_diff_conv_pool.1} parent=0 // loop_header_branch
    %16 = sbr.rel (%p14) target = $region8
  $region5: #{turtle_diff_conv_pool.1} parent=0 // loop_body
    %s18 = ssub.s32 %s13, 1
    %s19 = ssub.s32 %s13, 2
    %s20 = sadd.s32 %s13, 1
    %s21 = ssub.s32 %s13, %s20
    %p22 = scmp.eq.s32.totalorder %s21, 0
    %s24 = sadd.s32 %s23, 1
    %s25 = scalar_select %p22, %s23, %s24
    %p28 = pneg %p22
    %p29 = scmp.eq.s32.totalorder %s13, 1
    %p30 = por %p28, %p29
    %p31 = scmp.ne.s32.totalorder %s23, %s26
    %p32 = scmp.eq.s32.totalorder %s13, 0
    %p33 = por %p31, %p32
    %p34 = scmp.ne.s32.totalorder %s23, %s26
    %p35 = scmp.eq.s32.totalorder %s18, 1
    %p36 = por %p34, %p35
    %p37 = scmp.ne.s32.totalorder %s26, %s27
    %p38 = scmp.eq.s32.totalorder %s18, 0
    %p39 = por %p37, %p38
    %p40 = scmp.ne.s32.totalorder %s26, %s27
    %p41 = scmp.eq.s32.totalorder %s19, 1
    %p42 = por %p40, %p41
    %p44 = scmp.ne.s32.totalorder %s27, %s43
    %p45 = scmp.eq.s32.totalorder %s19, 0
    %p46 = por %p44, %p45
    %s48 = sadd.s32 %s47, 1
    %p51 = scmp.eq.s32.totalorder %s13, 1
    %p52 = scmp.ne.s32.totalorder %s47, %s49
    %p53 = scmp.eq.s32.totalorder %s13, 0
    %p54 = por %p52, %p53
    %p55 = scmp.ne.s32.totalorder %s47, %s49
    %p56 = scmp.eq.s32.totalorder %s18, 1
    %p57 = por %p55, %p56
    %p58 = scmp.ne.s32.totalorder %s49, %s50
    %p59 = scmp.eq.s32.totalorder %s18, 0
    %p60 = por %p58, %p59
    %p61 = scmp.ne.s32.totalorder %s49, %s50
    %p62 = scmp.eq.s32.totalorder %s19, 1
    %p63 = por %p61, %p62
    %p65 = scmp.ne.s32.totalorder %s50, %s64
    %p66 = scmp.eq.s32.totalorder %s19, 0
    %p67 = por %p65, %p66
    %s69 = sadd.s32 %s68, 1
    %p72 = scmp.eq.s32.totalorder %s13, 1
    %p73 = scmp.ne.s32.totalorder %s68, %s70
    %p74 = scmp.eq.s32.totalorder %s13, 0
    %p75 = por %p73, %p74
    %p76 = scmp.ne.s32.totalorder %s68, %s70
    %p77 = scmp.eq.s32.totalorder %s18, 1
    %p78 = por %p76, %p77
    %p79 = scmp.ne.s32.totalorder %s70, %s71
    %p80 = scmp.eq.s32.totalorder %s18, 0
    %p81 = por %p79, %p80
    %p82 = scmp.ne.s32.totalorder %s70, %s71
    %p83 = scmp.eq.s32.totalorder %s19, 1
    %p84 = por %p82, %p83
    %p86 = scmp.ne.s32.totalorder %s71, %s85
    %p87 = scmp.eq.s32.totalorder %s19, 0
    %p88 = por %p86, %p87
    %s90 = sadd.s32 %s89, 1
    %p93 = scmp.eq.s32.totalorder %s13, 1
    %p94 = scmp.ne.s32.totalorder %s89, %s91
    %p95 = scmp.eq.s32.totalorder %s13, 0
    %p96 = por %p94, %p95
    %p97 = scmp.ne.s32.totalorder %s89, %s91
    %p98 = scmp.eq.s32.totalorder %s18, 1
    %p99 = por %p97, %p98
    %p100 = scmp.ne.s32.totalorder %s91, %s92
    %p101 = scmp.eq.s32.totalorder %s18, 0
    %p102 = por %p100, %p101
    %p103 = scmp.ne.s32.totalorder %s91, %s92
    %p104 = scmp.eq.s32.totalorder %s19, 1
    %p105 = por %p103, %p104
    %p107 = scmp.ne.s32.totalorder %s92, %s106
    %p108 = scmp.eq.s32.totalorder %s19, 0
    %p109 = por %p107, %p108
    %s111 = sadd.s32 %s110, 1
    %p114 = scmp.eq.s32.totalorder %s13, 1
    %p115 = scmp.ne.s32.totalorder %s110, %s112
    %p116 = scmp.eq.s32.totalorder %s13, 0
    %p117 = por %p115, %p116
    %p118 = scmp.ne.s32.totalorder %s110, %s112
    %p119 = scmp.eq.s32.totalorder %s18, 1
    %p120 = por %p118, %p119
    %p121 = scmp.ne.s32.totalorder %s112, %s113
    %p122 = scmp.eq.s32.totalorder %s18, 0
    %p123 = por %p121, %p122
    %p124 = scmp.ne.s32.totalorder %s112, %s113
    %p125 = scmp.eq.s32.totalorder %s19, 1
    %p126 = por %p124, %p125
    %p128 = scmp.ne.s32.totalorder %s113, %s127
    %p129 = scmp.eq.s32.totalorder %s19, 0
    %p130 = por %p128, %p129
    %s132 = sadd.s32 %s131, 1
    %p135 = scmp.eq.s32.totalorder %s13, 1
    %p136 = scmp.ne.s32.totalorder %s131, %s133
    %p137 = scmp.eq.s32.totalorder %s13, 0
    %p138 = por %p136, %p137
    %p139 = scmp.ne.s32.totalorder %s131, %s133
    %p140 = scmp.eq.s32.totalorder %s18, 1
    %p141 = por %p139, %p140
    %p142 = scmp.ne.s32.totalorder %s133, %s134
    %p143 = scmp.eq.s32.totalorder %s18, 0
    %p144 = por %p142, %p143
    %p145 = scmp.ne.s32.totalorder %s133, %s134
    %p146 = scmp.eq.s32.totalorder %s19, 1
    %p147 = por %p145, %p146
    %p149 = scmp.ne.s32.totalorder %s134, %s148
    %p150 = scmp.eq.s32.totalorder %s19, 0
    %p151 = por %p149, %p150
    %s153 = sadd.s32 %s152, 1
    %p156 = scmp.eq.s32.totalorder %s13, 1
    %p157 = scmp.ne.s32.totalorder %s152, %s154
    %p158 = scmp.eq.s32.totalorder %s13, 0
    %p159 = por %p157, %p158
    %p160 = scmp.ne.s32.totalorder %s152, %s154
    %p161 = scmp.eq.s32.totalorder %s18, 1
    %p162 = por %p160, %p161
    %p163 = scmp.ne.s32.totalorder %s154, %s155
    %p164 = scmp.eq.s32.totalorder %s18, 0
    %p165 = por %p163, %p164
    %p166 = scmp.ne.s32.totalorder %s154, %s155
    %p167 = scmp.eq.s32.totalorder %s19, 1
    %p168 = por %p166, %p167
    %p170 = scmp.ne.s32.totalorder %s155, %s169
    %p171 = scmp.eq.s32.totalorder %s19, 0
    %p172 = por %p170, %p171
    %s173 = ssub.s32 %s13, %s20
    %p174 = scmp.eq.s32.totalorder %s173, 0
    %s176 = sadd.s32 %s175, 1
    %s177 = scalar_select %p174, %s175, %s176
    %p180 = pneg %p174
    %p181 = scmp.eq.s32.totalorder %s13, 1
    %p182 = por %p180, %p181
    %p183 = scmp.ne.s32.totalorder %s175, %s178
    %p184 = scmp.eq.s32.totalorder %s13, 0
    %p185 = por %p183, %p184
    %p186 = scmp.ne.s32.totalorder %s175, %s178
    %p187 = scmp.eq.s32.totalorder %s18, 1
    %p188 = por %p186, %p187
    %p189 = scmp.ne.s32.totalorder %s178, %s179
    %p190 = scmp.eq.s32.totalorder %s18, 0
    %p191 = por %p189, %p190
    %p192 = scmp.ne.s32.totalorder %s178, %s179
    %p193 = scmp.eq.s32.totalorder %s19, 1
    %p194 = por %p192, %p193
    %p196 = scmp.ne.s32.totalorder %s179, %s195
    %p197 = scmp.eq.s32.totalorder %s19, 0
    %p198 = por %p196, %p197
    %p199 = scmp.le.s32.totalorder 1, %s13
    %p200 = scmp.lt.s32.totalorder %s13, 3
    %p201 = pnand %p199, %p200
    %p202 = pneg %p201
    // Predicated region
    $region9: #{turtle_diff_conv_pool.1} parent=5 // pred_check
      _
    $region10: #{turtle_diff_conv_pool.1} parent=5 // pred_check_branch
      %204 = sbr.rel (%p201) target = $region12
    $region11: #{turtle_diff_conv_pool.1} parent=5 // pred_region
      %s205 = ssub.s32 %s13, 1
      // Predicated region
      $region13: #{turtle_diff_conv_pool.1} parent=11 // pred_check
        %p206 = pneg %p60
      $region14: #{turtle_diff_conv_pool.1} parent=11 // pred_check_branch
        %208 = sbr.rel (%p206) target = $region16
      $region15: #{turtle_diff_conv_pool.1} parent=11 // pred_region
        _
      $region16: #{turtle_diff_conv_pool.1} parent=11 // pred_fallthru
        _
      // Predicated region
      $region17: #{turtle_diff_conv_pool.1} parent=11 // pred_check
        %p209 = pneg %p81
      $region18: #{turtle_diff_conv_pool.1} parent=11 // pred_check_branch
        %211 = sbr.rel (%p209) target = $region20
      $region19: #{turtle_diff_conv_pool.1} parent=11 // pred_region
        _
      $region20: #{turtle_diff_conv_pool.1} parent=11 // pred_fallthru
        _
      // Predicated region
      $region21: #{turtle_diff_conv_pool.1} parent=11 // pred_check
        %p212 = pneg %p102
      $region22: #{turtle_diff_conv_pool.1} parent=11 // pred_check_branch
        %214 = sbr.rel (%p212) target = $region24
      $region23: #{turtle_diff_conv_pool.1} parent=11 // pred_region
        _
      $region24: #{turtle_diff_conv_pool.1} parent=11 // pred_fallthru
        _
      // Predicated region
      $region25: #{turtle_diff_conv_pool.1} parent=11 // pred_check
        %p215 = pneg %p123
      $region26: #{turtle_diff_conv_pool.1} parent=11 // pred_check_branch
        %217 = sbr.rel (%p215) target = $region28
      $region27: #{turtle_diff_conv_pool.1} parent=11 // pred_region
        _
      $region28: #{turtle_diff_conv_pool.1} parent=11 // pred_fallthru
        _
      // Predicated region
      $region29: #{turtle_diff_conv_pool.1} parent=11 // pred_check
        %p218 = pneg %p144
      $region30: #{turtle_diff_conv_pool.1} parent=11 // pred_check_branch
        %220 = sbr.rel (%p218) target = $region32
      $region31: #{turtle_diff_conv_pool.1} parent=11 // pred_region
        _
      $region32: #{turtle_diff_conv_pool.1} parent=11 // pred_fallthru
        _
      // Predicated region
      $region33: #{turtle_diff_conv_pool.1} parent=11 // pred_check
        %p221 = pneg %p165
      $region34: #{turtle_diff_conv_pool.1} parent=11 // pred_check_branch
        %223 = sbr.rel (%p221) target = $region36
      $region35: #{turtle_diff_conv_pool.1} parent=11 // pred_region
        _
      $region36: #{turtle_diff_conv_pool.1} parent=11 // pred_fallthru
        _
    $region12: #{turtle_diff_conv_pool.1} parent=5 // pred_fallthru
      _
    %p224 = scmp.lt.s32.totalorder %s13, 2
    // Predicated region
    $region37: #{turtle_diff_conv_pool.1} parent=5 // pred_check
      %p225 = pneg %p224
    $region38: #{turtle_diff_conv_pool.1} parent=5 // pred_check_branch
      %227 = sbr.rel (%p225) target = $region40
    $region39: #{turtle_diff_conv_pool.1} parent=5 // pred_region
      // Predicated region
      $region41: #{turtle_diff_conv_pool.1} parent=39 // pred_check
        %p228 = pneg %p33
      $region42: #{turtle_diff_conv_pool.1} parent=39 // pred_check_branch
        %230 = sbr.rel (%p228) target = $region44
      $region43: #{turtle_diff_conv_pool.1} parent=39 // pred_region
        %p231 = scmp.lt.s32.totalorder %s13, 1
        %s232 = scalar_select %p231, %s13, 1
        %s233 = smul.addr %s232, 52
        %s234 = smul.addr %s233, 4
        %s235 = scalar_lea.vmem %s0, %s234
      $region44: #{turtle_diff_conv_pool.1} parent=39 // pred_fallthru
        _
    $region40: #{turtle_diff_conv_pool.1} parent=5 // pred_fallthru
      _
    %p236 = scmp.le.s32.totalorder 1, %s13
    %p237 = scmp.lt.s32.totalorder %s13, 3
    %p238 = pnand %p236, %p237
    %p239 = pneg %p238
    // Predicated region
    $region45: #{turtle_diff_conv_pool.1} parent=5 // pred_check
      _
    $region46: #{turtle_diff_conv_pool.1} parent=5 // pred_check_branch
      %241 = sbr.rel (%p238) target = $region48
    $region47: #{turtle_diff_conv_pool.1} parent=5 // pred_region
      %s242 = ssub.s32 %s13, 1
      %p243 = scmp.lt.s32.totalorder %s18, 1
      %s244 = scalar_select %p243, %s18, 1
      %s245 = smul.addr %s244, 52
      %s246 = smul.addr %s245, 4
      %s247 = scalar_lea.vmem %s0, %s246
      %p248 = pneg %p39
      %p249 = pneg %p36
      %p250 = pneg %p60
      %p251 = pneg %p57
      %p252 = pneg %p81
      %p253 = pneg %p78
      %p254 = pneg %p102
      %p255 = pneg %p99
      %p256 = pneg %p123
      %p257 = pneg %p120
      %p258 = pneg %p144
      %p259 = pneg %p141
      %p260 = pneg %p165
      %p261 = pneg %p162
      %p262 = pneg %p191
      %p263 = pneg %p188
      %p264 = scmp.lt.s32.totalorder %s18, 1
      %s265 = scalar_select %p264, %s18, 1
      %s266 = smul.addr %s265, 4
      %s267 = scalar_lea.vmem %s7, %s266
      %p268 = scmp.lt.s32.totalorder %s18, 1
      %s269 = scalar_select %p268, %s18, 1
      %s270 = smul.addr %s269, 52
      %s271 = smul.addr %s270, 4
      %s272 = scalar_lea.vmem %s0, %s271
      %p273 = scmp.lt.s32.totalorder %s18, 1
      %s274 = scalar_select %p273, %s18, 1
      %s275 = smul.addr %s274, 4
      %s276 = scalar_lea.vmem %s7, %s275
      %v278 = vld [vmem:[%s1] sm:$0xf]
      %v279 = vld [vmem:[%s1 + $0x4] sm:$0xf]
      %v280 = vld [vmem:[%s1 + $0x8] sm:$0xf]
      %v281 = vld [vmem:[%s1 + $0xc] sm:$0xf]
      %v282 = vld [vmem:[%s1 + $0x10] sm:$0xf]
      %v283 = vld [vmem:[%s1 + $0x14] sm:$0xf]
      %v284 = vld [vmem:[%s1 + $0x18] sm:$0xf]
      %v285 = vld [vmem:[%s1 + $0x1c] sm:$0xf]
      %v286 = vld [vmem:[%s1 + $0x20] sm:$0xf]
      %v287 = vld [vmem:[%s1 + $0x24] sm:$0xf]
      %v288 = vld [vmem:[%s1 + $0x28] sm:$0xf]
      %v289 = vld [vmem:[%s1 + $0x2c] sm:$0xf]
      %v290 = vld [vmem:[%s1 + $0x30] sm:$0xf]
      %v291 = vld [vmem:[%s1 + $0x34] sm:$0xf]
      %v292 = vld [vmem:[%s1 + $0x38] sm:$0xf]
      %v293 = vld [vmem:[%s1 + $0x3c] sm:$0xf]
      %v294 = vld [vmem:[%s272] sm:$0xff]
      %v295 = vld [vmem:[%s272 + $0x8] sm:$0xff]
      %v296 = vld [vmem:[%s272 + $0x10] sm:$0xff]
      %v297 = vld [vmem:[%s272 + $0x18] sm:$0xff]
      %v298 = vld [vmem:[%s272 + $0x20] sm:$0xff]
      %v299 = vld [vmem:[%s272 + $0x28] sm:$0xff]
      %v300 = vld [vmem:[%s272 + $0x30] sm:$0xf]
      %v301 = vld [vmem:[%s272 + $0x34] sm:$0xff]
      %v302 = vld [vmem:[%s272 + $0x3c] sm:$0xff]
      %v303 = vld [vmem:[%s272 + $0x44] sm:$0xff]
      %v304 = vld [vmem:[%s272 + $0x4c] sm:$0xff]
      %v305 = vld [vmem:[%s272 + $0x54] sm:$0xff]
      %v306 = vld [vmem:[%s272 + $0x5c] sm:$0xff]
      %v307 = vld [vmem:[%s272 + $0x64] sm:$0xf]
      %v308 = vld [vmem:[%s272 + $0x68] sm:$0xff]
      %v309 = vld [vmem:[%s272 + $0x70] sm:$0xff]
      %v310 = vld [vmem:[%s272 + $0x78] sm:$0xff]
      %v311 = vld [vmem:[%s272 + $0x80] sm:$0xff]
      %v312 = vld [vmem:[%s272 + $0x88] sm:$0xff]
      %v313 = vld [vmem:[%s272 + $0x90] sm:$0xff]
      %v314 = vld [vmem:[%s272 + $0x98] sm:$0xf]
      %v315 = vld [vmem:[%s272 + $0x9c] sm:$0x33]
      %v316 = vld [vmem:[%s272 + $0xa4] sm:$0x33]
      %v317 = vld [vmem:[%s272 + $0xac] sm:$0x33]
      %v318 = vld [vmem:[%s272 + $0xb4] sm:$0x33]
      %v319 = vld [vmem:[%s272 + $0xbc] sm:$0x33]
      %v320 = vld [vmem:[%s272 + $0xc4] sm:$0x33]
      %v321 = vld [vmem:[%s272 + $0xcc] sm:$0x3]
      %v338 = vunpack.c.l.b16 %v278
      %v339 = vunpack.c.l.b16 %v279
      %v340 = vunpack.c.l.b16 %v280
      %v341 = vunpack.c.l.b16 %v281
      %v342 = vunpack.c.l.b16 %v282
      %v343 = vunpack.c.l.b16 %v283
      %v344 = vunpack.c.l.b16 %v284
      %v345 = vunpack.c.l.b16 %v285
      %v346 = vunpack.c.l.b16 %v286
      %v347 = vunpack.c.l.b16 %v287
      %v348 = vunpack.c.l.b16 %v288
      %v349 = vunpack.c.l.b16 %v289
      %v350 = vunpack.c.l.b16 %v290
      %v351 = vunpack.c.l.b16 %v291
      %v352 = vunpack.c.l.b16 %v292
      %v353 = vunpack.c.l.b16 %v293
      %v354 = vpack.c.b16 %v339, %v338
      %v355 = vpack.c.b16 %v341, %v340
      %v356 = vpack.c.b16 %v343, %v342
      %v357 = vpack.c.b16 %v345, %v344
      %v358 = vpack.c.b16 %v347, %v346
      %v359 = vpack.c.b16 %v349, %v348
      %v360 = vpack.c.b16 %v351, %v350
      %v361 = vpack.c.b16 %v353, %v352
      %v390 = vunpack.c.l.b16 %v294
      %v391 = vunpack.c.h.b16 %v294
      %v392 = vunpack.c.l.b16 %v295
      %v393 = vunpack.c.h.b16 %v295
      %v394 = vunpack.c.l.b16 %v296
      %v395 = vunpack.c.h.b16 %v296
      %v396 = vunpack.c.l.b16 %v297
      %v397 = vunpack.c.h.b16 %v297
      %v398 = vunpack.c.l.b16 %v298
      %v399 = vunpack.c.h.b16 %v298
      %v400 = vunpack.c.l.b16 %v299
      %v401 = vunpack.c.h.b16 %v299
      %v402 = vunpack.c.l.b16 %v300
      %v403 = vunpack.c.l.b16 %v301
      %v404 = vunpack.c.h.b16 %v301
      %v405 = vunpack.c.l.b16 %v302
      %v406 = vunpack.c.h.b16 %v302
      %v407 = vunpack.c.l.b16 %v303
      %v408 = vunpack.c.h.b16 %v303
      %v409 = vunpack.c.l.b16 %v304
      %v410 = vunpack.c.h.b16 %v304
      %v411 = vunpack.c.l.b16 %v305
      %v412 = vunpack.c.h.b16 %v305
      %v413 = vunpack.c.l.b16 %v306
      %v414 = vunpack.c.h.b16 %v306
      %v415 = vunpack.c.l.b16 %v307
      %v416 = vunpack.c.l.b16 %v308
      %v417 = vunpack.c.h.b16 %v308
      %v418 = vunpack.c.l.b16 %v309
      %v419 = vunpack.c.h.b16 %v309
      %v420 = vunpack.c.l.b16 %v310
      %v421 = vunpack.c.h.b16 %v310
      %v422 = vunpack.c.l.b16 %v311
      %v423 = vunpack.c.h.b16 %v311
      %v424 = vunpack.c.l.b16 %v312
      %v425 = vunpack.c.h.b16 %v312
      %v426 = vunpack.c.l.b16 %v313
      %v427 = vunpack.c.h.b16 %v313
      %v428 = vunpack.c.l.b16 %v314
      %v429 = vunpack.c.l.b16 %v315
      %v430 = vunpack.c.h.b16 %v315
      %v431 = vunpack.c.l.b16 %v316
      %v432 = vunpack.c.h.b16 %v316
      %v433 = vunpack.c.l.b16 %v317
      %v434 = vunpack.c.h.b16 %v317
      %v435 = vunpack.c.l.b16 %v318
      %v436 = vunpack.c.h.b16 %v318
      %v437 = vunpack.c.l.b16 %v319
      %v438 = vunpack.c.h.b16 %v319
      %v439 = vunpack.c.l.b16 %v320
      %v440 = vunpack.c.h.b16 %v320
      %v441 = vunpack.c.l.b16 %v321
      %v442 = vpack.c.b16 %v403, %v390
      %v443 = vpack.c.b16 %v404, %v391
      %v444 = vpack.c.b16 %v405, %v392
      %v445 = vpack.c.b16 %v406, %v393
      %v446 = vpack.c.b16 %v407, %v394
      %v447 = vpack.c.b16 %v408, %v395
      %v448 = vpack.c.b16 %v409, %v396
      %v449 = vpack.c.b16 %v410, %v397
      %v450 = vpack.c.b16 %v411, %v398
      %v451 = vpack.c.b16 %v412, %v399
      %v452 = vpack.c.b16 %v413, %v400
      %v453 = vpack.c.b16 %v414, %v401
      %v454 = vpack.c.b16 %v415, %v402
      %v455 = vpack.c.b16 %v429, %v416
      %v456 = vpack.c.b16 %v430, %v417
      %v457 = vpack.c.b16 %v431, %v418
      %v458 = vpack.c.b16 %v432, %v419
      %v459 = vpack.c.b16 %v433, %v420
      %v460 = vpack.c.b16 %v434, %v421
      %v461 = vpack.c.b16 %v435, %v422
      %v462 = vpack.c.b16 %v436, %v423
      %v463 = vpack.c.b16 %v437, %v424
      %v464 = vpack.c.b16 %v438, %v425
      %v465 = vpack.c.b16 %v439, %v426
      %v466 = vpack.c.b16 %v440, %v427
      %v467 = vpack.c.b16 %v441, %v428
      %vm481 = vcmask 228352
      %v483 = vsel %vm481, %v354, 0
      %v486 = vsel %vm481, %v355, 0
      %v489 = vsel %vm481, %v356, 0
      %v492 = vsel %vm481, %v357, 0
      %v495 = vsel %vm481, %v358, 0
      %v498 = vsel %vm481, %v359, 0
      %v501 = vsel %vm481, %v360, 0
      %v504 = vsel %vm481, %v361, 0
      %vm506 = vcmask 1045504
      %v508 = vsel %vm506, %v455, 0
      %v511 = vsel %vm506, %v456, 0
      %v514 = vsel %vm506, %v457, 0
      %v517 = vsel %vm506, %v458, 0
      %v520 = vsel %vm506, %v459, 0
      %v523 = vsel %vm506, %v460, 0
      %v526 = vsel %vm506, %v461, 0
      %v529 = vsel %vm506, %v462, 0
      %v532 = vsel %vm506, %v463, 0
      %v535 = vsel %vm506, %v464, 0
      %v538 = vsel %vm506, %v465, 0
      %v541 = vsel %vm506, %v466, 0
      %v544 = vsel %vm506, %v467, 0
      %546 = vmatpush.bf16.msra.mxu0 0
      %547 = vmatpush.bf16.msra.mxu0 0
      %548 = vmatpush.bf16.msra.mxu0 0
      %549 = vmatpush.bf16.msra.mxu0 0
      %550 = vmatpush.bf16.msra.mxu0 0
      %551 = vmatpush.bf16.msra.mxu0 0
      %552 = vmatpush.bf16.msra.mxu0 %v508
      %553 = vmatpush.bf16.msra.mxu0 %v442
      %554 = vmatmul.bf16.gmra.mxu0 %v483
      %v555 = vpop.f32.mrf.mxu0
      %v556 = vadd.f32 0.0, %v555
      %v557 = vpop.f32.mrf.mxu0
      %v558 = vadd.f32 0.0, %v557
      %559 = vmatmul.bf16.gmra.mxu0 %v486
      %v560 = vpop.f32.mrf.mxu0
      %v561 = vadd.f32 0.0, %v560
      %v562 = vpop.f32.mrf.mxu0
      %v563 = vadd.f32 0.0, %v562
      %564 = vmatmul.bf16.gmra.mxu0 %v489
      %v565 = vpop.f32.mrf.mxu0
      %v566 = vadd.f32 0.0, %v565
      %v567 = vpop.f32.mrf.mxu0
      %v568 = vadd.f32 0.0, %v567
      %569 = vmatmul.bf16.gmra.mxu0 %v492
      %v570 = vpop.f32.mrf.mxu0
      %v571 = vadd.f32 0.0, %v570
      %v572 = vpop.f32.mrf.mxu0
      %v573 = vadd.f32 0.0, %v572
      %574 = vmatmul.bf16.gmra.mxu0 %v495
      %v575 = vpop.f32.mrf.mxu0
      %v576 = vadd.f32 0.0, %v575
      %v577 = vpop.f32.mrf.mxu0
      %v578 = vadd.f32 0.0, %v577
      %579 = vmatmul.bf16.gmra.mxu0 %v498
      %v580 = vpop.f32.mrf.mxu0
      %v581 = vadd.f32 0.0, %v580
      %v582 = vpop.f32.mrf.mxu0
      %v583 = vadd.f32 0.0, %v582
      %584 = vmatmul.bf16.gmra.mxu0 %v501
      %v585 = vpop.f32.mrf.mxu0
      %v586 = vadd.f32 0.0, %v585
      %v587 = vpop.f32.mrf.mxu0
      %v588 = vadd.f32 0.0, %v587
      %589 = vmatmul.bf16.gmra.mxu0 %v504
      %v590 = vpop.f32.mrf.mxu0
      %v591 = vadd.f32 0.0, %v590
      %v592 = vpop.f32.mrf.mxu0
      %v593 = vadd.f32 0.0, %v592
      %594 = vdwg.mxu0
      %595 = vmatpush.bf16.msra.mxu0 0
      %596 = vmatpush.bf16.msra.mxu0 0
      %597 = vmatpush.bf16.msra.mxu0 0
      %598 = vmatpush.bf16.msra.mxu0 0
      %599 = vmatpush.bf16.msra.mxu0 0
      %600 = vmatpush.bf16.msra.mxu0 0
      %601 = vmatpush.bf16.msra.mxu0 %v511
      %602 = vmatpush.bf16.msra.mxu0 %v443
      %603 = vmatmul.bf16.gmra.mxu0 %v483
      %v604 = vpop.f32.mrf.mxu0
      %v605 = vadd.f32 0.0, %v604
      %v606 = vpop.f32.mrf.mxu0
      %v607 = vadd.f32 0.0, %v606
      %608 = vmatmul.bf16.gmra.mxu0 %v486
      %v609 = vpop.f32.mrf.mxu0
      %v610 = vadd.f32 0.0, %v609
      %v611 = vpop.f32.mrf.mxu0
      %v612 = vadd.f32 0.0, %v611
      %613 = vmatmul.bf16.gmra.mxu0 %v489
      %v614 = vpop.f32.mrf.mxu0
      %v615 = vadd.f32 0.0, %v614
      %v616 = vpop.f32.mrf.mxu0
      %v617 = vadd.f32 0.0, %v616
      %618 = vmatmul.bf16.gmra.mxu0 %v492
      %v619 = vpop.f32.mrf.mxu0
      %v620 = vadd.f32 0.0, %v619
      %v621 = vpop.f32.mrf.mxu0
      %v622 = vadd.f32 0.0, %v621
      %623 = vmatmul.bf16.gmra.mxu0 %v495
      %v624 = vpop.f32.mrf.mxu0
      %v625 = vadd.f32 0.0, %v624
      %v626 = vpop.f32.mrf.mxu0
      %v627 = vadd.f32 0.0, %v626
      %628 = vmatmul.bf16.gmra.mxu0 %v498
      %v629 = vpop.f32.mrf.mxu0
      %v630 = vadd.f32 0.0, %v629
      %v631 = vpop.f32.mrf.mxu0
      %v632 = vadd.f32 0.0, %v631
      %633 = vmatmul.bf16.gmra.mxu0 %v501
      %v634 = vpop.f32.mrf.mxu0
      %v635 = vadd.f32 0.0, %v634
      %v636 = vpop.f32.mrf.mxu0
      %v637 = vadd.f32 0.0, %v636
      %638 = vmatmul.bf16.gmra.mxu0 %v504
      %v639 = vpop.f32.mrf.mxu0
      %v640 = vadd.f32 0.0, %v639
      %v641 = vpop.f32.mrf.mxu0
      %v642 = vadd.f32 0.0, %v641
      %643 = vdwg.mxu0
      %644 = vmatpush.bf16.msra.mxu0 0
      %645 = vmatpush.bf16.msra.mxu0 0
      %646 = vmatpush.bf16.msra.mxu0 0
      %647 = vmatpush.bf16.msra.mxu0 0
      %648 = vmatpush.bf16.msra.mxu0 0
      %649 = vmatpush.bf16.msra.mxu0 0
      %650 = vmatpush.bf16.msra.mxu0 %v514
      %651 = vmatpush.bf16.msra.mxu0 %v444
      %652 = vmatmul.bf16.gmra.mxu0 %v483
      %v653 = vpop.f32.mrf.mxu0
      %v654 = vadd.f32 0.0, %v653
      %v655 = vpop.f32.mrf.mxu0
      %v656 = vadd.f32 0.0, %v655
      %657 = vmatmul.bf16.gmra.mxu0 %v486
      %v658 = vpop.f32.mrf.mxu0
      %v659 = vadd.f32 0.0, %v658
      %v660 = vpop.f32.mrf.mxu0
      %v661 = vadd.f32 0.0, %v660
      %662 = vmatmul.bf16.gmra.mxu0 %v489
      %v663 = vpop.f32.mrf.mxu0
      %v664 = vadd.f32 0.0, %v663
      %v665 = vpop.f32.mrf.mxu0
      %v666 = vadd.f32 0.0, %v665
      %667 = vmatmul.bf16.gmra.mxu0 %v492
      %v668 = vpop.f32.mrf.mxu0
      %v669 = vadd.f32 0.0, %v668
      %v670 = vpop.f32.mrf.mxu0
      %v671 = vadd.f32 0.0, %v670
      %672 = vmatmul.bf16.gmra.mxu0 %v495
      %v673 = vpop.f32.mrf.mxu0
      %v674 = vadd.f32 0.0, %v673
      %v675 = vpop.f32.mrf.mxu0
      %v676 = vadd.f32 0.0, %v675
      %677 = vmatmul.bf16.gmra.mxu0 %v498
      %v678 = vpop.f32.mrf.mxu0
      %v679 = vadd.f32 0.0, %v678
      %v680 = vpop.f32.mrf.mxu0
      %v681 = vadd.f32 0.0, %v680
      %682 = vmatmul.bf16.gmra.mxu0 %v501
      %v683 = vpop.f32.mrf.mxu0
      %v684 = vadd.f32 0.0, %v683
      %v685 = vpop.f32.mrf.mxu0
      %v686 = vadd.f32 0.0, %v685
      %687 = vmatmul.bf16.gmra.mxu0 %v504
      %v688 = vpop.f32.mrf.mxu0
      %v689 = vadd.f32 0.0, %v688
      %v690 = vpop.f32.mrf.mxu0
      %v691 = vadd.f32 0.0, %v690
      %692 = vdwg.mxu0
      %693 = vmatpush.bf16.msra.mxu0 0
      %694 = vmatpush.bf16.msra.mxu0 0
      %695 = vmatpush.bf16.msra.mxu0 0
      %696 = vmatpush.bf16.msra.mxu0 0
      %697 = vmatpush.bf16.msra.mxu0 0
      %698 = vmatpush.bf16.msra.mxu0 0
      %699 = vmatpush.bf16.msra.mxu0 %v517
      %700 = vmatpush.bf16.msra.mxu0 %v445
      %701 = vmatmul.bf16.gmra.mxu0 %v483
      %v702 = vpop.f32.mrf.mxu0
      %v703 = vadd.f32 0.0, %v702
      %v704 = vpop.f32.mrf.mxu0
      %v705 = vadd.f32 0.0, %v704
      %706 = vmatmul.bf16.gmra.mxu0 %v486
      %v707 = vpop.f32.mrf.mxu0
      %v708 = vadd.f32 0.0, %v707
      %v709 = vpop.f32.mrf.mxu0
      %v710 = vadd.f32 0.0, %v709
      %711 = vmatmul.bf16.gmra.mxu0 %v489
      %v712 = vpop.f32.mrf.mxu0
      %v713 = vadd.f32 0.0, %v712
      %v714 = vpop.f32.mrf.mxu0
      %v715 = vadd.f32 0.0, %v714
      %716 = vmatmul.bf16.gmra.mxu0 %v492
      %v717 = vpop.f32.mrf.mxu0
      %v718 = vadd.f32 0.0, %v717
      %v719 = vpop.f32.mrf.mxu0
      %v720 = vadd.f32 0.0, %v719
      %721 = vmatmul.bf16.gmra.mxu0 %v495
      %v722 = vpop.f32.mrf.mxu0
      %v723 = vadd.f32 0.0, %v722
      %v724 = vpop.f32.mrf.mxu0
      %v725 = vadd.f32 0.0, %v724
      %726 = vmatmul.bf16.gmra.mxu0 %v498
      %v727 = vpop.f32.mrf.mxu0
      %v728 = vadd.f32 0.0, %v727
      %v729 = vpop.f32.mrf.mxu0
      %v730 = vadd.f32 0.0, %v729
      %731 = vmatmul.bf16.gmra.mxu0 %v501
      %v732 = vpop.f32.mrf.mxu0
      %v733 = vadd.f32 0.0, %v732
      %v734 = vpop.f32.mrf.mxu0
      %v735 = vadd.f32 0.0, %v734
      %736 = vmatmul.bf16.gmra.mxu0 %v504
      %v737 = vpop.f32.mrf.mxu0
      %v738 = vadd.f32 0.0, %v737
      %v739 = vpop.f32.mrf.mxu0
      %v740 = vadd.f32 0.0, %v739
      %741 = vdwg.mxu0
      %742 = vmatpush.bf16.msra.mxu0 0
      %743 = vmatpush.bf16.msra.mxu0 0
      %744 = vmatpush.bf16.msra.mxu0 0
      %745 = vmatpush.bf16.msra.mxu0 0
      %746 = vmatpush.bf16.msra.mxu0 0
      %747 = vmatpush.bf16.msra.mxu0 0
      %748 = vmatpush.bf16.msra.mxu0 %v520
      %749 = vmatpush.bf16.msra.mxu0 %v446
      %750 = vmatmul.bf16.gmra.mxu0 %v483
      %v751 = vpop.f32.mrf.mxu0
      %v752 = vadd.f32 0.0, %v751
      %v753 = vpop.f32.mrf.mxu0
      %v754 = vadd.f32 0.0, %v753
      %755 = vmatmul.bf16.gmra.mxu0 %v486
      %v756 = vpop.f32.mrf.mxu0
      %v757 = vadd.f32 0.0, %v756
      %v758 = vpop.f32.mrf.mxu0
      %v759 = vadd.f32 0.0, %v758
      %760 = vmatmul.bf16.gmra.mxu0 %v489
      %v761 = vpop.f32.mrf.mxu0
      %v762 = vadd.f32 0.0, %v761
      %v763 = vpop.f32.mrf.mxu0
      %v764 = vadd.f32 0.0, %v763
      %765 = vmatmul.bf16.gmra.mxu0 %v492
      %v766 = vpop.f32.mrf.mxu0
      %v767 = vadd.f32 0.0, %v766
      %v768 = vpop.f32.mrf.mxu0
      %v769 = vadd.f32 0.0, %v768
      %770 = vmatmul.bf16.gmra.mxu0 %v495
      %v771 = vpop.f32.mrf.mxu0
      %v772 = vadd.f32 0.0, %v771
      %v773 = vpop.f32.mrf.mxu0
      %v774 = vadd.f32 0.0, %v773
      %775 = vmatmul.bf16.gmra.mxu0 %v498
      %v776 = vpop.f32.mrf.mxu0
      %v777 = vadd.f32 0.0, %v776
      %v778 = vpop.f32.mrf.mxu0
      %v779 = vadd.f32 0.0, %v778
      %780 = vmatmul.bf16.gmra.mxu0 %v501
      %v781 = vpop.f32.mrf.mxu0
      %v782 = vadd.f32 0.0, %v781
      %v783 = vpop.f32.mrf.mxu0
      %v784 = vadd.f32 0.0, %v783
      %785 = vmatmul.bf16.gmra.mxu0 %v504
      %v786 = vpop.f32.mrf.mxu0
      %v787 = vadd.f32 0.0, %v786
      %v788 = vpop.f32.mrf.mxu0
      %v789 = vadd.f32 0.0, %v788
      %790 = vdwg.mxu0
      %791 = vmatpush.bf16.msra.mxu0 0
      %792 = vmatpush.bf16.msra.mxu0 0
      %793 = vmatpush.bf16.msra.mxu0 0
      %794 = vmatpush.bf16.msra.mxu0 0
      %795 = vmatpush.bf16.msra.mxu0 0
      %796 = vmatpush.bf16.msra.mxu0 0
      %797 = vmatpush.bf16.msra.mxu0 %v523
      %798 = vmatpush.bf16.msra.mxu0 %v447
      %799 = vmatmul.bf16.gmra.mxu0 %v483
      %v800 = vpop.f32.mrf.mxu0
      %v801 = vadd.f32 0.0, %v800
      %v802 = vpop.f32.mrf.mxu0
      %v803 = vadd.f32 0.0, %v802
      %804 = vmatmul.bf16.gmra.mxu0 %v486
      %v805 = vpop.f32.mrf.mxu0
      %v806 = vadd.f32 0.0, %v805
      %v807 = vpop.f32.mrf.mxu0
      %v808 = vadd.f32 0.0, %v807
      %809 = vmatmul.bf16.gmra.mxu0 %v489
      %v810 = vpop.f32.mrf.mxu0
      %v811 = vadd.f32 0.0, %v810
      %v812 = vpop.f32.mrf.mxu0
      %v813 = vadd.f32 0.0, %v812
      %814 = vmatmul.bf16.gmra.mxu0 %v492
      %v815 = vpop.f32.mrf.mxu0
      %v816 = vadd.f32 0.0, %v815
      %v817 = vpop.f32.mrf.mxu0
      %v818 = vadd.f32 0.0, %v817
      %819 = vmatmul.bf16.gmra.mxu0 %v495
      %v820 = vpop.f32.mrf.mxu0
      %v821 = vadd.f32 0.0, %v820
      %v822 = vpop.f32.mrf.mxu0
      %v823 = vadd.f32 0.0, %v822
      %824 = vmatmul.bf16.gmra.mxu0 %v498
      %v825 = vpop.f32.mrf.mxu0
      %v826 = vadd.f32 0.0, %v825
      %v827 = vpop.f32.mrf.mxu0
      %v828 = vadd.f32 0.0, %v827
      %829 = vmatmul.bf16.gmra.mxu0 %v501
      %v830 = vpop.f32.mrf.mxu0
      %v831 = vadd.f32 0.0, %v830
      %v832 = vpop.f32.mrf.mxu0
      %v833 = vadd.f32 0.0, %v832
      %834 = vmatmul.bf16.gmra.mxu0 %v504
      %v835 = vpop.f32.mrf.mxu0
      %v836 = vadd.f32 0.0, %v835
      %v837 = vpop.f32.mrf.mxu0
      %v838 = vadd.f32 0.0, %v837
      %839 = vdwg.mxu0
      %840 = vmatpush.bf16.msra.mxu0 0
      %841 = vmatpush.bf16.msra.mxu0 0
      %842 = vmatpush.bf16.msra.mxu0 0
      %843 = vmatpush.bf16.msra.mxu0 0
      %844 = vmatpush.bf16.msra.mxu0 0
      %845 = vmatpush.bf16.msra.mxu0 0
      %846 = vmatpush.bf16.msra.mxu0 %v526
      %847 = vmatpush.bf16.msra.mxu0 %v448
      %848 = vmatmul.bf16.gmra.mxu0 %v483
      %v849 = vpop.f32.mrf.mxu0
      %v850 = vadd.f32 0.0, %v849
      %v851 = vpop.f32.mrf.mxu0
      %v852 = vadd.f32 0.0, %v851
      %853 = vmatmul.bf16.gmra.mxu0 %v486
      %v854 = vpop.f32.mrf.mxu0
      %v855 = vadd.f32 0.0, %v854
      %v856 = vpop.f32.mrf.mxu0
      %v857 = vadd.f32 0.0, %v856
      %858 = vmatmul.bf16.gmra.mxu0 %v489
      %v859 = vpop.f32.mrf.mxu0
      %v860 = vadd.f32 0.0, %v859
      %v861 = vpop.f32.mrf.mxu0
      %v862 = vadd.f32 0.0, %v861
      %863 = vmatmul.bf16.gmra.mxu0 %v492
      %v864 = vpop.f32.mrf.mxu0
      %v865 = vadd.f32 0.0, %v864
      %v866 = vpop.f32.mrf.mxu0
      %v867 = vadd.f32 0.0, %v866
      %868 = vmatmul.bf16.gmra.mxu0 %v495
      %v869 = vpop.f32.mrf.mxu0
      %v870 = vadd.f32 0.0, %v869
      %v871 = vpop.f32.mrf.mxu0
      %v872 = vadd.f32 0.0, %v871
      %873 = vmatmul.bf16.gmra.mxu0 %v498
      %v874 = vpop.f32.mrf.mxu0
      %v875 = vadd.f32 0.0, %v874
      %v876 = vpop.f32.mrf.mxu0
      %v877 = vadd.f32 0.0, %v876
      %878 = vmatmul.bf16.gmra.mxu0 %v501
      %v879 = vpop.f32.mrf.mxu0
      %v880 = vadd.f32 0.0, %v879
      %v881 = vpop.f32.mrf.mxu0
      %v882 = vadd.f32 0.0, %v881
      %883 = vmatmul.bf16.gmra.mxu0 %v504
      %v884 = vpop.f32.mrf.mxu0
      %v885 = vadd.f32 0.0, %v884
      %v886 = vpop.f32.mrf.mxu0
      %v887 = vadd.f32 0.0, %v886
      %888 = vdwg.mxu0
      %889 = vmatpush.bf16.msra.mxu0 0
      %890 = vmatpush.bf16.msra.mxu0 0
      %891 = vmatpush.bf16.msra.mxu0 0
      %892 = vmatpush.bf16.msra.mxu0 0
      %893 = vmatpush.bf16.msra.mxu0 0
      %894 = vmatpush.bf16.msra.mxu0 0
      %895 = vmatpush.bf16.msra.mxu0 %v529
      %896 = vmatpush.bf16.msra.mxu0 %v449
      %897 = vmatmul.bf16.gmra.mxu0 %v483
      %v898 = vpop.f32.mrf.mxu0
      %v899 = vadd.f32 0.0, %v898
      %v900 = vpop.f32.mrf.mxu0
      %v901 = vadd.f32 0.0, %v900
      %902 = vmatmul.bf16.gmra.mxu0 %v486
      %v903 = vpop.f32.mrf.mxu0
      %v904 = vadd.f32 0.0, %v903
      %v905 = vpop.f32.mrf.mxu0
      %v906 = vadd.f32 0.0, %v905
      %907 = vmatmul.bf16.gmra.mxu0 %v489
      %v908 = vpop.f32.mrf.mxu0
      %v909 = vadd.f32 0.0, %v908
      %v910 = vpop.f32.mrf.mxu0
      %v911 = vadd.f32 0.0, %v910
      %912 = vmatmul.bf16.gmra.mxu0 %v492
      %v913 = vpop.f32.mrf.mxu0
      %v914 = vadd.f32 0.0, %v913
      %v915 = vpop.f32.mrf.mxu0
      %v916 = vadd.f32 0.0, %v915
      %917 = vmatmul.bf16.gmra.mxu0 %v495
      %v918 = vpop.f32.mrf.mxu0
      %v919 = vadd.f32 0.0, %v918
      %v920 = vpop.f32.mrf.mxu0
      %v921 = vadd.f32 0.0, %v920
      %922 = vmatmul.bf16.gmra.mxu0 %v498
      %v923 = vpop.f32.mrf.mxu0
      %v924 = vadd.f32 0.0, %v923
      %v925 = vpop.f32.mrf.mxu0
      %v926 = vadd.f32 0.0, %v925
      %927 = vmatmul.bf16.gmra.mxu0 %v501
      %v928 = vpop.f32.mrf.mxu0
      %v929 = vadd.f32 0.0, %v928
      %v930 = vpop.f32.mrf.mxu0
      %v931 = vadd.f32 0.0, %v930
      %932 = vmatmul.bf16.gmra.mxu0 %v504
      %v933 = vpop.f32.mrf.mxu0
      %v934 = vadd.f32 0.0, %v933
      %v935 = vpop.f32.mrf.mxu0
      %v936 = vadd.f32 0.0, %v935
      %937 = vdwg.mxu0
      %938 = vmatpush.bf16.msra.mxu0 0
      %939 = vmatpush.bf16.msra.mxu0 0
      %940 = vmatpush.bf16.msra.mxu0 0
      %941 = vmatpush.bf16.msra.mxu0 0
      %942 = vmatpush.bf16.msra.mxu0 0
      %943 = vmatpush.bf16.msra.mxu0 0
      %944 = vmatpush.bf16.msra.mxu0 %v532
      %945 = vmatpush.bf16.msra.mxu0 %v450
      %946 = vmatmul.bf16.gmra.mxu0 %v483
      %v947 = vpop.f32.mrf.mxu0
      %v948 = vadd.f32 0.0, %v947
      %v949 = vpop.f32.mrf.mxu0
      %v950 = vadd.f32 0.0, %v949
      %951 = vmatmul.bf16.gmra.mxu0 %v486
      %v952 = vpop.f32.mrf.mxu0
      %v953 = vadd.f32 0.0, %v952
      %v954 = vpop.f32.mrf.mxu0
      %v955 = vadd.f32 0.0, %v954
      %956 = vmatmul.bf16.gmra.mxu0 %v489
      %v957 = vpop.f32.mrf.mxu0
      %v958 = vadd.f32 0.0, %v957
      %v959 = vpop.f32.mrf.mxu0
      %v960 = vadd.f32 0.0, %v959
      %961 = vmatmul.bf16.gmra.mxu0 %v492
      %v962 = vpop.f32.mrf.mxu0
      %v963 = vadd.f32 0.0, %v962
      %v964 = vpop.f32.mrf.mxu0
      %v965 = vadd.f32 0.0, %v964
      %966 = vmatmul.bf16.gmra.mxu0 %v495
      %v967 = vpop.f32.mrf.mxu0
      %v968 = vadd.f32 0.0, %v967
      %v969 = vpop.f32.mrf.mxu0
      %v970 = vadd.f32 0.0, %v969
      %971 = vmatmul.bf16.gmra.mxu0 %v498
      %v972 = vpop.f32.mrf.mxu0
      %v973 = vadd.f32 0.0, %v972
      %v974 = vpop.f32.mrf.mxu0
      %v975 = vadd.f32 0.0, %v974
      %976 = vmatmul.bf16.gmra.mxu0 %v501
      %v977 = vpop.f32.mrf.mxu0
      %v978 = vadd.f32 0.0, %v977
      %v979 = vpop.f32.mrf.mxu0
      %v980 = vadd.f32 0.0, %v979
      %981 = vmatmul.bf16.gmra.mxu0 %v504
      %v982 = vpop.f32.mrf.mxu0
      %v983 = vadd.f32 0.0, %v982
      %v984 = vpop.f32.mrf.mxu0
      %v985 = vadd.f32 0.0, %v984
      %986 = vdwg.mxu0
      %987 = vmatpush.bf16.msra.mxu0 0
      %988 = vmatpush.bf16.msra.mxu0 0
      %989 = vmatpush.bf16.msra.mxu0 0
      %990 = vmatpush.bf16.msra.mxu0 0
      %991 = vmatpush.bf16.msra.mxu0 0
      %992 = vmatpush.bf16.msra.mxu0 0
      %993 = vmatpush.bf16.msra.mxu0 %v535
      %994 = vmatpush.bf16.msra.mxu0 %v451
      %995 = vmatmul.bf16.gmra.mxu0 %v483
      %v996 = vpop.f32.mrf.mxu0
      %v997 = vadd.f32 0.0, %v996
      %v998 = vpop.f32.mrf.mxu0
      %v999 = vadd.f32 0.0, %v998
      %1000 = vmatmul.bf16.gmra.mxu0 %v486
      %v1001 = vpop.f32.mrf.mxu0
      %v1002 = vadd.f32 0.0, %v1001
      %v1003 = vpop.f32.mrf.mxu0
      %v1004 = vadd.f32 0.0, %v1003
      %1005 = vmatmul.bf16.gmra.mxu0 %v489
      %v1006 = vpop.f32.mrf.mxu0
      %v1007 = vadd.f32 0.0, %v1006
      %v1008 = vpop.f32.mrf.mxu0
      %v1009 = vadd.f32 0.0, %v1008
      %1010 = vmatmul.bf16.gmra.mxu0 %v492
      %v1011 = vpop.f32.mrf.mxu0
      %v1012 = vadd.f32 0.0, %v1011
      %v1013 = vpop.f32.mrf.mxu0
      %v1014 = vadd.f32 0.0, %v1013
      %1015 = vmatmul.bf16.gmra.mxu0 %v495
      %v1016 = vpop.f32.mrf.mxu0
      %v1017 = vadd.f32 0.0, %v1016
      %v1018 = vpop.f32.mrf.mxu0
      %v1019 = vadd.f32 0.0, %v1018
      %1020 = vmatmul.bf16.gmra.mxu0 %v498
      %v1021 = vpop.f32.mrf.mxu0
      %v1022 = vadd.f32 0.0, %v1021
      %v1023 = vpop.f32.mrf.mxu0
      %v1024 = vadd.f32 0.0, %v1023
      %1025 = vmatmul.bf16.gmra.mxu0 %v501
      %v1026 = vpop.f32.mrf.mxu0
      %v1027 = vadd.f32 0.0, %v1026
      %v1028 = vpop.f32.mrf.mxu0
      %v1029 = vadd.f32 0.0, %v1028
      %1030 = vmatmul.bf16.gmra.mxu0 %v504
      %v1031 = vpop.f32.mrf.mxu0
      %v1032 = vadd.f32 0.0, %v1031
      %v1033 = vpop.f32.mrf.mxu0
      %v1034 = vadd.f32 0.0, %v1033
      %1035 = vdwg.mxu0
      %1036 = vmatpush.bf16.msra.mxu0 0
      %1037 = vmatpush.bf16.msra.mxu0 0
      %1038 = vmatpush.bf16.msra.mxu0 0
      %1039 = vmatpush.bf16.msra.mxu0 0
      %1040 = vmatpush.bf16.msra.mxu0 0
      %1041 = vmatpush.bf16.msra.mxu0 0
      %1042 = vmatpush.bf16.msra.mxu0 %v538
      %1043 = vmatpush.bf16.msra.mxu0 %v452
      %1044 = vmatmul.bf16.gmra.mxu0 %v483
      %v1045 = vpop.f32.mrf.mxu0
      %v1046 = vadd.f32 0.0, %v1045
      %v1047 = vpop.f32.mrf.mxu0
      %v1048 = vadd.f32 0.0, %v1047
      %1049 = vmatmul.bf16.gmra.mxu0 %v486
      %v1050 = vpop.f32.mrf.mxu0
      %v1051 = vadd.f32 0.0, %v1050
      %v1052 = vpop.f32.mrf.mxu0
      %v1053 = vadd.f32 0.0, %v1052
      %1054 = vmatmul.bf16.gmra.mxu0 %v489
      %v1055 = vpop.f32.mrf.mxu0
      %v1056 = vadd.f32 0.0, %v1055
      %v1057 = vpop.f32.mrf.mxu0
      %v1058 = vadd.f32 0.0, %v1057
      %1059 = vmatmul.bf16.gmra.mxu0 %v492
      %v1060 = vpop.f32.mrf.mxu0
      %v1061 = vadd.f32 0.0, %v1060
      %v1062 = vpop.f32.mrf.mxu0
      %v1063 = vadd.f32 0.0, %v1062
      %1064 = vmatmul.bf16.gmra.mxu0 %v495
      %v1065 = vpop.f32.mrf.mxu0
      %v1066 = vadd.f32 0.0, %v1065
      %v1067 = vpop.f32.mrf.mxu0
      %v1068 = vadd.f32 0.0, %v1067
      %1069 = vmatmul.bf16.gmra.mxu0 %v498
      %v1070 = vpop.f32.mrf.mxu0
      %v1071 = vadd.f32 0.0, %v1070
      %v1072 = vpop.f32.mrf.mxu0
      %v1073 = vadd.f32 0.0, %v1072
      %1074 = vmatmul.bf16.gmra.mxu0 %v501
      %v1075 = vpop.f32.mrf.mxu0
      %v1076 = vadd.f32 0.0, %v1075
      %v1077 = vpop.f32.mrf.mxu0
      %v1078 = vadd.f32 0.0, %v1077
      %1079 = vmatmul.bf16.gmra.mxu0 %v504
      %v1080 = vpop.f32.mrf.mxu0
      %v1081 = vadd.f32 0.0, %v1080
      %v1082 = vpop.f32.mrf.mxu0
      %v1083 = vadd.f32 0.0, %v1082
      %1084 = vdwg.mxu0
      %1085 = vmatpush.bf16.msra.mxu0 0
      %1086 = vmatpush.bf16.msra.mxu0 0
      %1087 = vmatpush.bf16.msra.mxu0 0
      %1088 = vmatpush.bf16.msra.mxu0 0
      %1089 = vmatpush.bf16.msra.mxu0 0
      %1090 = vmatpush.bf16.msra.mxu0 0
      %1091 = vmatpush.bf16.msra.mxu0 %v541
      %1092 = vmatpush.bf16.msra.mxu0 %v453
      %1093 = vmatmul.bf16.gmra.mxu0 %v483
      %v1094 = vpop.f32.mrf.mxu0
      %v1095 = vadd.f32 0.0, %v1094
      %v1096 = vpop.f32.mrf.mxu0
      %v1097 = vadd.f32 0.0, %v1096
      %1098 = vmatmul.bf16.gmra.mxu0 %v486
      %v1099 = vpop.f32.mrf.mxu0
      %v1100 = vadd.f32 0.0, %v1099
      %v1101 = vpop.f32.mrf.mxu0
      %v1102 = vadd.f32 0.0, %v1101
      %1103 = vmatmul.bf16.gmra.mxu0 %v489
      %v1104 = vpop.f32.mrf.mxu0
      %v1105 = vadd.f32 0.0, %v1104
      %v1106 = vpop.f32.mrf.mxu0
      %v1107 = vadd.f32 0.0, %v1106
      %1108 = vmatmul.bf16.gmra.mxu0 %v492
      %v1109 = vpop.f32.mrf.mxu0
      %v1110 = vadd.f32 0.0, %v1109
      %v1111 = vpop.f32.mrf.mxu0
      %v1112 = vadd.f32 0.0, %v1111
      %1113 = vmatmul.bf16.gmra.mxu0 %v495
      %v1114 = vpop.f32.mrf.mxu0
      %v1115 = vadd.f32 0.0, %v1114
      %v1116 = vpop.f32.mrf.mxu0
      %v1117 = vadd.f32 0.0, %v1116
      %1118 = vmatmul.bf16.gmra.mxu0 %v498
      %v1119 = vpop.f32.mrf.mxu0
      %v1120 = vadd.f32 0.0, %v1119
      %v1121 = vpop.f32.mrf.mxu0
      %v1122 = vadd.f32 0.0, %v1121
      %1123 = vmatmul.bf16.gmra.mxu0 %v501
      %v1124 = vpop.f32.mrf.mxu0
      %v1125 = vadd.f32 0.0, %v1124
      %v1126 = vpop.f32.mrf.mxu0
      %v1127 = vadd.f32 0.0, %v1126
      %1128 = vmatmul.bf16.gmra.mxu0 %v504
      %v1129 = vpop.f32.mrf.mxu0
      %v1130 = vadd.f32 0.0, %v1129
      %v1131 = vpop.f32.mrf.mxu0
      %v1132 = vadd.f32 0.0, %v1131
      %1133 = vdwg.mxu0
      %1134 = vmatpush.bf16.msra.mxu0 0
      %1135 = vmatpush.bf16.msra.mxu0 0
      %1136 = vmatpush.bf16.msra.mxu0 0
      %1137 = vmatpush.bf16.msra.mxu0 0
      %1138 = vmatpush.bf16.msra.mxu0 0
      %1139 = vmatpush.bf16.msra.mxu0 0
      %1140 = vmatpush.bf16.msra.mxu0 %v544
      %1141 = vmatpush.bf16.msra.mxu0 %v454
      %1142 = vmatmul.bf16.gmra.mxu0 %v483
      %v1143 = vpop.f32.mrf.mxu0
      %v1144 = vadd.f32 0.0, %v1143
      %v1145 = vpop.f32.mrf.mxu0
      %v1146 = vadd.f32 0.0, %v1145
      %1147 = vmatmul.bf16.gmra.mxu0 %v486
      %v1148 = vpop.f32.mrf.mxu0
      %v1149 = vadd.f32 0.0, %v1148
      %v1150 = vpop.f32.mrf.mxu0
      %v1151 = vadd.f32 0.0, %v1150
      %1152 = vmatmul.bf16.gmra.mxu0 %v489
      %v1153 = vpop.f32.mrf.mxu0
      %v1154 = vadd.f32 0.0, %v1153
      %v1155 = vpop.f32.mrf.mxu0
      %v1156 = vadd.f32 0.0, %v1155
      %1157 = vmatmul.bf16.gmra.mxu0 %v492
      %v1158 = vpop.f32.mrf.mxu0
      %v1159 = vadd.f32 0.0, %v1158
      %v1160 = vpop.f32.mrf.mxu0
      %v1161 = vadd.f32 0.0, %v1160
      %1162 = vmatmul.bf16.gmra.mxu0 %v495
      %v1163 = vpop.f32.mrf.mxu0
      %v1164 = vadd.f32 0.0, %v1163
      %v1165 = vpop.f32.mrf.mxu0
      %v1166 = vadd.f32 0.0, %v1165
      %1167 = vmatmul.bf16.gmra.mxu0 %v498
      %v1168 = vpop.f32.mrf.mxu0
      %v1169 = vadd.f32 0.0, %v1168
      %v1170 = vpop.f32.mrf.mxu0
      %v1171 = vadd.f32 0.0, %v1170
      %1172 = vmatmul.bf16.gmra.mxu0 %v501
      %v1173 = vpop.f32.mrf.mxu0
      %v1174 = vadd.f32 0.0, %v1173
      %v1175 = vpop.f32.mrf.mxu0
      %v1176 = vadd.f32 0.0, %v1175
      %1177 = vmatmul.bf16.gmra.mxu0 %v504
      %v1178 = vpop.f32.mrf.mxu0
      %v1179 = vadd.f32 0.0, %v1178
      %v1180 = vpop.f32.mrf.mxu0
      %v1181 = vadd.f32 0.0, %v1180
      %1182 = vdwg.mxu0
      %v1183 = vmax.f32 %v556, 0.0
      %v1184 = vmax.f32 %v605, 0.0
      %v1185 = vmax.f32 %v654, 0.0
      %v1186 = vmax.f32 %v703, 0.0
      %v1187 = vmax.f32 %v752, 0.0
      %v1188 = vmax.f32 %v801, 0.0
      %v1189 = vmax.f32 %v850, 0.0
      %v1190 = vmax.f32 %v899, 0.0
      %v1191 = vmax.f32 %v948, 0.0
      %v1192 = vmax.f32 %v997, 0.0
      %v1193 = vmax.f32 %v1046, 0.0
      %v1194 = vmax.f32 %v1095, 0.0
      %v1195 = vmax.f32 %v1144, 0.0
      %v1196 = vmax.f32 %v558, 0.0
      %v1197 = vmax.f32 %v607, 0.0
      %v1198 = vmax.f32 %v656, 0.0
      %v1199 = vmax.f32 %v705, 0.0
      %v1200 = vmax.f32 %v754, 0.0
      %v1201 = vmax.f32 %v803, 0.0
      %v1202 = vmax.f32 %v852, 0.0
      %v1203 = vmax.f32 %v901, 0.0
      %v1204 = vmax.f32 %v950, 0.0
      %v1205 = vmax.f32 %v999, 0.0
      %v1206 = vmax.f32 %v1048, 0.0
      %v1207 = vmax.f32 %v1097, 0.0
      %v1208 = vmax.f32 %v1146, 0.0
      %v1209 = vmax.f32 %v561, 0.0
      %v1210 = vmax.f32 %v610, 0.0
      %v1211 = vmax.f32 %v659, 0.0
      %v1212 = vmax.f32 %v708, 0.0
      %v1213 = vmax.f32 %v757, 0.0
      %v1214 = vmax.f32 %v806, 0.0
      %v1215 = vmax.f32 %v855, 0.0
      %v1216 = vmax.f32 %v904, 0.0
      %v1217 = vmax.f32 %v953, 0.0
      %v1218 = vmax.f32 %v1002, 0.0
      %v1219 = vmax.f32 %v1051, 0.0
      %v1220 = vmax.f32 %v1100, 0.0
      %v1221 = vmax.f32 %v1149, 0.0
      %v1222 = vmax.f32 %v563, 0.0
      %v1223 = vmax.f32 %v612, 0.0
      %v1224 = vmax.f32 %v661, 0.0
      %v1225 = vmax.f32 %v710, 0.0
      %v1226 = vmax.f32 %v759, 0.0
      %v1227 = vmax.f32 %v808, 0.0
      %v1228 = vmax.f32 %v857, 0.0
      %v1229 = vmax.f32 %v906, 0.0
      %v1230 = vmax.f32 %v955, 0.0
      %v1231 = vmax.f32 %v1004, 0.0
      %v1232 = vmax.f32 %v1053, 0.0
      %v1233 = vmax.f32 %v1102, 0.0
      %v1234 = vmax.f32 %v1151, 0.0
      %v1235 = vmax.f32 %v566, 0.0
      %v1236 = vmax.f32 %v615, 0.0
      %v1237 = vmax.f32 %v664, 0.0
      %v1238 = vmax.f32 %v713, 0.0
      %v1239 = vmax.f32 %v762, 0.0
      %v1240 = vmax.f32 %v811, 0.0
      %v1241 = vmax.f32 %v860, 0.0
      %v1242 = vmax.f32 %v909, 0.0
      %v1243 = vmax.f32 %v958, 0.0
      %v1244 = vmax.f32 %v1007, 0.0
      %v1245 = vmax.f32 %v1056, 0.0
      %v1246 = vmax.f32 %v1105, 0.0
      %v1247 = vmax.f32 %v1154, 0.0
      %v1248 = vmax.f32 %v568, 0.0
      %v1249 = vmax.f32 %v617, 0.0
      %v1250 = vmax.f32 %v666, 0.0
      %v1251 = vmax.f32 %v715, 0.0
      %v1252 = vmax.f32 %v764, 0.0
      %v1253 = vmax.f32 %v813, 0.0
      %v1254 = vmax.f32 %v862, 0.0
      %v1255 = vmax.f32 %v911, 0.0
      %v1256 = vmax.f32 %v960, 0.0
      %v1257 = vmax.f32 %v1009, 0.0
      %v1258 = vmax.f32 %v1058, 0.0
      %v1259 = vmax.f32 %v1107, 0.0
      %v1260 = vmax.f32 %v1156, 0.0
      %v1261 = vmax.f32 %v571, 0.0
      %v1262 = vmax.f32 %v620, 0.0
      %v1263 = vmax.f32 %v669, 0.0
      %v1264 = vmax.f32 %v718, 0.0
      %v1265 = vmax.f32 %v767, 0.0
      %v1266 = vmax.f32 %v816, 0.0
      %v1267 = vmax.f32 %v865, 0.0
      %v1268 = vmax.f32 %v914, 0.0
      %v1269 = vmax.f32 %v963, 0.0
      %v1270 = vmax.f32 %v1012, 0.0
      %v1271 = vmax.f32 %v1061, 0.0
      %v1272 = vmax.f32 %v1110, 0.0
      %v1273 = vmax.f32 %v1159, 0.0
      %v1274 = vmax.f32 %v573, 0.0
      %v1275 = vmax.f32 %v622, 0.0
      %v1276 = vmax.f32 %v671, 0.0
      %v1277 = vmax.f32 %v720, 0.0
      %v1278 = vmax.f32 %v769, 0.0
      %v1279 = vmax.f32 %v818, 0.0
      %v1280 = vmax.f32 %v867, 0.0
      %v1281 = vmax.f32 %v916, 0.0
      %v1282 = vmax.f32 %v965, 0.0
      %v1283 = vmax.f32 %v1014, 0.0
      %v1284 = vmax.f32 %v1063, 0.0
      %v1285 = vmax.f32 %v1112, 0.0
      %v1286 = vmax.f32 %v1161, 0.0
      %v1287 = vmax.f32 %v576, 0.0
      %v1288 = vmax.f32 %v625, 0.0
      %v1289 = vmax.f32 %v674, 0.0
      %v1290 = vmax.f32 %v723, 0.0
      %v1291 = vmax.f32 %v772, 0.0
      %v1292 = vmax.f32 %v821, 0.0
      %v1293 = vmax.f32 %v870, 0.0
      %v1294 = vmax.f32 %v919, 0.0
      %v1295 = vmax.f32 %v968, 0.0
      %v1296 = vmax.f32 %v1017, 0.0
      %v1297 = vmax.f32 %v1066, 0.0
      %v1298 = vmax.f32 %v1115, 0.0
      %v1299 = vmax.f32 %v1164, 0.0
      %v1300 = vmax.f32 %v578, 0.0
      %v1301 = vmax.f32 %v627, 0.0
      %v1302 = vmax.f32 %v676, 0.0
      %v1303 = vmax.f32 %v725, 0.0
      %v1304 = vmax.f32 %v774, 0.0
      %v1305 = vmax.f32 %v823, 0.0
      %v1306 = vmax.f32 %v872, 0.0
      %v1307 = vmax.f32 %v921, 0.0
      %v1308 = vmax.f32 %v970, 0.0
      %v1309 = vmax.f32 %v1019, 0.0
      %v1310 = vmax.f32 %v1068, 0.0
      %v1311 = vmax.f32 %v1117, 0.0
      %v1312 = vmax.f32 %v1166, 0.0
      %v1313 = vmax.f32 %v581, 0.0
      %v1314 = vmax.f32 %v630, 0.0
      %v1315 = vmax.f32 %v679, 0.0
      %v1316 = vmax.f32 %v728, 0.0
      %v1317 = vmax.f32 %v777, 0.0
      %v1318 = vmax.f32 %v826, 0.0
      %v1319 = vmax.f32 %v875, 0.0
      %v1320 = vmax.f32 %v924, 0.0
      %v1321 = vmax.f32 %v973, 0.0
      %v1322 = vmax.f32 %v1022, 0.0
      %v1323 = vmax.f32 %v1071, 0.0
      %v1324 = vmax.f32 %v1120, 0.0
      %v1325 = vmax.f32 %v1169, 0.0
      %v1326 = vmax.f32 %v583, 0.0
      %v1327 = vmax.f32 %v632, 0.0
      %v1328 = vmax.f32 %v681, 0.0
      %v1329 = vmax.f32 %v730, 0.0
      %v1330 = vmax.f32 %v779, 0.0
      %v1331 = vmax.f32 %v828, 0.0
      %v1332 = vmax.f32 %v877, 0.0
      %v1333 = vmax.f32 %v926, 0.0
      %v1334 = vmax.f32 %v975, 0.0
      %v1335 = vmax.f32 %v1024, 0.0
      %v1336 = vmax.f32 %v1073, 0.0
      %v1337 = vmax.f32 %v1122, 0.0
      %v1338 = vmax.f32 %v1171, 0.0
      %v1339 = vmax.f32 %v586, 0.0
      %v1340 = vmax.f32 %v635, 0.0
      %v1341 = vmax.f32 %v684, 0.0
      %v1342 = vmax.f32 %v733, 0.0
      %v1343 = vmax.f32 %v782, 0.0
      %v1344 = vmax.f32 %v831, 0.0
      %v1345 = vmax.f32 %v880, 0.0
      %v1346 = vmax.f32 %v929, 0.0
      %v1347 = vmax.f32 %v978, 0.0
      %v1348 = vmax.f32 %v1027, 0.0
      %v1349 = vmax.f32 %v1076, 0.0
      %v1350 = vmax.f32 %v1125, 0.0
      %v1351 = vmax.f32 %v1174, 0.0
      %v1352 = vmax.f32 %v588, 0.0
      %v1353 = vmax.f32 %v637, 0.0
      %v1354 = vmax.f32 %v686, 0.0
      %v1355 = vmax.f32 %v735, 0.0
      %v1356 = vmax.f32 %v784, 0.0
      %v1357 = vmax.f32 %v833, 0.0
      %v1358 = vmax.f32 %v882, 0.0
      %v1359 = vmax.f32 %v931, 0.0
      %v1360 = vmax.f32 %v980, 0.0
      %v1361 = vmax.f32 %v1029, 0.0
      %v1362 = vmax.f32 %v1078, 0.0
      %v1363 = vmax.f32 %v1127, 0.0
      %v1364 = vmax.f32 %v1176, 0.0
      %v1365 = vmax.f32 %v591, 0.0
      %v1366 = vmax.f32 %v640, 0.0
      %v1367 = vmax.f32 %v689, 0.0
      %v1368 = vmax.f32 %v738, 0.0
      %v1369 = vmax.f32 %v787, 0.0
      %v1370 = vmax.f32 %v836, 0.0
      %v1371 = vmax.f32 %v885, 0.0
      %v1372 = vmax.f32 %v934, 0.0
      %v1373 = vmax.f32 %v983, 0.0
      %v1374 = vmax.f32 %v1032, 0.0
      %v1375 = vmax.f32 %v1081, 0.0
      %v1376 = vmax.f32 %v1130, 0.0
      %v1377 = vmax.f32 %v1179, 0.0
      %v1378 = vmax.f32 %v593, 0.0
      %v1379 = vmax.f32 %v642, 0.0
      %v1380 = vmax.f32 %v691, 0.0
      %v1381 = vmax.f32 %v740, 0.0
      %v1382 = vmax.f32 %v789, 0.0
      %v1383 = vmax.f32 %v838, 0.0
      %v1384 = vmax.f32 %v887, 0.0
      %v1385 = vmax.f32 %v936, 0.0
      %v1386 = vmax.f32 %v985, 0.0
      %v1387 = vmax.f32 %v1034, 0.0
      %v1388 = vmax.f32 %v1083, 0.0
      %v1389 = vmax.f32 %v1132, 0.0
      %v1390 = vmax.f32 %v1181, 0.0
      %v1391 = vld [vmem:[%s2] sm:$0xff]
      %v1392 = vld [vmem:[%s2 + $0x8] sm:$0xff]
      %v1393 = vld [vmem:[%s2 + $0x10] sm:$0xff]
      %v1394 = vld [vmem:[%s2 + $0x18] sm:$0xff]
      %v1395 = vld [vmem:[%s2 + $0x20] sm:$0xff]
      %v1396 = vld [vmem:[%s2 + $0x28] sm:$0xff]
      %v1397 = vld [vmem:[%s2 + $0x30] sm:$0xf]
      %1405 = vst [vmem:[#allocation1] ss:$2 sm:$0xff] %v1391
      %s1406 = scalar_lea.vmem [#allocation1], 16
      %1407 = vst [vmem:[%s1406] ss:$2 sm:$0xff] %v1392
      %s1408 = scalar_lea.vmem [#allocation1], 32
      %1409 = vst [vmem:[%s1408] ss:$2 sm:$0xff] %v1393
      %s1410 = scalar_lea.vmem [#allocation1], 48
      %1411 = vst [vmem:[%s1410] ss:$2 sm:$0xff] %v1394
      %v1412 = vld.sshfl [vmem:[#allocation1] sm:$0xff pattern:$0x75316420]
      %v1413 = vld.sshfl [vmem:[#allocation1 + $0x8] sm:$0xff pattern:$0x75316420]
      %v1414 = vld.sshfl [vmem:[#allocation1 + $0x10] sm:$0xff pattern:$0x75316420]
      %v1415 = vld.sshfl [vmem:[#allocation1 + $0x18] sm:$0xff pattern:$0x75316420]
      %v1416 = vld.sshfl [vmem:[#allocation1 + $0x20] sm:$0xff pattern:$0x75316420]
      %v1417 = vld.sshfl [vmem:[#allocation1 + $0x28] sm:$0xff pattern:$0x75316420]
      %v1418 = vld.sshfl [vmem:[#allocation1 + $0x30] sm:$0xff pattern:$0x75316420]
      %v1419 = vld.sshfl [vmem:[#allocation1 + $0x38] sm:$0xff pattern:$0x75316420]
      %1420 = vst [vmem:[#allocation1] ss:$2 sm:$0xff] %v1395
      %1421 = vst [vmem:[%s1406] ss:$2 sm:$0xff] %v1396
      %1422 = vst [vmem:[%s1408] ss:$2 sm:$0xff] %v1397
      %v1423 = vld.sshfl [vmem:[#allocation1] sm:$0xff pattern:$0x75316420]
      %v1424 = vld.sshfl [vmem:[#allocation1 + $0x8] sm:$0xff pattern:$0x75316420]
      %v1425 = vld.sshfl [vmem:[#allocation1 + $0x10] sm:$0xff pattern:$0x75316420]
      %v1426 = vld.sshfl [vmem:[#allocation1 + $0x18] sm:$0xff pattern:$0x75316420]
      %v1427 = vld.sshfl [vmem:[#allocation1 + $0x20] sm:$0xff pattern:$0x75316420]
      %vm1440 = vcmask 261120
      %v1441 = vsel %vm1440, %v1427, 0
      %v1444 = vsel %vm1440, %v1195, 0
      %v1447 = vsel %vm1440, %v1208, 0
      %v1450 = vsel %vm1440, %v1221, 0
      %v1453 = vsel %vm1440, %v1234, 0
      %v1456 = vsel %vm1440, %v1247, 0
      %v1459 = vsel %vm1440, %v1260, 0
      %v1462 = vsel %vm1440, %v1273, 0
      %v1465 = vsel %vm1440, %v1286, 0
      %v1468 = vsel %vm1440, %v1299, 0
      %v1471 = vsel %vm1440, %v1312, 0
      %v1474 = vsel %vm1440, %v1325, 0
      %v1477 = vsel %vm1440, %v1338, 0
      %v1480 = vsel %vm1440, %v1351, 0
      %v1483 = vsel %vm1440, %v1364, 0
      %v1486 = vsel %vm1440, %v1377, 0
      %v1489 = vsel %vm1440, %v1390, 0
      %v1491 = vand.u32 %v1378, 4294901760
      %1492 = vmatpush.xpose.msra.mxu0 %v1491
      %v1493 = vand.u32 %v1365, 4294901760
      %1494 = vmatpush.xpose.msra.mxu0 %v1493
      %v1495 = vand.u32 %v1352, 4294901760
      %1496 = vmatpush.xpose.msra.mxu0 %v1495
      %v1497 = vand.u32 %v1339, 4294901760
      %1498 = vmatpush.xpose.msra.mxu0 %v1497
      %v1499 = vand.u32 %v1326, 4294901760
      %1500 = vmatpush.xpose.msra.mxu0 %v1499
      %v1501 = vand.u32 %v1313, 4294901760
      %1502 = vmatpush.xpose.msra.mxu0 %v1501
      %v1503 = vand.u32 %v1300, 4294901760
      %1504 = vmatpush.xpose.msra.mxu0 %v1503
      %v1505 = vand.u32 %v1287, 4294901760
      %1506 = vmatpush.xpose.msra.mxu0 %v1505
      %v1507 = vand.u32 %v1274, 4294901760
      %1508 = vmatpush.xpose.msra.mxu0 %v1507
      %v1509 = vand.u32 %v1261, 4294901760
      %1510 = vmatpush.xpose.msra.mxu0 %v1509
      %v1511 = vand.u32 %v1248, 4294901760
      %1512 = vmatpush.xpose.msra.mxu0 %v1511
      %v1513 = vand.u32 %v1235, 4294901760
      %1514 = vmatpush.xpose.msra.mxu0 %v1513
      %v1515 = vand.u32 %v1222, 4294901760
      %1516 = vmatpush.xpose.msra.mxu0 %v1515
      %v1517 = vand.u32 %v1209, 4294901760
      %1518 = vmatpush.xpose.msra.mxu0 %v1517
      %v1519 = vand.u32 %v1196, 4294901760
      %1520 = vmatpush.xpose.msra.mxu0 %v1519
      %v1521 = vand.u32 %v1183, 4294901760
      %1522 = vmatpush.xpose.msra.mxu0 %v1521
      %v1523 = vand.u32 %v1412, 4294901760
      %v1524 = vsub.f32 %v1412, %v1523
      %v1525 = vand.u32 %v1524, 4294901760
      %v1526 = vsub.f32 %v1524, %v1525
      %v1527 = vand.u32 %v1526, 4294901760
      %1528 = vmatmul.f32.gmra.mxu0 %v1527
      %v1529 = vpop.f32.mrf.mxu0
      %v1530 = vadd.f32 0.0, %v1529
      %1531 = vdwg.mxu0
      %v1532 = vand.u32 %v1378, 4294901760
      %v1533 = vsub.f32 %v1378, %v1532
      %v1534 = vand.u32 %v1533, 4294901760
      %v1535 = vsub.f32 %v1533, %v1534
      %v1536 = vand.u32 %v1535, 4294901760
      %1537 = vmatpush.xpose.msra.mxu0 %v1536
      %v1538 = vand.u32 %v1365, 4294901760
      %v1539 = vsub.f32 %v1365, %v1538
      %v1540 = vand.u32 %v1539, 4294901760
      %v1541 = vsub.f32 %v1539, %v1540
      %v1542 = vand.u32 %v1541, 4294901760
      %1543 = vmatpush.xpose.msra.mxu0 %v1542
      %v1544 = vand.u32 %v1352, 4294901760
      %v1545 = vsub.f32 %v1352, %v1544
      %v1546 = vand.u32 %v1545, 4294901760
      %v1547 = vsub.f32 %v1545, %v1546
      %v1548 = vand.u32 %v1547, 4294901760
      %1549 = vmatpush.xpose.msra.mxu0 %v1548
      %v1550 = vand.u32 %v1339, 4294901760
      %v1551 = vsub.f32 %v1339, %v1550
      %v1552 = vand.u32 %v1551, 4294901760
      %v1553 = vsub.f32 %v1551, %v1552
      %v1554 = vand.u32 %v1553, 4294901760
      %1555 = vmatpush.xpose.msra.mxu0 %v1554
      %v1556 = vand.u32 %v1326, 4294901760
      %v1557 = vsub.f32 %v1326, %v1556
      %v1558 = vand.u32 %v1557, 4294901760
      %v1559 = vsub.f32 %v1557, %v1558
      %v1560 = vand.u32 %v1559, 4294901760
      %1561 = vmatpush.xpose.msra.mxu0 %v1560
      %v1562 = vand.u32 %v1313, 4294901760
      %v1563 = vsub.f32 %v1313, %v1562
      %v1564 = vand.u32 %v1563, 4294901760
      %v1565 = vsub.f32 %v1563, %v1564
      %v1566 = vand.u32 %v1565, 4294901760
      %1567 = vmatpush.xpose.msra.mxu0 %v1566
      %v1568 = vand.u32 %v1300, 4294901760
      %v1569 = vsub.f32 %v1300, %v1568
      %v1570 = vand.u32 %v1569, 4294901760
      %v1571 = vsub.f32 %v1569, %v1570
      %v1572 = vand.u32 %v1571, 4294901760
      %1573 = vmatpush.xpose.msra.mxu0 %v1572
      %v1574 = vand.u32 %v1287, 4294901760
      %v1575 = vsub.f32 %v1287, %v1574
      %v1576 = vand.u32 %v1575, 4294901760
      %v1577 = vsub.f32 %v1575, %v1576
      %v1578 = vand.u32 %v1577, 4294901760
      %1579 = vmatpush.xpose.msra.mxu0 %v1578
      %v1580 = vand.u32 %v1274, 4294901760
      %v1581 = vsub.f32 %v1274, %v1580
      %v1582 = vand.u32 %v1581, 4294901760
      %v1583 = vsub.f32 %v1581, %v1582
      %v1584 = vand.u32 %v1583, 4294901760
      %1585 = vmatpush.xpose.msra.mxu0 %v1584
      %v1586 = vand.u32 %v1261, 4294901760
      %v1587 = vsub.f32 %v1261, %v1586
      %v1588 = vand.u32 %v1587, 4294901760
      %v1589 = vsub.f32 %v1587, %v1588
      %v1590 = vand.u32 %v1589, 4294901760
      %1591 = vmatpush.xpose.msra.mxu0 %v1590
      %v1592 = vand.u32 %v1248, 4294901760
      %v1593 = vsub.f32 %v1248, %v1592
      %v1594 = vand.u32 %v1593, 4294901760
      %v1595 = vsub.f32 %v1593, %v1594
      %v1596 = vand.u32 %v1595, 4294901760
      %1597 = vmatpush.xpose.msra.mxu0 %v1596
      %v1598 = vand.u32 %v1235, 4294901760
      %v1599 = vsub.f32 %v1235, %v1598
      %v1600 = vand.u32 %v1599, 4294901760
      %v1601 = vsub.f32 %v1599, %v1600
      %v1602 = vand.u32 %v1601, 4294901760
      %1603 = vmatpush.xpose.msra.mxu0 %v1602
      %v1604 = vand.u32 %v1222, 4294901760
      %v1605 = vsub.f32 %v1222, %v1604
      %v1606 = vand.u32 %v1605, 4294901760
      %v1607 = vsub.f32 %v1605, %v1606
      %v1608 = vand.u32 %v1607, 4294901760
      %1609 = vmatpush.xpose.msra.mxu0 %v1608
      %v1610 = vand.u32 %v1209, 4294901760
      %v1611 = vsub.f32 %v1209, %v1610
      %v1612 = vand.u32 %v1611, 4294901760
      %v1613 = vsub.f32 %v1611, %v1612
      %v1614 = vand.u32 %v1613, 4294901760
      %1615 = vmatpush.xpose.msra.mxu0 %v1614
      %v1616 = vand.u32 %v1196, 4294901760
      %v1617 = vsub.f32 %v1196, %v1616
      %v1618 = vand.u32 %v1617, 4294901760
      %v1619 = vsub.f32 %v1617, %v1618
      %v1620 = vand.u32 %v1619, 4294901760
      %1621 = vmatpush.xpose.msra.mxu0 %v1620
      %v1622 = vand.u32 %v1183, 4294901760
      %v1623 = vsub.f32 %v1183, %v1622
      %v1624 = vand.u32 %v1623, 4294901760
      %v1625 = vsub.f32 %v1623, %v1624
      %v1626 = vand.u32 %v1625, 4294901760
      %1627 = vmatpush.xpose.msra.mxu0 %v1626
      %v1628 = vand.u32 %v1412, 4294901760
      %1629 = vmatmul.f32.gmra.mxu0 %v1628
      %v1630 = vpop.f32.mrf.mxu0
      %v1631 = vadd.f32 %v1530, %v1630
      %1632 = vdwg.mxu0
      %v1633 = vand.u32 %v1378, 4294901760
      %v1634 = vsub.f32 %v1378, %v1633
      %1635 = vmatpush.xpose.msra.mxu0 %v1634
      %v1636 = vand.u32 %v1365, 4294901760
      %v1637 = vsub.f32 %v1365, %v1636
      %1638 = vmatpush.xpose.msra.mxu0 %v1637
      %v1639 = vand.u32 %v1352, 4294901760
      %v1640 = vsub.f32 %v1352, %v1639
      %1641 = vmatpush.xpose.msra.mxu0 %v1640
      %v1642 = vand.u32 %v1339, 4294901760
      %v1643 = vsub.f32 %v1339, %v1642
      %1644 = vmatpush.xpose.msra.mxu0 %v1643
      %v1645 = vand.u32 %v1326, 4294901760
      %v1646 = vsub.f32 %v1326, %v1645
      %1647 = vmatpush.xpose.msra.mxu0 %v1646
      %v1648 = vand.u32 %v1313, 4294901760
      %v1649 = vsub.f32 %v1313, %v1648
      %1650 = vmatpush.xpose.msra.mxu0 %v1649
      %v1651 = vand.u32 %v1300, 4294901760
      %v1652 = vsub.f32 %v1300, %v1651
      %1653 = vmatpush.xpose.msra.mxu0 %v1652
      %v1654 = vand.u32 %v1287, 4294901760
      %v1655 = vsub.f32 %v1287, %v1654
      %1656 = vmatpush.xpose.msra.mxu0 %v1655
      %v1657 = vand.u32 %v1274, 4294901760
      %v1658 = vsub.f32 %v1274, %v1657
      %1659 = vmatpush.xpose.msra.mxu0 %v1658
      %v1660 = vand.u32 %v1261, 4294901760
      %v1661 = vsub.f32 %v1261, %v1660
      %1662 = vmatpush.xpose.msra.mxu0 %v1661
      %v1663 = vand.u32 %v1248, 4294901760
      %v1664 = vsub.f32 %v1248, %v1663
      %1665 = vmatpush.xpose.msra.mxu0 %v1664
      %v1666 = vand.u32 %v1235, 4294901760
      %v1667 = vsub.f32 %v1235, %v1666
      %1668 = vmatpush.xpose.msra.mxu0 %v1667
      %v1669 = vand.u32 %v1222, 4294901760
      %v1670 = vsub.f32 %v1222, %v1669
      %1671 = vmatpush.xpose.msra.mxu0 %v1670
      %v1672 = vand.u32 %v1209, 4294901760
      %v1673 = vsub.f32 %v1209, %v1672
      %1674 = vmatpush.xpose.msra.mxu0 %v1673
      %v1675 = vand.u32 %v1196, 4294901760
      %v1676 = vsub.f32 %v1196, %v1675
      %1677 = vmatpush.xpose.msra.mxu0 %v1676
      %v1678 = vand.u32 %v1183, 4294901760
      %v1679 = vsub.f32 %v1183, %v1678
      %1680 = vmatpush.xpose.msra.mxu0 %v1679
      %v1681 = vand.u32 %v1412, 4294901760
      %v1682 = vsub.f32 %v1412, %v1681
      %1683 = vmatmul.f32.gmra.mxu0 %v1682
      %v1684 = vpop.f32.mrf.mxu0
      %v1685 = vadd.f32 %v1631, %v1684
      %1686 = vdwg.mxu0
      %v1687 = vand.u32 %v1378, 4294901760
      %1688 = vmatpush.xpose.msra.mxu0 %v1687
      %v1689 = vand.u32 %v1365, 4294901760
      %1690 = vmatpush.xpose.msra.mxu0 %v1689
      %v1691 = vand.u32 %v1352, 4294901760
      %1692 = vmatpush.xpose.msra.mxu0 %v1691
      %v1693 = vand.u32 %v1339, 4294901760
      %1694 = vmatpush.xpose.msra.mxu0 %v1693
      %v1695 = vand.u32 %v1326, 4294901760
      %1696 = vmatpush.xpose.msra.mxu0 %v1695
      %v1697 = vand.u32 %v1313, 4294901760
      %1698 = vmatpush.xpose.msra.mxu0 %v1697
      %v1699 = vand.u32 %v1300, 4294901760
      %1700 = vmatpush.xpose.msra.mxu0 %v1699
      %v1701 = vand.u32 %v1287, 4294901760
      %1702 = vmatpush.xpose.msra.mxu0 %v1701
      %v1703 = vand.u32 %v1274, 4294901760
      %1704 = vmatpush.xpose.msra.mxu0 %v1703
      %v1705 = vand.u32 %v1261, 4294901760
      %1706 = vmatpush.xpose.msra.mxu0 %v1705
      %v1707 = vand.u32 %v1248, 4294901760
      %1708 = vmatpush.xpose.msra.mxu0 %v1707
      %v1709 = vand.u32 %v1235, 4294901760
      %1710 = vmatpush.xpose.msra.mxu0 %v1709
      %v1711 = vand.u32 %v1222, 4294901760
      %1712 = vmatpush.xpose.msra.mxu0 %v1711
      %v1713 = vand.u32 %v1209, 4294901760
      %1714 = vmatpush.xpose.msra.mxu0 %v1713
      %v1715 = vand.u32 %v1196, 4294901760
      %1716 = vmatpush.xpose.msra.mxu0 %v1715
      %v1717 = vand.u32 %v1183, 4294901760
      %1718 = vmatpush.xpose.msra.mxu0 %v1717
      %v1719 = vand.u32 %v1412, 4294901760
      %v1720 = vsub.f32 %v1412, %v1719
      %v1721 = vand.u32 %v1720, 4294901760
      %1722 = vmatmul.f32.gmra.mxu0 %v1721
      %v1723 = vpop.f32.mrf.mxu0
      %v1724 = vadd.f32 %v1685, %v1723
      %1725 = vdwg.mxu0
      %v1726 = vand.u32 %v1378, 4294901760
      %v1727 = vsub.f32 %v1378, %v1726
      %v1728 = vand.u32 %v1727, 4294901760
      %1729 = vmatpush.xpose.msra.mxu0 %v1728
      %v1730 = vand.u32 %v1365, 4294901760
      %v1731 = vsub.f32 %v1365, %v1730
      %v1732 = vand.u32 %v1731, 4294901760
      %1733 = vmatpush.xpose.msra.mxu0 %v1732
      %v1734 = vand.u32 %v1352, 4294901760
      %v1735 = vsub.f32 %v1352, %v1734
      %v1736 = vand.u32 %v1735, 4294901760
      %1737 = vmatpush.xpose.msra.mxu0 %v1736
      %v1738 = vand.u32 %v1339, 4294901760
      %v1739 = vsub.f32 %v1339, %v1738
      %v1740 = vand.u32 %v1739, 4294901760
      %1741 = vmatpush.xpose.msra.mxu0 %v1740
      %v1742 = vand.u32 %v1326, 4294901760
      %v1743 = vsub.f32 %v1326, %v1742
      %v1744 = vand.u32 %v1743, 4294901760
      %1745 = vmatpush.xpose.msra.mxu0 %v1744
      %v1746 = vand.u32 %v1313, 4294901760
      %v1747 = vsub.f32 %v1313, %v1746
      %v1748 = vand.u32 %v1747, 4294901760
      %1749 = vmatpush.xpose.msra.mxu0 %v1748
      %v1750 = vand.u32 %v1300, 4294901760
      %v1751 = vsub.f32 %v1300, %v1750
      %v1752 = vand.u32 %v1751, 4294901760
      %1753 = vmatpush.xpose.msra.mxu0 %v1752
      %v1754 = vand.u32 %v1287, 4294901760
      %v1755 = vsub.f32 %v1287, %v1754
      %v1756 = vand.u32 %v1755, 4294901760
      %1757 = vmatpush.xpose.msra.mxu0 %v1756
      %v1758 = vand.u32 %v1274, 4294901760
      %v1759 = vsub.f32 %v1274, %v1758
      %v1760 = vand.u32 %v1759, 4294901760
      %1761 = vmatpush.xpose.msra.mxu0 %v1760
      %v1762 = vand.u32 %v1261, 4294901760
      %v1763 = vsub.f32 %v1261, %v1762
      %v1764 = vand.u32 %v1763, 4294901760
      %1765 = vmatpush.xpose.msra.mxu0 %v1764
      %v1766 = vand.u32 %v1248, 4294901760
      %v1767 = vsub.f32 %v1248, %v1766
      %v1768 = vand.u32 %v1767, 4294901760
      %1769 = vmatpush.xpose.msra.mxu0 %v1768
      %v1770 = vand.u32 %v1235, 4294901760
      %v1771 = vsub.f32 %v1235, %v1770
      %v1772 = vand.u32 %v1771, 4294901760
      %1773 = vmatpush.xpose.msra.mxu0 %v1772
      %v1774 = vand.u32 %v1222, 4294901760
      %v1775 = vsub.f32 %v1222, %v1774
      %v1776 = vand.u32 %v1775, 4294901760
      %1777 = vmatpush.xpose.msra.mxu0 %v1776
      %v1778 = vand.u32 %v1209, 4294901760
      %v1779 = vsub.f32 %v1209, %v1778
      %v1780 = vand.u32 %v1779, 4294901760
      %1781 = vmatpush.xpose.msra.mxu0 %v1780
      %v1782 = vand.u32 %v1196, 4294901760
      %v1783 = vsub.f32 %v1196, %v1782
      %v1784 = vand.u32 %v1783, 4294901760
      %1785 = vmatpush.xpose.msra.mxu0 %v1784
      %v1786 = vand.u32 %v1183, 4294901760
      %v1787 = vsub.f32 %v1183, %v1786
      %v1788 = vand.u32 %v1787, 4294901760
      %1789 = vmatpush.xpose.msra.mxu0 %v1788
      %v1790 = vand.u32 %v1412, 4294901760
      %1791 = vmatmul.f32.gmra.mxu0 %v1790
      %v1792 = vpop.f32.mrf.mxu0
      %v1793 = vadd.f32 %v1724, %v1792
      %1794 = vdwg.mxu0
      %v1795 = vand.u32 %v1378, 4294901760
      %1796 = vmatpush.xpose.msra.mxu0 %v1795
      %v1797 = vand.u32 %v1365, 4294901760
      %1798 = vmatpush.xpose.msra.mxu0 %v1797
      %v1799 = vand.u32 %v1352, 4294901760
      %1800 = vmatpush.xpose.msra.mxu0 %v1799
      %v1801 = vand.u32 %v1339, 4294901760
      %1802 = vmatpush.xpose.msra.mxu0 %v1801
      %v1803 = vand.u32 %v1326, 4294901760
      %1804 = vmatpush.xpose.msra.mxu0 %v1803
      %v1805 = vand.u32 %v1313, 4294901760
      %1806 = vmatpush.xpose.msra.mxu0 %v1805
      %v1807 = vand.u32 %v1300, 4294901760
      %1808 = vmatpush.xpose.msra.mxu0 %v1807
      %v1809 = vand.u32 %v1287, 4294901760
      %1810 = vmatpush.xpose.msra.mxu0 %v1809
      %v1811 = vand.u32 %v1274, 4294901760
      %1812 = vmatpush.xpose.msra.mxu0 %v1811
      %v1813 = vand.u32 %v1261, 4294901760
      %1814 = vmatpush.xpose.msra.mxu0 %v1813
      %v1815 = vand.u32 %v1248, 4294901760
      %1816 = vmatpush.xpose.msra.mxu0 %v1815
      %v1817 = vand.u32 %v1235, 4294901760
      %1818 = vmatpush.xpose.msra.mxu0 %v1817
      %v1819 = vand.u32 %v1222, 4294901760
      %1820 = vmatpush.xpose.msra.mxu0 %v1819
      %v1821 = vand.u32 %v1209, 4294901760
      %1822 = vmatpush.xpose.msra.mxu0 %v1821
      %v1823 = vand.u32 %v1196, 4294901760
      %1824 = vmatpush.xpose.msra.mxu0 %v1823
      %v1825 = vand.u32 %v1183, 4294901760
      %1826 = vmatpush.xpose.msra.mxu0 %v1825
      %v1827 = vand.u32 %v1412, 4294901760
      %1828 = vmatmul.f32.gmra.mxu0 %v1827
      %v1829 = vpop.f32.mrf.mxu0
      %v1830 = vadd.f32 %v1793, %v1829
      %1831 = vdwg.mxu0
      %v1832 = vand.u32 %v1379, 4294901760
      %1833 = vmatpush.xpose.msra.mxu0 %v1832
      %v1834 = vand.u32 %v1366, 4294901760
      %1835 = vmatpush.xpose.msra.mxu0 %v1834
      %v1836 = vand.u32 %v1353, 4294901760
      %1837 = vmatpush.xpose.msra.mxu0 %v1836
      %v1838 = vand.u32 %v1340, 4294901760
      %1839 = vmatpush.xpose.msra.mxu0 %v1838
      %v1840 = vand.u32 %v1327, 4294901760
      %1841 = vmatpush.xpose.msra.mxu0 %v1840
      %v1842 = vand.u32 %v1314, 4294901760
      %1843 = vmatpush.xpose.msra.mxu0 %v1842
      %v1844 = vand.u32 %v1301, 4294901760
      %1845 = vmatpush.xpose.msra.mxu0 %v1844
      %v1846 = vand.u32 %v1288, 4294901760
      %1847 = vmatpush.xpose.msra.mxu0 %v1846
      %v1848 = vand.u32 %v1275, 4294901760
      %1849 = vmatpush.xpose.msra.mxu0 %v1848
      %v1850 = vand.u32 %v1262, 4294901760
      %1851 = vmatpush.xpose.msra.mxu0 %v1850
      %v1852 = vand.u32 %v1249, 4294901760
      %1853 = vmatpush.xpose.msra.mxu0 %v1852
      %v1854 = vand.u32 %v1236, 4294901760
      %1855 = vmatpush.xpose.msra.mxu0 %v1854
      %v1856 = vand.u32 %v1223, 4294901760
      %1857 = vmatpush.xpose.msra.mxu0 %v1856
      %v1858 = vand.u32 %v1210, 4294901760
      %1859 = vmatpush.xpose.msra.mxu0 %v1858
      %v1860 = vand.u32 %v1197, 4294901760
      %1861 = vmatpush.xpose.msra.mxu0 %v1860
      %v1862 = vand.u32 %v1184, 4294901760
      %1863 = vmatpush.xpose.msra.mxu0 %v1862
      %v1864 = vand.u32 %v1413, 4294901760
      %v1865 = vsub.f32 %v1413, %v1864
      %v1866 = vand.u32 %v1865, 4294901760
      %v1867 = vsub.f32 %v1865, %v1866
      %v1868 = vand.u32 %v1867, 4294901760
      %1869 = vmatmul.f32.gmra.mxu0 %v1868
      %v1870 = vpop.f32.mrf.mxu0
      %v1871 = vadd.f32 %v1830, %v1870
      %1872 = vdwg.mxu0
      %v1873 = vand.u32 %v1379, 4294901760
      %v1874 = vsub.f32 %v1379, %v1873
      %v1875 = vand.u32 %v1874, 4294901760
      %v1876 = vsub.f32 %v1874, %v1875
      %v1877 = vand.u32 %v1876, 4294901760
      %1878 = vmatpush.xpose.msra.mxu0 %v1877
      %v1879 = vand.u32 %v1366, 4294901760
      %v1880 = vsub.f32 %v1366, %v1879
      %v1881 = vand.u32 %v1880, 4294901760
      %v1882 = vsub.f32 %v1880, %v1881
      %v1883 = vand.u32 %v1882, 4294901760
      %1884 = vmatpush.xpose.msra.mxu0 %v1883
      %v1885 = vand.u32 %v1353, 4294901760
      %v1886 = vsub.f32 %v1353, %v1885
      %v1887 = vand.u32 %v1886, 4294901760
      %v1888 = vsub.f32 %v1886, %v1887
      %v1889 = vand.u32 %v1888, 4294901760
      %1890 = vmatpush.xpose.msra.mxu0 %v1889
      %v1891 = vand.u32 %v1340, 4294901760
      %v1892 = vsub.f32 %v1340, %v1891
      %v1893 = vand.u32 %v1892, 4294901760
      %v1894 = vsub.f32 %v1892, %v1893
      %v1895 = vand.u32 %v1894, 4294901760
      %1896 = vmatpush.xpose.msra.mxu0 %v1895
      %v1897 = vand.u32 %v1327, 4294901760
      %v1898 = vsub.f32 %v1327, %v1897
      %v1899 = vand.u32 %v1898, 4294901760
      %v1900 = vsub.f32 %v1898, %v1899
      %v1901 = vand.u32 %v1900, 4294901760
      %1902 = vmatpush.xpose.msra.mxu0 %v1901
      %v1903 = vand.u32 %v1314, 4294901760
      %v1904 = vsub.f32 %v1314, %v1903
      %v1905 = vand.u32 %v1904, 4294901760
      %v1906 = vsub.f32 %v1904, %v1905
      %v1907 = vand.u32 %v1906, 4294901760
      %1908 = vmatpush.xpose.msra.mxu0 %v1907
      %v1909 = vand.u32 %v1301, 4294901760
      %v1910 = vsub.f32 %v1301, %v1909
      %v1911 = vand.u32 %v1910, 4294901760
      %v1912 = vsub.f32 %v1910, %v1911
      %v1913 = vand.u32 %v1912, 4294901760
      %1914 = vmatpush.xpose.msra.mxu0 %v1913
      %v1915 = vand.u32 %v1288, 4294901760
      %v1916 = vsub.f32 %v1288, %v1915
      %v1917 = vand.u32 %v1916, 4294901760
      %v1918 = vsub.f32 %v1916, %v1917
      %v1919 = vand.u32 %v1918, 4294901760
      %1920 = vmatpush.xpose.msra.mxu0 %v1919
      %v1921 = vand.u32 %v1275, 4294901760
      %v1922 = vsub.f32 %v1275, %v1921
      %v1923 = vand.u32 %v1922, 4294901760
      %v1924 = vsub.f32 %v1922, %v1923
      %v1925 = vand.u32 %v1924, 4294901760
      %1926 = vmatpush.xpose.msra.mxu0 %v1925
      %v1927 = vand.u32 %v1262, 4294901760
      %v1928 = vsub.f32 %v1262, %v1927
      %v1929 = vand.u32 %v1928, 4294901760
      %v1930 = vsub.f32 %v1928, %v1929
      %v1931 = vand.u32 %v1930, 4294901760
      %1932 = vmatpush.xpose.msra.mxu0 %v1931
      %v1933 = vand.u32 %v1249, 4294901760
      %v1934 = vsub.f32 %v1249, %v1933
      %v1935 = vand.u32 %v1934, 4294901760
      %v1936 = vsub.f32 %v1934, %v1935
      %v1937 = vand.u32 %v1936, 4294901760
      %1938 = vmatpush.xpose.msra.mxu0 %v1937
      %v1939 = vand.u32 %v1236, 4294901760
      %v1940 = vsub.f32 %v1236, %v1939
      %v1941 = vand.u32 %v1940, 4294901760
      %v1942 = vsub.f32 %v1940, %v1941
      %v1943 = vand.u32 %v1942, 4294901760
      %1944 = vmatpush.xpose.msra.mxu0 %v1943
      %v1945 = vand.u32 %v1223, 4294901760
      %v1946 = vsub.f32 %v1223, %v1945
      %v1947 = vand.u32 %v1946, 4294901760
      %v1948 = vsub.f32 %v1946, %v1947
      %v1949 = vand.u32 %v1948, 4294901760
      %1950 = vmatpush.xpose.msra.mxu0 %v1949
      %v1951 = vand.u32 %v1210, 4294901760
      %v1952 = vsub.f32 %v1210, %v1951
      %v1953 = vand.u32 %v1952, 4294901760
      %v1954 = vsub.f32 %v1952, %v1953
      %v1955 = vand.u32 %v1954, 4294901760
      %1956 = vmatpush.xpose.msra.mxu0 %v1955
      %v1957 = vand.u32 %v1197, 4294901760
      %v1958 = vsub.f32 %v1197, %v1957
      %v1959 = vand.u32 %v1958, 4294901760
      %v1960 = vsub.f32 %v1958, %v1959
      %v1961 = vand.u32 %v1960, 4294901760
      %1962 = vmatpush.xpose.msra.mxu0 %v1961
      %v1963 = vand.u32 %v1184, 4294901760
      %v1964 = vsub.f32 %v1184, %v1963
      %v1965 = vand.u32 %v1964, 4294901760
      %v1966 = vsub.f32 %v1964, %v1965
      %v1967 = vand.u32 %v1966, 4294901760
      %1968 = vmatpush.xpose.msra.mxu0 %v1967
      %v1969 = vand.u32 %v1413, 4294901760
      %1970 = vmatmul.f32.gmra.mxu0 %v1969
      %v1971 = vpop.f32.mrf.mxu0
      %v1972 = vadd.f32 %v1871, %v1971
      %1973 = vdwg.mxu0
      %v1974 = vand.u32 %v1379, 4294901760
      %v1975 = vsub.f32 %v1379, %v1974
      %1976 = vmatpush.xpose.msra.mxu0 %v1975
      %v1977 = vand.u32 %v1366, 4294901760
      %v1978 = vsub.f32 %v1366, %v1977
      %1979 = vmatpush.xpose.msra.mxu0 %v1978
      %v1980 = vand.u32 %v1353, 4294901760
      %v1981 = vsub.f32 %v1353, %v1980
      %1982 = vmatpush.xpose.msra.mxu0 %v1981
      %v1983 = vand.u32 %v1340, 4294901760
      %v1984 = vsub.f32 %v1340, %v1983
      %1985 = vmatpush.xpose.msra.mxu0 %v1984
      %v1986 = vand.u32 %v1327, 4294901760
      %v1987 = vsub.f32 %v1327, %v1986
      %1988 = vmatpush.xpose.msra.mxu0 %v1987
      %v1989 = vand.u32 %v1314, 4294901760
      %v1990 = vsub.f32 %v1314, %v1989
      %1991 = vmatpush.xpose.msra.mxu0 %v1990
      %v1992 = vand.u32 %v1301, 4294901760
      %v1993 = vsub.f32 %v1301, %v1992
      %1994 = vmatpush.xpose.msra.mxu0 %v1993
      %v1995 = vand.u32 %v1288, 4294901760
      %v1996 = vsub.f32 %v1288, %v1995
      %1997 = vmatpush.xpose.msra.mxu0 %v1996
      %v1998 = vand.u32 %v1275, 4294901760
      %v1999 = vsub.f32 %v1275, %v1998
      %2000 = vmatpush.xpose.msra.mxu0 %v1999
      %v2001 = vand.u32 %v1262, 4294901760
      %v2002 = vsub.f32 %v1262, %v2001
      %2003 = vmatpush.xpose.msra.mxu0 %v2002
      %v2004 = vand.u32 %v1249, 4294901760
      %v2005 = vsub.f32 %v1249, %v2004
      %2006 = vmatpush.xpose.msra.mxu0 %v2005
      %v2007 = vand.u32 %v1236, 4294901760
      %v2008 = vsub.f32 %v1236, %v2007
      %2009 = vmatpush.xpose.msra.mxu0 %v2008
      %v2010 = vand.u32 %v1223, 4294901760
      %v2011 = vsub.f32 %v1223, %v2010
      %2012 = vmatpush.xpose.msra.mxu0 %v2011
      %v2013 = vand.u32 %v1210, 4294901760
      %v2014 = vsub.f32 %v1210, %v2013
      %2015 = vmatpush.xpose.msra.mxu0 %v2014
      %v2016 = vand.u32 %v1197, 4294901760
      %v2017 = vsub.f32 %v1197, %v2016
      %2018 = vmatpush.xpose.msra.mxu0 %v2017
      %v2019 = vand.u32 %v1184, 4294901760
      %v2020 = vsub.f32 %v1184, %v2019
      %2021 = vmatpush.xpose.msra.mxu0 %v2020
      %v2022 = vand.u32 %v1413, 4294901760
      %v2023 = vsub.f32 %v1413, %v2022
      %2024 = vmatmul.f32.gmra.mxu0 %v2023
      %v2025 = vpop.f32.mrf.mxu0
      %v2026 = vadd.f32 %v1972, %v2025
      %2027 = vdwg.mxu0
      %v2028 = vand.u32 %v1379, 4294901760
      %2029 = vmatpush.xpose.msra.mxu0 %v2028
      %v2030 = vand.u32 %v1366, 4294901760
      %2031 = vmatpush.xpose.msra.mxu0 %v2030
      %v2032 = vand.u32 %v1353, 4294901760
      %2033 = vmatpush.xpose.msra.mxu0 %v2032
      %v2034 = vand.u32 %v1340, 4294901760
      %2035 = vmatpush.xpose.msra.mxu0 %v2034
      %v2036 = vand.u32 %v1327, 4294901760
      %2037 = vmatpush.xpose.msra.mxu0 %v2036
      %v2038 = vand.u32 %v1314, 4294901760
      %2039 = vmatpush.xpose.msra.mxu0 %v2038
      %v2040 = vand.u32 %v1301, 4294901760
      %2041 = vmatpush.xpose.msra.mxu0 %v2040
      %v2042 = vand.u32 %v1288, 4294901760
      %2043 = vmatpush.xpose.msra.mxu0 %v2042
      %v2044 = vand.u32 %v1275, 4294901760
      %2045 = vmatpush.xpose.msra.mxu0 %v2044
      %v2046 = vand.u32 %v1262, 4294901760
      %2047 = vmatpush.xpose.msra.mxu0 %v2046
      %v2048 = vand.u32 %v1249, 4294901760
      %2049 = vmatpush.xpose.msra.mxu0 %v2048
      %v2050 = vand.u32 %v1236, 4294901760
      %2051 = vmatpush.xpose.msra.mxu0 %v2050
      %v2052 = vand.u32 %v1223, 4294901760
      %2053 = vmatpush.xpose.msra.mxu0 %v2052
      %v2054 = vand.u32 %v1210, 4294901760
      %2055 = vmatpush.xpose.msra.mxu0 %v2054
      %v2056 = vand.u32 %v1197, 4294901760
      %2057 = vmatpush.xpose.msra.mxu0 %v2056
      %v2058 = vand.u32 %v1184, 4294901760
      %2059 = vmatpush.xpose.msra.mxu0 %v2058
      %v2060 = vand.u32 %v1413, 4294901760
      %v2061 = vsub.f32 %v1413, %v2060
      %v2062 = vand.u32 %v2061, 4294901760
      %2063 = vmatmul.f32.gmra.mxu0 %v2062
      %v2064 = vpop.f32.mrf.mxu0
      %v2065 = vadd.f32 %v2026, %v2064
      %2066 = vdwg.mxu0
      %v2067 = vand.u32 %v1379, 4294901760
      %v2068 = vsub.f32 %v1379, %v2067
      %v2069 = vand.u32 %v2068, 4294901760
      %2070 = vmatpush.xpose.msra.mxu0 %v2069
      %v2071 = vand.u32 %v1366, 4294901760
      %v2072 = vsub.f32 %v1366, %v2071
      %v2073 = vand.u32 %v2072, 4294901760
      %2074 = vmatpush.xpose.msra.mxu0 %v2073
      %v2075 = vand.u32 %v1353, 4294901760
      %v2076 = vsub.f32 %v1353, %v2075
      %v2077 = vand.u32 %v2076, 4294901760
      %2078 = vmatpush.xpose.msra.mxu0 %v2077
      %v2079 = vand.u32 %v1340, 4294901760
      %v2080 = vsub.f32 %v1340, %v2079
      %v2081 = vand.u32 %v2080, 4294901760
      %2082 = vmatpush.xpose.msra.mxu0 %v2081
      %v2083 = vand.u32 %v1327, 4294901760
      %v2084 = vsub.f32 %v1327, %v2083
      %v2085 = vand.u32 %v2084, 4294901760
      %2086 = vmatpush.xpose.msra.mxu0 %v2085
      %v2087 = vand.u32 %v1314, 4294901760
      %v2088 = vsub.f32 %v1314, %v2087
      %v2089 = vand.u32 %v2088, 4294901760
      %2090 = vmatpush.xpose.msra.mxu0 %v2089
      %v2091 = vand.u32 %v1301, 4294901760
      %v2092 = vsub.f32 %v1301, %v2091
      %v2093 = vand.u32 %v2092, 4294901760
      %2094 = vmatpush.xpose.msra.mxu0 %v2093
      %v2095 = vand.u32 %v1288, 4294901760
      %v2096 = vsub.f32 %v1288, %v2095
      %v2097 = vand.u32 %v2096, 4294901760
      %2098 = vmatpush.xpose.msra.mxu0 %v2097
      %v2099 = vand.u32 %v1275, 4294901760
      %v2100 = vsub.f32 %v1275, %v2099
      %v2101 = vand.u32 %v2100, 4294901760
      %2102 = vmatpush.xpose.msra.mxu0 %v2101
      %v2103 = vand.u32 %v1262, 4294901760
      %v2104 = vsub.f32 %v1262, %v2103
      %v2105 = vand.u32 %v2104, 4294901760
      %2106 = vmatpush.xpose.msra.mxu0 %v2105
      %v2107 = vand.u32 %v1249, 4294901760
      %v2108 = vsub.f32 %v1249, %v2107
      %v2109 = vand.u32 %v2108, 4294901760
      %2110 = vmatpush.xpose.msra.mxu0 %v2109
      %v2111 = vand.u32 %v1236, 4294901760
      %v2112 = vsub.f32 %v1236, %v2111
      %v2113 = vand.u32 %v2112, 4294901760
      %2114 = vmatpush.xpose.msra.mxu0 %v2113
      %v2115 = vand.u32 %v1223, 4294901760
      %v2116 = vsub.f32 %v1223, %v2115
      %v2117 = vand.u32 %v2116, 4294901760
      %2118 = vmatpush.xpose.msra.mxu0 %v2117
      %v2119 = vand.u32 %v1210, 4294901760
      %v2120 = vsub.f32 %v1210, %v2119
      %v2121 = vand.u32 %v2120, 4294901760
      %2122 = vmatpush.xpose.msra.mxu0 %v2121
      %v2123 = vand.u32 %v1197, 4294901760
      %v2124 = vsub.f32 %v1197, %v2123
      %v2125 = vand.u32 %v2124, 4294901760
      %2126 = vmatpush.xpose.msra.mxu0 %v2125
      %v2127 = vand.u32 %v1184, 4294901760
      %v2128 = vsub.f32 %v1184, %v2127
      %v2129 = vand.u32 %v2128, 4294901760
      %2130 = vmatpush.xpose.msra.mxu0 %v2129
      %v2131 = vand.u32 %v1413, 4294901760
      %2132 = vmatmul.f32.gmra.mxu0 %v2131
      %v2133 = vpop.f32.mrf.mxu0
      %v2134 = vadd.f32 %v2065, %v2133
      %2135 = vdwg.mxu0
      %v2136 = vand.u32 %v1379, 4294901760
      %2137 = vmatpush.xpose.msra.mxu0 %v2136
      %v2138 = vand.u32 %v1366, 4294901760
      %2139 = vmatpush.xpose.msra.mxu0 %v2138
      %v2140 = vand.u32 %v1353, 4294901760
      %2141 = vmatpush.xpose.msra.mxu0 %v2140
      %v2142 = vand.u32 %v1340, 4294901760
      %2143 = vmatpush.xpose.msra.mxu0 %v2142
      %v2144 = vand.u32 %v1327, 4294901760
      %2145 = vmatpush.xpose.msra.mxu0 %v2144
      %v2146 = vand.u32 %v1314, 4294901760
      %2147 = vmatpush.xpose.msra.mxu0 %v2146
      %v2148 = vand.u32 %v1301, 4294901760
      %2149 = vmatpush.xpose.msra.mxu0 %v2148
      %v2150 = vand.u32 %v1288, 4294901760
      %2151 = vmatpush.xpose.msra.mxu0 %v2150
      %v2152 = vand.u32 %v1275, 4294901760
      %2153 = vmatpush.xpose.msra.mxu0 %v2152
      %v2154 = vand.u32 %v1262, 4294901760
      %2155 = vmatpush.xpose.msra.mxu0 %v2154
      %v2156 = vand.u32 %v1249, 4294901760
      %2157 = vmatpush.xpose.msra.mxu0 %v2156
      %v2158 = vand.u32 %v1236, 4294901760
      %2159 = vmatpush.xpose.msra.mxu0 %v2158
      %v2160 = vand.u32 %v1223, 4294901760
      %2161 = vmatpush.xpose.msra.mxu0 %v2160
      %v2162 = vand.u32 %v1210, 4294901760
      %2163 = vmatpush.xpose.msra.mxu0 %v2162
      %v2164 = vand.u32 %v1197, 4294901760
      %2165 = vmatpush.xpose.msra.mxu0 %v2164
      %v2166 = vand.u32 %v1184, 4294901760
      %2167 = vmatpush.xpose.msra.mxu0 %v2166
      %v2168 = vand.u32 %v1413, 4294901760
      %2169 = vmatmul.f32.gmra.mxu0 %v2168
      %v2170 = vpop.f32.mrf.mxu0
      %v2171 = vadd.f32 %v2134, %v2170
      %2172 = vdwg.mxu0
      %v2173 = vand.u32 %v1380, 4294901760
      %2174 = vmatpush.xpose.msra.mxu0 %v2173
      %v2175 = vand.u32 %v1367, 4294901760
      %2176 = vmatpush.xpose.msra.mxu0 %v2175
      %v2177 = vand.u32 %v1354, 4294901760
      %2178 = vmatpush.xpose.msra.mxu0 %v2177
      %v2179 = vand.u32 %v1341, 4294901760
      %2180 = vmatpush.xpose.msra.mxu0 %v2179
      %v2181 = vand.u32 %v1328, 4294901760
      %2182 = vmatpush.xpose.msra.mxu0 %v2181
      %v2183 = vand.u32 %v1315, 4294901760
      %2184 = vmatpush.xpose.msra.mxu0 %v2183
      %v2185 = vand.u32 %v1302, 4294901760
      %2186 = vmatpush.xpose.msra.mxu0 %v2185
      %v2187 = vand.u32 %v1289, 4294901760
      %2188 = vmatpush.xpose.msra.mxu0 %v2187
      %v2189 = vand.u32 %v1276, 4294901760
      %2190 = vmatpush.xpose.msra.mxu0 %v2189
      %v2191 = vand.u32 %v1263, 4294901760
      %2192 = vmatpush.xpose.msra.mxu0 %v2191
      %v2193 = vand.u32 %v1250, 4294901760
      %2194 = vmatpush.xpose.msra.mxu0 %v2193
      %v2195 = vand.u32 %v1237, 4294901760
      %2196 = vmatpush.xpose.msra.mxu0 %v2195
      %v2197 = vand.u32 %v1224, 4294901760
      %2198 = vmatpush.xpose.msra.mxu0 %v2197
      %v2199 = vand.u32 %v1211, 4294901760
      %2200 = vmatpush.xpose.msra.mxu0 %v2199
      %v2201 = vand.u32 %v1198, 4294901760
      %2202 = vmatpush.xpose.msra.mxu0 %v2201
      %v2203 = vand.u32 %v1185, 4294901760
      %2204 = vmatpush.xpose.msra.mxu0 %v2203
      %v2205 = vand.u32 %v1414, 4294901760
      %v2206 = vsub.f32 %v1414, %v2205
      %v2207 = vand.u32 %v2206, 4294901760
      %v2208 = vsub.f32 %v2206, %v2207
      %v2209 = vand.u32 %v2208, 4294901760
      %2210 = vmatmul.f32.gmra.mxu0 %v2209
      %v2211 = vpop.f32.mrf.mxu0
      %v2212 = vadd.f32 %v2171, %v2211
      %2213 = vdwg.mxu0
      %v2214 = vand.u32 %v1380, 4294901760
      %v2215 = vsub.f32 %v1380, %v2214
      %v2216 = vand.u32 %v2215, 4294901760
      %v2217 = vsub.f32 %v2215, %v2216
      %v2218 = vand.u32 %v2217, 4294901760
      %2219 = vmatpush.xpose.msra.mxu0 %v2218
      %v2220 = vand.u32 %v1367, 4294901760
      %v2221 = vsub.f32 %v1367, %v2220
      %v2222 = vand.u32 %v2221, 4294901760
      %v2223 = vsub.f32 %v2221, %v2222
      %v2224 = vand.u32 %v2223, 4294901760
      %2225 = vmatpush.xpose.msra.mxu0 %v2224
      %v2226 = vand.u32 %v1354, 4294901760
      %v2227 = vsub.f32 %v1354, %v2226
      %v2228 = vand.u32 %v2227, 4294901760
      %v2229 = vsub.f32 %v2227, %v2228
      %v2230 = vand.u32 %v2229, 4294901760
      %2231 = vmatpush.xpose.msra.mxu0 %v2230
      %v2232 = vand.u32 %v1341, 4294901760
      %v2233 = vsub.f32 %v1341, %v2232
      %v2234 = vand.u32 %v2233, 4294901760
      %v2235 = vsub.f32 %v2233, %v2234
      %v2236 = vand.u32 %v2235, 4294901760
      %2237 = vmatpush.xpose.msra.mxu0 %v2236
      %v2238 = vand.u32 %v1328, 4294901760
      %v2239 = vsub.f32 %v1328, %v2238
      %v2240 = vand.u32 %v2239, 4294901760
      %v2241 = vsub.f32 %v2239, %v2240
      %v2242 = vand.u32 %v2241, 4294901760
      %2243 = vmatpush.xpose.msra.mxu0 %v2242
      %v2244 = vand.u32 %v1315, 4294901760
      %v2245 = vsub.f32 %v1315, %v2244
      %v2246 = vand.u32 %v2245, 4294901760
      %v2247 = vsub.f32 %v2245, %v2246
      %v2248 = vand.u32 %v2247, 4294901760
      %2249 = vmatpush.xpose.msra.mxu0 %v2248
      %v2250 = vand.u32 %v1302, 4294901760
      %v2251 = vsub.f32 %v1302, %v2250
      %v2252 = vand.u32 %v2251, 4294901760
      %v2253 = vsub.f32 %v2251, %v2252
      %v2254 = vand.u32 %v2253, 4294901760
      %2255 = vmatpush.xpose.msra.mxu0 %v2254
      %v2256 = vand.u32 %v1289, 4294901760
      %v2257 = vsub.f32 %v1289, %v2256
      %v2258 = vand.u32 %v2257, 4294901760
      %v2259 = vsub.f32 %v2257, %v2258
      %v2260 = vand.u32 %v2259, 4294901760
      %2261 = vmatpush.xpose.msra.mxu0 %v2260
      %v2262 = vand.u32 %v1276, 4294901760
      %v2263 = vsub.f32 %v1276, %v2262
      %v2264 = vand.u32 %v2263, 4294901760
      %v2265 = vsub.f32 %v2263, %v2264
      %v2266 = vand.u32 %v2265, 4294901760
      %2267 = vmatpush.xpose.msra.mxu0 %v2266
      %v2268 = vand.u32 %v1263, 4294901760
      %v2269 = vsub.f32 %v1263, %v2268
      %v2270 = vand.u32 %v2269, 4294901760
      %v2271 = vsub.f32 %v2269, %v2270
      %v2272 = vand.u32 %v2271, 4294901760
      %2273 = vmatpush.xpose.msra.mxu0 %v2272
      %v2274 = vand.u32 %v1250, 4294901760
      %v2275 = vsub.f32 %v1250, %v2274
      %v2276 = vand.u32 %v2275, 4294901760
      %v2277 = vsub.f32 %v2275, %v2276
      %v2278 = vand.u32 %v2277, 4294901760
      %2279 = vmatpush.xpose.msra.mxu0 %v2278
      %v2280 = vand.u32 %v1237, 4294901760
      %v2281 = vsub.f32 %v1237, %v2280
      %v2282 = vand.u32 %v2281, 4294901760
      %v2283 = vsub.f32 %v2281, %v2282
      %v2284 = vand.u32 %v2283, 4294901760
      %2285 = vmatpush.xpose.msra.mxu0 %v2284
      %v2286 = vand.u32 %v1224, 4294901760
      %v2287 = vsub.f32 %v1224, %v2286
      %v2288 = vand.u32 %v2287, 4294901760
      %v2289 = vsub.f32 %v2287, %v2288
      %v2290 = vand.u32 %v2289, 4294901760
      %2291 = vmatpush.xpose.msra.mxu0 %v2290
      %v2292 = vand.u32 %v1211, 4294901760
      %v2293 = vsub.f32 %v1211, %v2292
      %v2294 = vand.u32 %v2293, 4294901760
      %v2295 = vsub.f32 %v2293, %v2294
      %v2296 = vand.u32 %v2295, 4294901760
      %2297 = vmatpush.xpose.msra.mxu0 %v2296
      %v2298 = vand.u32 %v1198, 4294901760
      %v2299 = vsub.f32 %v1198, %v2298
      %v2300 = vand.u32 %v2299, 4294901760
      %v2301 = vsub.f32 %v2299, %v2300
      %v2302 = vand.u32 %v2301, 4294901760
      %2303 = vmatpush.xpose.msra.mxu0 %v2302
      %v2304 = vand.u32 %v1185, 4294901760
      %v2305 = vsub.f32 %v1185, %v2304
      %v2306 = vand.u32 %v2305, 4294901760
      %v2307 = vsub.f32 %v2305, %v2306
      %v2308 = vand.u32 %v2307, 4294901760
      %2309 = vmatpush.xpose.msra.mxu0 %v2308
      %v2310 = vand.u32 %v1414, 4294901760
      %2311 = vmatmul.f32.gmra.mxu0 %v2310
      %v2312 = vpop.f32.mrf.mxu0
      %v2313 = vadd.f32 %v2212, %v2312
      %2314 = vdwg.mxu0
      %v2315 = vand.u32 %v1380, 4294901760
      %v2316 = vsub.f32 %v1380, %v2315
      %2317 = vmatpush.xpose.msra.mxu0 %v2316
      %v2318 = vand.u32 %v1367, 4294901760
      %v2319 = vsub.f32 %v1367, %v2318
      %2320 = vmatpush.xpose.msra.mxu0 %v2319
      %v2321 = vand.u32 %v1354, 4294901760
      %v2322 = vsub.f32 %v1354, %v2321
      %2323 = vmatpush.xpose.msra.mxu0 %v2322
      %v2324 = vand.u32 %v1341, 4294901760
      %v2325 = vsub.f32 %v1341, %v2324
      %2326 = vmatpush.xpose.msra.mxu0 %v2325
      %v2327 = vand.u32 %v1328, 4294901760
      %v2328 = vsub.f32 %v1328, %v2327
      %2329 = vmatpush.xpose.msra.mxu0 %v2328
      %v2330 = vand.u32 %v1315, 4294901760
      %v2331 = vsub.f32 %v1315, %v2330
      %2332 = vmatpush.xpose.msra.mxu0 %v2331
      %v2333 = vand.u32 %v1302, 4294901760
      %v2334 = vsub.f32 %v1302, %v2333
      %2335 = vmatpush.xpose.msra.mxu0 %v2334
      %v2336 = vand.u32 %v1289, 4294901760
      %v2337 = vsub.f32 %v1289, %v2336
      %2338 = vmatpush.xpose.msra.mxu0 %v2337
      %v2339 = vand.u32 %v1276, 4294901760
      %v2340 = vsub.f32 %v1276, %v2339
      %2341 = vmatpush.xpose.msra.mxu0 %v2340
      %v2342 = vand.u32 %v1263, 4294901760
      %v2343 = vsub.f32 %v1263, %v2342
      %2344 = vmatpush.xpose.msra.mxu0 %v2343
      %v2345 = vand.u32 %v1250, 4294901760
      %v2346 = vsub.f32 %v1250, %v2345
      %2347 = vmatpush.xpose.msra.mxu0 %v2346
      %v2348 = vand.u32 %v1237, 4294901760
      %v2349 = vsub.f32 %v1237, %v2348
      %2350 = vmatpush.xpose.msra.mxu0 %v2349
      %v2351 = vand.u32 %v1224, 4294901760
      %v2352 = vsub.f32 %v1224, %v2351
      %2353 = vmatpush.xpose.msra.mxu0 %v2352
      %v2354 = vand.u32 %v1211, 4294901760
      %v2355 = vsub.f32 %v1211, %v2354
      %2356 = vmatpush.xpose.msra.mxu0 %v2355
      %v2357 = vand.u32 %v1198, 4294901760
      %v2358 = vsub.f32 %v1198, %v2357
      %2359 = vmatpush.xpose.msra.mxu0 %v2358
      %v2360 = vand.u32 %v1185, 4294901760
      %v2361 = vsub.f32 %v1185, %v2360
      %2362 = vmatpush.xpose.msra.mxu0 %v2361
      %v2363 = vand.u32 %v1414, 4294901760
      %v2364 = vsub.f32 %v1414, %v2363
      %2365 = vmatmul.f32.gmra.mxu0 %v2364
      %v2366 = vpop.f32.mrf.mxu0
      %v2367 = vadd.f32 %v2313, %v2366
      %2368 = vdwg.mxu0
      %v2369 = vand.u32 %v1380, 4294901760
      %2370 = vmatpush.xpose.msra.mxu0 %v2369
      %v2371 = vand.u32 %v1367, 4294901760
      %2372 = vmatpush.xpose.msra.mxu0 %v2371
      %v2373 = vand.u32 %v1354, 4294901760
      %2374 = vmatpush.xpose.msra.mxu0 %v2373
      %v2375 = vand.u32 %v1341, 4294901760
      %2376 = vmatpush.xpose.msra.mxu0 %v2375
      %v2377 = vand.u32 %v1328, 4294901760
      %2378 = vmatpush.xpose.msra.mxu0 %v2377
      %v2379 = vand.u32 %v1315, 4294901760
      %2380 = vmatpush.xpose.msra.mxu0 %v2379
      %v2381 = vand.u32 %v1302, 4294901760
      %2382 = vmatpush.xpose.msra.mxu0 %v2381
      %v2383 = vand.u32 %v1289, 4294901760
      %2384 = vmatpush.xpose.msra.mxu0 %v2383
      %v2385 = vand.u32 %v1276, 4294901760
      %2386 = vmatpush.xpose.msra.mxu0 %v2385
      %v2387 = vand.u32 %v1263, 4294901760
      %2388 = vmatpush.xpose.msra.mxu0 %v2387
      %v2389 = vand.u32 %v1250, 4294901760
      %2390 = vmatpush.xpose.msra.mxu0 %v2389
      %v2391 = vand.u32 %v1237, 4294901760
      %2392 = vmatpush.xpose.msra.mxu0 %v2391
      %v2393 = vand.u32 %v1224, 4294901760
      %2394 = vmatpush.xpose.msra.mxu0 %v2393
      %v2395 = vand.u32 %v1211, 4294901760
      %2396 = vmatpush.xpose.msra.mxu0 %v2395
      %v2397 = vand.u32 %v1198, 4294901760
      %2398 = vmatpush.xpose.msra.mxu0 %v2397
      %v2399 = vand.u32 %v1185, 4294901760
      %2400 = vmatpush.xpose.msra.mxu0 %v2399
      %v2401 = vand.u32 %v1414, 4294901760
      %v2402 = vsub.f32 %v1414, %v2401
      %v2403 = vand.u32 %v2402, 4294901760
      %2404 = vmatmul.f32.gmra.mxu0 %v2403
      %v2405 = vpop.f32.mrf.mxu0
      %v2406 = vadd.f32 %v2367, %v2405
      %2407 = vdwg.mxu0
      %v2408 = vand.u32 %v1380, 4294901760
      %v2409 = vsub.f32 %v1380, %v2408
      %v2410 = vand.u32 %v2409, 4294901760
      %2411 = vmatpush.xpose.msra.mxu0 %v2410
      %v2412 = vand.u32 %v1367, 4294901760
      %v2413 = vsub.f32 %v1367, %v2412
      %v2414 = vand.u32 %v2413, 4294901760
      %2415 = vmatpush.xpose.msra.mxu0 %v2414
      %v2416 = vand.u32 %v1354, 4294901760
      %v2417 = vsub.f32 %v1354, %v2416
      %v2418 = vand.u32 %v2417, 4294901760
      %2419 = vmatpush.xpose.msra.mxu0 %v2418
      %v2420 = vand.u32 %v1341, 4294901760
      %v2421 = vsub.f32 %v1341, %v2420
      %v2422 = vand.u32 %v2421, 4294901760
      %2423 = vmatpush.xpose.msra.mxu0 %v2422
      %v2424 = vand.u32 %v1328, 4294901760
      %v2425 = vsub.f32 %v1328, %v2424
      %v2426 = vand.u32 %v2425, 4294901760
      %2427 = vmatpush.xpose.msra.mxu0 %v2426
      %v2428 = vand.u32 %v1315, 4294901760
      %v2429 = vsub.f32 %v1315, %v2428
      %v2430 = vand.u32 %v2429, 4294901760
      %2431 = vmatpush.xpose.msra.mxu0 %v2430
      %v2432 = vand.u32 %v1302, 4294901760
      %v2433 = vsub.f32 %v1302, %v2432
      %v2434 = vand.u32 %v2433, 4294901760
      %2435 = vmatpush.xpose.msra.mxu0 %v2434
      %v2436 = vand.u32 %v1289, 4294901760
      %v2437 = vsub.f32 %v1289, %v2436
      %v2438 = vand.u32 %v2437, 4294901760
      %2439 = vmatpush.xpose.msra.mxu0 %v2438
      %v2440 = vand.u32 %v1276, 4294901760
      %v2441 = vsub.f32 %v1276, %v2440
      %v2442 = vand.u32 %v2441, 4294901760
      %2443 = vmatpush.xpose.msra.mxu0 %v2442
      %v2444 = vand.u32 %v1263, 4294901760
      %v2445 = vsub.f32 %v1263, %v2444
      %v2446 = vand.u32 %v2445, 4294901760
      %2447 = vmatpush.xpose.msra.mxu0 %v2446
      %v2448 = vand.u32 %v1250, 4294901760
      %v2449 = vsub.f32 %v1250, %v2448
      %v2450 = vand.u32 %v2449, 4294901760
      %2451 = vmatpush.xpose.msra.mxu0 %v2450
      %v2452 = vand.u32 %v1237, 4294901760
      %v2453 = vsub.f32 %v1237, %v2452
      %v2454 = vand.u32 %v2453, 4294901760
      %2455 = vmatpush.xpose.msra.mxu0 %v2454
      %v2456 = vand.u32 %v1224, 4294901760
      %v2457 = vsub.f32 %v1224, %v2456
      %v2458 = vand.u32 %v2457, 4294901760
      %2459 = vmatpush.xpose.msra.mxu0 %v2458
      %v2460 = vand.u32 %v1211, 4294901760
      %v2461 = vsub.f32 %v1211, %v2460
      %v2462 = vand.u32 %v2461, 4294901760
      %2463 = vmatpush.xpose.msra.mxu0 %v2462
      %v2464 = vand.u32 %v1198, 4294901760
      %v2465 = vsub.f32 %v1198, %v2464
      %v2466 = vand.u32 %v2465, 4294901760
      %2467 = vmatpush.xpose.msra.mxu0 %v2466
      %v2468 = vand.u32 %v1185, 4294901760
      %v2469 = vsub.f32 %v1185, %v2468
      %v2470 = vand.u32 %v2469, 4294901760
      %2471 = vmatpush.xpose.msra.mxu0 %v2470
      %v2472 = vand.u32 %v1414, 4294901760
      %2473 = vmatmul.f32.gmra.mxu0 %v2472
      %v2474 = vpop.f32.mrf.mxu0
      %v2475 = vadd.f32 %v2406, %v2474
      %2476 = vdwg.mxu0
      %v2477 = vand.u32 %v1380, 4294901760
      %2478 = vmatpush.xpose.msra.mxu0 %v2477
      %v2479 = vand.u32 %v1367, 4294901760
      %2480 = vmatpush.xpose.msra.mxu0 %v2479
      %v2481 = vand.u32 %v1354, 4294901760
      %2482 = vmatpush.xpose.msra.mxu0 %v2481
      %v2483 = vand.u32 %v1341, 4294901760
      %2484 = vmatpush.xpose.msra.mxu0 %v2483
      %v2485 = vand.u32 %v1328, 4294901760
      %2486 = vmatpush.xpose.msra.mxu0 %v2485
      %v2487 = vand.u32 %v1315, 4294901760
      %2488 = vmatpush.xpose.msra.mxu0 %v2487
      %v2489 = vand.u32 %v1302, 4294901760
      %2490 = vmatpush.xpose.msra.mxu0 %v2489
      %v2491 = vand.u32 %v1289, 4294901760
      %2492 = vmatpush.xpose.msra.mxu0 %v2491
      %v2493 = vand.u32 %v1276, 4294901760
      %2494 = vmatpush.xpose.msra.mxu0 %v2493
      %v2495 = vand.u32 %v1263, 4294901760
      %2496 = vmatpush.xpose.msra.mxu0 %v2495
      %v2497 = vand.u32 %v1250, 4294901760
      %2498 = vmatpush.xpose.msra.mxu0 %v2497
      %v2499 = vand.u32 %v1237, 4294901760
      %2500 = vmatpush.xpose.msra.mxu0 %v2499
      %v2501 = vand.u32 %v1224, 4294901760
      %2502 = vmatpush.xpose.msra.mxu0 %v2501
      %v2503 = vand.u32 %v1211, 4294901760
      %2504 = vmatpush.xpose.msra.mxu0 %v2503
      %v2505 = vand.u32 %v1198, 4294901760
      %2506 = vmatpush.xpose.msra.mxu0 %v2505
      %v2507 = vand.u32 %v1185, 4294901760
      %2508 = vmatpush.xpose.msra.mxu0 %v2507
      %v2509 = vand.u32 %v1414, 4294901760
      %2510 = vmatmul.f32.gmra.mxu0 %v2509
      %v2511 = vpop.f32.mrf.mxu0
      %v2512 = vadd.f32 %v2475, %v2511
      %2513 = vdwg.mxu0
      %v2514 = vand.u32 %v1381, 4294901760
      %2515 = vmatpush.xpose.msra.mxu0 %v2514
      %v2516 = vand.u32 %v1368, 4294901760
      %2517 = vmatpush.xpose.msra.mxu0 %v2516
      %v2518 = vand.u32 %v1355, 4294901760
      %2519 = vmatpush.xpose.msra.mxu0 %v2518
      %v2520 = vand.u32 %v1342, 4294901760
      %2521 = vmatpush.xpose.msra.mxu0 %v2520
      %v2522 = vand.u32 %v1329, 4294901760
      %2523 = vmatpush.xpose.msra.mxu0 %v2522
      %v2524 = vand.u32 %v1316, 4294901760
      %2525 = vmatpush.xpose.msra.mxu0 %v2524
      %v2526 = vand.u32 %v1303, 4294901760
      %2527 = vmatpush.xpose.msra.mxu0 %v2526
      %v2528 = vand.u32 %v1290, 4294901760
      %2529 = vmatpush.xpose.msra.mxu0 %v2528
      %v2530 = vand.u32 %v1277, 4294901760
      %2531 = vmatpush.xpose.msra.mxu0 %v2530
      %v2532 = vand.u32 %v1264, 4294901760
      %2533 = vmatpush.xpose.msra.mxu0 %v2532
      %v2534 = vand.u32 %v1251, 4294901760
      %2535 = vmatpush.xpose.msra.mxu0 %v2534
      %v2536 = vand.u32 %v1238, 4294901760
      %2537 = vmatpush.xpose.msra.mxu0 %v2536
      %v2538 = vand.u32 %v1225, 4294901760
      %2539 = vmatpush.xpose.msra.mxu0 %v2538
      %v2540 = vand.u32 %v1212, 4294901760
      %2541 = vmatpush.xpose.msra.mxu0 %v2540
      %v2542 = vand.u32 %v1199, 4294901760
      %2543 = vmatpush.xpose.msra.mxu0 %v2542
      %v2544 = vand.u32 %v1186, 4294901760
      %2545 = vmatpush.xpose.msra.mxu0 %v2544
      %v2546 = vand.u32 %v1415, 4294901760
      %v2547 = vsub.f32 %v1415, %v2546
      %v2548 = vand.u32 %v2547, 4294901760
      %v2549 = vsub.f32 %v2547, %v2548
      %v2550 = vand.u32 %v2549, 4294901760
      %2551 = vmatmul.f32.gmra.mxu0 %v2550
      %v2552 = vpop.f32.mrf.mxu0
      %v2553 = vadd.f32 %v2512, %v2552
      %2554 = vdwg.mxu0
      %v2555 = vand.u32 %v1381, 4294901760
      %v2556 = vsub.f32 %v1381, %v2555
      %v2557 = vand.u32 %v2556, 4294901760
      %v2558 = vsub.f32 %v2556, %v2557
      %v2559 = vand.u32 %v2558, 4294901760
      %2560 = vmatpush.xpose.msra.mxu0 %v2559
      %v2561 = vand.u32 %v1368, 4294901760
      %v2562 = vsub.f32 %v1368, %v2561
      %v2563 = vand.u32 %v2562, 4294901760
      %v2564 = vsub.f32 %v2562, %v2563
      %v2565 = vand.u32 %v2564, 4294901760
      %2566 = vmatpush.xpose.msra.mxu0 %v2565
      %v2567 = vand.u32 %v1355, 4294901760
      %v2568 = vsub.f32 %v1355, %v2567
      %v2569 = vand.u32 %v2568, 4294901760
      %v2570 = vsub.f32 %v2568, %v2569
      %v2571 = vand.u32 %v2570, 4294901760
      %2572 = vmatpush.xpose.msra.mxu0 %v2571
      %v2573 = vand.u32 %v1342, 4294901760
      %v2574 = vsub.f32 %v1342, %v2573
      %v2575 = vand.u32 %v2574, 4294901760
      %v2576 = vsub.f32 %v2574, %v2575
      %v2577 = vand.u32 %v2576, 4294901760
      %2578 = vmatpush.xpose.msra.mxu0 %v2577
      %v2579 = vand.u32 %v1329, 4294901760
      %v2580 = vsub.f32 %v1329, %v2579
      %v2581 = vand.u32 %v2580, 4294901760
      %v2582 = vsub.f32 %v2580, %v2581
      %v2583 = vand.u32 %v2582, 4294901760
      %2584 = vmatpush.xpose.msra.mxu0 %v2583
      %v2585 = vand.u32 %v1316, 4294901760
      %v2586 = vsub.f32 %v1316, %v2585
      %v2587 = vand.u32 %v2586, 4294901760
      %v2588 = vsub.f32 %v2586, %v2587
      %v2589 = vand.u32 %v2588, 4294901760
      %2590 = vmatpush.xpose.msra.mxu0 %v2589
      %v2591 = vand.u32 %v1303, 4294901760
      %v2592 = vsub.f32 %v1303, %v2591
      %v2593 = vand.u32 %v2592, 4294901760
      %v2594 = vsub.f32 %v2592, %v2593
      %v2595 = vand.u32 %v2594, 4294901760
      %2596 = vmatpush.xpose.msra.mxu0 %v2595
      %v2597 = vand.u32 %v1290, 4294901760
      %v2598 = vsub.f32 %v1290, %v2597
      %v2599 = vand.u32 %v2598, 4294901760
      %v2600 = vsub.f32 %v2598, %v2599
      %v2601 = vand.u32 %v2600, 4294901760
      %2602 = vmatpush.xpose.msra.mxu0 %v2601
      %v2603 = vand.u32 %v1277, 4294901760
      %v2604 = vsub.f32 %v1277, %v2603
      %v2605 = vand.u32 %v2604, 4294901760
      %v2606 = vsub.f32 %v2604, %v2605
      %v2607 = vand.u32 %v2606, 4294901760
      %2608 = vmatpush.xpose.msra.mxu0 %v2607
      %v2609 = vand.u32 %v1264, 4294901760
      %v2610 = vsub.f32 %v1264, %v2609
      %v2611 = vand.u32 %v2610, 4294901760
      %v2612 = vsub.f32 %v2610, %v2611
      %v2613 = vand.u32 %v2612, 4294901760
      %2614 = vmatpush.xpose.msra.mxu0 %v2613
      %v2615 = vand.u32 %v1251, 4294901760
      %v2616 = vsub.f32 %v1251, %v2615
      %v2617 = vand.u32 %v2616, 4294901760
      %v2618 = vsub.f32 %v2616, %v2617
      %v2619 = vand.u32 %v2618, 4294901760
      %2620 = vmatpush.xpose.msra.mxu0 %v2619
      %v2621 = vand.u32 %v1238, 4294901760
      %v2622 = vsub.f32 %v1238, %v2621
      %v2623 = vand.u32 %v2622, 4294901760
      %v2624 = vsub.f32 %v2622, %v2623
      %v2625 = vand.u32 %v2624, 4294901760
      %2626 = vmatpush.xpose.msra.mxu0 %v2625
      %v2627 = vand.u32 %v1225, 4294901760
      %v2628 = vsub.f32 %v1225, %v2627
      %v2629 = vand.u32 %v2628, 4294901760
      %v2630 = vsub.f32 %v2628, %v2629
      %v2631 = vand.u32 %v2630, 4294901760
      %2632 = vmatpush.xpose.msra.mxu0 %v2631
      %v2633 = vand.u32 %v1212, 4294901760
      %v2634 = vsub.f32 %v1212, %v2633
      %v2635 = vand.u32 %v2634, 4294901760
      %v2636 = vsub.f32 %v2634, %v2635
      %v2637 = vand.u32 %v2636, 4294901760
      %2638 = vmatpush.xpose.msra.mxu0 %v2637
      %v2639 = vand.u32 %v1199, 4294901760
      %v2640 = vsub.f32 %v1199, %v2639
      %v2641 = vand.u32 %v2640, 4294901760
      %v2642 = vsub.f32 %v2640, %v2641
      %v2643 = vand.u32 %v2642, 4294901760
      %2644 = vmatpush.xpose.msra.mxu0 %v2643
      %v2645 = vand.u32 %v1186, 4294901760
      %v2646 = vsub.f32 %v1186, %v2645
      %v2647 = vand.u32 %v2646, 4294901760
      %v2648 = vsub.f32 %v2646, %v2647
      %v2649 = vand.u32 %v2648, 4294901760
      %2650 = vmatpush.xpose.msra.mxu0 %v2649
      %v2651 = vand.u32 %v1415, 4294901760
      %2652 = vmatmul.f32.gmra.mxu0 %v2651
      %v2653 = vpop.f32.mrf.mxu0
      %v2654 = vadd.f32 %v2553, %v2653
      %2655 = vdwg.mxu0
      %v2656 = vand.u32 %v1381, 4294901760
      %v2657 = vsub.f32 %v1381, %v2656
      %2658 = vmatpush.xpose.msra.mxu0 %v2657
      %v2659 = vand.u32 %v1368, 4294901760
      %v2660 = vsub.f32 %v1368, %v2659
      %2661 = vmatpush.xpose.msra.mxu0 %v2660
      %v2662 = vand.u32 %v1355, 4294901760
      %v2663 = vsub.f32 %v1355, %v2662
      %2664 = vmatpush.xpose.msra.mxu0 %v2663
      %v2665 = vand.u32 %v1342, 4294901760
      %v2666 = vsub.f32 %v1342, %v2665
      %2667 = vmatpush.xpose.msra.mxu0 %v2666
      %v2668 = vand.u32 %v1329, 4294901760
      %v2669 = vsub.f32 %v1329, %v2668
      %2670 = vmatpush.xpose.msra.mxu0 %v2669
      %v2671 = vand.u32 %v1316, 4294901760
      %v2672 = vsub.f32 %v1316, %v2671
      %2673 = vmatpush.xpose.msra.mxu0 %v2672
      %v2674 = vand.u32 %v1303, 4294901760
      %v2675 = vsub.f32 %v1303, %v2674
      %2676 = vmatpush.xpose.msra.mxu0 %v2675
      %v2677 = vand.u32 %v1290, 4294901760
      %v2678 = vsub.f32 %v1290, %v2677
      %2679 = vmatpush.xpose.msra.mxu0 %v2678
      %v2680 = vand.u32 %v1277, 4294901760
      %v2681 = vsub.f32 %v1277, %v2680
      %2682 = vmatpush.xpose.msra.mxu0 %v2681
      %v2683 = vand.u32 %v1264, 4294901760
      %v2684 = vsub.f32 %v1264, %v2683
      %2685 = vmatpush.xpose.msra.mxu0 %v2684
      %v2686 = vand.u32 %v1251, 4294901760
      %v2687 = vsub.f32 %v1251, %v2686
      %2688 = vmatpush.xpose.msra.mxu0 %v2687
      %v2689 = vand.u32 %v1238, 4294901760
      %v2690 = vsub.f32 %v1238, %v2689
      %2691 = vmatpush.xpose.msra.mxu0 %v2690
      %v2692 = vand.u32 %v1225, 4294901760
      %v2693 = vsub.f32 %v1225, %v2692
      %2694 = vmatpush.xpose.msra.mxu0 %v2693
      %v2695 = vand.u32 %v1212, 4294901760
      %v2696 = vsub.f32 %v1212, %v2695
      %2697 = vmatpush.xpose.msra.mxu0 %v2696
      %v2698 = vand.u32 %v1199, 4294901760
      %v2699 = vsub.f32 %v1199, %v2698
      %2700 = vmatpush.xpose.msra.mxu0 %v2699
      %v2701 = vand.u32 %v1186, 4294901760
      %v2702 = vsub.f32 %v1186, %v2701
      %2703 = vmatpush.xpose.msra.mxu0 %v2702
      %v2704 = vand.u32 %v1415, 4294901760
      %v2705 = vsub.f32 %v1415, %v2704
      %2706 = vmatmul.f32.gmra.mxu0 %v2705
      %v2707 = vpop.f32.mrf.mxu0
      %v2708 = vadd.f32 %v2654, %v2707
      %2709 = vdwg.mxu0
      %v2710 = vand.u32 %v1381, 4294901760
      %2711 = vmatpush.xpose.msra.mxu0 %v2710
      %v2712 = vand.u32 %v1368, 4294901760
      %2713 = vmatpush.xpose.msra.mxu0 %v2712
      %v2714 = vand.u32 %v1355, 4294901760
      %2715 = vmatpush.xpose.msra.mxu0 %v2714
      %v2716 = vand.u32 %v1342, 4294901760
      %2717 = vmatpush.xpose.msra.mxu0 %v2716
      %v2718 = vand.u32 %v1329, 4294901760
      %2719 = vmatpush.xpose.msra.mxu0 %v2718
      %v2720 = vand.u32 %v1316, 4294901760
      %2721 = vmatpush.xpose.msra.mxu0 %v2720
      %v2722 = vand.u32 %v1303, 4294901760
      %2723 = vmatpush.xpose.msra.mxu0 %v2722
      %v2724 = vand.u32 %v1290, 4294901760
      %2725 = vmatpush.xpose.msra.mxu0 %v2724
      %v2726 = vand.u32 %v1277, 4294901760
      %2727 = vmatpush.xpose.msra.mxu0 %v2726
      %v2728 = vand.u32 %v1264, 4294901760
      %2729 = vmatpush.xpose.msra.mxu0 %v2728
      %v2730 = vand.u32 %v1251, 4294901760
      %2731 = vmatpush.xpose.msra.mxu0 %v2730
      %v2732 = vand.u32 %v1238, 4294901760
      %2733 = vmatpush.xpose.msra.mxu0 %v2732
      %v2734 = vand.u32 %v1225, 4294901760
      %2735 = vmatpush.xpose.msra.mxu0 %v2734
      %v2736 = vand.u32 %v1212, 4294901760
      %2737 = vmatpush.xpose.msra.mxu0 %v2736
      %v2738 = vand.u32 %v1199, 4294901760
      %2739 = vmatpush.xpose.msra.mxu0 %v2738
      %v2740 = vand.u32 %v1186, 4294901760
      %2741 = vmatpush.xpose.msra.mxu0 %v2740
      %v2742 = vand.u32 %v1415, 4294901760
      %v2743 = vsub.f32 %v1415, %v2742
      %v2744 = vand.u32 %v2743, 4294901760
      %2745 = vmatmul.f32.gmra.mxu0 %v2744
      %v2746 = vpop.f32.mrf.mxu0
      %v2747 = vadd.f32 %v2708, %v2746
      %2748 = vdwg.mxu0
      %v2749 = vand.u32 %v1381, 4294901760
      %v2750 = vsub.f32 %v1381, %v2749
      %v2751 = vand.u32 %v2750, 4294901760
      %2752 = vmatpush.xpose.msra.mxu0 %v2751
      %v2753 = vand.u32 %v1368, 4294901760
      %v2754 = vsub.f32 %v1368, %v2753
      %v2755 = vand.u32 %v2754, 4294901760
      %2756 = vmatpush.xpose.msra.mxu0 %v2755
      %v2757 = vand.u32 %v1355, 4294901760
      %v2758 = vsub.f32 %v1355, %v2757
      %v2759 = vand.u32 %v2758, 4294901760
      %2760 = vmatpush.xpose.msra.mxu0 %v2759
      %v2761 = vand.u32 %v1342, 4294901760
      %v2762 = vsub.f32 %v1342, %v2761
      %v2763 = vand.u32 %v2762, 4294901760
      %2764 = vmatpush.xpose.msra.mxu0 %v2763
      %v2765 = vand.u32 %v1329, 4294901760
      %v2766 = vsub.f32 %v1329, %v2765
      %v2767 = vand.u32 %v2766, 4294901760
      %2768 = vmatpush.xpose.msra.mxu0 %v2767
      %v2769 = vand.u32 %v1316, 4294901760
      %v2770 = vsub.f32 %v1316, %v2769
      %v2771 = vand.u32 %v2770, 4294901760
      %2772 = vmatpush.xpose.msra.mxu0 %v2771
      %v2773 = vand.u32 %v1303, 4294901760
      %v2774 = vsub.f32 %v1303, %v2773
      %v2775 = vand.u32 %v2774, 4294901760
      %2776 = vmatpush.xpose.msra.mxu0 %v2775
      %v2777 = vand.u32 %v1290, 4294901760
      %v2778 = vsub.f32 %v1290, %v2777
      %v2779 = vand.u32 %v2778, 4294901760
      %2780 = vmatpush.xpose.msra.mxu0 %v2779
      %v2781 = vand.u32 %v1277, 4294901760
      %v2782 = vsub.f32 %v1277, %v2781
      %v2783 = vand.u32 %v2782, 4294901760
      %2784 = vmatpush.xpose.msra.mxu0 %v2783
      %v2785 = vand.u32 %v1264, 4294901760
      %v2786 = vsub.f32 %v1264, %v2785
      %v2787 = vand.u32 %v2786, 4294901760
      %2788 = vmatpush.xpose.msra.mxu0 %v2787
      %v2789 = vand.u32 %v1251, 4294901760
      %v2790 = vsub.f32 %v1251, %v2789
      %v2791 = vand.u32 %v2790, 4294901760
      %2792 = vmatpush.xpose.msra.mxu0 %v2791
      %v2793 = vand.u32 %v1238, 4294901760
      %v2794 = vsub.f32 %v1238, %v2793
      %v2795 = vand.u32 %v2794, 4294901760
      %2796 = vmatpush.xpose.msra.mxu0 %v2795
      %v2797 = vand.u32 %v1225, 4294901760
      %v2798 = vsub.f32 %v1225, %v2797
      %v2799 = vand.u32 %v2798, 4294901760
      %2800 = vmatpush.xpose.msra.mxu0 %v2799
      %v2801 = vand.u32 %v1212, 4294901760
      %v2802 = vsub.f32 %v1212, %v2801
      %v2803 = vand.u32 %v2802, 4294901760
      %2804 = vmatpush.xpose.msra.mxu0 %v2803
      %v2805 = vand.u32 %v1199, 4294901760
      %v2806 = vsub.f32 %v1199, %v2805
      %v2807 = vand.u32 %v2806, 4294901760
      %2808 = vmatpush.xpose.msra.mxu0 %v2807
      %v2809 = vand.u32 %v1186, 4294901760
      %v2810 = vsub.f32 %v1186, %v2809
      %v2811 = vand.u32 %v2810, 4294901760
      %2812 = vmatpush.xpose.msra.mxu0 %v2811
      %v2813 = vand.u32 %v1415, 4294901760
      %2814 = vmatmul.f32.gmra.mxu0 %v2813
      %v2815 = vpop.f32.mrf.mxu0
      %v2816 = vadd.f32 %v2747, %v2815
      %2817 = vdwg.mxu0
      %v2818 = vand.u32 %v1381, 4294901760
      %2819 = vmatpush.xpose.msra.mxu0 %v2818
      %v2820 = vand.u32 %v1368, 4294901760
      %2821 = vmatpush.xpose.msra.mxu0 %v2820
      %v2822 = vand.u32 %v1355, 4294901760
      %2823 = vmatpush.xpose.msra.mxu0 %v2822
      %v2824 = vand.u32 %v1342, 4294901760
      %2825 = vmatpush.xpose.msra.mxu0 %v2824
      %v2826 = vand.u32 %v1329, 4294901760
      %2827 = vmatpush.xpose.msra.mxu0 %v2826
      %v2828 = vand.u32 %v1316, 4294901760
      %2829 = vmatpush.xpose.msra.mxu0 %v2828
      %v2830 = vand.u32 %v1303, 4294901760
      %2831 = vmatpush.xpose.msra.mxu0 %v2830
      %v2832 = vand.u32 %v1290, 4294901760
      %2833 = vmatpush.xpose.msra.mxu0 %v2832
      %v2834 = vand.u32 %v1277, 4294901760
      %2835 = vmatpush.xpose.msra.mxu0 %v2834
      %v2836 = vand.u32 %v1264, 4294901760
      %2837 = vmatpush.xpose.msra.mxu0 %v2836
      %v2838 = vand.u32 %v1251, 4294901760
      %2839 = vmatpush.xpose.msra.mxu0 %v2838
      %v2840 = vand.u32 %v1238, 4294901760
      %2841 = vmatpush.xpose.msra.mxu0 %v2840
      %v2842 = vand.u32 %v1225, 4294901760
      %2843 = vmatpush.xpose.msra.mxu0 %v2842
      %v2844 = vand.u32 %v1212, 4294901760
      %2845 = vmatpush.xpose.msra.mxu0 %v2844
      %v2846 = vand.u32 %v1199, 4294901760
      %2847 = vmatpush.xpose.msra.mxu0 %v2846
      %v2848 = vand.u32 %v1186, 4294901760
      %2849 = vmatpush.xpose.msra.mxu0 %v2848
      %v2850 = vand.u32 %v1415, 4294901760
      %2851 = vmatmul.f32.gmra.mxu0 %v2850
      %v2852 = vpop.f32.mrf.mxu0
      %v2853 = vadd.f32 %v2816, %v2852
      %2854 = vdwg.mxu0
      %v2855 = vand.u32 %v1382, 4294901760
      %2856 = vmatpush.xpose.msra.mxu0 %v2855
      %v2857 = vand.u32 %v1369, 4294901760
      %2858 = vmatpush.xpose.msra.mxu0 %v2857
      %v2859 = vand.u32 %v1356, 4294901760
      %2860 = vmatpush.xpose.msra.mxu0 %v2859
      %v2861 = vand.u32 %v1343, 4294901760
      %2862 = vmatpush.xpose.msra.mxu0 %v2861
      %v2863 = vand.u32 %v1330, 4294901760
      %2864 = vmatpush.xpose.msra.mxu0 %v2863
      %v2865 = vand.u32 %v1317, 4294901760
      %2866 = vmatpush.xpose.msra.mxu0 %v2865
      %v2867 = vand.u32 %v1304, 4294901760
      %2868 = vmatpush.xpose.msra.mxu0 %v2867
      %v2869 = vand.u32 %v1291, 4294901760
      %2870 = vmatpush.xpose.msra.mxu0 %v2869
      %v2871 = vand.u32 %v1278, 4294901760
      %2872 = vmatpush.xpose.msra.mxu0 %v2871
      %v2873 = vand.u32 %v1265, 4294901760
      %2874 = vmatpush.xpose.msra.mxu0 %v2873
      %v2875 = vand.u32 %v1252, 4294901760
      %2876 = vmatpush.xpose.msra.mxu0 %v2875
      %v2877 = vand.u32 %v1239, 4294901760
      %2878 = vmatpush.xpose.msra.mxu0 %v2877
      %v2879 = vand.u32 %v1226, 4294901760
      %2880 = vmatpush.xpose.msra.mxu0 %v2879
      %v2881 = vand.u32 %v1213, 4294901760
      %2882 = vmatpush.xpose.msra.mxu0 %v2881
      %v2883 = vand.u32 %v1200, 4294901760
      %2884 = vmatpush.xpose.msra.mxu0 %v2883
      %v2885 = vand.u32 %v1187, 4294901760
      %2886 = vmatpush.xpose.msra.mxu0 %v2885
      %v2887 = vand.u32 %v1416, 4294901760
      %v2888 = vsub.f32 %v1416, %v2887
      %v2889 = vand.u32 %v2888, 4294901760
      %v2890 = vsub.f32 %v2888, %v2889
      %v2891 = vand.u32 %v2890, 4294901760
      %2892 = vmatmul.f32.gmra.mxu0 %v2891
      %v2893 = vpop.f32.mrf.mxu0
      %v2894 = vadd.f32 %v2853, %v2893
      %2895 = vdwg.mxu0
      %v2896 = vand.u32 %v1382, 4294901760
      %v2897 = vsub.f32 %v1382, %v2896
      %v2898 = vand.u32 %v2897, 4294901760
      %v2899 = vsub.f32 %v2897, %v2898
      %v2900 = vand.u32 %v2899, 4294901760
      %2901 = vmatpush.xpose.msra.mxu0 %v2900
      %v2902 = vand.u32 %v1369, 4294901760
      %v2903 = vsub.f32 %v1369, %v2902
      %v2904 = vand.u32 %v2903, 4294901760
      %v2905 = vsub.f32 %v2903, %v2904
      %v2906 = vand.u32 %v2905, 4294901760
      %2907 = vmatpush.xpose.msra.mxu0 %v2906
      %v2908 = vand.u32 %v1356, 4294901760
      %v2909 = vsub.f32 %v1356, %v2908
      %v2910 = vand.u32 %v2909, 4294901760
      %v2911 = vsub.f32 %v2909, %v2910
      %v2912 = vand.u32 %v2911, 4294901760
      %2913 = vmatpush.xpose.msra.mxu0 %v2912
      %v2914 = vand.u32 %v1343, 4294901760
      %v2915 = vsub.f32 %v1343, %v2914
      %v2916 = vand.u32 %v2915, 4294901760
      %v2917 = vsub.f32 %v2915, %v2916
      %v2918 = vand.u32 %v2917, 4294901760
      %2919 = vmatpush.xpose.msra.mxu0 %v2918
      %v2920 = vand.u32 %v1330, 4294901760
      %v2921 = vsub.f32 %v1330, %v2920
      %v2922 = vand.u32 %v2921, 4294901760
      %v2923 = vsub.f32 %v2921, %v2922
      %v2924 = vand.u32 %v2923, 4294901760
      %2925 = vmatpush.xpose.msra.mxu0 %v2924
      %v2926 = vand.u32 %v1317, 4294901760
      %v2927 = vsub.f32 %v1317, %v2926
      %v2928 = vand.u32 %v2927, 4294901760
      %v2929 = vsub.f32 %v2927, %v2928
      %v2930 = vand.u32 %v2929, 4294901760
      %2931 = vmatpush.xpose.msra.mxu0 %v2930
      %v2932 = vand.u32 %v1304, 4294901760
      %v2933 = vsub.f32 %v1304, %v2932
      %v2934 = vand.u32 %v2933, 4294901760
      %v2935 = vsub.f32 %v2933, %v2934
      %v2936 = vand.u32 %v2935, 4294901760
      %2937 = vmatpush.xpose.msra.mxu0 %v2936
      %v2938 = vand.u32 %v1291, 4294901760
      %v2939 = vsub.f32 %v1291, %v2938
      %v2940 = vand.u32 %v2939, 4294901760
      %v2941 = vsub.f32 %v2939, %v2940
      %v2942 = vand.u32 %v2941, 4294901760
      %2943 = vmatpush.xpose.msra.mxu0 %v2942
      %v2944 = vand.u32 %v1278, 4294901760
      %v2945 = vsub.f32 %v1278, %v2944
      %v2946 = vand.u32 %v2945, 4294901760
      %v2947 = vsub.f32 %v2945, %v2946
      %v2948 = vand.u32 %v2947, 4294901760
      %2949 = vmatpush.xpose.msra.mxu0 %v2948
      %v2950 = vand.u32 %v1265, 4294901760
      %v2951 = vsub.f32 %v1265, %v2950
      %v2952 = vand.u32 %v2951, 4294901760
      %v2953 = vsub.f32 %v2951, %v2952
      %v2954 = vand.u32 %v2953, 4294901760
      %2955 = vmatpush.xpose.msra.mxu0 %v2954
      %v2956 = vand.u32 %v1252, 4294901760
      %v2957 = vsub.f32 %v1252, %v2956
      %v2958 = vand.u32 %v2957, 4294901760
      %v2959 = vsub.f32 %v2957, %v2958
      %v2960 = vand.u32 %v2959, 4294901760
      %2961 = vmatpush.xpose.msra.mxu0 %v2960
      %v2962 = vand.u32 %v1239, 4294901760
      %v2963 = vsub.f32 %v1239, %v2962
      %v2964 = vand.u32 %v2963, 4294901760
      %v2965 = vsub.f32 %v2963, %v2964
      %v2966 = vand.u32 %v2965, 4294901760
      %2967 = vmatpush.xpose.msra.mxu0 %v2966
      %v2968 = vand.u32 %v1226, 4294901760
      %v2969 = vsub.f32 %v1226, %v2968
      %v2970 = vand.u32 %v2969, 4294901760
      %v2971 = vsub.f32 %v2969, %v2970
      %v2972 = vand.u32 %v2971, 4294901760
      %2973 = vmatpush.xpose.msra.mxu0 %v2972
      %v2974 = vand.u32 %v1213, 4294901760
      %v2975 = vsub.f32 %v1213, %v2974
      %v2976 = vand.u32 %v2975, 4294901760
      %v2977 = vsub.f32 %v2975, %v2976
      %v2978 = vand.u32 %v2977, 4294901760
      %2979 = vmatpush.xpose.msra.mxu0 %v2978
      %v2980 = vand.u32 %v1200, 4294901760
      %v2981 = vsub.f32 %v1200, %v2980
      %v2982 = vand.u32 %v2981, 4294901760
      %v2983 = vsub.f32 %v2981, %v2982
      %v2984 = vand.u32 %v2983, 4294901760
      %2985 = vmatpush.xpose.msra.mxu0 %v2984
      %v2986 = vand.u32 %v1187, 4294901760
      %v2987 = vsub.f32 %v1187, %v2986
      %v2988 = vand.u32 %v2987, 4294901760
      %v2989 = vsub.f32 %v2987, %v2988
      %v2990 = vand.u32 %v2989, 4294901760
      %2991 = vmatpush.xpose.msra.mxu0 %v2990
      %v2992 = vand.u32 %v1416, 4294901760
      %2993 = vmatmul.f32.gmra.mxu0 %v2992
      %v2994 = vpop.f32.mrf.mxu0
      %v2995 = vadd.f32 %v2894, %v2994
      %2996 = vdwg.mxu0
      %v2997 = vand.u32 %v1382, 4294901760
      %v2998 = vsub.f32 %v1382, %v2997
      %2999 = vmatpush.xpose.msra.mxu0 %v2998
      %v3000 = vand.u32 %v1369, 4294901760
      %v3001 = vsub.f32 %v1369, %v3000
      %3002 = vmatpush.xpose.msra.mxu0 %v3001
      %v3003 = vand.u32 %v1356, 4294901760
      %v3004 = vsub.f32 %v1356, %v3003
      %3005 = vmatpush.xpose.msra.mxu0 %v3004
      %v3006 = vand.u32 %v1343, 4294901760
      %v3007 = vsub.f32 %v1343, %v3006
      %3008 = vmatpush.xpose.msra.mxu0 %v3007
      %v3009 = vand.u32 %v1330, 4294901760
      %v3010 = vsub.f32 %v1330, %v3009
      %3011 = vmatpush.xpose.msra.mxu0 %v3010
      %v3012 = vand.u32 %v1317, 4294901760
      %v3013 = vsub.f32 %v1317, %v3012
      %3014 = vmatpush.xpose.msra.mxu0 %v3013
      %v3015 = vand.u32 %v1304, 4294901760
      %v3016 = vsub.f32 %v1304, %v3015
      %3017 = vmatpush.xpose.msra.mxu0 %v3016
      %v3018 = vand.u32 %v1291, 4294901760
      %v3019 = vsub.f32 %v1291, %v3018
      %3020 = vmatpush.xpose.msra.mxu0 %v3019
      %v3021 = vand.u32 %v1278, 4294901760
      %v3022 = vsub.f32 %v1278, %v3021
      %3023 = vmatpush.xpose.msra.mxu0 %v3022
      %v3024 = vand.u32 %v1265, 4294901760
      %v3025 = vsub.f32 %v1265, %v3024
      %3026 = vmatpush.xpose.msra.mxu0 %v3025
      %v3027 = vand.u32 %v1252, 4294901760
      %v3028 = vsub.f32 %v1252, %v3027
      %3029 = vmatpush.xpose.msra.mxu0 %v3028
      %v3030 = vand.u32 %v1239, 4294901760
      %v3031 = vsub.f32 %v1239, %v3030
      %3032 = vmatpush.xpose.msra.mxu0 %v3031
      %v3033 = vand.u32 %v1226, 4294901760
      %v3034 = vsub.f32 %v1226, %v3033
      %3035 = vmatpush.xpose.msra.mxu0 %v3034
      %v3036 = vand.u32 %v1213, 4294901760
      %v3037 = vsub.f32 %v1213, %v3036
      %3038 = vmatpush.xpose.msra.mxu0 %v3037
      %v3039 = vand.u32 %v1200, 4294901760
      %v3040 = vsub.f32 %v1200, %v3039
      %3041 = vmatpush.xpose.msra.mxu0 %v3040
      %v3042 = vand.u32 %v1187, 4294901760
      %v3043 = vsub.f32 %v1187, %v3042
      %3044 = vmatpush.xpose.msra.mxu0 %v3043
      %v3045 = vand.u32 %v1416, 4294901760
      %v3046 = vsub.f32 %v1416, %v3045
      %3047 = vmatmul.f32.gmra.mxu0 %v3046
      %v3048 = vpop.f32.mrf.mxu0
      %v3049 = vadd.f32 %v2995, %v3048
      %3050 = vdwg.mxu0
      %v3051 = vand.u32 %v1382, 4294901760
      %3052 = vmatpush.xpose.msra.mxu0 %v3051
      %v3053 = vand.u32 %v1369, 4294901760
      %3054 = vmatpush.xpose.msra.mxu0 %v3053
      %v3055 = vand.u32 %v1356, 4294901760
      %3056 = vmatpush.xpose.msra.mxu0 %v3055
      %v3057 = vand.u32 %v1343, 4294901760
      %3058 = vmatpush.xpose.msra.mxu0 %v3057
      %v3059 = vand.u32 %v1330, 4294901760
      %3060 = vmatpush.xpose.msra.mxu0 %v3059
      %v3061 = vand.u32 %v1317, 4294901760
      %3062 = vmatpush.xpose.msra.mxu0 %v3061
      %v3063 = vand.u32 %v1304, 4294901760
      %3064 = vmatpush.xpose.msra.mxu0 %v3063
      %v3065 = vand.u32 %v1291, 4294901760
      %3066 = vmatpush.xpose.msra.mxu0 %v3065
      %v3067 = vand.u32 %v1278, 4294901760
      %3068 = vmatpush.xpose.msra.mxu0 %v3067
      %v3069 = vand.u32 %v1265, 4294901760
      %3070 = vmatpush.xpose.msra.mxu0 %v3069
      %v3071 = vand.u32 %v1252, 4294901760
      %3072 = vmatpush.xpose.msra.mxu0 %v3071
      %v3073 = vand.u32 %v1239, 4294901760
      %3074 = vmatpush.xpose.msra.mxu0 %v3073
      %v3075 = vand.u32 %v1226, 4294901760
      %3076 = vmatpush.xpose.msra.mxu0 %v3075
      %v3077 = vand.u32 %v1213, 4294901760
      %3078 = vmatpush.xpose.msra.mxu0 %v3077
      %v3079 = vand.u32 %v1200, 4294901760
      %3080 = vmatpush.xpose.msra.mxu0 %v3079
      %v3081 = vand.u32 %v1187, 4294901760
      %3082 = vmatpush.xpose.msra.mxu0 %v3081
      %v3083 = vand.u32 %v1416, 4294901760
      %v3084 = vsub.f32 %v1416, %v3083
      %v3085 = vand.u32 %v3084, 4294901760
      %3086 = vmatmul.f32.gmra.mxu0 %v3085
      %v3087 = vpop.f32.mrf.mxu0
      %v3088 = vadd.f32 %v3049, %v3087
      %3089 = vdwg.mxu0
      %v3090 = vand.u32 %v1382, 4294901760
      %v3091 = vsub.f32 %v1382, %v3090
      %v3092 = vand.u32 %v3091, 4294901760
      %3093 = vmatpush.xpose.msra.mxu0 %v3092
      %v3094 = vand.u32 %v1369, 4294901760
      %v3095 = vsub.f32 %v1369, %v3094
      %v3096 = vand.u32 %v3095, 4294901760
      %3097 = vmatpush.xpose.msra.mxu0 %v3096
      %v3098 = vand.u32 %v1356, 4294901760
      %v3099 = vsub.f32 %v1356, %v3098
      %v3100 = vand.u32 %v3099, 4294901760
      %3101 = vmatpush.xpose.msra.mxu0 %v3100
      %v3102 = vand.u32 %v1343, 4294901760
      %v3103 = vsub.f32 %v1343, %v3102
      %v3104 = vand.u32 %v3103, 4294901760
      %3105 = vmatpush.xpose.msra.mxu0 %v3104
      %v3106 = vand.u32 %v1330, 4294901760
      %v3107 = vsub.f32 %v1330, %v3106
      %v3108 = vand.u32 %v3107, 4294901760
      %3109 = vmatpush.xpose.msra.mxu0 %v3108
      %v3110 = vand.u32 %v1317, 4294901760
      %v3111 = vsub.f32 %v1317, %v3110
      %v3112 = vand.u32 %v3111, 4294901760
      %3113 = vmatpush.xpose.msra.mxu0 %v3112
      %v3114 = vand.u32 %v1304, 4294901760
      %v3115 = vsub.f32 %v1304, %v3114
      %v3116 = vand.u32 %v3115, 4294901760
      %3117 = vmatpush.xpose.msra.mxu0 %v3116
      %v3118 = vand.u32 %v1291, 4294901760
      %v3119 = vsub.f32 %v1291, %v3118
      %v3120 = vand.u32 %v3119, 4294901760
      %3121 = vmatpush.xpose.msra.mxu0 %v3120
      %v3122 = vand.u32 %v1278, 4294901760
      %v3123 = vsub.f32 %v1278, %v3122
      %v3124 = vand.u32 %v3123, 4294901760
      %3125 = vmatpush.xpose.msra.mxu0 %v3124
      %v3126 = vand.u32 %v1265, 4294901760
      %v3127 = vsub.f32 %v1265, %v3126
      %v3128 = vand.u32 %v3127, 4294901760
      %3129 = vmatpush.xpose.msra.mxu0 %v3128
      %v3130 = vand.u32 %v1252, 4294901760
      %v3131 = vsub.f32 %v1252, %v3130
      %v3132 = vand.u32 %v3131, 4294901760
      %3133 = vmatpush.xpose.msra.mxu0 %v3132
      %v3134 = vand.u32 %v1239, 4294901760
      %v3135 = vsub.f32 %v1239, %v3134
      %v3136 = vand.u32 %v3135, 4294901760
      %3137 = vmatpush.xpose.msra.mxu0 %v3136
      %v3138 = vand.u32 %v1226, 4294901760
      %v3139 = vsub.f32 %v1226, %v3138
      %v3140 = vand.u32 %v3139, 4294901760
      %3141 = vmatpush.xpose.msra.mxu0 %v3140
      %v3142 = vand.u32 %v1213, 4294901760
      %v3143 = vsub.f32 %v1213, %v3142
      %v3144 = vand.u32 %v3143, 4294901760
      %3145 = vmatpush.xpose.msra.mxu0 %v3144
      %v3146 = vand.u32 %v1200, 4294901760
      %v3147 = vsub.f32 %v1200, %v3146
      %v3148 = vand.u32 %v3147, 4294901760
      %3149 = vmatpush.xpose.msra.mxu0 %v3148
      %v3150 = vand.u32 %v1187, 4294901760
      %v3151 = vsub.f32 %v1187, %v3150
      %v3152 = vand.u32 %v3151, 4294901760
      %3153 = vmatpush.xpose.msra.mxu0 %v3152
      %v3154 = vand.u32 %v1416, 4294901760
      %3155 = vmatmul.f32.gmra.mxu0 %v3154
      %v3156 = vpop.f32.mrf.mxu0
      %v3157 = vadd.f32 %v3088, %v3156
      %3158 = vdwg.mxu0
      %v3159 = vand.u32 %v1382, 4294901760
      %3160 = vmatpush.xpose.msra.mxu0 %v3159
      %v3161 = vand.u32 %v1369, 4294901760
      %3162 = vmatpush.xpose.msra.mxu0 %v3161
      %v3163 = vand.u32 %v1356, 4294901760
      %3164 = vmatpush.xpose.msra.mxu0 %v3163
      %v3165 = vand.u32 %v1343, 4294901760
      %3166 = vmatpush.xpose.msra.mxu0 %v3165
      %v3167 = vand.u32 %v1330, 4294901760
      %3168 = vmatpush.xpose.msra.mxu0 %v3167
      %v3169 = vand.u32 %v1317, 4294901760
      %3170 = vmatpush.xpose.msra.mxu0 %v3169
      %v3171 = vand.u32 %v1304, 4294901760
      %3172 = vmatpush.xpose.msra.mxu0 %v3171
      %v3173 = vand.u32 %v1291, 4294901760
      %3174 = vmatpush.xpose.msra.mxu0 %v3173
      %v3175 = vand.u32 %v1278, 4294901760
      %3176 = vmatpush.xpose.msra.mxu0 %v3175
      %v3177 = vand.u32 %v1265, 4294901760
      %3178 = vmatpush.xpose.msra.mxu0 %v3177
      %v3179 = vand.u32 %v1252, 4294901760
      %3180 = vmatpush.xpose.msra.mxu0 %v3179
      %v3181 = vand.u32 %v1239, 4294901760
      %3182 = vmatpush.xpose.msra.mxu0 %v3181
      %v3183 = vand.u32 %v1226, 4294901760
      %3184 = vmatpush.xpose.msra.mxu0 %v3183
      %v3185 = vand.u32 %v1213, 4294901760
      %3186 = vmatpush.xpose.msra.mxu0 %v3185
      %v3187 = vand.u32 %v1200, 4294901760
      %3188 = vmatpush.xpose.msra.mxu0 %v3187
      %v3189 = vand.u32 %v1187, 4294901760
      %3190 = vmatpush.xpose.msra.mxu0 %v3189
      %v3191 = vand.u32 %v1416, 4294901760
      %3192 = vmatmul.f32.gmra.mxu0 %v3191
      %v3193 = vpop.f32.mrf.mxu0
      %v3194 = vadd.f32 %v3157, %v3193
      %3195 = vdwg.mxu0
      %v3196 = vand.u32 %v1383, 4294901760
      %3197 = vmatpush.xpose.msra.mxu0 %v3196
      %v3198 = vand.u32 %v1370, 4294901760
      %3199 = vmatpush.xpose.msra.mxu0 %v3198
      %v3200 = vand.u32 %v1357, 4294901760
      %3201 = vmatpush.xpose.msra.mxu0 %v3200
      %v3202 = vand.u32 %v1344, 4294901760
      %3203 = vmatpush.xpose.msra.mxu0 %v3202
      %v3204 = vand.u32 %v1331, 4294901760
      %3205 = vmatpush.xpose.msra.mxu0 %v3204
      %v3206 = vand.u32 %v1318, 4294901760
      %3207 = vmatpush.xpose.msra.mxu0 %v3206
      %v3208 = vand.u32 %v1305, 4294901760
      %3209 = vmatpush.xpose.msra.mxu0 %v3208
      %v3210 = vand.u32 %v1292, 4294901760
      %3211 = vmatpush.xpose.msra.mxu0 %v3210
      %v3212 = vand.u32 %v1279, 4294901760
      %3213 = vmatpush.xpose.msra.mxu0 %v3212
      %v3214 = vand.u32 %v1266, 4294901760
      %3215 = vmatpush.xpose.msra.mxu0 %v3214
      %v3216 = vand.u32 %v1253, 4294901760
      %3217 = vmatpush.xpose.msra.mxu0 %v3216
      %v3218 = vand.u32 %v1240, 4294901760
      %3219 = vmatpush.xpose.msra.mxu0 %v3218
      %v3220 = vand.u32 %v1227, 4294901760
      %3221 = vmatpush.xpose.msra.mxu0 %v3220
      %v3222 = vand.u32 %v1214, 4294901760
      %3223 = vmatpush.xpose.msra.mxu0 %v3222
      %v3224 = vand.u32 %v1201, 4294901760
      %3225 = vmatpush.xpose.msra.mxu0 %v3224
      %v3226 = vand.u32 %v1188, 4294901760
      %3227 = vmatpush.xpose.msra.mxu0 %v3226
      %v3228 = vand.u32 %v1417, 4294901760
      %v3229 = vsub.f32 %v1417, %v3228
      %v3230 = vand.u32 %v3229, 4294901760
      %v3231 = vsub.f32 %v3229, %v3230
      %v3232 = vand.u32 %v3231, 4294901760
      %3233 = vmatmul.f32.gmra.mxu0 %v3232
      %v3234 = vpop.f32.mrf.mxu0
      %v3235 = vadd.f32 %v3194, %v3234
      %3236 = vdwg.mxu0
      %v3237 = vand.u32 %v1383, 4294901760
      %v3238 = vsub.f32 %v1383, %v3237
      %v3239 = vand.u32 %v3238, 4294901760
      %v3240 = vsub.f32 %v3238, %v3239
      %v3241 = vand.u32 %v3240, 4294901760
      %3242 = vmatpush.xpose.msra.mxu0 %v3241
      %v3243 = vand.u32 %v1370, 4294901760
      %v3244 = vsub.f32 %v1370, %v3243
      %v3245 = vand.u32 %v3244, 4294901760
      %v3246 = vsub.f32 %v3244, %v3245
      %v3247 = vand.u32 %v3246, 4294901760
      %3248 = vmatpush.xpose.msra.mxu0 %v3247
      %v3249 = vand.u32 %v1357, 4294901760
      %v3250 = vsub.f32 %v1357, %v3249
      %v3251 = vand.u32 %v3250, 4294901760
      %v3252 = vsub.f32 %v3250, %v3251
      %v3253 = vand.u32 %v3252, 4294901760
      %3254 = vmatpush.xpose.msra.mxu0 %v3253
      %v3255 = vand.u32 %v1344, 4294901760
      %v3256 = vsub.f32 %v1344, %v3255
      %v3257 = vand.u32 %v3256, 4294901760
      %v3258 = vsub.f32 %v3256, %v3257
      %v3259 = vand.u32 %v3258, 4294901760
      %3260 = vmatpush.xpose.msra.mxu0 %v3259
      %v3261 = vand.u32 %v1331, 4294901760
      %v3262 = vsub.f32 %v1331, %v3261
      %v3263 = vand.u32 %v3262, 4294901760
      %v3264 = vsub.f32 %v3262, %v3263
      %v3265 = vand.u32 %v3264, 4294901760
      %3266 = vmatpush.xpose.msra.mxu0 %v3265
      %v3267 = vand.u32 %v1318, 4294901760
      %v3268 = vsub.f32 %v1318, %v3267
      %v3269 = vand.u32 %v3268, 4294901760
      %v3270 = vsub.f32 %v3268, %v3269
      %v3271 = vand.u32 %v3270, 4294901760
      %3272 = vmatpush.xpose.msra.mxu0 %v3271
      %v3273 = vand.u32 %v1305, 4294901760
      %v3274 = vsub.f32 %v1305, %v3273
      %v3275 = vand.u32 %v3274, 4294901760
      %v3276 = vsub.f32 %v3274, %v3275
      %v3277 = vand.u32 %v3276, 4294901760
      %3278 = vmatpush.xpose.msra.mxu0 %v3277
      %v3279 = vand.u32 %v1292, 4294901760
      %v3280 = vsub.f32 %v1292, %v3279
      %v3281 = vand.u32 %v3280, 4294901760
      %v3282 = vsub.f32 %v3280, %v3281
      %v3283 = vand.u32 %v3282, 4294901760
      %3284 = vmatpush.xpose.msra.mxu0 %v3283
      %v3285 = vand.u32 %v1279, 4294901760
      %v3286 = vsub.f32 %v1279, %v3285
      %v3287 = vand.u32 %v3286, 4294901760
      %v3288 = vsub.f32 %v3286, %v3287
      %v3289 = vand.u32 %v3288, 4294901760
      %3290 = vmatpush.xpose.msra.mxu0 %v3289
      %v3291 = vand.u32 %v1266, 4294901760
      %v3292 = vsub.f32 %v1266, %v3291
      %v3293 = vand.u32 %v3292, 4294901760
      %v3294 = vsub.f32 %v3292, %v3293
      %v3295 = vand.u32 %v3294, 4294901760
      %3296 = vmatpush.xpose.msra.mxu0 %v3295
      %v3297 = vand.u32 %v1253, 4294901760
      %v3298 = vsub.f32 %v1253, %v3297
      %v3299 = vand.u32 %v3298, 4294901760
      %v3300 = vsub.f32 %v3298, %v3299
      %v3301 = vand.u32 %v3300, 4294901760
      %3302 = vmatpush.xpose.msra.mxu0 %v3301
      %v3303 = vand.u32 %v1240, 4294901760
      %v3304 = vsub.f32 %v1240, %v3303
      %v3305 = vand.u32 %v3304, 4294901760
      %v3306 = vsub.f32 %v3304, %v3305
      %v3307 = vand.u32 %v3306, 4294901760
      %3308 = vmatpush.xpose.msra.mxu0 %v3307
      %v3309 = vand.u32 %v1227, 4294901760
      %v3310 = vsub.f32 %v1227, %v3309
      %v3311 = vand.u32 %v3310, 4294901760
      %v3312 = vsub.f32 %v3310, %v3311
      %v3313 = vand.u32 %v3312, 4294901760
      %3314 = vmatpush.xpose.msra.mxu0 %v3313
      %v3315 = vand.u32 %v1214, 4294901760
      %v3316 = vsub.f32 %v1214, %v3315
      %v3317 = vand.u32 %v3316, 4294901760
      %v3318 = vsub.f32 %v3316, %v3317
      %v3319 = vand.u32 %v3318, 4294901760
      %3320 = vmatpush.xpose.msra.mxu0 %v3319
      %v3321 = vand.u32 %v1201, 4294901760
      %v3322 = vsub.f32 %v1201, %v3321
      %v3323 = vand.u32 %v3322, 4294901760
      %v3324 = vsub.f32 %v3322, %v3323
      %v3325 = vand.u32 %v3324, 4294901760
      %3326 = vmatpush.xpose.msra.mxu0 %v3325
      %v3327 = vand.u32 %v1188, 4294901760
      %v3328 = vsub.f32 %v1188, %v3327
      %v3329 = vand.u32 %v3328, 4294901760
      %v3330 = vsub.f32 %v3328, %v3329
      %v3331 = vand.u32 %v3330, 4294901760
      %3332 = vmatpush.xpose.msra.mxu0 %v3331
      %v3333 = vand.u32 %v1417, 4294901760
      %3334 = vmatmul.f32.gmra.mxu0 %v3333
      %v3335 = vpop.f32.mrf.mxu0
      %v3336 = vadd.f32 %v3235, %v3335
      %3337 = vdwg.mxu0
      %v3338 = vand.u32 %v1383, 4294901760
      %v3339 = vsub.f32 %v1383, %v3338
      %3340 = vmatpush.xpose.msra.mxu0 %v3339
      %v3341 = vand.u32 %v1370, 4294901760
      %v3342 = vsub.f32 %v1370, %v3341
      %3343 = vmatpush.xpose.msra.mxu0 %v3342
      %v3344 = vand.u32 %v1357, 4294901760
      %v3345 = vsub.f32 %v1357, %v3344
      %3346 = vmatpush.xpose.msra.mxu0 %v3345
      %v3347 = vand.u32 %v1344, 4294901760
      %v3348 = vsub.f32 %v1344, %v3347
      %3349 = vmatpush.xpose.msra.mxu0 %v3348
      %v3350 = vand.u32 %v1331, 4294901760
      %v3351 = vsub.f32 %v1331, %v3350
      %3352 = vmatpush.xpose.msra.mxu0 %v3351
      %v3353 = vand.u32 %v1318, 4294901760
      %v3354 = vsub.f32 %v1318, %v3353
      %3355 = vmatpush.xpose.msra.mxu0 %v3354
      %v3356 = vand.u32 %v1305, 4294901760
      %v3357 = vsub.f32 %v1305, %v3356
      %3358 = vmatpush.xpose.msra.mxu0 %v3357
      %v3359 = vand.u32 %v1292, 4294901760
      %v3360 = vsub.f32 %v1292, %v3359
      %3361 = vmatpush.xpose.msra.mxu0 %v3360
      %v3362 = vand.u32 %v1279, 4294901760
      %v3363 = vsub.f32 %v1279, %v3362
      %3364 = vmatpush.xpose.msra.mxu0 %v3363
      %v3365 = vand.u32 %v1266, 4294901760
      %v3366 = vsub.f32 %v1266, %v3365
      %3367 = vmatpush.xpose.msra.mxu0 %v3366
      %v3368 = vand.u32 %v1253, 4294901760
      %v3369 = vsub.f32 %v1253, %v3368
      %3370 = vmatpush.xpose.msra.mxu0 %v3369
      %v3371 = vand.u32 %v1240, 4294901760
      %v3372 = vsub.f32 %v1240, %v3371
      %3373 = vmatpush.xpose.msra.mxu0 %v3372
      %v3374 = vand.u32 %v1227, 4294901760
      %v3375 = vsub.f32 %v1227, %v3374
      %3376 = vmatpush.xpose.msra.mxu0 %v3375
      %v3377 = vand.u32 %v1214, 4294901760
      %v3378 = vsub.f32 %v1214, %v3377
      %3379 = vmatpush.xpose.msra.mxu0 %v3378
      %v3380 = vand.u32 %v1201, 4294901760
      %v3381 = vsub.f32 %v1201, %v3380
      %3382 = vmatpush.xpose.msra.mxu0 %v3381
      %v3383 = vand.u32 %v1188, 4294901760
      %v3384 = vsub.f32 %v1188, %v3383
      %3385 = vmatpush.xpose.msra.mxu0 %v3384
      %v3386 = vand.u32 %v1417, 4294901760
      %v3387 = vsub.f32 %v1417, %v3386
      %3388 = vmatmul.f32.gmra.mxu0 %v3387
      %v3389 = vpop.f32.mrf.mxu0
      %v3390 = vadd.f32 %v3336, %v3389
      %3391 = vdwg.mxu0
      %v3392 = vand.u32 %v1383, 4294901760
      %3393 = vmatpush.xpose.msra.mxu0 %v3392
      %v3394 = vand.u32 %v1370, 4294901760
      %3395 = vmatpush.xpose.msra.mxu0 %v3394
      %v3396 = vand.u32 %v1357, 4294901760
      %3397 = vmatpush.xpose.msra.mxu0 %v3396
      %v3398 = vand.u32 %v1344, 4294901760
      %3399 = vmatpush.xpose.msra.mxu0 %v3398
      %v3400 = vand.u32 %v1331, 4294901760
      %3401 = vmatpush.xpose.msra.mxu0 %v3400
      %v3402 = vand.u32 %v1318, 4294901760
      %3403 = vmatpush.xpose.msra.mxu0 %v3402
      %v3404 = vand.u32 %v1305, 4294901760
      %3405 = vmatpush.xpose.msra.mxu0 %v3404
      %v3406 = vand.u32 %v1292, 4294901760
      %3407 = vmatpush.xpose.msra.mxu0 %v3406
      %v3408 = vand.u32 %v1279, 4294901760
      %3409 = vmatpush.xpose.msra.mxu0 %v3408
      %v3410 = vand.u32 %v1266, 4294901760
      %3411 = vmatpush.xpose.msra.mxu0 %v3410
      %v3412 = vand.u32 %v1253, 4294901760
      %3413 = vmatpush.xpose.msra.mxu0 %v3412
      %v3414 = vand.u32 %v1240, 4294901760
      %3415 = vmatpush.xpose.msra.mxu0 %v3414
      %v3416 = vand.u32 %v1227, 4294901760
      %3417 = vmatpush.xpose.msra.mxu0 %v3416
      %v3418 = vand.u32 %v1214, 4294901760
      %3419 = vmatpush.xpose.msra.mxu0 %v3418
      %v3420 = vand.u32 %v1201, 4294901760
      %3421 = vmatpush.xpose.msra.mxu0 %v3420
      %v3422 = vand.u32 %v1188, 4294901760
      %3423 = vmatpush.xpose.msra.mxu0 %v3422
      %v3424 = vand.u32 %v1417, 4294901760
      %v3425 = vsub.f32 %v1417, %v3424
      %v3426 = vand.u32 %v3425, 4294901760
      %3427 = vmatmul.f32.gmra.mxu0 %v3426
      %v3428 = vpop.f32.mrf.mxu0
      %v3429 = vadd.f32 %v3390, %v3428
      %3430 = vdwg.mxu0
      %v3431 = vand.u32 %v1383, 4294901760
      %v3432 = vsub.f32 %v1383, %v3431
      %v3433 = vand.u32 %v3432, 4294901760
      %3434 = vmatpush.xpose.msra.mxu0 %v3433
      %v3435 = vand.u32 %v1370, 4294901760
      %v3436 = vsub.f32 %v1370, %v3435
      %v3437 = vand.u32 %v3436, 4294901760
      %3438 = vmatpush.xpose.msra.mxu0 %v3437
      %v3439 = vand.u32 %v1357, 4294901760
      %v3440 = vsub.f32 %v1357, %v3439
      %v3441 = vand.u32 %v3440, 4294901760
      %3442 = vmatpush.xpose.msra.mxu0 %v3441
      %v3443 = vand.u32 %v1344, 4294901760
      %v3444 = vsub.f32 %v1344, %v3443
      %v3445 = vand.u32 %v3444, 4294901760
      %3446 = vmatpush.xpose.msra.mxu0 %v3445
      %v3447 = vand.u32 %v1331, 4294901760
      %v3448 = vsub.f32 %v1331, %v3447
      %v3449 = vand.u32 %v3448, 4294901760
      %3450 = vmatpush.xpose.msra.mxu0 %v3449
      %v3451 = vand.u32 %v1318, 4294901760
      %v3452 = vsub.f32 %v1318, %v3451
      %v3453 = vand.u32 %v3452, 4294901760
      %3454 = vmatpush.xpose.msra.mxu0 %v3453
      %v3455 = vand.u32 %v1305, 4294901760
      %v3456 = vsub.f32 %v1305, %v3455
      %v3457 = vand.u32 %v3456, 4294901760
      %3458 = vmatpush.xpose.msra.mxu0 %v3457
      %v3459 = vand.u32 %v1292, 4294901760
      %v3460 = vsub.f32 %v1292, %v3459
      %v3461 = vand.u32 %v3460, 4294901760
      %3462 = vmatpush.xpose.msra.mxu0 %v3461
      %v3463 = vand.u32 %v1279, 4294901760
      %v3464 = vsub.f32 %v1279, %v3463
      %v3465 = vand.u32 %v3464, 4294901760
      %3466 = vmatpush.xpose.msra.mxu0 %v3465
      %v3467 = vand.u32 %v1266, 4294901760
      %v3468 = vsub.f32 %v1266, %v3467
      %v3469 = vand.u32 %v3468, 4294901760
      %3470 = vmatpush.xpose.msra.mxu0 %v3469
      %v3471 = vand.u32 %v1253, 4294901760
      %v3472 = vsub.f32 %v1253, %v3471
      %v3473 = vand.u32 %v3472, 4294901760
      %3474 = vmatpush.xpose.msra.mxu0 %v3473
      %v3475 = vand.u32 %v1240, 4294901760
      %v3476 = vsub.f32 %v1240, %v3475
      %v3477 = vand.u32 %v3476, 4294901760
      %3478 = vmatpush.xpose.msra.mxu0 %v3477
      %v3479 = vand.u32 %v1227, 4294901760
      %v3480 = vsub.f32 %v1227, %v3479
      %v3481 = vand.u32 %v3480, 4294901760
      %3482 = vmatpush.xpose.msra.mxu0 %v3481
      %v3483 = vand.u32 %v1214, 4294901760
      %v3484 = vsub.f32 %v1214, %v3483
      %v3485 = vand.u32 %v3484, 4294901760
      %3486 = vmatpush.xpose.msra.mxu0 %v3485
      %v3487 = vand.u32 %v1201, 4294901760
      %v3488 = vsub.f32 %v1201, %v3487
      %v3489 = vand.u32 %v3488, 4294901760
      %3490 = vmatpush.xpose.msra.mxu0 %v3489
      %v3491 = vand.u32 %v1188, 4294901760
      %v3492 = vsub.f32 %v1188, %v3491
      %v3493 = vand.u32 %v3492, 4294901760
      %3494 = vmatpush.xpose.msra.mxu0 %v3493
      %v3495 = vand.u32 %v1417, 4294901760
      %3496 = vmatmul.f32.gmra.mxu0 %v3495
      %v3497 = vpop.f32.mrf.mxu0
      %v3498 = vadd.f32 %v3429, %v3497
      %3499 = vdwg.mxu0
      %v3500 = vand.u32 %v1383, 4294901760
      %3501 = vmatpush.xpose.msra.mxu0 %v3500
      %v3502 = vand.u32 %v1370, 4294901760
      %3503 = vmatpush.xpose.msra.mxu0 %v3502
      %v3504 = vand.u32 %v1357, 4294901760
      %3505 = vmatpush.xpose.msra.mxu0 %v3504
      %v3506 = vand.u32 %v1344, 4294901760
      %3507 = vmatpush.xpose.msra.mxu0 %v3506
      %v3508 = vand.u32 %v1331, 4294901760
      %3509 = vmatpush.xpose.msra.mxu0 %v3508
      %v3510 = vand.u32 %v1318, 4294901760
      %3511 = vmatpush.xpose.msra.mxu0 %v3510
      %v3512 = vand.u32 %v1305, 4294901760
      %3513 = vmatpush.xpose.msra.mxu0 %v3512
      %v3514 = vand.u32 %v1292, 4294901760
      %3515 = vmatpush.xpose.msra.mxu0 %v3514
      %v3516 = vand.u32 %v1279, 4294901760
      %3517 = vmatpush.xpose.msra.mxu0 %v3516
      %v3518 = vand.u32 %v1266, 4294901760
      %3519 = vmatpush.xpose.msra.mxu0 %v3518
      %v3520 = vand.u32 %v1253, 4294901760
      %3521 = vmatpush.xpose.msra.mxu0 %v3520
      %v3522 = vand.u32 %v1240, 4294901760
      %3523 = vmatpush.xpose.msra.mxu0 %v3522
      %v3524 = vand.u32 %v1227, 4294901760
      %3525 = vmatpush.xpose.msra.mxu0 %v3524
      %v3526 = vand.u32 %v1214, 4294901760
      %3527 = vmatpush.xpose.msra.mxu0 %v3526
      %v3528 = vand.u32 %v1201, 4294901760
      %3529 = vmatpush.xpose.msra.mxu0 %v3528
      %v3530 = vand.u32 %v1188, 4294901760
      %3531 = vmatpush.xpose.msra.mxu0 %v3530
      %v3532 = vand.u32 %v1417, 4294901760
      %3533 = vmatmul.f32.gmra.mxu0 %v3532
      %v3534 = vpop.f32.mrf.mxu0
      %v3535 = vadd.f32 %v3498, %v3534
      %3536 = vdwg.mxu0
      %v3537 = vand.u32 %v1384, 4294901760
      %3538 = vmatpush.xpose.msra.mxu0 %v3537
      %v3539 = vand.u32 %v1371, 4294901760
      %3540 = vmatpush.xpose.msra.mxu0 %v3539
      %v3541 = vand.u32 %v1358, 4294901760
      %3542 = vmatpush.xpose.msra.mxu0 %v3541
      %v3543 = vand.u32 %v1345, 4294901760
      %3544 = vmatpush.xpose.msra.mxu0 %v3543
      %v3545 = vand.u32 %v1332, 4294901760
      %3546 = vmatpush.xpose.msra.mxu0 %v3545
      %v3547 = vand.u32 %v1319, 4294901760
      %3548 = vmatpush.xpose.msra.mxu0 %v3547
      %v3549 = vand.u32 %v1306, 4294901760
      %3550 = vmatpush.xpose.msra.mxu0 %v3549
      %v3551 = vand.u32 %v1293, 4294901760
      %3552 = vmatpush.xpose.msra.mxu0 %v3551
      %v3553 = vand.u32 %v1280, 4294901760
      %3554 = vmatpush.xpose.msra.mxu0 %v3553
      %v3555 = vand.u32 %v1267, 4294901760
      %3556 = vmatpush.xpose.msra.mxu0 %v3555
      %v3557 = vand.u32 %v1254, 4294901760
      %3558 = vmatpush.xpose.msra.mxu0 %v3557
      %v3559 = vand.u32 %v1241, 4294901760
      %3560 = vmatpush.xpose.msra.mxu0 %v3559
      %v3561 = vand.u32 %v1228, 4294901760
      %3562 = vmatpush.xpose.msra.mxu0 %v3561
      %v3563 = vand.u32 %v1215, 4294901760
      %3564 = vmatpush.xpose.msra.mxu0 %v3563
      %v3565 = vand.u32 %v1202, 4294901760
      %3566 = vmatpush.xpose.msra.mxu0 %v3565
      %v3567 = vand.u32 %v1189, 4294901760
      %3568 = vmatpush.xpose.msra.mxu0 %v3567
      %v3569 = vand.u32 %v1418, 4294901760
      %v3570 = vsub.f32 %v1418, %v3569
      %v3571 = vand.u32 %v3570, 4294901760
      %v3572 = vsub.f32 %v3570, %v3571
      %v3573 = vand.u32 %v3572, 4294901760
      %3574 = vmatmul.f32.gmra.mxu0 %v3573
      %v3575 = vpop.f32.mrf.mxu0
      %v3576 = vadd.f32 %v3535, %v3575
      %3577 = vdwg.mxu0
      %v3578 = vand.u32 %v1384, 4294901760
      %v3579 = vsub.f32 %v1384, %v3578
      %v3580 = vand.u32 %v3579, 4294901760
      %v3581 = vsub.f32 %v3579, %v3580
      %v3582 = vand.u32 %v3581, 4294901760
      %3583 = vmatpush.xpose.msra.mxu0 %v3582
      %v3584 = vand.u32 %v1371, 4294901760
      %v3585 = vsub.f32 %v1371, %v3584
      %v3586 = vand.u32 %v3585, 4294901760
      %v3587 = vsub.f32 %v3585, %v3586
      %v3588 = vand.u32 %v3587, 4294901760
      %3589 = vmatpush.xpose.msra.mxu0 %v3588
      %v3590 = vand.u32 %v1358, 4294901760
      %v3591 = vsub.f32 %v1358, %v3590
      %v3592 = vand.u32 %v3591, 4294901760
      %v3593 = vsub.f32 %v3591, %v3592
      %v3594 = vand.u32 %v3593, 4294901760
      %3595 = vmatpush.xpose.msra.mxu0 %v3594
      %v3596 = vand.u32 %v1345, 4294901760
      %v3597 = vsub.f32 %v1345, %v3596
      %v3598 = vand.u32 %v3597, 4294901760
      %v3599 = vsub.f32 %v3597, %v3598
      %v3600 = vand.u32 %v3599, 4294901760
      %3601 = vmatpush.xpose.msra.mxu0 %v3600
      %v3602 = vand.u32 %v1332, 4294901760
      %v3603 = vsub.f32 %v1332, %v3602
      %v3604 = vand.u32 %v3603, 4294901760
      %v3605 = vsub.f32 %v3603, %v3604
      %v3606 = vand.u32 %v3605, 4294901760
      %3607 = vmatpush.xpose.msra.mxu0 %v3606
      %v3608 = vand.u32 %v1319, 4294901760
      %v3609 = vsub.f32 %v1319, %v3608
      %v3610 = vand.u32 %v3609, 4294901760
      %v3611 = vsub.f32 %v3609, %v3610
      %v3612 = vand.u32 %v3611, 4294901760
      %3613 = vmatpush.xpose.msra.mxu0 %v3612
      %v3614 = vand.u32 %v1306, 4294901760
      %v3615 = vsub.f32 %v1306, %v3614
      %v3616 = vand.u32 %v3615, 4294901760
      %v3617 = vsub.f32 %v3615, %v3616
      %v3618 = vand.u32 %v3617, 4294901760
      %3619 = vmatpush.xpose.msra.mxu0 %v3618
      %v3620 = vand.u32 %v1293, 4294901760
      %v3621 = vsub.f32 %v1293, %v3620
      %v3622 = vand.u32 %v3621, 4294901760
      %v3623 = vsub.f32 %v3621, %v3622
      %v3624 = vand.u32 %v3623, 4294901760
      %3625 = vmatpush.xpose.msra.mxu0 %v3624
      %v3626 = vand.u32 %v1280, 4294901760
      %v3627 = vsub.f32 %v1280, %v3626
      %v3628 = vand.u32 %v3627, 4294901760
      %v3629 = vsub.f32 %v3627, %v3628
      %v3630 = vand.u32 %v3629, 4294901760
      %3631 = vmatpush.xpose.msra.mxu0 %v3630
      %v3632 = vand.u32 %v1267, 4294901760
      %v3633 = vsub.f32 %v1267, %v3632
      %v3634 = vand.u32 %v3633, 4294901760
      %v3635 = vsub.f32 %v3633, %v3634
      %v3636 = vand.u32 %v3635, 4294901760
      %3637 = vmatpush.xpose.msra.mxu0 %v3636
      %v3638 = vand.u32 %v1254, 4294901760
      %v3639 = vsub.f32 %v1254, %v3638
      %v3640 = vand.u32 %v3639, 4294901760
      %v3641 = vsub.f32 %v3639, %v3640
      %v3642 = vand.u32 %v3641, 4294901760
      %3643 = vmatpush.xpose.msra.mxu0 %v3642
      %v3644 = vand.u32 %v1241, 4294901760
      %v3645 = vsub.f32 %v1241, %v3644
      %v3646 = vand.u32 %v3645, 4294901760
      %v3647 = vsub.f32 %v3645, %v3646
      %v3648 = vand.u32 %v3647, 4294901760
      %3649 = vmatpush.xpose.msra.mxu0 %v3648
      %v3650 = vand.u32 %v1228, 4294901760
      %v3651 = vsub.f32 %v1228, %v3650
      %v3652 = vand.u32 %v3651, 4294901760
      %v3653 = vsub.f32 %v3651, %v3652
      %v3654 = vand.u32 %v3653, 4294901760
      %3655 = vmatpush.xpose.msra.mxu0 %v3654
      %v3656 = vand.u32 %v1215, 4294901760
      %v3657 = vsub.f32 %v1215, %v3656
      %v3658 = vand.u32 %v3657, 4294901760
      %v3659 = vsub.f32 %v3657, %v3658
      %v3660 = vand.u32 %v3659, 4294901760
      %3661 = vmatpush.xpose.msra.mxu0 %v3660
      %v3662 = vand.u32 %v1202, 4294901760
      %v3663 = vsub.f32 %v1202, %v3662
      %v3664 = vand.u32 %v3663, 4294901760
      %v3665 = vsub.f32 %v3663, %v3664
      %v3666 = vand.u32 %v3665, 4294901760
      %3667 = vmatpush.xpose.msra.mxu0 %v3666
      %v3668 = vand.u32 %v1189, 4294901760
      %v3669 = vsub.f32 %v1189, %v3668
      %v3670 = vand.u32 %v3669, 4294901760
      %v3671 = vsub.f32 %v3669, %v3670
      %v3672 = vand.u32 %v3671, 4294901760
      %3673 = vmatpush.xpose.msra.mxu0 %v3672
      %v3674 = vand.u32 %v1418, 4294901760
      %3675 = vmatmul.f32.gmra.mxu0 %v3674
      %v3676 = vpop.f32.mrf.mxu0
      %v3677 = vadd.f32 %v3576, %v3676
      %3678 = vdwg.mxu0
      %v3679 = vand.u32 %v1384, 4294901760
      %v3680 = vsub.f32 %v1384, %v3679
      %3681 = vmatpush.xpose.msra.mxu0 %v3680
      %v3682 = vand.u32 %v1371, 4294901760
      %v3683 = vsub.f32 %v1371, %v3682
      %3684 = vmatpush.xpose.msra.mxu0 %v3683
      %v3685 = vand.u32 %v1358, 4294901760
      %v3686 = vsub.f32 %v1358, %v3685
      %3687 = vmatpush.xpose.msra.mxu0 %v3686
      %v3688 = vand.u32 %v1345, 4294901760
      %v3689 = vsub.f32 %v1345, %v3688
      %3690 = vmatpush.xpose.msra.mxu0 %v3689
      %v3691 = vand.u32 %v1332, 4294901760
      %v3692 = vsub.f32 %v1332, %v3691
      %3693 = vmatpush.xpose.msra.mxu0 %v3692
      %v3694 = vand.u32 %v1319, 4294901760
      %v3695 = vsub.f32 %v1319, %v3694
      %3696 = vmatpush.xpose.msra.mxu0 %v3695
      %v3697 = vand.u32 %v1306, 4294901760
      %v3698 = vsub.f32 %v1306, %v3697
      %3699 = vmatpush.xpose.msra.mxu0 %v3698
      %v3700 = vand.u32 %v1293, 4294901760
      %v3701 = vsub.f32 %v1293, %v3700
      %3702 = vmatpush.xpose.msra.mxu0 %v3701
      %v3703 = vand.u32 %v1280, 4294901760
      %v3704 = vsub.f32 %v1280, %v3703
      %3705 = vmatpush.xpose.msra.mxu0 %v3704
      %v3706 = vand.u32 %v1267, 4294901760
      %v3707 = vsub.f32 %v1267, %v3706
      %3708 = vmatpush.xpose.msra.mxu0 %v3707
      %v3709 = vand.u32 %v1254, 4294901760
      %v3710 = vsub.f32 %v1254, %v3709
      %3711 = vmatpush.xpose.msra.mxu0 %v3710
      %v3712 = vand.u32 %v1241, 4294901760
      %v3713 = vsub.f32 %v1241, %v3712
      %3714 = vmatpush.xpose.msra.mxu0 %v3713
      %v3715 = vand.u32 %v1228, 4294901760
      %v3716 = vsub.f32 %v1228, %v3715
      %3717 = vmatpush.xpose.msra.mxu0 %v3716
      %v3718 = vand.u32 %v1215, 4294901760
      %v3719 = vsub.f32 %v1215, %v3718
      %3720 = vmatpush.xpose.msra.mxu0 %v3719
      %v3721 = vand.u32 %v1202, 4294901760
      %v3722 = vsub.f32 %v1202, %v3721
      %3723 = vmatpush.xpose.msra.mxu0 %v3722
      %v3724 = vand.u32 %v1189, 4294901760
      %v3725 = vsub.f32 %v1189, %v3724
      %3726 = vmatpush.xpose.msra.mxu0 %v3725
      %v3727 = vand.u32 %v1418, 4294901760
      %v3728 = vsub.f32 %v1418, %v3727
      %3729 = vmatmul.f32.gmra.mxu0 %v3728
      %v3730 = vpop.f32.mrf.mxu0
      %v3731 = vadd.f32 %v3677, %v3730
      %3732 = vdwg.mxu0
      %v3733 = vand.u32 %v1384, 4294901760
      %3734 = vmatpush.xpose.msra.mxu0 %v3733
      %v3735 = vand.u32 %v1371, 4294901760
      %3736 = vmatpush.xpose.msra.mxu0 %v3735
      %v3737 = vand.u32 %v1358, 4294901760
      %3738 = vmatpush.xpose.msra.mxu0 %v3737
      %v3739 = vand.u32 %v1345, 4294901760
      %3740 = vmatpush.xpose.msra.mxu0 %v3739
      %v3741 = vand.u32 %v1332, 4294901760
      %3742 = vmatpush.xpose.msra.mxu0 %v3741
      %v3743 = vand.u32 %v1319, 4294901760
      %3744 = vmatpush.xpose.msra.mxu0 %v3743
      %v3745 = vand.u32 %v1306, 4294901760
      %3746 = vmatpush.xpose.msra.mxu0 %v3745
      %v3747 = vand.u32 %v1293, 4294901760
      %3748 = vmatpush.xpose.msra.mxu0 %v3747
      %v3749 = vand.u32 %v1280, 4294901760
      %3750 = vmatpush.xpose.msra.mxu0 %v3749
      %v3751 = vand.u32 %v1267, 4294901760
      %3752 = vmatpush.xpose.msra.mxu0 %v3751
      %v3753 = vand.u32 %v1254, 4294901760
      %3754 = vmatpush.xpose.msra.mxu0 %v3753
      %v3755 = vand.u32 %v1241, 4294901760
      %3756 = vmatpush.xpose.msra.mxu0 %v3755
      %v3757 = vand.u32 %v1228, 4294901760
      %3758 = vmatpush.xpose.msra.mxu0 %v3757
      %v3759 = vand.u32 %v1215, 4294901760
      %3760 = vmatpush.xpose.msra.mxu0 %v3759
      %v3761 = vand.u32 %v1202, 4294901760
      %3762 = vmatpush.xpose.msra.mxu0 %v3761
      %v3763 = vand.u32 %v1189, 4294901760
      %3764 = vmatpush.xpose.msra.mxu0 %v3763
      %v3765 = vand.u32 %v1418, 4294901760
      %v3766 = vsub.f32 %v1418, %v3765
      %v3767 = vand.u32 %v3766, 4294901760
      %3768 = vmatmul.f32.gmra.mxu0 %v3767
      %v3769 = vpop.f32.mrf.mxu0
      %v3770 = vadd.f32 %v3731, %v3769
      %3771 = vdwg.mxu0
      %v3772 = vand.u32 %v1384, 4294901760
      %v3773 = vsub.f32 %v1384, %v3772
      %v3774 = vand.u32 %v3773, 4294901760
      %3775 = vmatpush.xpose.msra.mxu0 %v3774
      %v3776 = vand.u32 %v1371, 4294901760
      %v3777 = vsub.f32 %v1371, %v3776
      %v3778 = vand.u32 %v3777, 4294901760
      %3779 = vmatpush.xpose.msra.mxu0 %v3778
      %v3780 = vand.u32 %v1358, 4294901760
      %v3781 = vsub.f32 %v1358, %v3780
      %v3782 = vand.u32 %v3781, 4294901760
      %3783 = vmatpush.xpose.msra.mxu0 %v3782
      %v3784 = vand.u32 %v1345, 4294901760
      %v3785 = vsub.f32 %v1345, %v3784
      %v3786 = vand.u32 %v3785, 4294901760
      %3787 = vmatpush.xpose.msra.mxu0 %v3786
      %v3788 = vand.u32 %v1332, 4294901760
      %v3789 = vsub.f32 %v1332, %v3788
      %v3790 = vand.u32 %v3789, 4294901760
      %3791 = vmatpush.xpose.msra.mxu0 %v3790
      %v3792 = vand.u32 %v1319, 4294901760
      %v3793 = vsub.f32 %v1319, %v3792
      %v3794 = vand.u32 %v3793, 4294901760
      %3795 = vmatpush.xpose.msra.mxu0 %v3794
      %v3796 = vand.u32 %v1306, 4294901760
      %v3797 = vsub.f32 %v1306, %v3796
      %v3798 = vand.u32 %v3797, 4294901760
      %3799 = vmatpush.xpose.msra.mxu0 %v3798
      %v3800 = vand.u32 %v1293, 4294901760
      %v3801 = vsub.f32 %v1293, %v3800
      %v3802 = vand.u32 %v3801, 4294901760
      %3803 = vmatpush.xpose.msra.mxu0 %v3802
      %v3804 = vand.u32 %v1280, 4294901760
      %v3805 = vsub.f32 %v1280, %v3804
      %v3806 = vand.u32 %v3805, 4294901760
      %3807 = vmatpush.xpose.msra.mxu0 %v3806
      %v3808 = vand.u32 %v1267, 4294901760
      %v3809 = vsub.f32 %v1267, %v3808
      %v3810 = vand.u32 %v3809, 4294901760
      %3811 = vmatpush.xpose.msra.mxu0 %v3810
      %v3812 = vand.u32 %v1254, 4294901760
      %v3813 = vsub.f32 %v1254, %v3812
      %v3814 = vand.u32 %v3813, 4294901760
      %3815 = vmatpush.xpose.msra.mxu0 %v3814
      %v3816 = vand.u32 %v1241, 4294901760
      %v3817 = vsub.f32 %v1241, %v3816
      %v3818 = vand.u32 %v3817, 4294901760
      %3819 = vmatpush.xpose.msra.mxu0 %v3818
      %v3820 = vand.u32 %v1228, 4294901760
      %v3821 = vsub.f32 %v1228, %v3820
      %v3822 = vand.u32 %v3821, 4294901760
      %3823 = vmatpush.xpose.msra.mxu0 %v3822
      %v3824 = vand.u32 %v1215, 4294901760
      %v3825 = vsub.f32 %v1215, %v3824
      %v3826 = vand.u32 %v3825, 4294901760
      %3827 = vmatpush.xpose.msra.mxu0 %v3826
      %v3828 = vand.u32 %v1202, 4294901760
      %v3829 = vsub.f32 %v1202, %v3828
      %v3830 = vand.u32 %v3829, 4294901760
      %3831 = vmatpush.xpose.msra.mxu0 %v3830
      %v3832 = vand.u32 %v1189, 4294901760
      %v3833 = vsub.f32 %v1189, %v3832
      %v3834 = vand.u32 %v3833, 4294901760
      %3835 = vmatpush.xpose.msra.mxu0 %v3834
      %v3836 = vand.u32 %v1418, 4294901760
      %3837 = vmatmul.f32.gmra.mxu0 %v3836
      %v3838 = vpop.f32.mrf.mxu0
      %v3839 = vadd.f32 %v3770, %v3838
      %3840 = vdwg.mxu0
      %v3841 = vand.u32 %v1384, 4294901760
      %3842 = vmatpush.xpose.msra.mxu0 %v3841
      %v3843 = vand.u32 %v1371, 4294901760
      %3844 = vmatpush.xpose.msra.mxu0 %v3843
      %v3845 = vand.u32 %v1358, 4294901760
      %3846 = vmatpush.xpose.msra.mxu0 %v3845
      %v3847 = vand.u32 %v1345, 4294901760
      %3848 = vmatpush.xpose.msra.mxu0 %v3847
      %v3849 = vand.u32 %v1332, 4294901760
      %3850 = vmatpush.xpose.msra.mxu0 %v3849
      %v3851 = vand.u32 %v1319, 4294901760
      %3852 = vmatpush.xpose.msra.mxu0 %v3851
      %v3853 = vand.u32 %v1306, 4294901760
      %3854 = vmatpush.xpose.msra.mxu0 %v3853
      %v3855 = vand.u32 %v1293, 4294901760
      %3856 = vmatpush.xpose.msra.mxu0 %v3855
      %v3857 = vand.u32 %v1280, 4294901760
      %3858 = vmatpush.xpose.msra.mxu0 %v3857
      %v3859 = vand.u32 %v1267, 4294901760
      %3860 = vmatpush.xpose.msra.mxu0 %v3859
      %v3861 = vand.u32 %v1254, 4294901760
      %3862 = vmatpush.xpose.msra.mxu0 %v3861
      %v3863 = vand.u32 %v1241, 4294901760
      %3864 = vmatpush.xpose.msra.mxu0 %v3863
      %v3865 = vand.u32 %v1228, 4294901760
      %3866 = vmatpush.xpose.msra.mxu0 %v3865
      %v3867 = vand.u32 %v1215, 4294901760
      %3868 = vmatpush.xpose.msra.mxu0 %v3867
      %v3869 = vand.u32 %v1202, 4294901760
      %3870 = vmatpush.xpose.msra.mxu0 %v3869
      %v3871 = vand.u32 %v1189, 4294901760
      %3872 = vmatpush.xpose.msra.mxu0 %v3871
      %v3873 = vand.u32 %v1418, 4294901760
      %3874 = vmatmul.f32.gmra.mxu0 %v3873
      %v3875 = vpop.f32.mrf.mxu0
      %v3876 = vadd.f32 %v3839, %v3875
      %3877 = vdwg.mxu0
      %v3878 = vand.u32 %v1385, 4294901760
      %3879 = vmatpush.xpose.msra.mxu0 %v3878
      %v3880 = vand.u32 %v1372, 4294901760
      %3881 = vmatpush.xpose.msra.mxu0 %v3880
      %v3882 = vand.u32 %v1359, 4294901760
      %3883 = vmatpush.xpose.msra.mxu0 %v3882
      %v3884 = vand.u32 %v1346, 4294901760
      %3885 = vmatpush.xpose.msra.mxu0 %v3884
      %v3886 = vand.u32 %v1333, 4294901760
      %3887 = vmatpush.xpose.msra.mxu0 %v3886
      %v3888 = vand.u32 %v1320, 4294901760
      %3889 = vmatpush.xpose.msra.mxu0 %v3888
      %v3890 = vand.u32 %v1307, 4294901760
      %3891 = vmatpush.xpose.msra.mxu0 %v3890
      %v3892 = vand.u32 %v1294, 4294901760
      %3893 = vmatpush.xpose.msra.mxu0 %v3892
      %v3894 = vand.u32 %v1281, 4294901760
      %3895 = vmatpush.xpose.msra.mxu0 %v3894
      %v3896 = vand.u32 %v1268, 4294901760
      %3897 = vmatpush.xpose.msra.mxu0 %v3896
      %v3898 = vand.u32 %v1255, 4294901760
      %3899 = vmatpush.xpose.msra.mxu0 %v3898
      %v3900 = vand.u32 %v1242, 4294901760
      %3901 = vmatpush.xpose.msra.mxu0 %v3900
      %v3902 = vand.u32 %v1229, 4294901760
      %3903 = vmatpush.xpose.msra.mxu0 %v3902
      %v3904 = vand.u32 %v1216, 4294901760
      %3905 = vmatpush.xpose.msra.mxu0 %v3904
      %v3906 = vand.u32 %v1203, 4294901760
      %3907 = vmatpush.xpose.msra.mxu0 %v3906
      %v3908 = vand.u32 %v1190, 4294901760
      %3909 = vmatpush.xpose.msra.mxu0 %v3908
      %v3910 = vand.u32 %v1419, 4294901760
      %v3911 = vsub.f32 %v1419, %v3910
      %v3912 = vand.u32 %v3911, 4294901760
      %v3913 = vsub.f32 %v3911, %v3912
      %v3914 = vand.u32 %v3913, 4294901760
      %3915 = vmatmul.f32.gmra.mxu0 %v3914
      %v3916 = vpop.f32.mrf.mxu0
      %v3917 = vadd.f32 %v3876, %v3916
      %3918 = vdwg.mxu0
      %v3919 = vand.u32 %v1385, 4294901760
      %v3920 = vsub.f32 %v1385, %v3919
      %v3921 = vand.u32 %v3920, 4294901760
      %v3922 = vsub.f32 %v3920, %v3921
      %v3923 = vand.u32 %v3922, 4294901760
      %3924 = vmatpush.xpose.msra.mxu0 %v3923
      %v3925 = vand.u32 %v1372, 4294901760
      %v3926 = vsub.f32 %v1372, %v3925
      %v3927 = vand.u32 %v3926, 4294901760
      %v3928 = vsub.f32 %v3926, %v3927
      %v3929 = vand.u32 %v3928, 4294901760
      %3930 = vmatpush.xpose.msra.mxu0 %v3929
      %v3931 = vand.u32 %v1359, 4294901760
      %v3932 = vsub.f32 %v1359, %v3931
      %v3933 = vand.u32 %v3932, 4294901760
      %v3934 = vsub.f32 %v3932, %v3933
      %v3935 = vand.u32 %v3934, 4294901760
      %3936 = vmatpush.xpose.msra.mxu0 %v3935
      %v3937 = vand.u32 %v1346, 4294901760
      %v3938 = vsub.f32 %v1346, %v3937
      %v3939 = vand.u32 %v3938, 4294901760
      %v3940 = vsub.f32 %v3938, %v3939
      %v3941 = vand.u32 %v3940, 4294901760
      %3942 = vmatpush.xpose.msra.mxu0 %v3941
      %v3943 = vand.u32 %v1333, 4294901760
      %v3944 = vsub.f32 %v1333, %v3943
      %v3945 = vand.u32 %v3944, 4294901760
      %v3946 = vsub.f32 %v3944, %v3945
      %v3947 = vand.u32 %v3946, 4294901760
      %3948 = vmatpush.xpose.msra.mxu0 %v3947
      %v3949 = vand.u32 %v1320, 4294901760
      %v3950 = vsub.f32 %v1320, %v3949
      %v3951 = vand.u32 %v3950, 4294901760
      %v3952 = vsub.f32 %v3950, %v3951
      %v3953 = vand.u32 %v3952, 4294901760
      %3954 = vmatpush.xpose.msra.mxu0 %v3953
      %v3955 = vand.u32 %v1307, 4294901760
      %v3956 = vsub.f32 %v1307, %v3955
      %v3957 = vand.u32 %v3956, 4294901760
      %v3958 = vsub.f32 %v3956, %v3957
      %v3959 = vand.u32 %v3958, 4294901760
      %3960 = vmatpush.xpose.msra.mxu0 %v3959
      %v3961 = vand.u32 %v1294, 4294901760
      %v3962 = vsub.f32 %v1294, %v3961
      %v3963 = vand.u32 %v3962, 4294901760
      %v3964 = vsub.f32 %v3962, %v3963
      %v3965 = vand.u32 %v3964, 4294901760
      %3966 = vmatpush.xpose.msra.mxu0 %v3965
      %v3967 = vand.u32 %v1281, 4294901760
      %v3968 = vsub.f32 %v1281, %v3967
      %v3969 = vand.u32 %v3968, 4294901760
      %v3970 = vsub.f32 %v3968, %v3969
      %v3971 = vand.u32 %v3970, 4294901760
      %3972 = vmatpush.xpose.msra.mxu0 %v3971
      %v3973 = vand.u32 %v1268, 4294901760
      %v3974 = vsub.f32 %v1268, %v3973
      %v3975 = vand.u32 %v3974, 4294901760
      %v3976 = vsub.f32 %v3974, %v3975
      %v3977 = vand.u32 %v3976, 4294901760
      %3978 = vmatpush.xpose.msra.mxu0 %v3977
      %v3979 = vand.u32 %v1255, 4294901760
      %v3980 = vsub.f32 %v1255, %v3979
      %v3981 = vand.u32 %v3980, 4294901760
      %v3982 = vsub.f32 %v3980, %v3981
      %v3983 = vand.u32 %v3982, 4294901760
      %3984 = vmatpush.xpose.msra.mxu0 %v3983
      %v3985 = vand.u32 %v1242, 4294901760
      %v3986 = vsub.f32 %v1242, %v3985
      %v3987 = vand.u32 %v3986, 4294901760
      %v3988 = vsub.f32 %v3986, %v3987
      %v3989 = vand.u32 %v3988, 4294901760
      %3990 = vmatpush.xpose.msra.mxu0 %v3989
      %v3991 = vand.u32 %v1229, 4294901760
      %v3992 = vsub.f32 %v1229, %v3991
      %v3993 = vand.u32 %v3992, 4294901760
      %v3994 = vsub.f32 %v3992, %v3993
      %v3995 = vand.u32 %v3994, 4294901760
      %3996 = vmatpush.xpose.msra.mxu0 %v3995
      %v3997 = vand.u32 %v1216, 4294901760
      %v3998 = vsub.f32 %v1216, %v3997
      %v3999 = vand.u32 %v3998, 4294901760
      %v4000 = vsub.f32 %v3998, %v3999
      %v4001 = vand.u32 %v4000, 4294901760
      %4002 = vmatpush.xpose.msra.mxu0 %v4001
      %v4003 = vand.u32 %v1203, 4294901760
      %v4004 = vsub.f32 %v1203, %v4003
      %v4005 = vand.u32 %v4004, 4294901760
      %v4006 = vsub.f32 %v4004, %v4005
      %v4007 = vand.u32 %v4006, 4294901760
      %4008 = vmatpush.xpose.msra.mxu0 %v4007
      %v4009 = vand.u32 %v1190, 4294901760
      %v4010 = vsub.f32 %v1190, %v4009
      %v4011 = vand.u32 %v4010, 4294901760
      %v4012 = vsub.f32 %v4010, %v4011
      %v4013 = vand.u32 %v4012, 4294901760
      %4014 = vmatpush.xpose.msra.mxu0 %v4013
      %v4015 = vand.u32 %v1419, 4294901760
      %4016 = vmatmul.f32.gmra.mxu0 %v4015
      %v4017 = vpop.f32.mrf.mxu0
      %v4018 = vadd.f32 %v3917, %v4017
      %4019 = vdwg.mxu0
      %v4020 = vand.u32 %v1385, 4294901760
      %v4021 = vsub.f32 %v1385, %v4020
      %4022 = vmatpush.xpose.msra.mxu0 %v4021
      %v4023 = vand.u32 %v1372, 4294901760
      %v4024 = vsub.f32 %v1372, %v4023
      %4025 = vmatpush.xpose.msra.mxu0 %v4024
      %v4026 = vand.u32 %v1359, 4294901760
      %v4027 = vsub.f32 %v1359, %v4026
      %4028 = vmatpush.xpose.msra.mxu0 %v4027
      %v4029 = vand.u32 %v1346, 4294901760
      %v4030 = vsub.f32 %v1346, %v4029
      %4031 = vmatpush.xpose.msra.mxu0 %v4030
      %v4032 = vand.u32 %v1333, 4294901760
      %v4033 = vsub.f32 %v1333, %v4032
      %4034 = vmatpush.xpose.msra.mxu0 %v4033
      %v4035 = vand.u32 %v1320, 4294901760
      %v4036 = vsub.f32 %v1320, %v4035
      %4037 = vmatpush.xpose.msra.mxu0 %v4036
      %v4038 = vand.u32 %v1307, 4294901760
      %v4039 = vsub.f32 %v1307, %v4038
      %4040 = vmatpush.xpose.msra.mxu0 %v4039
      %v4041 = vand.u32 %v1294, 4294901760
      %v4042 = vsub.f32 %v1294, %v4041
      %4043 = vmatpush.xpose.msra.mxu0 %v4042
      %v4044 = vand.u32 %v1281, 4294901760
      %v4045 = vsub.f32 %v1281, %v4044
      %4046 = vmatpush.xpose.msra.mxu0 %v4045
      %v4047 = vand.u32 %v1268, 4294901760
      %v4048 = vsub.f32 %v1268, %v4047
      %4049 = vmatpush.xpose.msra.mxu0 %v4048
      %v4050 = vand.u32 %v1255, 4294901760
      %v4051 = vsub.f32 %v1255, %v4050
      %4052 = vmatpush.xpose.msra.mxu0 %v4051
      %v4053 = vand.u32 %v1242, 4294901760
      %v4054 = vsub.f32 %v1242, %v4053
      %4055 = vmatpush.xpose.msra.mxu0 %v4054
      %v4056 = vand.u32 %v1229, 4294901760
      %v4057 = vsub.f32 %v1229, %v4056
      %4058 = vmatpush.xpose.msra.mxu0 %v4057
      %v4059 = vand.u32 %v1216, 4294901760
      %v4060 = vsub.f32 %v1216, %v4059
      %4061 = vmatpush.xpose.msra.mxu0 %v4060
      %v4062 = vand.u32 %v1203, 4294901760
      %v4063 = vsub.f32 %v1203, %v4062
      %4064 = vmatpush.xpose.msra.mxu0 %v4063
      %v4065 = vand.u32 %v1190, 4294901760
      %v4066 = vsub.f32 %v1190, %v4065
      %4067 = vmatpush.xpose.msra.mxu0 %v4066
      %v4068 = vand.u32 %v1419, 4294901760
      %v4069 = vsub.f32 %v1419, %v4068
      %4070 = vmatmul.f32.gmra.mxu0 %v4069
      %v4071 = vpop.f32.mrf.mxu0
      %v4072 = vadd.f32 %v4018, %v4071
      %4073 = vdwg.mxu0
      %v4074 = vand.u32 %v1385, 4294901760
      %4075 = vmatpush.xpose.msra.mxu0 %v4074
      %v4076 = vand.u32 %v1372, 4294901760
      %4077 = vmatpush.xpose.msra.mxu0 %v4076
      %v4078 = vand.u32 %v1359, 4294901760
      %4079 = vmatpush.xpose.msra.mxu0 %v4078
      %v4080 = vand.u32 %v1346, 4294901760
      %4081 = vmatpush.xpose.msra.mxu0 %v4080
      %v4082 = vand.u32 %v1333, 4294901760
      %4083 = vmatpush.xpose.msra.mxu0 %v4082
      %v4084 = vand.u32 %v1320, 4294901760
      %4085 = vmatpush.xpose.msra.mxu0 %v4084
      %v4086 = vand.u32 %v1307, 4294901760
      %4087 = vmatpush.xpose.msra.mxu0 %v4086
      %v4088 = vand.u32 %v1294, 4294901760
      %4089 = vmatpush.xpose.msra.mxu0 %v4088
      %v4090 = vand.u32 %v1281, 4294901760
      %4091 = vmatpush.xpose.msra.mxu0 %v4090
      %v4092 = vand.u32 %v1268, 4294901760
      %4093 = vmatpush.xpose.msra.mxu0 %v4092
      %v4094 = vand.u32 %v1255, 4294901760
      %4095 = vmatpush.xpose.msra.mxu0 %v4094
      %v4096 = vand.u32 %v1242, 4294901760
      %4097 = vmatpush.xpose.msra.mxu0 %v4096
      %v4098 = vand.u32 %v1229, 4294901760
      %4099 = vmatpush.xpose.msra.mxu0 %v4098
      %v4100 = vand.u32 %v1216, 4294901760
      %4101 = vmatpush.xpose.msra.mxu0 %v4100
      %v4102 = vand.u32 %v1203, 4294901760
      %4103 = vmatpush.xpose.msra.mxu0 %v4102
      %v4104 = vand.u32 %v1190, 4294901760
      %4105 = vmatpush.xpose.msra.mxu0 %v4104
      %v4106 = vand.u32 %v1419, 4294901760
      %v4107 = vsub.f32 %v1419, %v4106
      %v4108 = vand.u32 %v4107, 4294901760
      %4109 = vmatmul.f32.gmra.mxu0 %v4108
      %v4110 = vpop.f32.mrf.mxu0
      %v4111 = vadd.f32 %v4072, %v4110
      %4112 = vdwg.mxu0
      %v4113 = vand.u32 %v1385, 4294901760
      %v4114 = vsub.f32 %v1385, %v4113
      %v4115 = vand.u32 %v4114, 4294901760
      %4116 = vmatpush.xpose.msra.mxu0 %v4115
      %v4117 = vand.u32 %v1372, 4294901760
      %v4118 = vsub.f32 %v1372, %v4117
      %v4119 = vand.u32 %v4118, 4294901760
      %4120 = vmatpush.xpose.msra.mxu0 %v4119
      %v4121 = vand.u32 %v1359, 4294901760
      %v4122 = vsub.f32 %v1359, %v4121
      %v4123 = vand.u32 %v4122, 4294901760
      %4124 = vmatpush.xpose.msra.mxu0 %v4123
      %v4125 = vand.u32 %v1346, 4294901760
      %v4126 = vsub.f32 %v1346, %v4125
      %v4127 = vand.u32 %v4126, 4294901760
      %4128 = vmatpush.xpose.msra.mxu0 %v4127
      %v4129 = vand.u32 %v1333, 4294901760
      %v4130 = vsub.f32 %v1333, %v4129
      %v4131 = vand.u32 %v4130, 4294901760
      %4132 = vmatpush.xpose.msra.mxu0 %v4131
      %v4133 = vand.u32 %v1320, 4294901760
      %v4134 = vsub.f32 %v1320, %v4133
      %v4135 = vand.u32 %v4134, 4294901760
      %4136 = vmatpush.xpose.msra.mxu0 %v4135
      %v4137 = vand.u32 %v1307, 4294901760
      %v4138 = vsub.f32 %v1307, %v4137
      %v4139 = vand.u32 %v4138, 4294901760
      %4140 = vmatpush.xpose.msra.mxu0 %v4139
      %v4141 = vand.u32 %v1294, 4294901760
      %v4142 = vsub.f32 %v1294, %v4141
      %v4143 = vand.u32 %v4142, 4294901760
      %4144 = vmatpush.xpose.msra.mxu0 %v4143
      %v4145 = vand.u32 %v1281, 4294901760
      %v4146 = vsub.f32 %v1281, %v4145
      %v4147 = vand.u32 %v4146, 4294901760
      %4148 = vmatpush.xpose.msra.mxu0 %v4147
      %v4149 = vand.u32 %v1268, 4294901760
      %v4150 = vsub.f32 %v1268, %v4149
      %v4151 = vand.u32 %v4150, 4294901760
      %4152 = vmatpush.xpose.msra.mxu0 %v4151
      %v4153 = vand.u32 %v1255, 4294901760
      %v4154 = vsub.f32 %v1255, %v4153
      %v4155 = vand.u32 %v4154, 4294901760
      %4156 = vmatpush.xpose.msra.mxu0 %v4155
      %v4157 = vand.u32 %v1242, 4294901760
      %v4158 = vsub.f32 %v1242, %v4157
      %v4159 = vand.u32 %v4158, 4294901760
      %4160 = vmatpush.xpose.msra.mxu0 %v4159
      %v4161 = vand.u32 %v1229, 4294901760
      %v4162 = vsub.f32 %v1229, %v4161
      %v4163 = vand.u32 %v4162, 4294901760
      %4164 = vmatpush.xpose.msra.mxu0 %v4163
      %v4165 = vand.u32 %v1216, 4294901760
      %v4166 = vsub.f32 %v1216, %v4165
      %v4167 = vand.u32 %v4166, 4294901760
      %4168 = vmatpush.xpose.msra.mxu0 %v4167
      %v4169 = vand.u32 %v1203, 4294901760
      %v4170 = vsub.f32 %v1203, %v4169
      %v4171 = vand.u32 %v4170, 4294901760
      %4172 = vmatpush.xpose.msra.mxu0 %v4171
      %v4173 = vand.u32 %v1190, 4294901760
      %v4174 = vsub.f32 %v1190, %v4173
      %v4175 = vand.u32 %v4174, 4294901760
      %4176 = vmatpush.xpose.msra.mxu0 %v4175
      %v4177 = vand.u32 %v1419, 4294901760
      %4178 = vmatmul.f32.gmra.mxu0 %v4177
      %v4179 = vpop.f32.mrf.mxu0
      %v4180 = vadd.f32 %v4111, %v4179
      %4181 = vdwg.mxu0
      %v4182 = vand.u32 %v1385, 4294901760
      %4183 = vmatpush.xpose.msra.mxu0 %v4182
      %v4184 = vand.u32 %v1372, 4294901760
      %4185 = vmatpush.xpose.msra.mxu0 %v4184
      %v4186 = vand.u32 %v1359, 4294901760
      %4187 = vmatpush.xpose.msra.mxu0 %v4186
      %v4188 = vand.u32 %v1346, 4294901760
      %4189 = vmatpush.xpose.msra.mxu0 %v4188
      %v4190 = vand.u32 %v1333, 4294901760
      %4191 = vmatpush.xpose.msra.mxu0 %v4190
      %v4192 = vand.u32 %v1320, 4294901760
      %4193 = vmatpush.xpose.msra.mxu0 %v4192
      %v4194 = vand.u32 %v1307, 4294901760
      %4195 = vmatpush.xpose.msra.mxu0 %v4194
      %v4196 = vand.u32 %v1294, 4294901760
      %4197 = vmatpush.xpose.msra.mxu0 %v4196
      %v4198 = vand.u32 %v1281, 4294901760
      %4199 = vmatpush.xpose.msra.mxu0 %v4198
      %v4200 = vand.u32 %v1268, 4294901760
      %4201 = vmatpush.xpose.msra.mxu0 %v4200
      %v4202 = vand.u32 %v1255, 4294901760
      %4203 = vmatpush.xpose.msra.mxu0 %v4202
      %v4204 = vand.u32 %v1242, 4294901760
      %4205 = vmatpush.xpose.msra.mxu0 %v4204
      %v4206 = vand.u32 %v1229, 4294901760
      %4207 = vmatpush.xpose.msra.mxu0 %v4206
      %v4208 = vand.u32 %v1216, 4294901760
      %4209 = vmatpush.xpose.msra.mxu0 %v4208
      %v4210 = vand.u32 %v1203, 4294901760
      %4211 = vmatpush.xpose.msra.mxu0 %v4210
      %v4212 = vand.u32 %v1190, 4294901760
      %4213 = vmatpush.xpose.msra.mxu0 %v4212
      %v4214 = vand.u32 %v1419, 4294901760
      %4215 = vmatmul.f32.gmra.mxu0 %v4214
      %v4216 = vpop.f32.mrf.mxu0
      %v4217 = vadd.f32 %v4180, %v4216
      %4218 = vdwg.mxu0
      %v4219 = vand.u32 %v1386, 4294901760
      %4220 = vmatpush.xpose.msra.mxu0 %v4219
      %v4221 = vand.u32 %v1373, 4294901760
      %4222 = vmatpush.xpose.msra.mxu0 %v4221
      %v4223 = vand.u32 %v1360, 4294901760
      %4224 = vmatpush.xpose.msra.mxu0 %v4223
      %v4225 = vand.u32 %v1347, 4294901760
      %4226 = vmatpush.xpose.msra.mxu0 %v4225
      %v4227 = vand.u32 %v1334, 4294901760
      %4228 = vmatpush.xpose.msra.mxu0 %v4227
      %v4229 = vand.u32 %v1321, 4294901760
      %4230 = vmatpush.xpose.msra.mxu0 %v4229
      %v4231 = vand.u32 %v1308, 4294901760
      %4232 = vmatpush.xpose.msra.mxu0 %v4231
      %v4233 = vand.u32 %v1295, 4294901760
      %4234 = vmatpush.xpose.msra.mxu0 %v4233
      %v4235 = vand.u32 %v1282, 4294901760
      %4236 = vmatpush.xpose.msra.mxu0 %v4235
      %v4237 = vand.u32 %v1269, 4294901760
      %4238 = vmatpush.xpose.msra.mxu0 %v4237
      %v4239 = vand.u32 %v1256, 4294901760
      %4240 = vmatpush.xpose.msra.mxu0 %v4239
      %v4241 = vand.u32 %v1243, 4294901760
      %4242 = vmatpush.xpose.msra.mxu0 %v4241
      %v4243 = vand.u32 %v1230, 4294901760
      %4244 = vmatpush.xpose.msra.mxu0 %v4243
      %v4245 = vand.u32 %v1217, 4294901760
      %4246 = vmatpush.xpose.msra.mxu0 %v4245
      %v4247 = vand.u32 %v1204, 4294901760
      %4248 = vmatpush.xpose.msra.mxu0 %v4247
      %v4249 = vand.u32 %v1191, 4294901760
      %4250 = vmatpush.xpose.msra.mxu0 %v4249
      %v4251 = vand.u32 %v1423, 4294901760
      %v4252 = vsub.f32 %v1423, %v4251
      %v4253 = vand.u32 %v4252, 4294901760
      %v4254 = vsub.f32 %v4252, %v4253
      %v4255 = vand.u32 %v4254, 4294901760
      %4256 = vmatmul.f32.gmra.mxu0 %v4255
      %v4257 = vpop.f32.mrf.mxu0
      %v4258 = vadd.f32 %v4217, %v4257
      %4259 = vdwg.mxu0
      %v4260 = vand.u32 %v1386, 4294901760
      %v4261 = vsub.f32 %v1386, %v4260
      %v4262 = vand.u32 %v4261, 4294901760
      %v4263 = vsub.f32 %v4261, %v4262
      %v4264 = vand.u32 %v4263, 4294901760
      %4265 = vmatpush.xpose.msra.mxu0 %v4264
      %v4266 = vand.u32 %v1373, 4294901760
      %v4267 = vsub.f32 %v1373, %v4266
      %v4268 = vand.u32 %v4267, 4294901760
      %v4269 = vsub.f32 %v4267, %v4268
      %v4270 = vand.u32 %v4269, 4294901760
      %4271 = vmatpush.xpose.msra.mxu0 %v4270
      %v4272 = vand.u32 %v1360, 4294901760
      %v4273 = vsub.f32 %v1360, %v4272
      %v4274 = vand.u32 %v4273, 4294901760
      %v4275 = vsub.f32 %v4273, %v4274
      %v4276 = vand.u32 %v4275, 4294901760
      %4277 = vmatpush.xpose.msra.mxu0 %v4276
      %v4278 = vand.u32 %v1347, 4294901760
      %v4279 = vsub.f32 %v1347, %v4278
      %v4280 = vand.u32 %v4279, 4294901760
      %v4281 = vsub.f32 %v4279, %v4280
      %v4282 = vand.u32 %v4281, 4294901760
      %4283 = vmatpush.xpose.msra.mxu0 %v4282
      %v4284 = vand.u32 %v1334, 4294901760
      %v4285 = vsub.f32 %v1334, %v4284
      %v4286 = vand.u32 %v4285, 4294901760
      %v4287 = vsub.f32 %v4285, %v4286
      %v4288 = vand.u32 %v4287, 4294901760
      %4289 = vmatpush.xpose.msra.mxu0 %v4288
      %v4290 = vand.u32 %v1321, 4294901760
      %v4291 = vsub.f32 %v1321, %v4290
      %v4292 = vand.u32 %v4291, 4294901760
      %v4293 = vsub.f32 %v4291, %v4292
      %v4294 = vand.u32 %v4293, 4294901760
      %4295 = vmatpush.xpose.msra.mxu0 %v4294
      %v4296 = vand.u32 %v1308, 4294901760
      %v4297 = vsub.f32 %v1308, %v4296
      %v4298 = vand.u32 %v4297, 4294901760
      %v4299 = vsub.f32 %v4297, %v4298
      %v4300 = vand.u32 %v4299, 4294901760
      %4301 = vmatpush.xpose.msra.mxu0 %v4300
      %v4302 = vand.u32 %v1295, 4294901760
      %v4303 = vsub.f32 %v1295, %v4302
      %v4304 = vand.u32 %v4303, 4294901760
      %v4305 = vsub.f32 %v4303, %v4304
      %v4306 = vand.u32 %v4305, 4294901760
      %4307 = vmatpush.xpose.msra.mxu0 %v4306
      %v4308 = vand.u32 %v1282, 4294901760
      %v4309 = vsub.f32 %v1282, %v4308
      %v4310 = vand.u32 %v4309, 4294901760
      %v4311 = vsub.f32 %v4309, %v4310
      %v4312 = vand.u32 %v4311, 4294901760
      %4313 = vmatpush.xpose.msra.mxu0 %v4312
      %v4314 = vand.u32 %v1269, 4294901760
      %v4315 = vsub.f32 %v1269, %v4314
      %v4316 = vand.u32 %v4315, 4294901760
      %v4317 = vsub.f32 %v4315, %v4316
      %v4318 = vand.u32 %v4317, 4294901760
      %4319 = vmatpush.xpose.msra.mxu0 %v4318
      %v4320 = vand.u32 %v1256, 4294901760
      %v4321 = vsub.f32 %v1256, %v4320
      %v4322 = vand.u32 %v4321, 4294901760
      %v4323 = vsub.f32 %v4321, %v4322
      %v4324 = vand.u32 %v4323, 4294901760
      %4325 = vmatpush.xpose.msra.mxu0 %v4324
      %v4326 = vand.u32 %v1243, 4294901760
      %v4327 = vsub.f32 %v1243, %v4326
      %v4328 = vand.u32 %v4327, 4294901760
      %v4329 = vsub.f32 %v4327, %v4328
      %v4330 = vand.u32 %v4329, 4294901760
      %4331 = vmatpush.xpose.msra.mxu0 %v4330
      %v4332 = vand.u32 %v1230, 4294901760
      %v4333 = vsub.f32 %v1230, %v4332
      %v4334 = vand.u32 %v4333, 4294901760
      %v4335 = vsub.f32 %v4333, %v4334
      %v4336 = vand.u32 %v4335, 4294901760
      %4337 = vmatpush.xpose.msra.mxu0 %v4336
      %v4338 = vand.u32 %v1217, 4294901760
      %v4339 = vsub.f32 %v1217, %v4338
      %v4340 = vand.u32 %v4339, 4294901760
      %v4341 = vsub.f32 %v4339, %v4340
      %v4342 = vand.u32 %v4341, 4294901760
      %4343 = vmatpush.xpose.msra.mxu0 %v4342
      %v4344 = vand.u32 %v1204, 4294901760
      %v4345 = vsub.f32 %v1204, %v4344
      %v4346 = vand.u32 %v4345, 4294901760
      %v4347 = vsub.f32 %v4345, %v4346
      %v4348 = vand.u32 %v4347, 4294901760
      %4349 = vmatpush.xpose.msra.mxu0 %v4348
      %v4350 = vand.u32 %v1191, 4294901760
      %v4351 = vsub.f32 %v1191, %v4350
      %v4352 = vand.u32 %v4351, 4294901760
      %v4353 = vsub.f32 %v4351, %v4352
      %v4354 = vand.u32 %v4353, 4294901760
      %4355 = vmatpush.xpose.msra.mxu0 %v4354
      %v4356 = vand.u32 %v1423, 4294901760
      %4357 = vmatmul.f32.gmra.mxu0 %v4356
      %v4358 = vpop.f32.mrf.mxu0
      %v4359 = vadd.f32 %v4258, %v4358
      %4360 = vdwg.mxu0
      %v4361 = vand.u32 %v1386, 4294901760
      %v4362 = vsub.f32 %v1386, %v4361
      %4363 = vmatpush.xpose.msra.mxu0 %v4362
      %v4364 = vand.u32 %v1373, 4294901760
      %v4365 = vsub.f32 %v1373, %v4364
      %4366 = vmatpush.xpose.msra.mxu0 %v4365
      %v4367 = vand.u32 %v1360, 4294901760
      %v4368 = vsub.f32 %v1360, %v4367
      %4369 = vmatpush.xpose.msra.mxu0 %v4368
      %v4370 = vand.u32 %v1347, 4294901760
      %v4371 = vsub.f32 %v1347, %v4370
      %4372 = vmatpush.xpose.msra.mxu0 %v4371
      %v4373 = vand.u32 %v1334, 4294901760
      %v4374 = vsub.f32 %v1334, %v4373
      %4375 = vmatpush.xpose.msra.mxu0 %v4374
      %v4376 = vand.u32 %v1321, 4294901760
      %v4377 = vsub.f32 %v1321, %v4376
      %4378 = vmatpush.xpose.msra.mxu0 %v4377
      %v4379 = vand.u32 %v1308, 4294901760
      %v4380 = vsub.f32 %v1308, %v4379
      %4381 = vmatpush.xpose.msra.mxu0 %v4380
      %v4382 = vand.u32 %v1295, 4294901760
      %v4383 = vsub.f32 %v1295, %v4382
      %4384 = vmatpush.xpose.msra.mxu0 %v4383
      %v4385 = vand.u32 %v1282, 4294901760
      %v4386 = vsub.f32 %v1282, %v4385
      %4387 = vmatpush.xpose.msra.mxu0 %v4386
      %v4388 = vand.u32 %v1269, 4294901760
      %v4389 = vsub.f32 %v1269, %v4388
      %4390 = vmatpush.xpose.msra.mxu0 %v4389
      %v4391 = vand.u32 %v1256, 4294901760
      %v4392 = vsub.f32 %v1256, %v4391
      %4393 = vmatpush.xpose.msra.mxu0 %v4392
      %v4394 = vand.u32 %v1243, 4294901760
      %v4395 = vsub.f32 %v1243, %v4394
      %4396 = vmatpush.xpose.msra.mxu0 %v4395
      %v4397 = vand.u32 %v1230, 4294901760
      %v4398 = vsub.f32 %v1230, %v4397
      %4399 = vmatpush.xpose.msra.mxu0 %v4398
      %v4400 = vand.u32 %v1217, 4294901760
      %v4401 = vsub.f32 %v1217, %v4400
      %4402 = vmatpush.xpose.msra.mxu0 %v4401
      %v4403 = vand.u32 %v1204, 4294901760
      %v4404 = vsub.f32 %v1204, %v4403
      %4405 = vmatpush.xpose.msra.mxu0 %v4404
      %v4406 = vand.u32 %v1191, 4294901760
      %v4407 = vsub.f32 %v1191, %v4406
      %4408 = vmatpush.xpose.msra.mxu0 %v4407
      %v4409 = vand.u32 %v1423, 4294901760
      %v4410 = vsub.f32 %v1423, %v4409
      %4411 = vmatmul.f32.gmra.mxu0 %v4410
      %v4412 = vpop.f32.mrf.mxu0
      %v4413 = vadd.f32 %v4359, %v4412
      %4414 = vdwg.mxu0
      %v4415 = vand.u32 %v1386, 4294901760
      %4416 = vmatpush.xpose.msra.mxu0 %v4415
      %v4417 = vand.u32 %v1373, 4294901760
      %4418 = vmatpush.xpose.msra.mxu0 %v4417
      %v4419 = vand.u32 %v1360, 4294901760
      %4420 = vmatpush.xpose.msra.mxu0 %v4419
      %v4421 = vand.u32 %v1347, 4294901760
      %4422 = vmatpush.xpose.msra.mxu0 %v4421
      %v4423 = vand.u32 %v1334, 4294901760
      %4424 = vmatpush.xpose.msra.mxu0 %v4423
      %v4425 = vand.u32 %v1321, 4294901760
      %4426 = vmatpush.xpose.msra.mxu0 %v4425
      %v4427 = vand.u32 %v1308, 4294901760
      %4428 = vmatpush.xpose.msra.mxu0 %v4427
      %v4429 = vand.u32 %v1295, 4294901760
      %4430 = vmatpush.xpose.msra.mxu0 %v4429
      %v4431 = vand.u32 %v1282, 4294901760
      %4432 = vmatpush.xpose.msra.mxu0 %v4431
      %v4433 = vand.u32 %v1269, 4294901760
      %4434 = vmatpush.xpose.msra.mxu0 %v4433
      %v4435 = vand.u32 %v1256, 4294901760
      %4436 = vmatpush.xpose.msra.mxu0 %v4435
      %v4437 = vand.u32 %v1243, 4294901760
      %4438 = vmatpush.xpose.msra.mxu0 %v4437
      %v4439 = vand.u32 %v1230, 4294901760
      %4440 = vmatpush.xpose.msra.mxu0 %v4439
      %v4441 = vand.u32 %v1217, 4294901760
      %4442 = vmatpush.xpose.msra.mxu0 %v4441
      %v4443 = vand.u32 %v1204, 4294901760
      %4444 = vmatpush.xpose.msra.mxu0 %v4443
      %v4445 = vand.u32 %v1191, 4294901760
      %4446 = vmatpush.xpose.msra.mxu0 %v4445
      %v4447 = vand.u32 %v1423, 4294901760
      %v4448 = vsub.f32 %v1423, %v4447
      %v4449 = vand.u32 %v4448, 4294901760
      %4450 = vmatmul.f32.gmra.mxu0 %v4449
      %v4451 = vpop.f32.mrf.mxu0
      %v4452 = vadd.f32 %v4413, %v4451
      %4453 = vdwg.mxu0
      %v4454 = vand.u32 %v1386, 4294901760
      %v4455 = vsub.f32 %v1386, %v4454
      %v4456 = vand.u32 %v4455, 4294901760
      %4457 = vmatpush.xpose.msra.mxu0 %v4456
      %v4458 = vand.u32 %v1373, 4294901760
      %v4459 = vsub.f32 %v1373, %v4458
      %v4460 = vand.u32 %v4459, 4294901760
      %4461 = vmatpush.xpose.msra.mxu0 %v4460
      %v4462 = vand.u32 %v1360, 4294901760
      %v4463 = vsub.f32 %v1360, %v4462
      %v4464 = vand.u32 %v4463, 4294901760
      %4465 = vmatpush.xpose.msra.mxu0 %v4464
      %v4466 = vand.u32 %v1347, 4294901760
      %v4467 = vsub.f32 %v1347, %v4466
      %v4468 = vand.u32 %v4467, 4294901760
      %4469 = vmatpush.xpose.msra.mxu0 %v4468
      %v4470 = vand.u32 %v1334, 4294901760
      %v4471 = vsub.f32 %v1334, %v4470
      %v4472 = vand.u32 %v4471, 4294901760
      %4473 = vmatpush.xpose.msra.mxu0 %v4472
      %v4474 = vand.u32 %v1321, 4294901760
      %v4475 = vsub.f32 %v1321, %v4474
      %v4476 = vand.u32 %v4475, 4294901760
      %4477 = vmatpush.xpose.msra.mxu0 %v4476
      %v4478 = vand.u32 %v1308, 4294901760
      %v4479 = vsub.f32 %v1308, %v4478
      %v4480 = vand.u32 %v4479, 4294901760
      %4481 = vmatpush.xpose.msra.mxu0 %v4480
      %v4482 = vand.u32 %v1295, 4294901760
      %v4483 = vsub.f32 %v1295, %v4482
      %v4484 = vand.u32 %v4483, 4294901760
      %4485 = vmatpush.xpose.msra.mxu0 %v4484
      %v4486 = vand.u32 %v1282, 4294901760
      %v4487 = vsub.f32 %v1282, %v4486
      %v4488 = vand.u32 %v4487, 4294901760
      %4489 = vmatpush.xpose.msra.mxu0 %v4488
      %v4490 = vand.u32 %v1269, 4294901760
      %v4491 = vsub.f32 %v1269, %v4490
      %v4492 = vand.u32 %v4491, 4294901760
      %4493 = vmatpush.xpose.msra.mxu0 %v4492
      %v4494 = vand.u32 %v1256, 4294901760
      %v4495 = vsub.f32 %v1256, %v4494
      %v4496 = vand.u32 %v4495, 4294901760
      %4497 = vmatpush.xpose.msra.mxu0 %v4496
      %v4498 = vand.u32 %v1243, 4294901760
      %v4499 = vsub.f32 %v1243, %v4498
      %v4500 = vand.u32 %v4499, 4294901760
      %4501 = vmatpush.xpose.msra.mxu0 %v4500
      %v4502 = vand.u32 %v1230, 4294901760
      %v4503 = vsub.f32 %v1230, %v4502
      %v4504 = vand.u32 %v4503, 4294901760
      %4505 = vmatpush.xpose.msra.mxu0 %v4504
      %v4506 = vand.u32 %v1217, 4294901760
      %v4507 = vsub.f32 %v1217, %v4506
      %v4508 = vand.u32 %v4507, 4294901760
      %4509 = vmatpush.xpose.msra.mxu0 %v4508
      %v4510 = vand.u32 %v1204, 4294901760
      %v4511 = vsub.f32 %v1204, %v4510
      %v4512 = vand.u32 %v4511, 4294901760
      %4513 = vmatpush.xpose.msra.mxu0 %v4512
      %v4514 = vand.u32 %v1191, 4294901760
      %v4515 = vsub.f32 %v1191, %v4514
      %v4516 = vand.u32 %v4515, 4294901760
      %4517 = vmatpush.xpose.msra.mxu0 %v4516
      %v4518 = vand.u32 %v1423, 4294901760
      %4519 = vmatmul.f32.gmra.mxu0 %v4518
      %v4520 = vpop.f32.mrf.mxu0
      %v4521 = vadd.f32 %v4452, %v4520
      %4522 = vdwg.mxu0
      %v4523 = vand.u32 %v1386, 4294901760
      %4524 = vmatpush.xpose.msra.mxu0 %v4523
      %v4525 = vand.u32 %v1373, 4294901760
      %4526 = vmatpush.xpose.msra.mxu0 %v4525
      %v4527 = vand.u32 %v1360, 4294901760
      %4528 = vmatpush.xpose.msra.mxu0 %v4527
      %v4529 = vand.u32 %v1347, 4294901760
      %4530 = vmatpush.xpose.msra.mxu0 %v4529
      %v4531 = vand.u32 %v1334, 4294901760
      %4532 = vmatpush.xpose.msra.mxu0 %v4531
      %v4533 = vand.u32 %v1321, 4294901760
      %4534 = vmatpush.xpose.msra.mxu0 %v4533
      %v4535 = vand.u32 %v1308, 4294901760
      %4536 = vmatpush.xpose.msra.mxu0 %v4535
      %v4537 = vand.u32 %v1295, 4294901760
      %4538 = vmatpush.xpose.msra.mxu0 %v4537
      %v4539 = vand.u32 %v1282, 4294901760
      %4540 = vmatpush.xpose.msra.mxu0 %v4539
      %v4541 = vand.u32 %v1269, 4294901760
      %4542 = vmatpush.xpose.msra.mxu0 %v4541
      %v4543 = vand.u32 %v1256, 4294901760
      %4544 = vmatpush.xpose.msra.mxu0 %v4543
      %v4545 = vand.u32 %v1243, 4294901760
      %4546 = vmatpush.xpose.msra.mxu0 %v4545
      %v4547 = vand.u32 %v1230, 4294901760
      %4548 = vmatpush.xpose.msra.mxu0 %v4547
      %v4549 = vand.u32 %v1217, 4294901760
      %4550 = vmatpush.xpose.msra.mxu0 %v4549
      %v4551 = vand.u32 %v1204, 4294901760
      %4552 = vmatpush.xpose.msra.mxu0 %v4551
      %v4553 = vand.u32 %v1191, 4294901760
      %4554 = vmatpush.xpose.msra.mxu0 %v4553
      %v4555 = vand.u32 %v1423, 4294901760
      %4556 = vmatmul.f32.gmra.mxu0 %v4555
      %v4557 = vpop.f32.mrf.mxu0
      %v4558 = vadd.f32 %v4521, %v4557
      %4559 = vdwg.mxu0
      %v4560 = vand.u32 %v1387, 4294901760
      %4561 = vmatpush.xpose.msra.mxu0 %v4560
      %v4562 = vand.u32 %v1374, 4294901760
      %4563 = vmatpush.xpose.msra.mxu0 %v4562
      %v4564 = vand.u32 %v1361, 4294901760
      %4565 = vmatpush.xpose.msra.mxu0 %v4564
      %v4566 = vand.u32 %v1348, 4294901760
      %4567 = vmatpush.xpose.msra.mxu0 %v4566
      %v4568 = vand.u32 %v1335, 4294901760
      %4569 = vmatpush.xpose.msra.mxu0 %v4568
      %v4570 = vand.u32 %v1322, 4294901760
      %4571 = vmatpush.xpose.msra.mxu0 %v4570
      %v4572 = vand.u32 %v1309, 4294901760
      %4573 = vmatpush.xpose.msra.mxu0 %v4572
      %v4574 = vand.u32 %v1296, 4294901760
      %4575 = vmatpush.xpose.msra.mxu0 %v4574
      %v4576 = vand.u32 %v1283, 4294901760
      %4577 = vmatpush.xpose.msra.mxu0 %v4576
      %v4578 = vand.u32 %v1270, 4294901760
      %4579 = vmatpush.xpose.msra.mxu0 %v4578
      %v4580 = vand.u32 %v1257, 4294901760
      %4581 = vmatpush.xpose.msra.mxu0 %v4580
      %v4582 = vand.u32 %v1244, 4294901760
      %4583 = vmatpush.xpose.msra.mxu0 %v4582
      %v4584 = vand.u32 %v1231, 4294901760
      %4585 = vmatpush.xpose.msra.mxu0 %v4584
      %v4586 = vand.u32 %v1218, 4294901760
      %4587 = vmatpush.xpose.msra.mxu0 %v4586
      %v4588 = vand.u32 %v1205, 4294901760
      %4589 = vmatpush.xpose.msra.mxu0 %v4588
      %v4590 = vand.u32 %v1192, 4294901760
      %4591 = vmatpush.xpose.msra.mxu0 %v4590
      %v4592 = vand.u32 %v1424, 4294901760
      %v4593 = vsub.f32 %v1424, %v4592
      %v4594 = vand.u32 %v4593, 4294901760
      %v4595 = vsub.f32 %v4593, %v4594
      %v4596 = vand.u32 %v4595, 4294901760
      %4597 = vmatmul.f32.gmra.mxu0 %v4596
      %v4598 = vpop.f32.mrf.mxu0
      %v4599 = vadd.f32 %v4558, %v4598
      %4600 = vdwg.mxu0
      %v4601 = vand.u32 %v1387, 4294901760
      %v4602 = vsub.f32 %v1387, %v4601
      %v4603 = vand.u32 %v4602, 4294901760
      %v4604 = vsub.f32 %v4602, %v4603
      %v4605 = vand.u32 %v4604, 4294901760
      %4606 = vmatpush.xpose.msra.mxu0 %v4605
      %v4607 = vand.u32 %v1374, 4294901760
      %v4608 = vsub.f32 %v1374, %v4607
      %v4609 = vand.u32 %v4608, 4294901760
      %v4610 = vsub.f32 %v4608, %v4609
      %v4611 = vand.u32 %v4610, 4294901760
      %4612 = vmatpush.xpose.msra.mxu0 %v4611
      %v4613 = vand.u32 %v1361, 4294901760
      %v4614 = vsub.f32 %v1361, %v4613
      %v4615 = vand.u32 %v4614, 4294901760
      %v4616 = vsub.f32 %v4614, %v4615
      %v4617 = vand.u32 %v4616, 4294901760
      %4618 = vmatpush.xpose.msra.mxu0 %v4617
      %v4619 = vand.u32 %v1348, 4294901760
      %v4620 = vsub.f32 %v1348, %v4619
      %v4621 = vand.u32 %v4620, 4294901760
      %v4622 = vsub.f32 %v4620, %v4621
      %v4623 = vand.u32 %v4622, 4294901760
      %4624 = vmatpush.xpose.msra.mxu0 %v4623
      %v4625 = vand.u32 %v1335, 4294901760
      %v4626 = vsub.f32 %v1335, %v4625
      %v4627 = vand.u32 %v4626, 4294901760
      %v4628 = vsub.f32 %v4626, %v4627
      %v4629 = vand.u32 %v4628, 4294901760
      %4630 = vmatpush.xpose.msra.mxu0 %v4629
      %v4631 = vand.u32 %v1322, 4294901760
      %v4632 = vsub.f32 %v1322, %v4631
      %v4633 = vand.u32 %v4632, 4294901760
      %v4634 = vsub.f32 %v4632, %v4633
      %v4635 = vand.u32 %v4634, 4294901760
      %4636 = vmatpush.xpose.msra.mxu0 %v4635
      %v4637 = vand.u32 %v1309, 4294901760
      %v4638 = vsub.f32 %v1309, %v4637
      %v4639 = vand.u32 %v4638, 4294901760
      %v4640 = vsub.f32 %v4638, %v4639
      %v4641 = vand.u32 %v4640, 4294901760
      %4642 = vmatpush.xpose.msra.mxu0 %v4641
      %v4643 = vand.u32 %v1296, 4294901760
      %v4644 = vsub.f32 %v1296, %v4643
      %v4645 = vand.u32 %v4644, 4294901760
      %v4646 = vsub.f32 %v4644, %v4645
      %v4647 = vand.u32 %v4646, 4294901760
      %4648 = vmatpush.xpose.msra.mxu0 %v4647
      %v4649 = vand.u32 %v1283, 4294901760
      %v4650 = vsub.f32 %v1283, %v4649
      %v4651 = vand.u32 %v4650, 4294901760
      %v4652 = vsub.f32 %v4650, %v4651
      %v4653 = vand.u32 %v4652, 4294901760
      %4654 = vmatpush.xpose.msra.mxu0 %v4653
      %v4655 = vand.u32 %v1270, 4294901760
      %v4656 = vsub.f32 %v1270, %v4655
      %v4657 = vand.u32 %v4656, 4294901760
      %v4658 = vsub.f32 %v4656, %v4657
      %v4659 = vand.u32 %v4658, 4294901760
      %4660 = vmatpush.xpose.msra.mxu0 %v4659
      %v4661 = vand.u32 %v1257, 4294901760
      %v4662 = vsub.f32 %v1257, %v4661
      %v4663 = vand.u32 %v4662, 4294901760
      %v4664 = vsub.f32 %v4662, %v4663
      %v4665 = vand.u32 %v4664, 4294901760
      %4666 = vmatpush.xpose.msra.mxu0 %v4665
      %v4667 = vand.u32 %v1244, 4294901760
      %v4668 = vsub.f32 %v1244, %v4667
      %v4669 = vand.u32 %v4668, 4294901760
      %v4670 = vsub.f32 %v4668, %v4669
      %v4671 = vand.u32 %v4670, 4294901760
      %4672 = vmatpush.xpose.msra.mxu0 %v4671
      %v4673 = vand.u32 %v1231, 4294901760
      %v4674 = vsub.f32 %v1231, %v4673
      %v4675 = vand.u32 %v4674, 4294901760
      %v4676 = vsub.f32 %v4674, %v4675
      %v4677 = vand.u32 %v4676, 4294901760
      %4678 = vmatpush.xpose.msra.mxu0 %v4677
      %v4679 = vand.u32 %v1218, 4294901760
      %v4680 = vsub.f32 %v1218, %v4679
      %v4681 = vand.u32 %v4680, 4294901760
      %v4682 = vsub.f32 %v4680, %v4681
      %v4683 = vand.u32 %v4682, 4294901760
      %4684 = vmatpush.xpose.msra.mxu0 %v4683
      %v4685 = vand.u32 %v1205, 4294901760
      %v4686 = vsub.f32 %v1205, %v4685
      %v4687 = vand.u32 %v4686, 4294901760
      %v4688 = vsub.f32 %v4686, %v4687
      %v4689 = vand.u32 %v4688, 4294901760
      %4690 = vmatpush.xpose.msra.mxu0 %v4689
      %v4691 = vand.u32 %v1192, 4294901760
      %v4692 = vsub.f32 %v1192, %v4691
      %v4693 = vand.u32 %v4692, 4294901760
      %v4694 = vsub.f32 %v4692, %v4693
      %v4695 = vand.u32 %v4694, 4294901760
      %4696 = vmatpush.xpose.msra.mxu0 %v4695
      %v4697 = vand.u32 %v1424, 4294901760
      %4698 = vmatmul.f32.gmra.mxu0 %v4697
      %v4699 = vpop.f32.mrf.mxu0
      %v4700 = vadd.f32 %v4599, %v4699
      %4701 = vdwg.mxu0
      %v4702 = vand.u32 %v1387, 4294901760
      %v4703 = vsub.f32 %v1387, %v4702
      %4704 = vmatpush.xpose.msra.mxu0 %v4703
      %v4705 = vand.u32 %v1374, 4294901760
      %v4706 = vsub.f32 %v1374, %v4705
      %4707 = vmatpush.xpose.msra.mxu0 %v4706
      %v4708 = vand.u32 %v1361, 4294901760
      %v4709 = vsub.f32 %v1361, %v4708
      %4710 = vmatpush.xpose.msra.mxu0 %v4709
      %v4711 = vand.u32 %v1348, 4294901760
      %v4712 = vsub.f32 %v1348, %v4711
      %4713 = vmatpush.xpose.msra.mxu0 %v4712
      %v4714 = vand.u32 %v1335, 4294901760
      %v4715 = vsub.f32 %v1335, %v4714
      %4716 = vmatpush.xpose.msra.mxu0 %v4715
      %v4717 = vand.u32 %v1322, 4294901760
      %v4718 = vsub.f32 %v1322, %v4717
      %4719 = vmatpush.xpose.msra.mxu0 %v4718
      %v4720 = vand.u32 %v1309, 4294901760
      %v4721 = vsub.f32 %v1309, %v4720
      %4722 = vmatpush.xpose.msra.mxu0 %v4721
      %v4723 = vand.u32 %v1296, 4294901760
      %v4724 = vsub.f32 %v1296, %v4723
      %4725 = vmatpush.xpose.msra.mxu0 %v4724
      %v4726 = vand.u32 %v1283, 4294901760
      %v4727 = vsub.f32 %v1283, %v4726
      %4728 = vmatpush.xpose.msra.mxu0 %v4727
      %v4729 = vand.u32 %v1270, 4294901760
      %v4730 = vsub.f32 %v1270, %v4729
      %4731 = vmatpush.xpose.msra.mxu0 %v4730
      %v4732 = vand.u32 %v1257, 4294901760
      %v4733 = vsub.f32 %v1257, %v4732
      %4734 = vmatpush.xpose.msra.mxu0 %v4733
      %v4735 = vand.u32 %v1244, 4294901760
      %v4736 = vsub.f32 %v1244, %v4735
      %4737 = vmatpush.xpose.msra.mxu0 %v4736
      %v4738 = vand.u32 %v1231, 4294901760
      %v4739 = vsub.f32 %v1231, %v4738
      %4740 = vmatpush.xpose.msra.mxu0 %v4739
      %v4741 = vand.u32 %v1218, 4294901760
      %v4742 = vsub.f32 %v1218, %v4741
      %4743 = vmatpush.xpose.msra.mxu0 %v4742
      %v4744 = vand.u32 %v1205, 4294901760
      %v4745 = vsub.f32 %v1205, %v4744
      %4746 = vmatpush.xpose.msra.mxu0 %v4745
      %v4747 = vand.u32 %v1192, 4294901760
      %v4748 = vsub.f32 %v1192, %v4747
      %4749 = vmatpush.xpose.msra.mxu0 %v4748
      %v4750 = vand.u32 %v1424, 4294901760
      %v4751 = vsub.f32 %v1424, %v4750
      %4752 = vmatmul.f32.gmra.mxu0 %v4751
      %v4753 = vpop.f32.mrf.mxu0
      %v4754 = vadd.f32 %v4700, %v4753
      %4755 = vdwg.mxu0
      %v4756 = vand.u32 %v1387, 4294901760
      %4757 = vmatpush.xpose.msra.mxu0 %v4756
      %v4758 = vand.u32 %v1374, 4294901760
      %4759 = vmatpush.xpose.msra.mxu0 %v4758
      %v4760 = vand.u32 %v1361, 4294901760
      %4761 = vmatpush.xpose.msra.mxu0 %v4760
      %v4762 = vand.u32 %v1348, 4294901760
      %4763 = vmatpush.xpose.msra.mxu0 %v4762
      %v4764 = vand.u32 %v1335, 4294901760
      %4765 = vmatpush.xpose.msra.mxu0 %v4764
      %v4766 = vand.u32 %v1322, 4294901760
      %4767 = vmatpush.xpose.msra.mxu0 %v4766
      %v4768 = vand.u32 %v1309, 4294901760
      %4769 = vmatpush.xpose.msra.mxu0 %v4768
      %v4770 = vand.u32 %v1296, 4294901760
      %4771 = vmatpush.xpose.msra.mxu0 %v4770
      %v4772 = vand.u32 %v1283, 4294901760
      %4773 = vmatpush.xpose.msra.mxu0 %v4772
      %v4774 = vand.u32 %v1270, 4294901760
      %4775 = vmatpush.xpose.msra.mxu0 %v4774
      %v4776 = vand.u32 %v1257, 4294901760
      %4777 = vmatpush.xpose.msra.mxu0 %v4776
      %v4778 = vand.u32 %v1244, 4294901760
      %4779 = vmatpush.xpose.msra.mxu0 %v4778
      %v4780 = vand.u32 %v1231, 4294901760
      %4781 = vmatpush.xpose.msra.mxu0 %v4780
      %v4782 = vand.u32 %v1218, 4294901760
      %4783 = vmatpush.xpose.msra.mxu0 %v4782
      %v4784 = vand.u32 %v1205, 4294901760
      %4785 = vmatpush.xpose.msra.mxu0 %v4784
      %v4786 = vand.u32 %v1192, 4294901760
      %4787 = vmatpush.xpose.msra.mxu0 %v4786
      %v4788 = vand.u32 %v1424, 4294901760
      %v4789 = vsub.f32 %v1424, %v4788
      %v4790 = vand.u32 %v4789, 4294901760
      %4791 = vmatmul.f32.gmra.mxu0 %v4790
      %v4792 = vpop.f32.mrf.mxu0
      %v4793 = vadd.f32 %v4754, %v4792
      %4794 = vdwg.mxu0
      %v4795 = vand.u32 %v1387, 4294901760
      %v4796 = vsub.f32 %v1387, %v4795
      %v4797 = vand.u32 %v4796, 4294901760
      %4798 = vmatpush.xpose.msra.mxu0 %v4797
      %v4799 = vand.u32 %v1374, 4294901760
      %v4800 = vsub.f32 %v1374, %v4799
      %v4801 = vand.u32 %v4800, 4294901760
      %4802 = vmatpush.xpose.msra.mxu0 %v4801
      %v4803 = vand.u32 %v1361, 4294901760
      %v4804 = vsub.f32 %v1361, %v4803
      %v4805 = vand.u32 %v4804, 4294901760
      %4806 = vmatpush.xpose.msra.mxu0 %v4805
      %v4807 = vand.u32 %v1348, 4294901760
      %v4808 = vsub.f32 %v1348, %v4807
      %v4809 = vand.u32 %v4808, 4294901760
      %4810 = vmatpush.xpose.msra.mxu0 %v4809
      %v4811 = vand.u32 %v1335, 4294901760
      %v4812 = vsub.f32 %v1335, %v4811
      %v4813 = vand.u32 %v4812, 4294901760
      %4814 = vmatpush.xpose.msra.mxu0 %v4813
      %v4815 = vand.u32 %v1322, 4294901760
      %v4816 = vsub.f32 %v1322, %v4815
      %v4817 = vand.u32 %v4816, 4294901760
      %4818 = vmatpush.xpose.msra.mxu0 %v4817
      %v4819 = vand.u32 %v1309, 4294901760
      %v4820 = vsub.f32 %v1309, %v4819
      %v4821 = vand.u32 %v4820, 4294901760
      %4822 = vmatpush.xpose.msra.mxu0 %v4821
      %v4823 = vand.u32 %v1296, 4294901760
      %v4824 = vsub.f32 %v1296, %v4823
      %v4825 = vand.u32 %v4824, 4294901760
      %4826 = vmatpush.xpose.msra.mxu0 %v4825
      %v4827 = vand.u32 %v1283, 4294901760
      %v4828 = vsub.f32 %v1283, %v4827
      %v4829 = vand.u32 %v4828, 4294901760
      %4830 = vmatpush.xpose.msra.mxu0 %v4829
      %v4831 = vand.u32 %v1270, 4294901760
      %v4832 = vsub.f32 %v1270, %v4831
      %v4833 = vand.u32 %v4832, 4294901760
      %4834 = vmatpush.xpose.msra.mxu0 %v4833
      %v4835 = vand.u32 %v1257, 4294901760
      %v4836 = vsub.f32 %v1257, %v4835
      %v4837 = vand.u32 %v4836, 4294901760
      %4838 = vmatpush.xpose.msra.mxu0 %v4837
      %v4839 = vand.u32 %v1244, 4294901760
      %v4840 = vsub.f32 %v1244, %v4839
      %v4841 = vand.u32 %v4840, 4294901760
      %4842 = vmatpush.xpose.msra.mxu0 %v4841
      %v4843 = vand.u32 %v1231, 4294901760
      %v4844 = vsub.f32 %v1231, %v4843
      %v4845 = vand.u32 %v4844, 4294901760
      %4846 = vmatpush.xpose.msra.mxu0 %v4845
      %v4847 = vand.u32 %v1218, 4294901760
      %v4848 = vsub.f32 %v1218, %v4847
      %v4849 = vand.u32 %v4848, 4294901760
      %4850 = vmatpush.xpose.msra.mxu0 %v4849
      %v4851 = vand.u32 %v1205, 4294901760
      %v4852 = vsub.f32 %v1205, %v4851
      %v4853 = vand.u32 %v4852, 4294901760
      %4854 = vmatpush.xpose.msra.mxu0 %v4853
      %v4855 = vand.u32 %v1192, 4294901760
      %v4856 = vsub.f32 %v1192, %v4855
      %v4857 = vand.u32 %v4856, 4294901760
      %4858 = vmatpush.xpose.msra.mxu0 %v4857
      %v4859 = vand.u32 %v1424, 4294901760
      %4860 = vmatmul.f32.gmra.mxu0 %v4859
      %v4861 = vpop.f32.mrf.mxu0
      %v4862 = vadd.f32 %v4793, %v4861
      %4863 = vdwg.mxu0
      %v4864 = vand.u32 %v1387, 4294901760
      %4865 = vmatpush.xpose.msra.mxu0 %v4864
      %v4866 = vand.u32 %v1374, 4294901760
      %4867 = vmatpush.xpose.msra.mxu0 %v4866
      %v4868 = vand.u32 %v1361, 4294901760
      %4869 = vmatpush.xpose.msra.mxu0 %v4868
      %v4870 = vand.u32 %v1348, 4294901760
      %4871 = vmatpush.xpose.msra.mxu0 %v4870
      %v4872 = vand.u32 %v1335, 4294901760
      %4873 = vmatpush.xpose.msra.mxu0 %v4872
      %v4874 = vand.u32 %v1322, 4294901760
      %4875 = vmatpush.xpose.msra.mxu0 %v4874
      %v4876 = vand.u32 %v1309, 4294901760
      %4877 = vmatpush.xpose.msra.mxu0 %v4876
      %v4878 = vand.u32 %v1296, 4294901760
      %4879 = vmatpush.xpose.msra.mxu0 %v4878
      %v4880 = vand.u32 %v1283, 4294901760
      %4881 = vmatpush.xpose.msra.mxu0 %v4880
      %v4882 = vand.u32 %v1270, 4294901760
      %4883 = vmatpush.xpose.msra.mxu0 %v4882
      %v4884 = vand.u32 %v1257, 4294901760
      %4885 = vmatpush.xpose.msra.mxu0 %v4884
      %v4886 = vand.u32 %v1244, 4294901760
      %4887 = vmatpush.xpose.msra.mxu0 %v4886
      %v4888 = vand.u32 %v1231, 4294901760
      %4889 = vmatpush.xpose.msra.mxu0 %v4888
      %v4890 = vand.u32 %v1218, 4294901760
      %4891 = vmatpush.xpose.msra.mxu0 %v4890
      %v4892 = vand.u32 %v1205, 4294901760
      %4893 = vmatpush.xpose.msra.mxu0 %v4892
      %v4894 = vand.u32 %v1192, 4294901760
      %4895 = vmatpush.xpose.msra.mxu0 %v4894
      %v4896 = vand.u32 %v1424, 4294901760
      %4897 = vmatmul.f32.gmra.mxu0 %v4896
      %v4898 = vpop.f32.mrf.mxu0
      %v4899 = vadd.f32 %v4862, %v4898
      %4900 = vdwg.mxu0
      %v4901 = vand.u32 %v1388, 4294901760
      %4902 = vmatpush.xpose.msra.mxu0 %v4901
      %v4903 = vand.u32 %v1375, 4294901760
      %4904 = vmatpush.xpose.msra.mxu0 %v4903
      %v4905 = vand.u32 %v1362, 4294901760
      %4906 = vmatpush.xpose.msra.mxu0 %v4905
      %v4907 = vand.u32 %v1349, 4294901760
      %4908 = vmatpush.xpose.msra.mxu0 %v4907
      %v4909 = vand.u32 %v1336, 4294901760
      %4910 = vmatpush.xpose.msra.mxu0 %v4909
      %v4911 = vand.u32 %v1323, 4294901760
      %4912 = vmatpush.xpose.msra.mxu0 %v4911
      %v4913 = vand.u32 %v1310, 4294901760
      %4914 = vmatpush.xpose.msra.mxu0 %v4913
      %v4915 = vand.u32 %v1297, 4294901760
      %4916 = vmatpush.xpose.msra.mxu0 %v4915
      %v4917 = vand.u32 %v1284, 4294901760
      %4918 = vmatpush.xpose.msra.mxu0 %v4917
      %v4919 = vand.u32 %v1271, 4294901760
      %4920 = vmatpush.xpose.msra.mxu0 %v4919
      %v4921 = vand.u32 %v1258, 4294901760
      %4922 = vmatpush.xpose.msra.mxu0 %v4921
      %v4923 = vand.u32 %v1245, 4294901760
      %4924 = vmatpush.xpose.msra.mxu0 %v4923
      %v4925 = vand.u32 %v1232, 4294901760
      %4926 = vmatpush.xpose.msra.mxu0 %v4925
      %v4927 = vand.u32 %v1219, 4294901760
      %4928 = vmatpush.xpose.msra.mxu0 %v4927
      %v4929 = vand.u32 %v1206, 4294901760
      %4930 = vmatpush.xpose.msra.mxu0 %v4929
      %v4931 = vand.u32 %v1193, 4294901760
      %4932 = vmatpush.xpose.msra.mxu0 %v4931
      %v4933 = vand.u32 %v1425, 4294901760
      %v4934 = vsub.f32 %v1425, %v4933
      %v4935 = vand.u32 %v4934, 4294901760
      %v4936 = vsub.f32 %v4934, %v4935
      %v4937 = vand.u32 %v4936, 4294901760
      %4938 = vmatmul.f32.gmra.mxu0 %v4937
      %v4939 = vpop.f32.mrf.mxu0
      %v4940 = vadd.f32 %v4899, %v4939
      %4941 = vdwg.mxu0
      %v4942 = vand.u32 %v1388, 4294901760
      %v4943 = vsub.f32 %v1388, %v4942
      %v4944 = vand.u32 %v4943, 4294901760
      %v4945 = vsub.f32 %v4943, %v4944
      %v4946 = vand.u32 %v4945, 4294901760
      %4947 = vmatpush.xpose.msra.mxu0 %v4946
      %v4948 = vand.u32 %v1375, 4294901760
      %v4949 = vsub.f32 %v1375, %v4948
      %v4950 = vand.u32 %v4949, 4294901760
      %v4951 = vsub.f32 %v4949, %v4950
      %v4952 = vand.u32 %v4951, 4294901760
      %4953 = vmatpush.xpose.msra.mxu0 %v4952
      %v4954 = vand.u32 %v1362, 4294901760
      %v4955 = vsub.f32 %v1362, %v4954
      %v4956 = vand.u32 %v4955, 4294901760
      %v4957 = vsub.f32 %v4955, %v4956
      %v4958 = vand.u32 %v4957, 4294901760
      %4959 = vmatpush.xpose.msra.mxu0 %v4958
      %v4960 = vand.u32 %v1349, 4294901760
      %v4961 = vsub.f32 %v1349, %v4960
      %v4962 = vand.u32 %v4961, 4294901760
      %v4963 = vsub.f32 %v4961, %v4962
      %v4964 = vand.u32 %v4963, 4294901760
      %4965 = vmatpush.xpose.msra.mxu0 %v4964
      %v4966 = vand.u32 %v1336, 4294901760
      %v4967 = vsub.f32 %v1336, %v4966
      %v4968 = vand.u32 %v4967, 4294901760
      %v4969 = vsub.f32 %v4967, %v4968
      %v4970 = vand.u32 %v4969, 4294901760
      %4971 = vmatpush.xpose.msra.mxu0 %v4970
      %v4972 = vand.u32 %v1323, 4294901760
      %v4973 = vsub.f32 %v1323, %v4972
      %v4974 = vand.u32 %v4973, 4294901760
      %v4975 = vsub.f32 %v4973, %v4974
      %v4976 = vand.u32 %v4975, 4294901760
      %4977 = vmatpush.xpose.msra.mxu0 %v4976
      %v4978 = vand.u32 %v1310, 4294901760
      %v4979 = vsub.f32 %v1310, %v4978
      %v4980 = vand.u32 %v4979, 4294901760
      %v4981 = vsub.f32 %v4979, %v4980
      %v4982 = vand.u32 %v4981, 4294901760
      %4983 = vmatpush.xpose.msra.mxu0 %v4982
      %v4984 = vand.u32 %v1297, 4294901760
      %v4985 = vsub.f32 %v1297, %v4984
      %v4986 = vand.u32 %v4985, 4294901760
      %v4987 = vsub.f32 %v4985, %v4986
      %v4988 = vand.u32 %v4987, 4294901760
      %4989 = vmatpush.xpose.msra.mxu0 %v4988
      %v4990 = vand.u32 %v1284, 4294901760
      %v4991 = vsub.f32 %v1284, %v4990
      %v4992 = vand.u32 %v4991, 4294901760
      %v4993 = vsub.f32 %v4991, %v4992
      %v4994 = vand.u32 %v4993, 4294901760
      %4995 = vmatpush.xpose.msra.mxu0 %v4994
      %v4996 = vand.u32 %v1271, 4294901760
      %v4997 = vsub.f32 %v1271, %v4996
      %v4998 = vand.u32 %v4997, 4294901760
      %v4999 = vsub.f32 %v4997, %v4998
      %v5000 = vand.u32 %v4999, 4294901760
      %5001 = vmatpush.xpose.msra.mxu0 %v5000
      %v5002 = vand.u32 %v1258, 4294901760
      %v5003 = vsub.f32 %v1258, %v5002
      %v5004 = vand.u32 %v5003, 4294901760
      %v5005 = vsub.f32 %v5003, %v5004
      %v5006 = vand.u32 %v5005, 4294901760
      %5007 = vmatpush.xpose.msra.mxu0 %v5006
      %v5008 = vand.u32 %v1245, 4294901760
      %v5009 = vsub.f32 %v1245, %v5008
      %v5010 = vand.u32 %v5009, 4294901760
      %v5011 = vsub.f32 %v5009, %v5010
      %v5012 = vand.u32 %v5011, 4294901760
      %5013 = vmatpush.xpose.msra.mxu0 %v5012
      %v5014 = vand.u32 %v1232, 4294901760
      %v5015 = vsub.f32 %v1232, %v5014
      %v5016 = vand.u32 %v5015, 4294901760
      %v5017 = vsub.f32 %v5015, %v5016
      %v5018 = vand.u32 %v5017, 4294901760
      %5019 = vmatpush.xpose.msra.mxu0 %v5018
      %v5020 = vand.u32 %v1219, 4294901760
      %v5021 = vsub.f32 %v1219, %v5020
      %v5022 = vand.u32 %v5021, 4294901760
      %v5023 = vsub.f32 %v5021, %v5022
      %v5024 = vand.u32 %v5023, 4294901760
      %5025 = vmatpush.xpose.msra.mxu0 %v5024
      %v5026 = vand.u32 %v1206, 4294901760
      %v5027 = vsub.f32 %v1206, %v5026
      %v5028 = vand.u32 %v5027, 4294901760
      %v5029 = vsub.f32 %v5027, %v5028
      %v5030 = vand.u32 %v5029, 4294901760
      %5031 = vmatpush.xpose.msra.mxu0 %v5030
      %v5032 = vand.u32 %v1193, 4294901760
      %v5033 = vsub.f32 %v1193, %v5032
      %v5034 = vand.u32 %v5033, 4294901760
      %v5035 = vsub.f32 %v5033, %v5034
      %v5036 = vand.u32 %v5035, 4294901760
      %5037 = vmatpush.xpose.msra.mxu0 %v5036
      %v5038 = vand.u32 %v1425, 4294901760
      %5039 = vmatmul.f32.gmra.mxu0 %v5038
      %v5040 = vpop.f32.mrf.mxu0
      %v5041 = vadd.f32 %v4940, %v5040
      %5042 = vdwg.mxu0
      %v5043 = vand.u32 %v1388, 4294901760
      %v5044 = vsub.f32 %v1388, %v5043
      %5045 = vmatpush.xpose.msra.mxu0 %v5044
      %v5046 = vand.u32 %v1375, 4294901760
      %v5047 = vsub.f32 %v1375, %v5046
      %5048 = vmatpush.xpose.msra.mxu0 %v5047
      %v5049 = vand.u32 %v1362, 4294901760
      %v5050 = vsub.f32 %v1362, %v5049
      %5051 = vmatpush.xpose.msra.mxu0 %v5050
      %v5052 = vand.u32 %v1349, 4294901760
      %v5053 = vsub.f32 %v1349, %v5052
      %5054 = vmatpush.xpose.msra.mxu0 %v5053
      %v5055 = vand.u32 %v1336, 4294901760
      %v5056 = vsub.f32 %v1336, %v5055
      %5057 = vmatpush.xpose.msra.mxu0 %v5056
      %v5058 = vand.u32 %v1323, 4294901760
      %v5059 = vsub.f32 %v1323, %v5058
      %5060 = vmatpush.xpose.msra.mxu0 %v5059
      %v5061 = vand.u32 %v1310, 4294901760
      %v5062 = vsub.f32 %v1310, %v5061
      %5063 = vmatpush.xpose.msra.mxu0 %v5062
      %v5064 = vand.u32 %v1297, 4294901760
      %v5065 = vsub.f32 %v1297, %v5064
      %5066 = vmatpush.xpose.msra.mxu0 %v5065
      %v5067 = vand.u32 %v1284, 4294901760
      %v5068 = vsub.f32 %v1284, %v5067
      %5069 = vmatpush.xpose.msra.mxu0 %v5068
      %v5070 = vand.u32 %v1271, 4294901760
      %v5071 = vsub.f32 %v1271, %v5070
      %5072 = vmatpush.xpose.msra.mxu0 %v5071
      %v5073 = vand.u32 %v1258, 4294901760
      %v5074 = vsub.f32 %v1258, %v5073
      %5075 = vmatpush.xpose.msra.mxu0 %v5074
      %v5076 = vand.u32 %v1245, 4294901760
      %v5077 = vsub.f32 %v1245, %v5076
      %5078 = vmatpush.xpose.msra.mxu0 %v5077
      %v5079 = vand.u32 %v1232, 4294901760
      %v5080 = vsub.f32 %v1232, %v5079
      %5081 = vmatpush.xpose.msra.mxu0 %v5080
      %v5082 = vand.u32 %v1219, 4294901760
      %v5083 = vsub.f32 %v1219, %v5082
      %5084 = vmatpush.xpose.msra.mxu0 %v5083
      %v5085 = vand.u32 %v1206, 4294901760
      %v5086 = vsub.f32 %v1206, %v5085
      %5087 = vmatpush.xpose.msra.mxu0 %v5086
      %v5088 = vand.u32 %v1193, 4294901760
      %v5089 = vsub.f32 %v1193, %v5088
      %5090 = vmatpush.xpose.msra.mxu0 %v5089
      %v5091 = vand.u32 %v1425, 4294901760
      %v5092 = vsub.f32 %v1425, %v5091
      %5093 = vmatmul.f32.gmra.mxu0 %v5092
      %v5094 = vpop.f32.mrf.mxu0
      %v5095 = vadd.f32 %v5041, %v5094
      %5096 = vdwg.mxu0
      %v5097 = vand.u32 %v1388, 4294901760
      %5098 = vmatpush.xpose.msra.mxu0 %v5097
      %v5099 = vand.u32 %v1375, 4294901760
      %5100 = vmatpush.xpose.msra.mxu0 %v5099
      %v5101 = vand.u32 %v1362, 4294901760
      %5102 = vmatpush.xpose.msra.mxu0 %v5101
      %v5103 = vand.u32 %v1349, 4294901760
      %5104 = vmatpush.xpose.msra.mxu0 %v5103
      %v5105 = vand.u32 %v1336, 4294901760
      %5106 = vmatpush.xpose.msra.mxu0 %v5105
      %v5107 = vand.u32 %v1323, 4294901760
      %5108 = vmatpush.xpose.msra.mxu0 %v5107
      %v5109 = vand.u32 %v1310, 4294901760
      %5110 = vmatpush.xpose.msra.mxu0 %v5109
      %v5111 = vand.u32 %v1297, 4294901760
      %5112 = vmatpush.xpose.msra.mxu0 %v5111
      %v5113 = vand.u32 %v1284, 4294901760
      %5114 = vmatpush.xpose.msra.mxu0 %v5113
      %v5115 = vand.u32 %v1271, 4294901760
      %5116 = vmatpush.xpose.msra.mxu0 %v5115
      %v5117 = vand.u32 %v1258, 4294901760
      %5118 = vmatpush.xpose.msra.mxu0 %v5117
      %v5119 = vand.u32 %v1245, 4294901760
      %5120 = vmatpush.xpose.msra.mxu0 %v5119
      %v5121 = vand.u32 %v1232, 4294901760
      %5122 = vmatpush.xpose.msra.mxu0 %v5121
      %v5123 = vand.u32 %v1219, 4294901760
      %5124 = vmatpush.xpose.msra.mxu0 %v5123
      %v5125 = vand.u32 %v1206, 4294901760
      %5126 = vmatpush.xpose.msra.mxu0 %v5125
      %v5127 = vand.u32 %v1193, 4294901760
      %5128 = vmatpush.xpose.msra.mxu0 %v5127
      %v5129 = vand.u32 %v1425, 4294901760
      %v5130 = vsub.f32 %v1425, %v5129
      %v5131 = vand.u32 %v5130, 4294901760
      %5132 = vmatmul.f32.gmra.mxu0 %v5131
      %v5133 = vpop.f32.mrf.mxu0
      %v5134 = vadd.f32 %v5095, %v5133
      %5135 = vdwg.mxu0
      %v5136 = vand.u32 %v1388, 4294901760
      %v5137 = vsub.f32 %v1388, %v5136
      %v5138 = vand.u32 %v5137, 4294901760
      %5139 = vmatpush.xpose.msra.mxu0 %v5138
      %v5140 = vand.u32 %v1375, 4294901760
      %v5141 = vsub.f32 %v1375, %v5140
      %v5142 = vand.u32 %v5141, 4294901760
      %5143 = vmatpush.xpose.msra.mxu0 %v5142
      %v5144 = vand.u32 %v1362, 4294901760
      %v5145 = vsub.f32 %v1362, %v5144
      %v5146 = vand.u32 %v5145, 4294901760
      %5147 = vmatpush.xpose.msra.mxu0 %v5146
      %v5148 = vand.u32 %v1349, 4294901760
      %v5149 = vsub.f32 %v1349, %v5148
      %v5150 = vand.u32 %v5149, 4294901760
      %5151 = vmatpush.xpose.msra.mxu0 %v5150
      %v5152 = vand.u32 %v1336, 4294901760
      %v5153 = vsub.f32 %v1336, %v5152
      %v5154 = vand.u32 %v5153, 4294901760
      %5155 = vmatpush.xpose.msra.mxu0 %v5154
      %v5156 = vand.u32 %v1323, 4294901760
      %v5157 = vsub.f32 %v1323, %v5156
      %v5158 = vand.u32 %v5157, 4294901760
      %5159 = vmatpush.xpose.msra.mxu0 %v5158
      %v5160 = vand.u32 %v1310, 4294901760
      %v5161 = vsub.f32 %v1310, %v5160
      %v5162 = vand.u32 %v5161, 4294901760
      %5163 = vmatpush.xpose.msra.mxu0 %v5162
      %v5164 = vand.u32 %v1297, 4294901760
      %v5165 = vsub.f32 %v1297, %v5164
      %v5166 = vand.u32 %v5165, 4294901760
      %5167 = vmatpush.xpose.msra.mxu0 %v5166
      %v5168 = vand.u32 %v1284, 4294901760
      %v5169 = vsub.f32 %v1284, %v5168
      %v5170 = vand.u32 %v5169, 4294901760
      %5171 = vmatpush.xpose.msra.mxu0 %v5170
      %v5172 = vand.u32 %v1271, 4294901760
      %v5173 = vsub.f32 %v1271, %v5172
      %v5174 = vand.u32 %v5173, 4294901760
      %5175 = vmatpush.xpose.msra.mxu0 %v5174
      %v5176 = vand.u32 %v1258, 4294901760
      %v5177 = vsub.f32 %v1258, %v5176
      %v5178 = vand.u32 %v5177, 4294901760
      %5179 = vmatpush.xpose.msra.mxu0 %v5178
      %v5180 = vand.u32 %v1245, 4294901760
      %v5181 = vsub.f32 %v1245, %v5180
      %v5182 = vand.u32 %v5181, 4294901760
      %5183 = vmatpush.xpose.msra.mxu0 %v5182
      %v5184 = vand.u32 %v1232, 4294901760
      %v5185 = vsub.f32 %v1232, %v5184
      %v5186 = vand.u32 %v5185, 4294901760
      %5187 = vmatpush.xpose.msra.mxu0 %v5186
      %v5188 = vand.u32 %v1219, 4294901760
      %v5189 = vsub.f32 %v1219, %v5188
      %v5190 = vand.u32 %v5189, 4294901760
      %5191 = vmatpush.xpose.msra.mxu0 %v5190
      %v5192 = vand.u32 %v1206, 4294901760
      %v5193 = vsub.f32 %v1206, %v5192
      %v5194 = vand.u32 %v5193, 4294901760
      %5195 = vmatpush.xpose.msra.mxu0 %v5194
      %v5196 = vand.u32 %v1193, 4294901760
      %v5197 = vsub.f32 %v1193, %v5196
      %v5198 = vand.u32 %v5197, 4294901760
      %5199 = vmatpush.xpose.msra.mxu0 %v5198
      %v5200 = vand.u32 %v1425, 4294901760
      %5201 = vmatmul.f32.gmra.mxu0 %v5200
      %v5202 = vpop.f32.mrf.mxu0
      %v5203 = vadd.f32 %v5134, %v5202
      %5204 = vdwg.mxu0
      %v5205 = vand.u32 %v1388, 4294901760
      %5206 = vmatpush.xpose.msra.mxu0 %v5205
      %v5207 = vand.u32 %v1375, 4294901760
      %5208 = vmatpush.xpose.msra.mxu0 %v5207
      %v5209 = vand.u32 %v1362, 4294901760
      %5210 = vmatpush.xpose.msra.mxu0 %v5209
      %v5211 = vand.u32 %v1349, 4294901760
      %5212 = vmatpush.xpose.msra.mxu0 %v5211
      %v5213 = vand.u32 %v1336, 4294901760
      %5214 = vmatpush.xpose.msra.mxu0 %v5213
      %v5215 = vand.u32 %v1323, 4294901760
      %5216 = vmatpush.xpose.msra.mxu0 %v5215
      %v5217 = vand.u32 %v1310, 4294901760
      %5218 = vmatpush.xpose.msra.mxu0 %v5217
      %v5219 = vand.u32 %v1297, 4294901760
      %5220 = vmatpush.xpose.msra.mxu0 %v5219
      %v5221 = vand.u32 %v1284, 4294901760
      %5222 = vmatpush.xpose.msra.mxu0 %v5221
      %v5223 = vand.u32 %v1271, 4294901760
      %5224 = vmatpush.xpose.msra.mxu0 %v5223
      %v5225 = vand.u32 %v1258, 4294901760
      %5226 = vmatpush.xpose.msra.mxu0 %v5225
      %v5227 = vand.u32 %v1245, 4294901760
      %5228 = vmatpush.xpose.msra.mxu0 %v5227
      %v5229 = vand.u32 %v1232, 4294901760
      %5230 = vmatpush.xpose.msra.mxu0 %v5229
      %v5231 = vand.u32 %v1219, 4294901760
      %5232 = vmatpush.xpose.msra.mxu0 %v5231
      %v5233 = vand.u32 %v1206, 4294901760
      %5234 = vmatpush.xpose.msra.mxu0 %v5233
      %v5235 = vand.u32 %v1193, 4294901760
      %5236 = vmatpush.xpose.msra.mxu0 %v5235
      %v5237 = vand.u32 %v1425, 4294901760
      %5238 = vmatmul.f32.gmra.mxu0 %v5237
      %v5239 = vpop.f32.mrf.mxu0
      %v5240 = vadd.f32 %v5203, %v5239
      %5241 = vdwg.mxu0
      %v5242 = vand.u32 %v1389, 4294901760
      %5243 = vmatpush.xpose.msra.mxu0 %v5242
      %v5244 = vand.u32 %v1376, 4294901760
      %5245 = vmatpush.xpose.msra.mxu0 %v5244
      %v5246 = vand.u32 %v1363, 4294901760
      %5247 = vmatpush.xpose.msra.mxu0 %v5246
      %v5248 = vand.u32 %v1350, 4294901760
      %5249 = vmatpush.xpose.msra.mxu0 %v5248
      %v5250 = vand.u32 %v1337, 4294901760
      %5251 = vmatpush.xpose.msra.mxu0 %v5250
      %v5252 = vand.u32 %v1324, 4294901760
      %5253 = vmatpush.xpose.msra.mxu0 %v5252
      %v5254 = vand.u32 %v1311, 4294901760
      %5255 = vmatpush.xpose.msra.mxu0 %v5254
      %v5256 = vand.u32 %v1298, 4294901760
      %5257 = vmatpush.xpose.msra.mxu0 %v5256
      %v5258 = vand.u32 %v1285, 4294901760
      %5259 = vmatpush.xpose.msra.mxu0 %v5258
      %v5260 = vand.u32 %v1272, 4294901760
      %5261 = vmatpush.xpose.msra.mxu0 %v5260
      %v5262 = vand.u32 %v1259, 4294901760
      %5263 = vmatpush.xpose.msra.mxu0 %v5262
      %v5264 = vand.u32 %v1246, 4294901760
      %5265 = vmatpush.xpose.msra.mxu0 %v5264
      %v5266 = vand.u32 %v1233, 4294901760
      %5267 = vmatpush.xpose.msra.mxu0 %v5266
      %v5268 = vand.u32 %v1220, 4294901760
      %5269 = vmatpush.xpose.msra.mxu0 %v5268
      %v5270 = vand.u32 %v1207, 4294901760
      %5271 = vmatpush.xpose.msra.mxu0 %v5270
      %v5272 = vand.u32 %v1194, 4294901760
      %5273 = vmatpush.xpose.msra.mxu0 %v5272
      %v5274 = vand.u32 %v1426, 4294901760
      %v5275 = vsub.f32 %v1426, %v5274
      %v5276 = vand.u32 %v5275, 4294901760
      %v5277 = vsub.f32 %v5275, %v5276
      %v5278 = vand.u32 %v5277, 4294901760
      %5279 = vmatmul.f32.gmra.mxu0 %v5278
      %v5280 = vpop.f32.mrf.mxu0
      %v5281 = vadd.f32 %v5240, %v5280
      %5282 = vdwg.mxu0
      %v5283 = vand.u32 %v1389, 4294901760
      %v5284 = vsub.f32 %v1389, %v5283
      %v5285 = vand.u32 %v5284, 4294901760
      %v5286 = vsub.f32 %v5284, %v5285
      %v5287 = vand.u32 %v5286, 4294901760
      %5288 = vmatpush.xpose.msra.mxu0 %v5287
      %v5289 = vand.u32 %v1376, 4294901760
      %v5290 = vsub.f32 %v1376, %v5289
      %v5291 = vand.u32 %v5290, 4294901760
      %v5292 = vsub.f32 %v5290, %v5291
      %v5293 = vand.u32 %v5292, 4294901760
      %5294 = vmatpush.xpose.msra.mxu0 %v5293
      %v5295 = vand.u32 %v1363, 4294901760
      %v5296 = vsub.f32 %v1363, %v5295
      %v5297 = vand.u32 %v5296, 4294901760
      %v5298 = vsub.f32 %v5296, %v5297
      %v5299 = vand.u32 %v5298, 4294901760
      %5300 = vmatpush.xpose.msra.mxu0 %v5299
      %v5301 = vand.u32 %v1350, 4294901760
      %v5302 = vsub.f32 %v1350, %v5301
      %v5303 = vand.u32 %v5302, 4294901760
      %v5304 = vsub.f32 %v5302, %v5303
      %v5305 = vand.u32 %v5304, 4294901760
      %5306 = vmatpush.xpose.msra.mxu0 %v5305
      %v5307 = vand.u32 %v1337, 4294901760
      %v5308 = vsub.f32 %v1337, %v5307
      %v5309 = vand.u32 %v5308, 4294901760
      %v5310 = vsub.f32 %v5308, %v5309
      %v5311 = vand.u32 %v5310, 4294901760
      %5312 = vmatpush.xpose.msra.mxu0 %v5311
      %v5313 = vand.u32 %v1324, 4294901760
      %v5314 = vsub.f32 %v1324, %v5313
      %v5315 = vand.u32 %v5314, 4294901760
      %v5316 = vsub.f32 %v5314, %v5315
      %v5317 = vand.u32 %v5316, 4294901760
      %5318 = vmatpush.xpose.msra.mxu0 %v5317
      %v5319 = vand.u32 %v1311, 4294901760
      %v5320 = vsub.f32 %v1311, %v5319
      %v5321 = vand.u32 %v5320, 4294901760
      %v5322 = vsub.f32 %v5320, %v5321
      %v5323 = vand.u32 %v5322, 4294901760
      %5324 = vmatpush.xpose.msra.mxu0 %v5323
      %v5325 = vand.u32 %v1298, 4294901760
      %v5326 = vsub.f32 %v1298, %v5325
      %v5327 = vand.u32 %v5326, 4294901760
      %v5328 = vsub.f32 %v5326, %v5327
      %v5329 = vand.u32 %v5328, 4294901760
      %5330 = vmatpush.xpose.msra.mxu0 %v5329
      %v5331 = vand.u32 %v1285, 4294901760
      %v5332 = vsub.f32 %v1285, %v5331
      %v5333 = vand.u32 %v5332, 4294901760
      %v5334 = vsub.f32 %v5332, %v5333
      %v5335 = vand.u32 %v5334, 4294901760
      %5336 = vmatpush.xpose.msra.mxu0 %v5335
      %v5337 = vand.u32 %v1272, 4294901760
      %v5338 = vsub.f32 %v1272, %v5337
      %v5339 = vand.u32 %v5338, 4294901760
      %v5340 = vsub.f32 %v5338, %v5339
      %v5341 = vand.u32 %v5340, 4294901760
      %5342 = vmatpush.xpose.msra.mxu0 %v5341
      %v5343 = vand.u32 %v1259, 4294901760
      %v5344 = vsub.f32 %v1259, %v5343
      %v5345 = vand.u32 %v5344, 4294901760
      %v5346 = vsub.f32 %v5344, %v5345
      %v5347 = vand.u32 %v5346, 4294901760
      %5348 = vmatpush.xpose.msra.mxu0 %v5347
      %v5349 = vand.u32 %v1246, 4294901760
      %v5350 = vsub.f32 %v1246, %v5349
      %v5351 = vand.u32 %v5350, 4294901760
      %v5352 = vsub.f32 %v5350, %v5351
      %v5353 = vand.u32 %v5352, 4294901760
      %5354 = vmatpush.xpose.msra.mxu0 %v5353
      %v5355 = vand.u32 %v1233, 4294901760
      %v5356 = vsub.f32 %v1233, %v5355
      %v5357 = vand.u32 %v5356, 4294901760
      %v5358 = vsub.f32 %v5356, %v5357
      %v5359 = vand.u32 %v5358, 4294901760
      %5360 = vmatpush.xpose.msra.mxu0 %v5359
      %v5361 = vand.u32 %v1220, 4294901760
      %v5362 = vsub.f32 %v1220, %v5361
      %v5363 = vand.u32 %v5362, 4294901760
      %v5364 = vsub.f32 %v5362, %v5363
      %v5365 = vand.u32 %v5364, 4294901760
      %5366 = vmatpush.xpose.msra.mxu0 %v5365
      %v5367 = vand.u32 %v1207, 4294901760
      %v5368 = vsub.f32 %v1207, %v5367
      %v5369 = vand.u32 %v5368, 4294901760
      %v5370 = vsub.f32 %v5368, %v5369
      %v5371 = vand.u32 %v5370, 4294901760
      %5372 = vmatpush.xpose.msra.mxu0 %v5371
      %v5373 = vand.u32 %v1194, 4294901760
      %v5374 = vsub.f32 %v1194, %v5373
      %v5375 = vand.u32 %v5374, 4294901760
      %v5376 = vsub.f32 %v5374, %v5375
      %v5377 = vand.u32 %v5376, 4294901760
      %5378 = vmatpush.xpose.msra.mxu0 %v5377
      %v5379 = vand.u32 %v1426, 4294901760
      %5380 = vmatmul.f32.gmra.mxu0 %v5379
      %v5381 = vpop.f32.mrf.mxu0
      %v5382 = vadd.f32 %v5281, %v5381
      %5383 = vdwg.mxu0
      %v5384 = vand.u32 %v1389, 4294901760
      %v5385 = vsub.f32 %v1389, %v5384
      %5386 = vmatpush.xpose.msra.mxu0 %v5385
      %v5387 = vand.u32 %v1376, 4294901760
      %v5388 = vsub.f32 %v1376, %v5387
      %5389 = vmatpush.xpose.msra.mxu0 %v5388
      %v5390 = vand.u32 %v1363, 4294901760
      %v5391 = vsub.f32 %v1363, %v5390
      %5392 = vmatpush.xpose.msra.mxu0 %v5391
      %v5393 = vand.u32 %v1350, 4294901760
      %v5394 = vsub.f32 %v1350, %v5393
      %5395 = vmatpush.xpose.msra.mxu0 %v5394
      %v5396 = vand.u32 %v1337, 4294901760
      %v5397 = vsub.f32 %v1337, %v5396
      %5398 = vmatpush.xpose.msra.mxu0 %v5397
      %v5399 = vand.u32 %v1324, 4294901760
      %v5400 = vsub.f32 %v1324, %v5399
      %5401 = vmatpush.xpose.msra.mxu0 %v5400
      %v5402 = vand.u32 %v1311, 4294901760
      %v5403 = vsub.f32 %v1311, %v5402
      %5404 = vmatpush.xpose.msra.mxu0 %v5403
      %v5405 = vand.u32 %v1298, 4294901760
      %v5406 = vsub.f32 %v1298, %v5405
      %5407 = vmatpush.xpose.msra.mxu0 %v5406
      %v5408 = vand.u32 %v1285, 4294901760
      %v5409 = vsub.f32 %v1285, %v5408
      %5410 = vmatpush.xpose.msra.mxu0 %v5409
      %v5411 = vand.u32 %v1272, 4294901760
      %v5412 = vsub.f32 %v1272, %v5411
      %5413 = vmatpush.xpose.msra.mxu0 %v5412
      %v5414 = vand.u32 %v1259, 4294901760
      %v5415 = vsub.f32 %v1259, %v5414
      %5416 = vmatpush.xpose.msra.mxu0 %v5415
      %v5417 = vand.u32 %v1246, 4294901760
      %v5418 = vsub.f32 %v1246, %v5417
      %5419 = vmatpush.xpose.msra.mxu0 %v5418
      %v5420 = vand.u32 %v1233, 4294901760
      %v5421 = vsub.f32 %v1233, %v5420
      %5422 = vmatpush.xpose.msra.mxu0 %v5421
      %v5423 = vand.u32 %v1220, 4294901760
      %v5424 = vsub.f32 %v1220, %v5423
      %5425 = vmatpush.xpose.msra.mxu0 %v5424
      %v5426 = vand.u32 %v1207, 4294901760
      %v5427 = vsub.f32 %v1207, %v5426
      %5428 = vmatpush.xpose.msra.mxu0 %v5427
      %v5429 = vand.u32 %v1194, 4294901760
      %v5430 = vsub.f32 %v1194, %v5429
      %5431 = vmatpush.xpose.msra.mxu0 %v5430
      %v5432 = vand.u32 %v1426, 4294901760
      %v5433 = vsub.f32 %v1426, %v5432
      %5434 = vmatmul.f32.gmra.mxu0 %v5433
      %v5435 = vpop.f32.mrf.mxu0
      %v5436 = vadd.f32 %v5382, %v5435
      %5437 = vdwg.mxu0
      %v5438 = vand.u32 %v1389, 4294901760
      %5439 = vmatpush.xpose.msra.mxu0 %v5438
      %v5440 = vand.u32 %v1376, 4294901760
      %5441 = vmatpush.xpose.msra.mxu0 %v5440
      %v5442 = vand.u32 %v1363, 4294901760
      %5443 = vmatpush.xpose.msra.mxu0 %v5442
      %v5444 = vand.u32 %v1350, 4294901760
      %5445 = vmatpush.xpose.msra.mxu0 %v5444
      %v5446 = vand.u32 %v1337, 4294901760
      %5447 = vmatpush.xpose.msra.mxu0 %v5446
      %v5448 = vand.u32 %v1324, 4294901760
      %5449 = vmatpush.xpose.msra.mxu0 %v5448
      %v5450 = vand.u32 %v1311, 4294901760
      %5451 = vmatpush.xpose.msra.mxu0 %v5450
      %v5452 = vand.u32 %v1298, 4294901760
      %5453 = vmatpush.xpose.msra.mxu0 %v5452
      %v5454 = vand.u32 %v1285, 4294901760
      %5455 = vmatpush.xpose.msra.mxu0 %v5454
      %v5456 = vand.u32 %v1272, 4294901760
      %5457 = vmatpush.xpose.msra.mxu0 %v5456
      %v5458 = vand.u32 %v1259, 4294901760
      %5459 = vmatpush.xpose.msra.mxu0 %v5458
      %v5460 = vand.u32 %v1246, 4294901760
      %5461 = vmatpush.xpose.msra.mxu0 %v5460
      %v5462 = vand.u32 %v1233, 4294901760
      %5463 = vmatpush.xpose.msra.mxu0 %v5462
      %v5464 = vand.u32 %v1220, 4294901760
      %5465 = vmatpush.xpose.msra.mxu0 %v5464
      %v5466 = vand.u32 %v1207, 4294901760
      %5467 = vmatpush.xpose.msra.mxu0 %v5466
      %v5468 = vand.u32 %v1194, 4294901760
      %5469 = vmatpush.xpose.msra.mxu0 %v5468
      %v5470 = vand.u32 %v1426, 4294901760
      %v5471 = vsub.f32 %v1426, %v5470
      %v5472 = vand.u32 %v5471, 4294901760
      %5473 = vmatmul.f32.gmra.mxu0 %v5472
      %v5474 = vpop.f32.mrf.mxu0
      %v5475 = vadd.f32 %v5436, %v5474
      %5476 = vdwg.mxu0
      %v5477 = vand.u32 %v1389, 4294901760
      %v5478 = vsub.f32 %v1389, %v5477
      %v5479 = vand.u32 %v5478, 4294901760
      %5480 = vmatpush.xpose.msra.mxu0 %v5479
      %v5481 = vand.u32 %v1376, 4294901760
      %v5482 = vsub.f32 %v1376, %v5481
      %v5483 = vand.u32 %v5482, 4294901760
      %5484 = vmatpush.xpose.msra.mxu0 %v5483
      %v5485 = vand.u32 %v1363, 4294901760
      %v5486 = vsub.f32 %v1363, %v5485
      %v5487 = vand.u32 %v5486, 4294901760
      %5488 = vmatpush.xpose.msra.mxu0 %v5487
      %v5489 = vand.u32 %v1350, 4294901760
      %v5490 = vsub.f32 %v1350, %v5489
      %v5491 = vand.u32 %v5490, 4294901760
      %5492 = vmatpush.xpose.msra.mxu0 %v5491
      %v5493 = vand.u32 %v1337, 4294901760
      %v5494 = vsub.f32 %v1337, %v5493
      %v5495 = vand.u32 %v5494, 4294901760
      %5496 = vmatpush.xpose.msra.mxu0 %v5495
      %v5497 = vand.u32 %v1324, 4294901760
      %v5498 = vsub.f32 %v1324, %v5497
      %v5499 = vand.u32 %v5498, 4294901760
      %5500 = vmatpush.xpose.msra.mxu0 %v5499
      %v5501 = vand.u32 %v1311, 4294901760
      %v5502 = vsub.f32 %v1311, %v5501
      %v5503 = vand.u32 %v5502, 4294901760
      %5504 = vmatpush.xpose.msra.mxu0 %v5503
      %v5505 = vand.u32 %v1298, 4294901760
      %v5506 = vsub.f32 %v1298, %v5505
      %v5507 = vand.u32 %v5506, 4294901760
      %5508 = vmatpush.xpose.msra.mxu0 %v5507
      %v5509 = vand.u32 %v1285, 4294901760
      %v5510 = vsub.f32 %v1285, %v5509
      %v5511 = vand.u32 %v5510, 4294901760
      %5512 = vmatpush.xpose.msra.mxu0 %v5511
      %v5513 = vand.u32 %v1272, 4294901760
      %v5514 = vsub.f32 %v1272, %v5513
      %v5515 = vand.u32 %v5514, 4294901760
      %5516 = vmatpush.xpose.msra.mxu0 %v5515
      %v5517 = vand.u32 %v1259, 4294901760
      %v5518 = vsub.f32 %v1259, %v5517
      %v5519 = vand.u32 %v5518, 4294901760
      %5520 = vmatpush.xpose.msra.mxu0 %v5519
      %v5521 = vand.u32 %v1246, 4294901760
      %v5522 = vsub.f32 %v1246, %v5521
      %v5523 = vand.u32 %v5522, 4294901760
      %5524 = vmatpush.xpose.msra.mxu0 %v5523
      %v5525 = vand.u32 %v1233, 4294901760
      %v5526 = vsub.f32 %v1233, %v5525
      %v5527 = vand.u32 %v5526, 4294901760
      %5528 = vmatpush.xpose.msra.mxu0 %v5527
      %v5529 = vand.u32 %v1220, 4294901760
      %v5530 = vsub.f32 %v1220, %v5529
      %v5531 = vand.u32 %v5530, 4294901760
      %5532 = vmatpush.xpose.msra.mxu0 %v5531
      %v5533 = vand.u32 %v1207, 4294901760
      %v5534 = vsub.f32 %v1207, %v5533
      %v5535 = vand.u32 %v5534, 4294901760
      %5536 = vmatpush.xpose.msra.mxu0 %v5535
      %v5537 = vand.u32 %v1194, 4294901760
      %v5538 = vsub.f32 %v1194, %v5537
      %v5539 = vand.u32 %v5538, 4294901760
      %5540 = vmatpush.xpose.msra.mxu0 %v5539
      %v5541 = vand.u32 %v1426, 4294901760
      %5542 = vmatmul.f32.gmra.mxu0 %v5541
      %v5543 = vpop.f32.mrf.mxu0
      %v5544 = vadd.f32 %v5475, %v5543
      %5545 = vdwg.mxu0
      %v5546 = vand.u32 %v1389, 4294901760
      %5547 = vmatpush.xpose.msra.mxu0 %v5546
      %v5548 = vand.u32 %v1376, 4294901760
      %5549 = vmatpush.xpose.msra.mxu0 %v5548
      %v5550 = vand.u32 %v1363, 4294901760
      %5551 = vmatpush.xpose.msra.mxu0 %v5550
      %v5552 = vand.u32 %v1350, 4294901760
      %5553 = vmatpush.xpose.msra.mxu0 %v5552
      %v5554 = vand.u32 %v1337, 4294901760
      %5555 = vmatpush.xpose.msra.mxu0 %v5554
      %v5556 = vand.u32 %v1324, 4294901760
      %5557 = vmatpush.xpose.msra.mxu0 %v5556
      %v5558 = vand.u32 %v1311, 4294901760
      %5559 = vmatpush.xpose.msra.mxu0 %v5558
      %v5560 = vand.u32 %v1298, 4294901760
      %5561 = vmatpush.xpose.msra.mxu0 %v5560
      %v5562 = vand.u32 %v1285, 4294901760
      %5563 = vmatpush.xpose.msra.mxu0 %v5562
      %v5564 = vand.u32 %v1272, 4294901760
      %5565 = vmatpush.xpose.msra.mxu0 %v5564
      %v5566 = vand.u32 %v1259, 4294901760
      %5567 = vmatpush.xpose.msra.mxu0 %v5566
      %v5568 = vand.u32 %v1246, 4294901760
      %5569 = vmatpush.xpose.msra.mxu0 %v5568
      %v5570 = vand.u32 %v1233, 4294901760
      %5571 = vmatpush.xpose.msra.mxu0 %v5570
      %v5572 = vand.u32 %v1220, 4294901760
      %5573 = vmatpush.xpose.msra.mxu0 %v5572
      %v5574 = vand.u32 %v1207, 4294901760
      %5575 = vmatpush.xpose.msra.mxu0 %v5574
      %v5576 = vand.u32 %v1194, 4294901760
      %5577 = vmatpush.xpose.msra.mxu0 %v5576
      %v5578 = vand.u32 %v1426, 4294901760
      %5579 = vmatmul.f32.gmra.mxu0 %v5578
      %v5580 = vpop.f32.mrf.mxu0
      %v5581 = vadd.f32 %v5544, %v5580
      %5582 = vdwg.mxu0
      %v5583 = vand.u32 %v1489, 4294901760
      %5584 = vmatpush.xpose.msra.mxu0 %v5583
      %v5585 = vand.u32 %v1486, 4294901760
      %5586 = vmatpush.xpose.msra.mxu0 %v5585
      %v5587 = vand.u32 %v1483, 4294901760
      %5588 = vmatpush.xpose.msra.mxu0 %v5587
      %v5589 = vand.u32 %v1480, 4294901760
      %5590 = vmatpush.xpose.msra.mxu0 %v5589
      %v5591 = vand.u32 %v1477, 4294901760
      %5592 = vmatpush.xpose.msra.mxu0 %v5591
      %v5593 = vand.u32 %v1474, 4294901760
      %5594 = vmatpush.xpose.msra.mxu0 %v5593
      %v5595 = vand.u32 %v1471, 4294901760
      %5596 = vmatpush.xpose.msra.mxu0 %v5595
      %v5597 = vand.u32 %v1468, 4294901760
      %5598 = vmatpush.xpose.msra.mxu0 %v5597
      %v5599 = vand.u32 %v1465, 4294901760
      %5600 = vmatpush.xpose.msra.mxu0 %v5599
      %v5601 = vand.u32 %v1462, 4294901760
      %5602 = vmatpush.xpose.msra.mxu0 %v5601
      %v5603 = vand.u32 %v1459, 4294901760
      %5604 = vmatpush.xpose.msra.mxu0 %v5603
      %v5605 = vand.u32 %v1456, 4294901760
      %5606 = vmatpush.xpose.msra.mxu0 %v5605
      %v5607 = vand.u32 %v1453, 4294901760
      %5608 = vmatpush.xpose.msra.mxu0 %v5607
      %v5609 = vand.u32 %v1450, 4294901760
      %5610 = vmatpush.xpose.msra.mxu0 %v5609
      %v5611 = vand.u32 %v1447, 4294901760
      %5612 = vmatpush.xpose.msra.mxu0 %v5611
      %v5613 = vand.u32 %v1444, 4294901760
      %5614 = vmatpush.xpose.msra.mxu0 %v5613
      %v5615 = vand.u32 %v1441, 4294901760
      %v5616 = vsub.f32 %v1441, %v5615
      %v5617 = vand.u32 %v5616, 4294901760
      %v5618 = vsub.f32 %v5616, %v5617
      %v5619 = vand.u32 %v5618, 4294901760
      %5620 = vmatmul.f32.gmra.mxu0 %v5619
      %v5621 = vpop.f32.mrf.mxu0
      %v5622 = vadd.f32 %v5581, %v5621
      %5623 = vdwg.mxu0
      %v5624 = vand.u32 %v1489, 4294901760
      %v5625 = vsub.f32 %v1489, %v5624
      %v5626 = vand.u32 %v5625, 4294901760
      %v5627 = vsub.f32 %v5625, %v5626
      %v5628 = vand.u32 %v5627, 4294901760
      %5629 = vmatpush.xpose.msra.mxu0 %v5628
      %v5630 = vand.u32 %v1486, 4294901760
      %v5631 = vsub.f32 %v1486, %v5630
      %v5632 = vand.u32 %v5631, 4294901760
      %v5633 = vsub.f32 %v5631, %v5632
      %v5634 = vand.u32 %v5633, 4294901760
      %5635 = vmatpush.xpose.msra.mxu0 %v5634
      %v5636 = vand.u32 %v1483, 4294901760
      %v5637 = vsub.f32 %v1483, %v5636
      %v5638 = vand.u32 %v5637, 4294901760
      %v5639 = vsub.f32 %v5637, %v5638
      %v5640 = vand.u32 %v5639, 4294901760
      %5641 = vmatpush.xpose.msra.mxu0 %v5640
      %v5642 = vand.u32 %v1480, 4294901760
      %v5643 = vsub.f32 %v1480, %v5642
      %v5644 = vand.u32 %v5643, 4294901760
      %v5645 = vsub.f32 %v5643, %v5644
      %v5646 = vand.u32 %v5645, 4294901760
      %5647 = vmatpush.xpose.msra.mxu0 %v5646
      %v5648 = vand.u32 %v1477, 4294901760
      %v5649 = vsub.f32 %v1477, %v5648
      %v5650 = vand.u32 %v5649, 4294901760
      %v5651 = vsub.f32 %v5649, %v5650
      %v5652 = vand.u32 %v5651, 4294901760
      %5653 = vmatpush.xpose.msra.mxu0 %v5652
      %v5654 = vand.u32 %v1474, 4294901760
      %v5655 = vsub.f32 %v1474, %v5654
      %v5656 = vand.u32 %v5655, 4294901760
      %v5657 = vsub.f32 %v5655, %v5656
      %v5658 = vand.u32 %v5657, 4294901760
      %5659 = vmatpush.xpose.msra.mxu0 %v5658
      %v5660 = vand.u32 %v1471, 4294901760
      %v5661 = vsub.f32 %v1471, %v5660
      %v5662 = vand.u32 %v5661, 4294901760
      %v5663 = vsub.f32 %v5661, %v5662
      %v5664 = vand.u32 %v5663, 4294901760
      %5665 = vmatpush.xpose.msra.mxu0 %v5664
      %v5666 = vand.u32 %v1468, 4294901760
      %v5667 = vsub.f32 %v1468, %v5666
      %v5668 = vand.u32 %v5667, 4294901760
      %v5669 = vsub.f32 %v5667, %v5668
      %v5670 = vand.u32 %v5669, 4294901760
      %5671 = vmatpush.xpose.msra.mxu0 %v5670
      %v5672 = vand.u32 %v1465, 4294901760
      %v5673 = vsub.f32 %v1465, %v5672
      %v5674 = vand.u32 %v5673, 4294901760
      %v5675 = vsub.f32 %v5673, %v5674
      %v5676 = vand.u32 %v5675, 4294901760
      %5677 = vmatpush.xpose.msra.mxu0 %v5676
      %v5678 = vand.u32 %v1462, 4294901760
      %v5679 = vsub.f32 %v1462, %v5678
      %v5680 = vand.u32 %v5679, 4294901760
      %v5681 = vsub.f32 %v5679, %v5680
      %v5682 = vand.u32 %v5681, 4294901760
      %5683 = vmatpush.xpose.msra.mxu0 %v5682
      %v5684 = vand.u32 %v1459, 4294901760
      %v5685 = vsub.f32 %v1459, %v5684
      %v5686 = vand.u32 %v5685, 4294901760
      %v5687 = vsub.f32 %v5685, %v5686
      %v5688 = vand.u32 %v5687, 4294901760
      %5689 = vmatpush.xpose.msra.mxu0 %v5688
      %v5690 = vand.u32 %v1456, 4294901760
      %v5691 = vsub.f32 %v1456, %v5690
      %v5692 = vand.u32 %v5691, 4294901760
      %v5693 = vsub.f32 %v5691, %v5692
      %v5694 = vand.u32 %v5693, 4294901760
      %5695 = vmatpush.xpose.msra.mxu0 %v5694
      %v5696 = vand.u32 %v1453, 4294901760
      %v5697 = vsub.f32 %v1453, %v5696
      %v5698 = vand.u32 %v5697, 4294901760
      %v5699 = vsub.f32 %v5697, %v5698
      %v5700 = vand.u32 %v5699, 4294901760
      %5701 = vmatpush.xpose.msra.mxu0 %v5700
      %v5702 = vand.u32 %v1450, 4294901760
      %v5703 = vsub.f32 %v1450, %v5702
      %v5704 = vand.u32 %v5703, 4294901760
      %v5705 = vsub.f32 %v5703, %v5704
      %v5706 = vand.u32 %v5705, 4294901760
      %5707 = vmatpush.xpose.msra.mxu0 %v5706
      %v5708 = vand.u32 %v1447, 4294901760
      %v5709 = vsub.f32 %v1447, %v5708
      %v5710 = vand.u32 %v5709, 4294901760
      %v5711 = vsub.f32 %v5709, %v5710
      %v5712 = vand.u32 %v5711, 4294901760
      %5713 = vmatpush.xpose.msra.mxu0 %v5712
      %v5714 = vand.u32 %v1444, 4294901760
      %v5715 = vsub.f32 %v1444, %v5714
      %v5716 = vand.u32 %v5715, 4294901760
      %v5717 = vsub.f32 %v5715, %v5716
      %v5718 = vand.u32 %v5717, 4294901760
      %5719 = vmatpush.xpose.msra.mxu0 %v5718
      %v5720 = vand.u32 %v1441, 4294901760
      %5721 = vmatmul.f32.gmra.mxu0 %v5720
      %v5722 = vpop.f32.mrf.mxu0
      %v5723 = vadd.f32 %v5622, %v5722
      %5724 = vdwg.mxu0
      %v5725 = vand.u32 %v1489, 4294901760
      %v5726 = vsub.f32 %v1489, %v5725
      %5727 = vmatpush.xpose.msra.mxu0 %v5726
      %v5728 = vand.u32 %v1486, 4294901760
      %v5729 = vsub.f32 %v1486, %v5728
      %5730 = vmatpush.xpose.msra.mxu0 %v5729
      %v5731 = vand.u32 %v1483, 4294901760
      %v5732 = vsub.f32 %v1483, %v5731
      %5733 = vmatpush.xpose.msra.mxu0 %v5732
      %v5734 = vand.u32 %v1480, 4294901760
      %v5735 = vsub.f32 %v1480, %v5734
      %5736 = vmatpush.xpose.msra.mxu0 %v5735
      %v5737 = vand.u32 %v1477, 4294901760
      %v5738 = vsub.f32 %v1477, %v5737
      %5739 = vmatpush.xpose.msra.mxu0 %v5738
      %v5740 = vand.u32 %v1474, 4294901760
      %v5741 = vsub.f32 %v1474, %v5740
      %5742 = vmatpush.xpose.msra.mxu0 %v5741
      %v5743 = vand.u32 %v1471, 4294901760
      %v5744 = vsub.f32 %v1471, %v5743
      %5745 = vmatpush.xpose.msra.mxu0 %v5744
      %v5746 = vand.u32 %v1468, 4294901760
      %v5747 = vsub.f32 %v1468, %v5746
      %5748 = vmatpush.xpose.msra.mxu0 %v5747
      %v5749 = vand.u32 %v1465, 4294901760
      %v5750 = vsub.f32 %v1465, %v5749
      %5751 = vmatpush.xpose.msra.mxu0 %v5750
      %v5752 = vand.u32 %v1462, 4294901760
      %v5753 = vsub.f32 %v1462, %v5752
      %5754 = vmatpush.xpose.msra.mxu0 %v5753
      %v5755 = vand.u32 %v1459, 4294901760
      %v5756 = vsub.f32 %v1459, %v5755
      %5757 = vmatpush.xpose.msra.mxu0 %v5756
      %v5758 = vand.u32 %v1456, 4294901760
      %v5759 = vsub.f32 %v1456, %v5758
      %5760 = vmatpush.xpose.msra.mxu0 %v5759
      %v5761 = vand.u32 %v1453, 4294901760
      %v5762 = vsub.f32 %v1453, %v5761
      %5763 = vmatpush.xpose.msra.mxu0 %v5762
      %v5764 = vand.u32 %v1450, 4294901760
      %v5765 = vsub.f32 %v1450, %v5764
      %5766 = vmatpush.xpose.msra.mxu0 %v5765
      %v5767 = vand.u32 %v1447, 4294901760
      %v5768 = vsub.f32 %v1447, %v5767
      %5769 = vmatpush.xpose.msra.mxu0 %v5768
      %v5770 = vand.u32 %v1444, 4294901760
      %v5771 = vsub.f32 %v1444, %v5770
      %5772 = vmatpush.xpose.msra.mxu0 %v5771
      %v5773 = vand.u32 %v1441, 4294901760
      %v5774 = vsub.f32 %v1441, %v5773
      %5775 = vmatmul.f32.gmra.mxu0 %v5774
      %v5776 = vpop.f32.mrf.mxu0
      %v5777 = vadd.f32 %v5723, %v5776
      %5778 = vdwg.mxu0
      %v5779 = vand.u32 %v1489, 4294901760
      %5780 = vmatpush.xpose.msra.mxu0 %v5779
      %v5781 = vand.u32 %v1486, 4294901760
      %5782 = vmatpush.xpose.msra.mxu0 %v5781
      %v5783 = vand.u32 %v1483, 4294901760
      %5784 = vmatpush.xpose.msra.mxu0 %v5783
      %v5785 = vand.u32 %v1480, 4294901760
      %5786 = vmatpush.xpose.msra.mxu0 %v5785
      %v5787 = vand.u32 %v1477, 4294901760
      %5788 = vmatpush.xpose.msra.mxu0 %v5787
      %v5789 = vand.u32 %v1474, 4294901760
      %5790 = vmatpush.xpose.msra.mxu0 %v5789
      %v5791 = vand.u32 %v1471, 4294901760
      %5792 = vmatpush.xpose.msra.mxu0 %v5791
      %v5793 = vand.u32 %v1468, 4294901760
      %5794 = vmatpush.xpose.msra.mxu0 %v5793
      %v5795 = vand.u32 %v1465, 4294901760
      %5796 = vmatpush.xpose.msra.mxu0 %v5795
      %v5797 = vand.u32 %v1462, 4294901760
      %5798 = vmatpush.xpose.msra.mxu0 %v5797
      %v5799 = vand.u32 %v1459, 4294901760
      %5800 = vmatpush.xpose.msra.mxu0 %v5799
      %v5801 = vand.u32 %v1456, 4294901760
      %5802 = vmatpush.xpose.msra.mxu0 %v5801
      %v5803 = vand.u32 %v1453, 4294901760
      %5804 = vmatpush.xpose.msra.mxu0 %v5803
      %v5805 = vand.u32 %v1450, 4294901760
      %5806 = vmatpush.xpose.msra.mxu0 %v5805
      %v5807 = vand.u32 %v1447, 4294901760
      %5808 = vmatpush.xpose.msra.mxu0 %v5807
      %v5809 = vand.u32 %v1444, 4294901760
      %5810 = vmatpush.xpose.msra.mxu0 %v5809
      %v5811 = vand.u32 %v1441, 4294901760
      %v5812 = vsub.f32 %v1441, %v5811
      %v5813 = vand.u32 %v5812, 4294901760
      %5814 = vmatmul.f32.gmra.mxu0 %v5813
      %v5815 = vpop.f32.mrf.mxu0
      %v5816 = vadd.f32 %v5777, %v5815
      %5817 = vdwg.mxu0
      %v5818 = vand.u32 %v1489, 4294901760
      %v5819 = vsub.f32 %v1489, %v5818
      %v5820 = vand.u32 %v5819, 4294901760
      %5821 = vmatpush.xpose.msra.mxu0 %v5820
      %v5822 = vand.u32 %v1486, 4294901760
      %v5823 = vsub.f32 %v1486, %v5822
      %v5824 = vand.u32 %v5823, 4294901760
      %5825 = vmatpush.xpose.msra.mxu0 %v5824
      %v5826 = vand.u32 %v1483, 4294901760
      %v5827 = vsub.f32 %v1483, %v5826
      %v5828 = vand.u32 %v5827, 4294901760
      %5829 = vmatpush.xpose.msra.mxu0 %v5828
      %v5830 = vand.u32 %v1480, 4294901760
      %v5831 = vsub.f32 %v1480, %v5830
      %v5832 = vand.u32 %v5831, 4294901760
      %5833 = vmatpush.xpose.msra.mxu0 %v5832
      %v5834 = vand.u32 %v1477, 4294901760
      %v5835 = vsub.f32 %v1477, %v5834
      %v5836 = vand.u32 %v5835, 4294901760
      %5837 = vmatpush.xpose.msra.mxu0 %v5836
      %v5838 = vand.u32 %v1474, 4294901760
      %v5839 = vsub.f32 %v1474, %v5838
      %v5840 = vand.u32 %v5839, 4294901760
      %5841 = vmatpush.xpose.msra.mxu0 %v5840
      %v5842 = vand.u32 %v1471, 4294901760
      %v5843 = vsub.f32 %v1471, %v5842
      %v5844 = vand.u32 %v5843, 4294901760
      %5845 = vmatpush.xpose.msra.mxu0 %v5844
      %v5846 = vand.u32 %v1468, 4294901760
      %v5847 = vsub.f32 %v1468, %v5846
      %v5848 = vand.u32 %v5847, 4294901760
      %5849 = vmatpush.xpose.msra.mxu0 %v5848
      %v5850 = vand.u32 %v1465, 4294901760
      %v5851 = vsub.f32 %v1465, %v5850
      %v5852 = vand.u32 %v5851, 4294901760
      %5853 = vmatpush.xpose.msra.mxu0 %v5852
      %v5854 = vand.u32 %v1462, 4294901760
      %v5855 = vsub.f32 %v1462, %v5854
      %v5856 = vand.u32 %v5855, 4294901760
      %5857 = vmatpush.xpose.msra.mxu0 %v5856
      %v5858 = vand.u32 %v1459, 4294901760
      %v5859 = vsub.f32 %v1459, %v5858
      %v5860 = vand.u32 %v5859, 4294901760
      %5861 = vmatpush.xpose.msra.mxu0 %v5860
      %v5862 = vand.u32 %v1456, 4294901760
      %v5863 = vsub.f32 %v1456, %v5862
      %v5864 = vand.u32 %v5863, 4294901760
      %5865 = vmatpush.xpose.msra.mxu0 %v5864
      %v5866 = vand.u32 %v1453, 4294901760
      %v5867 = vsub.f32 %v1453, %v5866
      %v5868 = vand.u32 %v5867, 4294901760
      %5869 = vmatpush.xpose.msra.mxu0 %v5868
      %v5870 = vand.u32 %v1450, 4294901760
      %v5871 = vsub.f32 %v1450, %v5870
      %v5872 = vand.u32 %v5871, 4294901760
      %5873 = vmatpush.xpose.msra.mxu0 %v5872
      %v5874 = vand.u32 %v1447, 4294901760
      %v5875 = vsub.f32 %v1447, %v5874
      %v5876 = vand.u32 %v5875, 4294901760
      %5877 = vmatpush.xpose.msra.mxu0 %v5876
      %v5878 = vand.u32 %v1444, 4294901760
      %v5879 = vsub.f32 %v1444, %v5878
      %v5880 = vand.u32 %v5879, 4294901760
      %5881 = vmatpush.xpose.msra.mxu0 %v5880
      %v5882 = vand.u32 %v1441, 4294901760
      %5883 = vmatmul.f32.gmra.mxu0 %v5882
      %v5884 = vpop.f32.mrf.mxu0
      %v5885 = vadd.f32 %v5816, %v5884
      %5886 = vdwg.mxu0
      %v5887 = vand.u32 %v1489, 4294901760
      %5888 = vmatpush.xpose.msra.mxu0 %v5887
      %v5889 = vand.u32 %v1486, 4294901760
      %5890 = vmatpush.xpose.msra.mxu0 %v5889
      %v5891 = vand.u32 %v1483, 4294901760
      %5892 = vmatpush.xpose.msra.mxu0 %v5891
      %v5893 = vand.u32 %v1480, 4294901760
      %5894 = vmatpush.xpose.msra.mxu0 %v5893
      %v5895 = vand.u32 %v1477, 4294901760
      %5896 = vmatpush.xpose.msra.mxu0 %v5895
      %v5897 = vand.u32 %v1474, 4294901760
      %5898 = vmatpush.xpose.msra.mxu0 %v5897
      %v5899 = vand.u32 %v1471, 4294901760
      %5900 = vmatpush.xpose.msra.mxu0 %v5899
      %v5901 = vand.u32 %v1468, 4294901760
      %5902 = vmatpush.xpose.msra.mxu0 %v5901
      %v5903 = vand.u32 %v1465, 4294901760
      %5904 = vmatpush.xpose.msra.mxu0 %v5903
      %v5905 = vand.u32 %v1462, 4294901760
      %5906 = vmatpush.xpose.msra.mxu0 %v5905
      %v5907 = vand.u32 %v1459, 4294901760
      %5908 = vmatpush.xpose.msra.mxu0 %v5907
      %v5909 = vand.u32 %v1456, 4294901760
      %5910 = vmatpush.xpose.msra.mxu0 %v5909
      %v5911 = vand.u32 %v1453, 4294901760
      %5912 = vmatpush.xpose.msra.mxu0 %v5911
      %v5913 = vand.u32 %v1450, 4294901760
      %5914 = vmatpush.xpose.msra.mxu0 %v5913
      %v5915 = vand.u32 %v1447, 4294901760
      %5916 = vmatpush.xpose.msra.mxu0 %v5915
      %v5917 = vand.u32 %v1444, 4294901760
      %5918 = vmatpush.xpose.msra.mxu0 %v5917
      %v5919 = vand.u32 %v1441, 4294901760
      %5920 = vmatmul.f32.gmra.mxu0 %v5919
      %v5921 = vpop.f32.mrf.mxu0
      %v5922 = vadd.f32 %v5885, %v5921
      %5923 = vdwg.mxu0
      %v5924 = vld [vmem:[%s3] sm:$0xff]
      %v5925 = vld [vmem:[%s3 + $0x8] sm:$0xff]
      %v5926 = vld [vmem:[%s3 + $0x10] sm:$0xff]
      %v5927 = vld [vmem:[%s3 + $0x18] sm:$0xff]
      %v5928 = vld [vmem:[%s3 + $0x20] sm:$0xff]
      %v5929 = vld [vmem:[%s3 + $0x28] sm:$0xff]
      %v5930 = vld [vmem:[%s3 + $0x30] sm:$0xff]
      %v5931 = vld [vmem:[%s3 + $0x38] sm:$0xff]
      %v5932 = vld [vmem:[%s3 + $0x40] sm:$0xff]
      %v5933 = vld [vmem:[%s3 + $0x48] sm:$0xff]
      %v5934 = vld [vmem:[%s3 + $0x50] sm:$0xff]
      %v5935 = vld [vmem:[%s3 + $0x58] sm:$0xff]
      %v5936 = vld [vmem:[%s3 + $0x60] sm:$0xff]
      %v5937 = vld [vmem:[%s3 + $0x68] sm:$0xff]
      %v5938 = vld [vmem:[%s3 + $0x70] sm:$0xff]
      %v5939 = vld [vmem:[%s3 + $0x78] sm:$0xff]
      %v5940 = vand.u32 %v5939, 4294901760
      %5941 = vmatpush.msra.mxu0 %v5940
      %v5942 = vand.u32 %v5938, 4294901760
      %5943 = vmatpush.msra.mxu0 %v5942
      %v5944 = vand.u32 %v5937, 4294901760
      %5945 = vmatpush.msra.mxu0 %v5944
      %v5946 = vand.u32 %v5936, 4294901760
      %5947 = vmatpush.msra.mxu0 %v5946
      %v5948 = vand.u32 %v5935, 4294901760
      %5949 = vmatpush.msra.mxu0 %v5948
      %v5950 = vand.u32 %v5934, 4294901760
      %5951 = vmatpush.msra.mxu0 %v5950
      %v5952 = vand.u32 %v5933, 4294901760
      %5953 = vmatpush.msra.mxu0 %v5952
      %v5954 = vand.u32 %v5932, 4294901760
      %5955 = vmatpush.msra.mxu0 %v5954
      %v5956 = vand.u32 %v5931, 4294901760
      %5957 = vmatpush.msra.mxu0 %v5956
      %v5958 = vand.u32 %v5930, 4294901760
      %5959 = vmatpush.msra.mxu0 %v5958
      %v5960 = vand.u32 %v5929, 4294901760
      %5961 = vmatpush.msra.mxu0 %v5960
      %v5962 = vand.u32 %v5928, 4294901760
      %5963 = vmatpush.msra.mxu0 %v5962
      %v5964 = vand.u32 %v5927, 4294901760
      %5965 = vmatpush.msra.mxu0 %v5964
      %v5966 = vand.u32 %v5926, 4294901760
      %5967 = vmatpush.msra.mxu0 %v5966
      %v5968 = vand.u32 %v5925, 4294901760
      %5969 = vmatpush.msra.mxu0 %v5968
      %v5970 = vand.u32 %v5924, 4294901760
      %5971 = vmatpush.msra.mxu0 %v5970
      %v5972 = vand.u32 %v5922, 4294901760
      %v5973 = vsub.f32 %v5922, %v5972
      %v5974 = vand.u32 %v5973, 4294901760
      %v5975 = vsub.f32 %v5973, %v5974
      %v5976 = vand.u32 %v5975, 4294901760
      %5977 = vmatmul.f32.gmra.mxu0 %v5976
      %v5978 = vpop.f32.mrf.mxu0
      %v5979 = vadd.f32 0.0, %v5978
      %5980 = vdwg.mxu0
      %v5981 = vand.u32 %v5939, 4294901760
      %v5982 = vsub.f32 %v5939, %v5981
      %v5983 = vand.u32 %v5982, 4294901760
      %v5984 = vsub.f32 %v5982, %v5983
      %v5985 = vand.u32 %v5984, 4294901760
      %5986 = vmatpush.msra.mxu0 %v5985
      %v5987 = vand.u32 %v5938, 4294901760
      %v5988 = vsub.f32 %v5938, %v5987
      %v5989 = vand.u32 %v5988, 4294901760
      %v5990 = vsub.f32 %v5988, %v5989
      %v5991 = vand.u32 %v5990, 4294901760
      %5992 = vmatpush.msra.mxu0 %v5991
      %v5993 = vand.u32 %v5937, 4294901760
      %v5994 = vsub.f32 %v5937, %v5993
      %v5995 = vand.u32 %v5994, 4294901760
      %v5996 = vsub.f32 %v5994, %v5995
      %v5997 = vand.u32 %v5996, 4294901760
      %5998 = vmatpush.msra.mxu0 %v5997
      %v5999 = vand.u32 %v5936, 4294901760
      %v6000 = vsub.f32 %v5936, %v5999
      %v6001 = vand.u32 %v6000, 4294901760
      %v6002 = vsub.f32 %v6000, %v6001
      %v6003 = vand.u32 %v6002, 4294901760
      %6004 = vmatpush.msra.mxu0 %v6003
      %v6005 = vand.u32 %v5935, 4294901760
      %v6006 = vsub.f32 %v5935, %v6005
      %v6007 = vand.u32 %v6006, 4294901760
      %v6008 = vsub.f32 %v6006, %v6007
      %v6009 = vand.u32 %v6008, 4294901760
      %6010 = vmatpush.msra.mxu0 %v6009
      %v6011 = vand.u32 %v5934, 4294901760
      %v6012 = vsub.f32 %v5934, %v6011
      %v6013 = vand.u32 %v6012, 4294901760
      %v6014 = vsub.f32 %v6012, %v6013
      %v6015 = vand.u32 %v6014, 4294901760
      %6016 = vmatpush.msra.mxu0 %v6015
      %v6017 = vand.u32 %v5933, 4294901760
      %v6018 = vsub.f32 %v5933, %v6017
      %v6019 = vand.u32 %v6018, 4294901760
      %v6020 = vsub.f32 %v6018, %v6019
      %v6021 = vand.u32 %v6020, 4294901760
      %6022 = vmatpush.msra.mxu0 %v6021
      %v6023 = vand.u32 %v5932, 4294901760
      %v6024 = vsub.f32 %v5932, %v6023
      %v6025 = vand.u32 %v6024, 4294901760
      %v6026 = vsub.f32 %v6024, %v6025
      %v6027 = vand.u32 %v6026, 4294901760
      %6028 = vmatpush.msra.mxu0 %v6027
      %v6029 = vand.u32 %v5931, 4294901760
      %v6030 = vsub.f32 %v5931, %v6029
      %v6031 = vand.u32 %v6030, 4294901760
      %v6032 = vsub.f32 %v6030, %v6031
      %v6033 = vand.u32 %v6032, 4294901760
      %6034 = vmatpush.msra.mxu0 %v6033
      %v6035 = vand.u32 %v5930, 4294901760
      %v6036 = vsub.f32 %v5930, %v6035
      %v6037 = vand.u32 %v6036, 4294901760
      %v6038 = vsub.f32 %v6036, %v6037
      %v6039 = vand.u32 %v6038, 4294901760
      %6040 = vmatpush.msra.mxu0 %v6039
      %v6041 = vand.u32 %v5929, 4294901760
      %v6042 = vsub.f32 %v5929, %v6041
      %v6043 = vand.u32 %v6042, 4294901760
      %v6044 = vsub.f32 %v6042, %v6043
      %v6045 = vand.u32 %v6044, 4294901760
      %6046 = vmatpush.msra.mxu0 %v6045
      %v6047 = vand.u32 %v5928, 4294901760
      %v6048 = vsub.f32 %v5928, %v6047
      %v6049 = vand.u32 %v6048, 4294901760
      %v6050 = vsub.f32 %v6048, %v6049
      %v6051 = vand.u32 %v6050, 4294901760
      %6052 = vmatpush.msra.mxu0 %v6051
      %v6053 = vand.u32 %v5927, 4294901760
      %v6054 = vsub.f32 %v5927, %v6053
      %v6055 = vand.u32 %v6054, 4294901760
      %v6056 = vsub.f32 %v6054, %v6055
      %v6057 = vand.u32 %v6056, 4294901760
      %6058 = vmatpush.msra.mxu0 %v6057
      %v6059 = vand.u32 %v5926, 4294901760
      %v6060 = vsub.f32 %v5926, %v6059
      %v6061 = vand.u32 %v6060, 4294901760
      %v6062 = vsub.f32 %v6060, %v6061
      %v6063 = vand.u32 %v6062, 4294901760
      %6064 = vmatpush.msra.mxu0 %v6063
      %v6065 = vand.u32 %v5925, 4294901760
      %v6066 = vsub.f32 %v5925, %v6065
      %v6067 = vand.u32 %v6066, 4294901760
      %v6068 = vsub.f32 %v6066, %v6067
      %v6069 = vand.u32 %v6068, 4294901760
      %6070 = vmatpush.msra.mxu0 %v6069
      %v6071 = vand.u32 %v5924, 4294901760
      %v6072 = vsub.f32 %v5924, %v6071
      %v6073 = vand.u32 %v6072, 4294901760
      %v6074 = vsub.f32 %v6072, %v6073
      %v6075 = vand.u32 %v6074, 4294901760
      %6076 = vmatpush.msra.mxu0 %v6075
      %v6077 = vand.u32 %v5922, 4294901760
      %6078 = vmatmul.f32.gmra.mxu0 %v6077
      %v6079 = vpop.f32.mrf.mxu0
      %v6080 = vadd.f32 %v5979, %v6079
      %6081 = vdwg.mxu0
      %v6082 = vand.u32 %v5939, 4294901760
      %v6083 = vsub.f32 %v5939, %v6082
      %6084 = vmatpush.msra.mxu0 %v6083
      %v6085 = vand.u32 %v5938, 4294901760
      %v6086 = vsub.f32 %v5938, %v6085
      %6087 = vmatpush.msra.mxu0 %v6086
      %v6088 = vand.u32 %v5937, 4294901760
      %v6089 = vsub.f32 %v5937, %v6088
      %6090 = vmatpush.msra.mxu0 %v6089
      %v6091 = vand.u32 %v5936, 4294901760
      %v6092 = vsub.f32 %v5936, %v6091
      %6093 = vmatpush.msra.mxu0 %v6092
      %v6094 = vand.u32 %v5935, 4294901760
      %v6095 = vsub.f32 %v5935, %v6094
      %6096 = vmatpush.msra.mxu0 %v6095
      %v6097 = vand.u32 %v5934, 4294901760
      %v6098 = vsub.f32 %v5934, %v6097
      %6099 = vmatpush.msra.mxu0 %v6098
      %v6100 = vand.u32 %v5933, 4294901760
      %v6101 = vsub.f32 %v5933, %v6100
      %6102 = vmatpush.msra.mxu0 %v6101
      %v6103 = vand.u32 %v5932, 4294901760
      %v6104 = vsub.f32 %v5932, %v6103
      %6105 = vmatpush.msra.mxu0 %v6104
      %v6106 = vand.u32 %v5931, 4294901760
      %v6107 = vsub.f32 %v5931, %v6106
      %6108 = vmatpush.msra.mxu0 %v6107
      %v6109 = vand.u32 %v5930, 4294901760
      %v6110 = vsub.f32 %v5930, %v6109
      %6111 = vmatpush.msra.mxu0 %v6110
      %v6112 = vand.u32 %v5929, 4294901760
      %v6113 = vsub.f32 %v5929, %v6112
      %6114 = vmatpush.msra.mxu0 %v6113
      %v6115 = vand.u32 %v5928, 4294901760
      %v6116 = vsub.f32 %v5928, %v6115
      %6117 = vmatpush.msra.mxu0 %v6116
      %v6118 = vand.u32 %v5927, 4294901760
      %v6119 = vsub.f32 %v5927, %v6118
      %6120 = vmatpush.msra.mxu0 %v6119
      %v6121 = vand.u32 %v5926, 4294901760
      %v6122 = vsub.f32 %v5926, %v6121
      %6123 = vmatpush.msra.mxu0 %v6122
      %v6124 = vand.u32 %v5925, 4294901760
      %v6125 = vsub.f32 %v5925, %v6124
      %6126 = vmatpush.msra.mxu0 %v6125
      %v6127 = vand.u32 %v5924, 4294901760
      %v6128 = vsub.f32 %v5924, %v6127
      %6129 = vmatpush.msra.mxu0 %v6128
      %v6130 = vand.u32 %v5922, 4294901760
      %v6131 = vsub.f32 %v5922, %v6130
      %6132 = vmatmul.f32.gmra.mxu0 %v6131
      %v6133 = vpop.f32.mrf.mxu0
      %v6134 = vadd.f32 %v6080, %v6133
      %6135 = vdwg.mxu0
      %v6136 = vand.u32 %v5939, 4294901760
      %6137 = vmatpush.msra.mxu0 %v6136
      %v6138 = vand.u32 %v5938, 4294901760
      %6139 = vmatpush.msra.mxu0 %v6138
      %v6140 = vand.u32 %v5937, 4294901760
      %6141 = vmatpush.msra.mxu0 %v6140
      %v6142 = vand.u32 %v5936, 4294901760
      %6143 = vmatpush.msra.mxu0 %v6142
      %v6144 = vand.u32 %v5935, 4294901760
      %6145 = vmatpush.msra.mxu0 %v6144
      %v6146 = vand.u32 %v5934, 4294901760
      %6147 = vmatpush.msra.mxu0 %v6146
      %v6148 = vand.u32 %v5933, 4294901760
      %6149 = vmatpush.msra.mxu0 %v6148
      %v6150 = vand.u32 %v5932, 4294901760
      %6151 = vmatpush.msra.mxu0 %v6150
      %v6152 = vand.u32 %v5931, 4294901760
      %6153 = vmatpush.msra.mxu0 %v6152
      %v6154 = vand.u32 %v5930, 4294901760
      %6155 = vmatpush.msra.mxu0 %v6154
      %v6156 = vand.u32 %v5929, 4294901760
      %6157 = vmatpush.msra.mxu0 %v6156
      %v6158 = vand.u32 %v5928, 4294901760
      %6159 = vmatpush.msra.mxu0 %v6158
      %v6160 = vand.u32 %v5927, 4294901760
      %6161 = vmatpush.msra.mxu0 %v6160
      %v6162 = vand.u32 %v5926, 4294901760
      %6163 = vmatpush.msra.mxu0 %v6162
      %v6164 = vand.u32 %v5925, 4294901760
      %6165 = vmatpush.msra.mxu0 %v6164
      %v6166 = vand.u32 %v5924, 4294901760
      %6167 = vmatpush.msra.mxu0 %v6166
      %v6168 = vand.u32 %v5922, 4294901760
      %v6169 = vsub.f32 %v5922, %v6168
      %v6170 = vand.u32 %v6169, 4294901760
      %6171 = vmatmul.f32.gmra.mxu0 %v6170
      %v6172 = vpop.f32.mrf.mxu0
      %v6173 = vadd.f32 %v6134, %v6172
      %6174 = vdwg.mxu0
      %v6175 = vand.u32 %v5939, 4294901760
      %v6176 = vsub.f32 %v5939, %v6175
      %v6177 = vand.u32 %v6176, 4294901760
      %6178 = vmatpush.msra.mxu0 %v6177
      %v6179 = vand.u32 %v5938, 4294901760
      %v6180 = vsub.f32 %v5938, %v6179
      %v6181 = vand.u32 %v6180, 4294901760
      %6182 = vmatpush.msra.mxu0 %v6181
      %v6183 = vand.u32 %v5937, 4294901760
      %v6184 = vsub.f32 %v5937, %v6183
      %v6185 = vand.u32 %v6184, 4294901760
      %6186 = vmatpush.msra.mxu0 %v6185
      %v6187 = vand.u32 %v5936, 4294901760
      %v6188 = vsub.f32 %v5936, %v6187
      %v6189 = vand.u32 %v6188, 4294901760
      %6190 = vmatpush.msra.mxu0 %v6189
      %v6191 = vand.u32 %v5935, 4294901760
      %v6192 = vsub.f32 %v5935, %v6191
      %v6193 = vand.u32 %v6192, 4294901760
      %6194 = vmatpush.msra.mxu0 %v6193
      %v6195 = vand.u32 %v5934, 4294901760
      %v6196 = vsub.f32 %v5934, %v6195
      %v6197 = vand.u32 %v6196, 4294901760
      %6198 = vmatpush.msra.mxu0 %v6197
      %v6199 = vand.u32 %v5933, 4294901760
      %v6200 = vsub.f32 %v5933, %v6199
      %v6201 = vand.u32 %v6200, 4294901760
      %6202 = vmatpush.msra.mxu0 %v6201
      %v6203 = vand.u32 %v5932, 4294901760
      %v6204 = vsub.f32 %v5932, %v6203
      %v6205 = vand.u32 %v6204, 4294901760
      %6206 = vmatpush.msra.mxu0 %v6205
      %v6207 = vand.u32 %v5931, 4294901760
      %v6208 = vsub.f32 %v5931, %v6207
      %v6209 = vand.u32 %v6208, 4294901760
      %6210 = vmatpush.msra.mxu0 %v6209
      %v6211 = vand.u32 %v5930, 4294901760
      %v6212 = vsub.f32 %v5930, %v6211
      %v6213 = vand.u32 %v6212, 4294901760
      %6214 = vmatpush.msra.mxu0 %v6213
      %v6215 = vand.u32 %v5929, 4294901760
      %v6216 = vsub.f32 %v5929, %v6215
      %v6217 = vand.u32 %v6216, 4294901760
      %6218 = vmatpush.msra.mxu0 %v6217
      %v6219 = vand.u32 %v5928, 4294901760
      %v6220 = vsub.f32 %v5928, %v6219
      %v6221 = vand.u32 %v6220, 4294901760
      %6222 = vmatpush.msra.mxu0 %v6221
      %v6223 = vand.u32 %v5927, 4294901760
      %v6224 = vsub.f32 %v5927, %v6223
      %v6225 = vand.u32 %v6224, 4294901760
      %6226 = vmatpush.msra.mxu0 %v6225
      %v6227 = vand.u32 %v5926, 4294901760
      %v6228 = vsub.f32 %v5926, %v6227
      %v6229 = vand.u32 %v6228, 4294901760
      %6230 = vmatpush.msra.mxu0 %v6229
      %v6231 = vand.u32 %v5925, 4294901760
      %v6232 = vsub.f32 %v5925, %v6231
      %v6233 = vand.u32 %v6232, 4294901760
      %6234 = vmatpush.msra.mxu0 %v6233
      %v6235 = vand.u32 %v5924, 4294901760
      %v6236 = vsub.f32 %v5924, %v6235
      %v6237 = vand.u32 %v6236, 4294901760
      %6238 = vmatpush.msra.mxu0 %v6237
      %v6239 = vand.u32 %v5922, 4294901760
      %6240 = vmatmul.f32.gmra.mxu0 %v6239
      %v6241 = vpop.f32.mrf.mxu0
      %v6242 = vadd.f32 %v6173, %v6241
      %6243 = vdwg.mxu0
      %v6244 = vand.u32 %v5939, 4294901760
      %6245 = vmatpush.msra.mxu0 %v6244
      %v6246 = vand.u32 %v5938, 4294901760
      %6247 = vmatpush.msra.mxu0 %v6246
      %v6248 = vand.u32 %v5937, 4294901760
      %6249 = vmatpush.msra.mxu0 %v6248
      %v6250 = vand.u32 %v5936, 4294901760
      %6251 = vmatpush.msra.mxu0 %v6250
      %v6252 = vand.u32 %v5935, 4294901760
      %6253 = vmatpush.msra.mxu0 %v6252
      %v6254 = vand.u32 %v5934, 4294901760
      %6255 = vmatpush.msra.mxu0 %v6254
      %v6256 = vand.u32 %v5933, 4294901760
      %6257 = vmatpush.msra.mxu0 %v6256
      %v6258 = vand.u32 %v5932, 4294901760
      %6259 = vmatpush.msra.mxu0 %v6258
      %v6260 = vand.u32 %v5931, 4294901760
      %6261 = vmatpush.msra.mxu0 %v6260
      %v6262 = vand.u32 %v5930, 4294901760
      %6263 = vmatpush.msra.mxu0 %v6262
      %v6264 = vand.u32 %v5929, 4294901760
      %6265 = vmatpush.msra.mxu0 %v6264
      %v6266 = vand.u32 %v5928, 4294901760
      %6267 = vmatpush.msra.mxu0 %v6266
      %v6268 = vand.u32 %v5927, 4294901760
      %6269 = vmatpush.msra.mxu0 %v6268
      %v6270 = vand.u32 %v5926, 4294901760
      %6271 = vmatpush.msra.mxu0 %v6270
      %v6272 = vand.u32 %v5925, 4294901760
      %6273 = vmatpush.msra.mxu0 %v6272
      %v6274 = vand.u32 %v5924, 4294901760
      %6275 = vmatpush.msra.mxu0 %v6274
      %v6276 = vand.u32 %v5922, 4294901760
      %6277 = vmatmul.f32.gmra.mxu0 %v6276
      %v6278 = vpop.f32.mrf.mxu0
      %v6279 = vadd.f32 %v6242, %v6278
      %6280 = vdwg.mxu0
      %v6281 = vld [vmem:[%s4] sm:$0x1]
      %v6283 = vperm.slane %v6281, 0
      %v6285 = vadd.f32 %v6279, %v6283
      %v6286 = vmax.f32 %v6285, 0.0
      %v6287 = vsub.f32 0.0, %v6279
      %v6288 = vadd.f32 %v6287, %v6283
      %v6289 = vmax.f32 %v6288, 0.0
      %v6290 = vadd.f32 %v6286, %v6289
      %v6291 = vmul.f32 %v6290, 0.5
      %v6292 = vld [vmem:[%s5] sm:$0xff]
      %v6293 = vld [vmem:[%s5 + $0x8] sm:$0xff]
      %v6294 = vld [vmem:[%s5 + $0x10] sm:$0xff]
      %v6295 = vld [vmem:[%s5 + $0x18] sm:$0xff]
      %v6296 = vld [vmem:[%s5 + $0x20] sm:$0xff]
      %v6297 = vld [vmem:[%s5 + $0x28] sm:$0xff]
      %v6298 = vld [vmem:[%s5 + $0x30] sm:$0xff]
      %v6299 = vld [vmem:[%s5 + $0x38] sm:$0xff]
      %v6300 = vld [vmem:[%s5 + $0x40] sm:$0xff]
      %v6301 = vld [vmem:[%s5 + $0x48] sm:$0xff]
      %v6302 = vld [vmem:[%s5 + $0x50] sm:$0xff]
      %v6303 = vld [vmem:[%s5 + $0x58] sm:$0xff]
      %v6304 = vld [vmem:[%s5 + $0x60] sm:$0xff]
      %v6305 = vld [vmem:[%s5 + $0x68] sm:$0xff]
      %v6306 = vld [vmem:[%s5 + $0x70] sm:$0xff]
      %v6307 = vld [vmem:[%s5 + $0x78] sm:$0xff]
      %v6308 = vld [vmem:[%s6] sm:$0x1]
      %v6310 = vperm.slane %v6308, 0
      %v6312 = vand.u32 %v6307, 4294901760
      %6313 = vmatpush.msra.mxu0 %v6312
      %v6314 = vand.u32 %v6306, 4294901760
      %6315 = vmatpush.msra.mxu0 %v6314
      %v6316 = vand.u32 %v6305, 4294901760
      %6317 = vmatpush.msra.mxu0 %v6316
      %v6318 = vand.u32 %v6304, 4294901760
      %6319 = vmatpush.msra.mxu0 %v6318
      %v6320 = vand.u32 %v6303, 4294901760
      %6321 = vmatpush.msra.mxu0 %v6320
      %v6322 = vand.u32 %v6302, 4294901760
      %6323 = vmatpush.msra.mxu0 %v6322
      %v6324 = vand.u32 %v6301, 4294901760
      %6325 = vmatpush.msra.mxu0 %v6324
      %v6326 = vand.u32 %v6300, 4294901760
      %6327 = vmatpush.msra.mxu0 %v6326
      %v6328 = vand.u32 %v6299, 4294901760
      %6329 = vmatpush.msra.mxu0 %v6328
      %v6330 = vand.u32 %v6298, 4294901760
      %6331 = vmatpush.msra.mxu0 %v6330
      %v6332 = vand.u32 %v6297, 4294901760
      %6333 = vmatpush.msra.mxu0 %v6332
      %v6334 = vand.u32 %v6296, 4294901760
      %6335 = vmatpush.msra.mxu0 %v6334
      %v6336 = vand.u32 %v6295, 4294901760
      %6337 = vmatpush.msra.mxu0 %v6336
      %v6338 = vand.u32 %v6294, 4294901760
      %6339 = vmatpush.msra.mxu0 %v6338
      %v6340 = vand.u32 %v6293, 4294901760
      %6341 = vmatpush.msra.mxu0 %v6340
      %v6342 = vand.u32 %v6292, 4294901760
      %6343 = vmatpush.msra.mxu0 %v6342
      %v6344 = vand.u32 %v6291, 4294901760
      %v6345 = vsub.f32 %v6291, %v6344
      %v6346 = vand.u32 %v6345, 4294901760
      %v6347 = vsub.f32 %v6345, %v6346
      %v6348 = vand.u32 %v6347, 4294901760
      %6349 = vmatmul.f32.gmra.mxu0 %v6348
      %v6350 = vpop.f32.mrf.mxu0
      %v6351 = vadd.f32 %v6310, %v6350
      %6352 = vdwg.mxu0
      %v6353 = vand.u32 %v6307, 4294901760
      %v6354 = vsub.f32 %v6307, %v6353
      %v6355 = vand.u32 %v6354, 4294901760
      %v6356 = vsub.f32 %v6354, %v6355
      %v6357 = vand.u32 %v6356, 4294901760
      %6358 = vmatpush.msra.mxu0 %v6357
      %v6359 = vand.u32 %v6306, 4294901760
      %v6360 = vsub.f32 %v6306, %v6359
      %v6361 = vand.u32 %v6360, 4294901760
      %v6362 = vsub.f32 %v6360, %v6361
      %v6363 = vand.u32 %v6362, 4294901760
      %6364 = vmatpush.msra.mxu0 %v6363
      %v6365 = vand.u32 %v6305, 4294901760
      %v6366 = vsub.f32 %v6305, %v6365
      %v6367 = vand.u32 %v6366, 4294901760
      %v6368 = vsub.f32 %v6366, %v6367
      %v6369 = vand.u32 %v6368, 4294901760
      %6370 = vmatpush.msra.mxu0 %v6369
      %v6371 = vand.u32 %v6304, 4294901760
      %v6372 = vsub.f32 %v6304, %v6371
      %v6373 = vand.u32 %v6372, 4294901760
      %v6374 = vsub.f32 %v6372, %v6373
      %v6375 = vand.u32 %v6374, 4294901760
      %6376 = vmatpush.msra.mxu0 %v6375
      %v6377 = vand.u32 %v6303, 4294901760
      %v6378 = vsub.f32 %v6303, %v6377
      %v6379 = vand.u32 %v6378, 4294901760
      %v6380 = vsub.f32 %v6378, %v6379
      %v6381 = vand.u32 %v6380, 4294901760
      %6382 = vmatpush.msra.mxu0 %v6381
      %v6383 = vand.u32 %v6302, 4294901760
      %v6384 = vsub.f32 %v6302, %v6383
      %v6385 = vand.u32 %v6384, 4294901760
      %v6386 = vsub.f32 %v6384, %v6385
      %v6387 = vand.u32 %v6386, 4294901760
      %6388 = vmatpush.msra.mxu0 %v6387
      %v6389 = vand.u32 %v6301, 4294901760
      %v6390 = vsub.f32 %v6301, %v6389
      %v6391 = vand.u32 %v6390, 4294901760
      %v6392 = vsub.f32 %v6390, %v6391
      %v6393 = vand.u32 %v6392, 4294901760
      %6394 = vmatpush.msra.mxu0 %v6393
      %v6395 = vand.u32 %v6300, 4294901760
      %v6396 = vsub.f32 %v6300, %v6395
      %v6397 = vand.u32 %v6396, 4294901760
      %v6398 = vsub.f32 %v6396, %v6397
      %v6399 = vand.u32 %v6398, 4294901760
      %6400 = vmatpush.msra.mxu0 %v6399
      %v6401 = vand.u32 %v6299, 4294901760
      %v6402 = vsub.f32 %v6299, %v6401
      %v6403 = vand.u32 %v6402, 4294901760
      %v6404 = vsub.f32 %v6402, %v6403
      %v6405 = vand.u32 %v6404, 4294901760
      %6406 = vmatpush.msra.mxu0 %v6405
      %v6407 = vand.u32 %v6298, 4294901760
      %v6408 = vsub.f32 %v6298, %v6407
      %v6409 = vand.u32 %v6408, 4294901760
      %v6410 = vsub.f32 %v6408, %v6409
      %v6411 = vand.u32 %v6410, 4294901760
      %6412 = vmatpush.msra.mxu0 %v6411
      %v6413 = vand.u32 %v6297, 4294901760
      %v6414 = vsub.f32 %v6297, %v6413
      %v6415 = vand.u32 %v6414, 4294901760
      %v6416 = vsub.f32 %v6414, %v6415
      %v6417 = vand.u32 %v6416, 4294901760
      %6418 = vmatpush.msra.mxu0 %v6417
      %v6419 = vand.u32 %v6296, 4294901760
      %v6420 = vsub.f32 %v6296, %v6419
      %v6421 = vand.u32 %v6420, 4294901760
      %v6422 = vsub.f32 %v6420, %v6421
      %v6423 = vand.u32 %v6422, 4294901760
      %6424 = vmatpush.msra.mxu0 %v6423
      %v6425 = vand.u32 %v6295, 4294901760
      %v6426 = vsub.f32 %v6295, %v6425
      %v6427 = vand.u32 %v6426, 4294901760
      %v6428 = vsub.f32 %v6426, %v6427
      %v6429 = vand.u32 %v6428, 4294901760
      %6430 = vmatpush.msra.mxu0 %v6429
      %v6431 = vand.u32 %v6294, 4294901760
      %v6432 = vsub.f32 %v6294, %v6431
      %v6433 = vand.u32 %v6432, 4294901760
      %v6434 = vsub.f32 %v6432, %v6433
      %v6435 = vand.u32 %v6434, 4294901760
      %6436 = vmatpush.msra.mxu0 %v6435
      %v6437 = vand.u32 %v6293, 4294901760
      %v6438 = vsub.f32 %v6293, %v6437
      %v6439 = vand.u32 %v6438, 4294901760
      %v6440 = vsub.f32 %v6438, %v6439
      %v6441 = vand.u32 %v6440, 4294901760
      %6442 = vmatpush.msra.mxu0 %v6441
      %v6443 = vand.u32 %v6292, 4294901760
      %v6444 = vsub.f32 %v6292, %v6443
      %v6445 = vand.u32 %v6444, 4294901760
      %v6446 = vsub.f32 %v6444, %v6445
      %v6447 = vand.u32 %v6446, 4294901760
      %6448 = vmatpush.msra.mxu0 %v6447
      %v6449 = vand.u32 %v6291, 4294901760
      %6450 = vmatmul.f32.gmra.mxu0 %v6449
      %v6451 = vpop.f32.mrf.mxu0
      %v6452 = vadd.f32 %v6351, %v6451
      %6453 = vdwg.mxu0
      %v6454 = vand.u32 %v6307, 4294901760
      %v6455 = vsub.f32 %v6307, %v6454
      %6456 = vmatpush.msra.mxu0 %v6455
      %v6457 = vand.u32 %v6306, 4294901760
      %v6458 = vsub.f32 %v6306, %v6457
      %6459 = vmatpush.msra.mxu0 %v6458
      %v6460 = vand.u32 %v6305, 4294901760
      %v6461 = vsub.f32 %v6305, %v6460
      %6462 = vmatpush.msra.mxu0 %v6461
      %v6463 = vand.u32 %v6304, 4294901760
      %v6464 = vsub.f32 %v6304, %v6463
      %6465 = vmatpush.msra.mxu0 %v6464
      %v6466 = vand.u32 %v6303, 4294901760
      %v6467 = vsub.f32 %v6303, %v6466
      %6468 = vmatpush.msra.mxu0 %v6467
      %v6469 = vand.u32 %v6302, 4294901760
      %v6470 = vsub.f32 %v6302, %v6469
      %6471 = vmatpush.msra.mxu0 %v6470
      %v6472 = vand.u32 %v6301, 4294901760
      %v6473 = vsub.f32 %v6301, %v6472
      %6474 = vmatpush.msra.mxu0 %v6473
      %v6475 = vand.u32 %v6300, 4294901760
      %v6476 = vsub.f32 %v6300, %v6475
      %6477 = vmatpush.msra.mxu0 %v6476
      %v6478 = vand.u32 %v6299, 4294901760
      %v6479 = vsub.f32 %v6299, %v6478
      %6480 = vmatpush.msra.mxu0 %v6479
      %v6481 = vand.u32 %v6298, 4294901760
      %v6482 = vsub.f32 %v6298, %v6481
      %6483 = vmatpush.msra.mxu0 %v6482
      %v6484 = vand.u32 %v6297, 4294901760
      %v6485 = vsub.f32 %v6297, %v6484
      %6486 = vmatpush.msra.mxu0 %v6485
      %v6487 = vand.u32 %v6296, 4294901760
      %v6488 = vsub.f32 %v6296, %v6487
      %6489 = vmatpush.msra.mxu0 %v6488
      %v6490 = vand.u32 %v6295, 4294901760
      %v6491 = vsub.f32 %v6295, %v6490
      %6492 = vmatpush.msra.mxu0 %v6491
      %v6493 = vand.u32 %v6294, 4294901760
      %v6494 = vsub.f32 %v6294, %v6493
      %6495 = vmatpush.msra.mxu0 %v6494
      %v6496 = vand.u32 %v6293, 4294901760
      %v6497 = vsub.f32 %v6293, %v6496
      %6498 = vmatpush.msra.mxu0 %v6497
      %v6499 = vand.u32 %v6292, 4294901760
      %v6500 = vsub.f32 %v6292, %v6499
      %6501 = vmatpush.msra.mxu0 %v6500
      %v6502 = vand.u32 %v6291, 4294901760
      %v6503 = vsub.f32 %v6291, %v6502
      %6504 = vmatmul.f32.gmra.mxu0 %v6503
      %v6505 = vpop.f32.mrf.mxu0
      %v6506 = vadd.f32 %v6452, %v6505
      %6507 = vdwg.mxu0
      %v6508 = vand.u32 %v6307, 4294901760
      %6509 = vmatpush.msra.mxu0 %v6508
      %v6510 = vand.u32 %v6306, 4294901760
      %6511 = vmatpush.msra.mxu0 %v6510
      %v6512 = vand.u32 %v6305, 4294901760
      %6513 = vmatpush.msra.mxu0 %v6512
      %v6514 = vand.u32 %v6304, 4294901760
      %6515 = vmatpush.msra.mxu0 %v6514
      %v6516 = vand.u32 %v6303, 4294901760
      %6517 = vmatpush.msra.mxu0 %v6516
      %v6518 = vand.u32 %v6302, 4294901760
      %6519 = vmatpush.msra.mxu0 %v6518
      %v6520 = vand.u32 %v6301, 4294901760
      %6521 = vmatpush.msra.mxu0 %v6520
      %v6522 = vand.u32 %v6300, 4294901760
      %6523 = vmatpush.msra.mxu0 %v6522
      %v6524 = vand.u32 %v6299, 4294901760
      %6525 = vmatpush.msra.mxu0 %v6524
      %v6526 = vand.u32 %v6298, 4294901760
      %6527 = vmatpush.msra.mxu0 %v6526
      %v6528 = vand.u32 %v6297, 4294901760
      %6529 = vmatpush.msra.mxu0 %v6528
      %v6530 = vand.u32 %v6296, 4294901760
      %6531 = vmatpush.msra.mxu0 %v6530
      %v6532 = vand.u32 %v6295, 4294901760
      %6533 = vmatpush.msra.mxu0 %v6532
      %v6534 = vand.u32 %v6294, 4294901760
      %6535 = vmatpush.msra.mxu0 %v6534
      %v6536 = vand.u32 %v6293, 4294901760
      %6537 = vmatpush.msra.mxu0 %v6536
      %v6538 = vand.u32 %v6292, 4294901760
      %6539 = vmatpush.msra.mxu0 %v6538
      %v6540 = vand.u32 %v6291, 4294901760
      %v6541 = vsub.f32 %v6291, %v6540
      %v6542 = vand.u32 %v6541, 4294901760
      %6543 = vmatmul.f32.gmra.mxu0 %v6542
      %v6544 = vpop.f32.mrf.mxu0
      %v6545 = vadd.f32 %v6506, %v6544
      %6546 = vdwg.mxu0
      %v6547 = vand.u32 %v6307, 4294901760
      %v6548 = vsub.f32 %v6307, %v6547
      %v6549 = vand.u32 %v6548, 4294901760
      %6550 = vmatpush.msra.mxu0 %v6549
      %v6551 = vand.u32 %v6306, 4294901760
      %v6552 = vsub.f32 %v6306, %v6551
      %v6553 = vand.u32 %v6552, 4294901760
      %6554 = vmatpush.msra.mxu0 %v6553
      %v6555 = vand.u32 %v6305, 4294901760
      %v6556 = vsub.f32 %v6305, %v6555
      %v6557 = vand.u32 %v6556, 4294901760
      %6558 = vmatpush.msra.mxu0 %v6557
      %v6559 = vand.u32 %v6304, 4294901760
      %v6560 = vsub.f32 %v6304, %v6559
      %v6561 = vand.u32 %v6560, 4294901760
      %6562 = vmatpush.msra.mxu0 %v6561
      %v6563 = vand.u32 %v6303, 4294901760
      %v6564 = vsub.f32 %v6303, %v6563
      %v6565 = vand.u32 %v6564, 4294901760
      %6566 = vmatpush.msra.mxu0 %v6565
      %v6567 = vand.u32 %v6302, 4294901760
      %v6568 = vsub.f32 %v6302, %v6567
      %v6569 = vand.u32 %v6568, 4294901760
      %6570 = vmatpush.msra.mxu0 %v6569
      %v6571 = vand.u32 %v6301, 4294901760
      %v6572 = vsub.f32 %v6301, %v6571
      %v6573 = vand.u32 %v6572, 4294901760
      %6574 = vmatpush.msra.mxu0 %v6573
      %v6575 = vand.u32 %v6300, 4294901760
      %v6576 = vsub.f32 %v6300, %v6575
      %v6577 = vand.u32 %v6576, 4294901760
      %6578 = vmatpush.msra.mxu0 %v6577
      %v6579 = vand.u32 %v6299, 4294901760
      %v6580 = vsub.f32 %v6299, %v6579
      %v6581 = vand.u32 %v6580, 4294901760
      %6582 = vmatpush.msra.mxu0 %v6581
      %v6583 = vand.u32 %v6298, 4294901760
      %v6584 = vsub.f32 %v6298, %v6583
      %v6585 = vand.u32 %v6584, 4294901760
      %6586 = vmatpush.msra.mxu0 %v6585
      %v6587 = vand.u32 %v6297, 4294901760
      %v6588 = vsub.f32 %v6297, %v6587
      %v6589 = vand.u32 %v6588, 4294901760
      %6590 = vmatpush.msra.mxu0 %v6589
      %v6591 = vand.u32 %v6296, 4294901760
      %v6592 = vsub.f32 %v6296, %v6591
      %v6593 = vand.u32 %v6592, 4294901760
      %6594 = vmatpush.msra.mxu0 %v6593
      %v6595 = vand.u32 %v6295, 4294901760
      %v6596 = vsub.f32 %v6295, %v6595
      %v6597 = vand.u32 %v6596, 4294901760
      %6598 = vmatpush.msra.mxu0 %v6597
      %v6599 = vand.u32 %v6294, 4294901760
      %v6600 = vsub.f32 %v6294, %v6599
      %v6601 = vand.u32 %v6600, 4294901760
      %6602 = vmatpush.msra.mxu0 %v6601
      %v6603 = vand.u32 %v6293, 4294901760
      %v6604 = vsub.f32 %v6293, %v6603
      %v6605 = vand.u32 %v6604, 4294901760
      %6606 = vmatpush.msra.mxu0 %v6605
      %v6607 = vand.u32 %v6292, 4294901760
      %v6608 = vsub.f32 %v6292, %v6607
      %v6609 = vand.u32 %v6608, 4294901760
      %6610 = vmatpush.msra.mxu0 %v6609
      %v6611 = vand.u32 %v6291, 4294901760
      %6612 = vmatmul.f32.gmra.mxu0 %v6611
      %v6613 = vpop.f32.mrf.mxu0
      %v6614 = vadd.f32 %v6545, %v6613
      %6615 = vdwg.mxu0
      %v6616 = vand.u32 %v6307, 4294901760
      %6617 = vmatpush.msra.mxu0 %v6616
      %v6618 = vand.u32 %v6306, 4294901760
      %6619 = vmatpush.msra.mxu0 %v6618
      %v6620 = vand.u32 %v6305, 4294901760
      %6621 = vmatpush.msra.mxu0 %v6620
      %v6622 = vand.u32 %v6304, 4294901760
      %6623 = vmatpush.msra.mxu0 %v6622
      %v6624 = vand.u32 %v6303, 4294901760
      %6625 = vmatpush.msra.mxu0 %v6624
      %v6626 = vand.u32 %v6302, 4294901760
      %6627 = vmatpush.msra.mxu0 %v6626
      %v6628 = vand.u32 %v6301, 4294901760
      %6629 = vmatpush.msra.mxu0 %v6628
      %v6630 = vand.u32 %v6300, 4294901760
      %6631 = vmatpush.msra.mxu0 %v6630
      %v6632 = vand.u32 %v6299, 4294901760
      %6633 = vmatpush.msra.mxu0 %v6632
      %v6634 = vand.u32 %v6298, 4294901760
      %6635 = vmatpush.msra.mxu0 %v6634
      %v6636 = vand.u32 %v6297, 4294901760
      %6637 = vmatpush.msra.mxu0 %v6636
      %v6638 = vand.u32 %v6296, 4294901760
      %6639 = vmatpush.msra.mxu0 %v6638
      %v6640 = vand.u32 %v6295, 4294901760
      %6641 = vmatpush.msra.mxu0 %v6640
      %v6642 = vand.u32 %v6294, 4294901760
      %6643 = vmatpush.msra.mxu0 %v6642
      %v6644 = vand.u32 %v6293, 4294901760
      %6645 = vmatpush.msra.mxu0 %v6644
      %v6646 = vand.u32 %v6292, 4294901760
      %6647 = vmatpush.msra.mxu0 %v6646
      %v6648 = vand.u32 %v6291, 4294901760
      %6649 = vmatmul.f32.gmra.mxu0 %v6648
      %v6650 = vpop.f32.mrf.mxu0
      %v6651 = vadd.f32 %v6614, %v6650
      %6652 = vdwg.mxu0
      %6653 = vst [vmem:[%s276] sm:$0xf] %v6651
      %p6654 = scmp.lt.s32.totalorder %s18, 1
      %s6655 = scalar_select %p6654, %s18, 1
      %s6656 = smul.addr %s6655, 4
      %s6657 = scalar_lea.vmem %s7, %s6656
      // Predicated region
      $region49: #{turtle_diff_conv_pool.1} parent=47 // pred_check
        %p6658 = pneg %p188
      $region50: #{turtle_diff_conv_pool.1} parent=47 // pred_check_branch
        %6660 = sbr.rel (%p6658) target = $region52
      $region51: #{turtle_diff_conv_pool.1} parent=47 // pred_region
        _
      $region52: #{turtle_diff_conv_pool.1} parent=47 // pred_fallthru
        _
    $region48: #{turtle_diff_conv_pool.1} parent=5 // pred_fallthru
      _
    %p6661 = scmp.le.s32.totalorder 2, %s13
    // Predicated region
    $region53: #{turtle_diff_conv_pool.1} parent=5 // pred_check
      %p6662 = pneg %p6661
    $region54: #{turtle_diff_conv_pool.1} parent=5 // pred_check_branch
      %6664 = sbr.rel (%p6662) target = $region56
    $region55: #{turtle_diff_conv_pool.1} parent=5 // pred_region
      %s6665 = ssub.s32 %s13, 2
      // Predicated region
      $region57: #{turtle_diff_conv_pool.1} parent=55 // pred_check
        %p6666 = pneg %p194
      $region58: #{turtle_diff_conv_pool.1} parent=55 // pred_check_branch
        %6668 = sbr.rel (%p6666) target = $region60
      $region59: #{turtle_diff_conv_pool.1} parent=55 // pred_region
        %p6669 = scmp.lt.s32.totalorder %s19, 1
        %s6670 = scalar_select %p6669, %s19, 1
        %s6671 = smul.addr %s6670, 4
        %s6672 = scalar_lea.vmem %s7, %s6671
      $region60: #{turtle_diff_conv_pool.1} parent=55 // pred_fallthru
        _
    $region56: #{turtle_diff_conv_pool.1} parent=5 // pred_fallthru
      _
  $region6: #{turtle_diff_conv_pool.1} parent=0 // loop_footer
    %s17 = sadd.s32 1, %s13
  $region7: #{turtle_diff_conv_pool.1} parent=0 // loop_footer_branch
    %12 = sbr.rel target = $region3
  $region8: #{turtle_diff_conv_pool.1} parent=0 // loop_exit
    _

</llo_original>
